<compile_context>
chip_gen: v7x
topology: tpu7x:2x2x1
jax: 0.10.0
libtpu: 0.0.40
codegen_flags: <defaults>
</compile_context>

<pallas_src>
import jax
import jax.numpy as jnp
from jax import lax
from jax.experimental import pallas as pl
from jax.experimental.pallas import tpu as pltpu

# constants fixed by the PyTorch module
LRN_SIZE = 5
LRN_ALPHA = 1e-4
LRN_BETA = 0.75          # applied as d**0.75 via sqrt/rsqrt
LRN_K = 1.0
SUB_CONST = 1.7321

KH = KW = 7
LANE = 128


def _round_up(x, m):
    return (x + m - 1) // m * m


# --------------------------------------------------------------------------
# kernel 1: conv1 (7x7, stride 1, pad 3) as a single lane-dense im2col matmul
# --------------------------------------------------------------------------
def conv1_matmul_kernel(p_ref, w_ref, b_ref, o_ref):
    # p_ref: (BM, K) bf16   im2col rows (one per conv1 output pixel, in
    #        even/odd (row, col) de-interleaved order)
    # w_ref: (K, C1p) bf16  b_ref: (1, C1p) f32   o_ref: (BM, C1p) f32
    o_ref[...] = (jnp.dot(p_ref[...], w_ref[...],
                          preferred_element_type=jnp.float32) + b_ref[...])


# --------------------------------------------------------------------------
# kernel 2: fused maxpool(3,2,1) + sub + relu + conv2(1x1) + LRN(size=5)
# --------------------------------------------------------------------------
def pool_conv2_lrn_kernel(x1s_ref, w2_ref, b2_ref, o_ref):
    # x1s_ref: (4, Ho, Wo, C1p) f32, de-interleaved conv1 output:
    #   slab 0: x1[2i  , 2j  ]   slab 1: x1[2i  , 2j+1]
    #   slab 2: x1[2i+1, 2j  ]   slab 3: x1[2i+1, 2j+1]
    # w2_ref: (C1p, C2) bf16   b2_ref: (1, C2) f32   o_ref: (Ho*Wo, C2) f32
    _, Ho, Wo, C1p = x1s_ref.shape
    C2 = o_ref.shape[-1]
    neg_inf = jnp.float32(-jnp.inf)

    def shift_row(x):          # x[i-1, :, :]   (-inf fill at i == 0)
        pad = jnp.full((1, Wo, C1p), neg_inf, x.dtype)
        return jnp.concatenate([pad, x[:-1]], axis=0)

    # vertical max over rows {2i-1, 2i, 2i+1}, separately per column parity
    o0 = x1s_ref[2]
    even_cols = jnp.maximum(jnp.maximum(x1s_ref[0], o0), shift_row(o0))  # col 2j
    o1 = x1s_ref[3]
    odd_cols = jnp.maximum(jnp.maximum(x1s_ref[1], o1), shift_row(o1))   # col 2j+1

    # horizontal max over columns {2j-1, 2j, 2j+1}; column 2j-1 is the odd
    # column array shifted by one in j (sublane roll, -inf mask at j == 0)
    col_id = lax.broadcasted_iota(jnp.int32, (Ho, Wo, C1p), 1)
    odd_cols_left = jnp.where(col_id == 0, neg_inf,
                              pltpu.roll(odd_cols, shift=1, axis=1))
    pooled = jnp.maximum(jnp.maximum(even_cols, odd_cols), odd_cols_left)

    # subtract + relu, then 1x1 conv as one MXU matmul (bf16 in, f32 acc)
    x4 = jnp.maximum(pooled - SUB_CONST, 0.0)
    x4 = x4.reshape(Ho * Wo, C1p).astype(jnp.bfloat16)
    x5 = (jnp.dot(x4, w2_ref[...], preferred_element_type=jnp.float32)
          + b2_ref[...])

    # LRN(size=5): 5-tap sliding sum of squares along the channel (lane) axis
    # via static lane rolls + boundary masks (no dense 512x512 band matmul).
    sq = x5 * x5
    cid = lax.broadcasted_iota(jnp.int32, (Ho * Wo, C2), 1)
    win = sq
    win = win + jnp.where(cid >= 1, pltpu.roll(sq, shift=1, axis=1), 0.0)
    win = win + jnp.where(cid >= 2, pltpu.roll(sq, shift=2, axis=1), 0.0)
    win = win + jnp.where(cid < C2 - 1, pltpu.roll(sq, shift=C2 - 1, axis=1), 0.0)
    win = win + jnp.where(cid < C2 - 2, pltpu.roll(sq, shift=C2 - 2, axis=1), 0.0)

    d = LRN_K + (LRN_ALPHA / LRN_SIZE) * win
    r = lax.rsqrt(d)                       # d^-0.5
    o_ref[...] = x5 * (r * jnp.sqrt(r))    # x5 * d^-0.75  (EUP only, no divide)


# --------------------------------------------------------------------------
# wrapper
# --------------------------------------------------------------------------
@jax.jit
def model_forward(x_nchw, w1, b1, w2, b2):
    N, Cin, H, W = x_nchw.shape
    C1 = w1.shape[0]
    C2 = w2.shape[0]
    assert N == 1, "kernel assumes batch 1 (as in the reference module input)"
    assert H % 2 == 0 and W % 2 == 0, "pool de-interleave assumes even H, W"
    Ho, Wo = H // 2, W // 2

    Cin_p = _round_up(Cin, LANE)      # 91  -> 128 (lane-dense im2col taps)
    C1_p = _round_up(C1, LANE)        # 225 -> 256 (lane-dense conv1 out / conv2 K)
    K = KH * KW * Cin_p               # 49 * 128 = 6272

    # ---- conv1 operands: channels-last padded input + im2col patches ----
    x_hwc = jnp.transpose(x_nchw[0], (1, 2, 0))                     # (H, W, Cin)
    x_pad = jnp.pad(x_hwc, ((3, 3), (3, 3), (0, Cin_p - Cin)))      # (H+6, W+6, Cin_p)

    taps = [x_pad[kh:kh + H, kw:kw + W, :]
            for kh in range(KH) for kw in range(KW)]
    patches = jnp.stack(taps, axis=2)                               # (H, W, 49, Cin_p)
    # de-interleave rows/cols by parity: row order = (a, b, i, j) so the
    # stride-2 pool in kernel 2 becomes plain (unstrided) slab maxes.
    patches = patches.reshape(Ho, 2, Wo, 2, KH * KW, Cin_p)
    patches = jnp.transpose(patches, (1, 3, 0, 2, 4, 5))
    im2col = patches.reshape(4 * Ho * Wo, K).astype(jnp.bfloat16)

    w1_mat = jnp.transpose(w1, (2, 3, 1, 0))                        # (7,7,Cin,C1)
    w1_mat = jnp.pad(w1_mat, ((0, 0), (0, 0),
                              (0, Cin_p - Cin), (0, C1_p - C1)))
    w1_mat = w1_mat.reshape(K, C1_p).astype(jnp.bfloat16)
    b1_p = jnp.pad(b1, (0, C1_p - C1)).reshape(1, C1_p).astype(jnp.float32)

    M = 4 * Ho * Wo
    BM = M // 2 if (M % 2 == 0 and (M // 2) % 8 == 0) else M        # 2 row blocks

    x1s = pl.pallas_call(
        conv1_matmul_kernel,
        out_shape=jax.ShapeDtypeStruct((M, C1_p), jnp.float32),
        grid=(M // BM,),
        in_specs=[
            pl.BlockSpec((BM, K), lambda i: (i, 0)),
            pl.BlockSpec((K, C1_p), lambda i: (0, 0)),
            pl.BlockSpec((1, C1_p), lambda i: (0, 0)),
        ],
        out_specs=pl.BlockSpec((BM, C1_p), lambda i: (i, 0)),
        compiler_params=pltpu.CompilerParams(
            dimension_semantics=("parallel",),      # megacore sharding on v7x
            vmem_limit_bytes=32 * 1024 * 1024),
    )(im2col, w1_mat, b1_p)

    x1s = x1s.reshape(4, Ho, Wo, C1_p)              # pure metadata reshape

    # ---- conv2 (1x1) operands ----
    w2_mat = jnp.transpose(w2[:, :, 0, 0], (1, 0))                  # (C1, C2)
    w2_mat = jnp.pad(w2_mat, ((0, C1_p - C1), (0, 0))).astype(jnp.bfloat16)
    b2_p = b2.reshape(1, C2).astype(jnp.float32)

    out = pl.pallas_call(
        pool_conv2_lrn_kernel,
        out_shape=jax.ShapeDtypeStruct((Ho * Wo, C2), jnp.float32),
        in_specs=[pl.BlockSpec(memory_space=pltpu.MemorySpace.VMEM)] * 3,
        out_specs=pl.BlockSpec(memory_space=pltpu.MemorySpace.VMEM),
    )(x1s, w2_mat, b2_p)

    return jnp.transpose(out.reshape(Ho, Wo, C2), (2, 0, 1))[None]  # NCHW


# --------------------------------------------------------------------------
# pure-JAX reference (independent formulation) for the sanity check
# --------------------------------------------------------------------------
def model_reference(x, w1, b1, w2, b2):
    y = jax.lax.conv_general_dilated(
        x, w1, window_strides=(1, 1), padding=((3, 3), (3, 3)),
        dimension_numbers=('NCHW', 'OIHW', 'NCHW'))
    y = y + b1[None, :, None, None]
    y = jax.lax.reduce_window(y, -jnp.inf, jax.lax.max,
                              (1, 1, 3, 3), (1, 1, 2, 2),
                              ((0, 0), (0, 0), (1, 1), (1, 1)))
    y = jnp.maximum(y - SUB_CONST, 0.0)
    z = jax.lax.conv_general_dilated(
        y, w2, window_strides=(1, 1), padding=((0, 0), (0, 0)),
        dimension_numbers=('NCHW', 'OIHW', 'NCHW'))
    z = z + b2[None, :, None, None]
    C = z.shape[1]
    sq = jnp.pad(z * z, ((0, 0), (LRN_SIZE // 2, LRN_SIZE // 2), (0, 0), (0, 0)))
    win = sum(sq[:, i:i + C] for i in range(LRN_SIZE))
    return z / (LRN_K + (LRN_ALPHA / LRN_SIZE) * win) ** LRN_BETA


if __name__ == "__main__":
    key = jax.random.PRNGKey(0)
    k_x, k_w1, k_b1, k_w2, k_b2 = jax.random.split(key, 5)

    Cin, C1, C2 = 91, 225, 512         # channel dims fixed by the module
    H = W = 16                         # small (even) spatial size for the test

    # deterministic synthetic params, PyTorch-Conv2d-style uniform init
    fan1 = Cin * 7 * 7
    fan2 = C1 * 1 * 1
    bnd1 = 1.0 / (fan1 ** 0.5)
    bnd2 = 1.0 / (fan2 ** 0.5)

    x = jax.random.normal(k_x, (1, Cin, H, W), jnp.float32)
    w1 = jax.random.uniform(k_w1, (C1, Cin, 7, 7), jnp.float32, -bnd1, bnd1)
    b1 = jax.random.uniform(k_b1, (C1,), jnp.float32, -bnd1, bnd1)
    w2 = jax.random.uniform(k_w2, (C2, C1, 1, 1), jnp.float32, -bnd2, bnd2)
    b2 = jax.random.uniform(k_b2, (C2,), jnp.float32, -bnd2, bnd2)

    out = jax.block_until_ready(model_forward(x, w1, b1, w2, b2))
    ref = model_reference(x, w1, b1, w2, b2)

    assert out.shape == (1, C2, H // 2, W // 2)
    assert bool(jnp.all(jnp.isfinite(out)))
    assert bool(jnp.allclose(out, ref, rtol=2e-2, atol=2e-2)), \
        float(jnp.max(jnp.abs(out - ref)))
    print("KERNEL_OK")
</pallas_src>

<mosaic_0001>
module attributes {stable_mosaic.version = 11 : i64} {
  func.func @conv1_matmul_kernel(%arg0: i32, %arg1: memref<128x6272xbf16, #tpu.memory_space<vmem>>, %arg2: memref<6272x256xbf16, #tpu.memory_space<vmem>>, %arg3: memref<1x256xf32, #tpu.memory_space<vmem>>, %arg4: memref<128x256xf32, #tpu.memory_space<vmem>>) attributes {dimension_semantics = [#tpu.dimension_semantics<parallel>], iteration_bounds = array<i64: 2>, scalar_prefetch = 0 : i64, scratch_operands = 0 : i64, tpu.core_type = #tpu.core_type<tc>, window_params = [{transform_indices = @transform_0, window_bounds = array<i64: 128, 6272>}, {pipeline_mode = #tpu.pipeline_mode<synchronous>, transform_indices = @transform_1, window_bounds = array<i64: 6272, 256>}, {pipeline_mode = #tpu.pipeline_mode<synchronous>, transform_indices = @transform_2, window_bounds = array<i64: 1, 256>}, {transform_indices = @transform_3, window_bounds = array<i64: 128, 256>}]} {
    %c0 = arith.constant 0 : index
    %c0_0 = arith.constant 0 : index
    %0 = vector.load %arg1[%c0, %c0_0] : memref<128x6272xbf16, #tpu.memory_space<vmem>>, vector<128x6272xbf16>
    %c0_1 = arith.constant 0 : index
    %c0_2 = arith.constant 0 : index
    %1 = vector.load %arg2[%c0_1, %c0_2] : memref<6272x256xbf16, #tpu.memory_space<vmem>>, vector<6272x256xbf16>
    %cst = arith.constant dense<0.000000e+00> : vector<128x256xf32>
    %2 = tpu.matmul %0, %1, %cst {dimension_numbers = #tpu.dot_dimension_numbers<[1], [0], [0], [1], [0, 0, 1, 1], [], []>} : vector<128x6272xbf16>, vector<6272x256xbf16>, vector<128x256xf32> -> vector<128x256xf32>
    %c0_3 = arith.constant 0 : index
    %c0_4 = arith.constant 0 : index
    %3 = vector.load %arg3[%c0_3, %c0_4] : memref<1x256xf32, #tpu.memory_space<vmem>>, vector<1x256xf32>
    %4 = vector.broadcast %3 : vector<1x256xf32> to vector<128x256xf32>
    %5 = arith.addf %2, %4 : vector<128x256xf32>
    %c0_5 = arith.constant 0 : index
    %c0_6 = arith.constant 0 : index
    %6 = vector.load %arg4[%c0_5, %c0_6] : memref<128x256xf32, #tpu.memory_space<vmem>>, vector<128x256xf32>
    tpu.vector_store %arg4[%c0_5, %c0_6], %5 {strides = array<i32>} : memref<128x256xf32, #tpu.memory_space<vmem>>, vector<128x256xf32>,
    return
  }
  func.func @transform_0(%arg0: i32) -> (i32, i32) {
    %c0_i32 = arith.constant 0 : i32
    %c0_i32_0 = arith.constant 0 : i32
    return %arg0, %c0_i32 : i32, i32
  }
  func.func @transform_1(%arg0: i32) -> (i32, i32) {
    %c0_i32 = arith.constant 0 : i32
    %c0_i32_0 = arith.constant 0 : i32
    %c0_i32_1 = arith.constant 0 : i32
    return %c0_i32, %c0_i32_0 : i32, i32
  }
  func.func @transform_2(%arg0: i32) -> (i32, i32) {
    %c0_i32 = arith.constant 0 : i32
    %c0_i32_0 = arith.constant 0 : i32
    %c0_i32_1 = arith.constant 0 : i32
    return %c0_i32, %c0_i32_0 : i32, i32
  }
  func.func @transform_3(%arg0: i32) -> (i32, i32) {
    %c0_i32 = arith.constant 0 : i32
    %c0_i32_0 = arith.constant 0 : i32
    return %arg0, %c0_i32 : i32, i32
  }
}

module attributes {stable_mosaic.version = 11 : i64} {
  func.func @pool_conv2_lrn_kernel(%arg0: memref<4x8x8x256xf32, #tpu.memory_space<vmem>>, %arg1: memref<256x512xbf16, #tpu.memory_space<vmem>>, %arg2: memref<1x512xf32, #tpu.memory_space<vmem>>, %arg3: memref<64x512xf32, #tpu.memory_space<vmem>>) attributes {dimension_semantics = [], scalar_prefetch = 0 : i64, scratch_operands = 0 : i64, tpu.core_type = #tpu.core_type<tc>} {
    %c2 = arith.constant 2 : index
    %c0 = arith.constant 0 : index
    %c0_0 = arith.constant 0 : index
    %c0_1 = arith.constant 0 : index
    %0 = vector.load %arg0[%c2, %c0, %c0_0, %c0_1] : memref<4x8x8x256xf32, #tpu.memory_space<vmem>>, vector<1x8x8x256xf32>
    %1 = vector.shape_cast %0 : vector<1x8x8x256xf32> to vector<8x8x256xf32>
    %c0_2 = arith.constant 0 : index
    %c0_3 = arith.constant 0 : index
    %c0_4 = arith.constant 0 : index
    %c0_5 = arith.constant 0 : index
    %2 = vector.load %arg0[%c0_2, %c0_3, %c0_4, %c0_5] : memref<4x8x8x256xf32, #tpu.memory_space<vmem>>, vector<1x8x8x256xf32>
    %3 = vector.shape_cast %2 : vector<1x8x8x256xf32> to vector<8x8x256xf32>
    %4 = arith.maximumf %3, %1 : vector<8x8x256xf32>
    %cst = arith.constant 0xFF800000 : f32
    %5 = vector.broadcast %cst : f32 to vector<1x8x256xf32>
    %6 = vector.extract_strided_slice %1 {offsets = [0, 0, 0], sizes = [7, 8, 256], strides = [1, 1, 1]} : vector<8x8x256xf32> to vector<7x8x256xf32>
    %7 = tpu.concatenate %5, %6 in 0 : vector<1x8x256xf32>, vector<7x8x256xf32> -> vector<8x8x256xf32>
    %8 = arith.maximumf %4, %7 : vector<8x8x256xf32>
    %c3 = arith.constant 3 : index
    %c0_6 = arith.constant 0 : index
    %c0_7 = arith.constant 0 : index
    %c0_8 = arith.constant 0 : index
    %9 = vector.load %arg0[%c3, %c0_6, %c0_7, %c0_8] : memref<4x8x8x256xf32, #tpu.memory_space<vmem>>, vector<1x8x8x256xf32>
    %10 = vector.shape_cast %9 : vector<1x8x8x256xf32> to vector<8x8x256xf32>
    %c1 = arith.constant 1 : index
    %c0_9 = arith.constant 0 : index
    %c0_10 = arith.constant 0 : index
    %c0_11 = arith.constant 0 : index
    %11 = vector.load %arg0[%c1, %c0_9, %c0_10, %c0_11] : memref<4x8x8x256xf32, #tpu.memory_space<vmem>>, vector<1x8x8x256xf32>
    %12 = vector.shape_cast %11 : vector<1x8x8x256xf32> to vector<8x8x256xf32>
    %13 = arith.maximumf %12, %10 : vector<8x8x256xf32>
    %cst_12 = arith.constant 0xFF800000 : f32
    %14 = vector.broadcast %cst_12 : f32 to vector<1x8x256xf32>
    %15 = vector.extract_strided_slice %10 {offsets = [0, 0, 0], sizes = [7, 8, 256], strides = [1, 1, 1]} : vector<8x8x256xf32> to vector<7x8x256xf32>
    %16 = tpu.concatenate %14, %15 in 0 : vector<1x8x256xf32>, vector<7x8x256xf32> -> vector<8x8x256xf32>
    %17 = arith.maximumf %13, %16 : vector<8x8x256xf32>
    %18 = tpu.iota {dimensions = array<i32: 1>} : vector<8x8x256xi32>
    %c0_i32 = arith.constant 0 : i32
    %19 = vector.broadcast %c0_i32 : i32 to vector<8x8x256xi32>
    %20 = arith.cmpi eq, %18, %19 : vector<8x8x256xi32>
    %c1_i32 = arith.constant 1 : i32
    %21 = tpu.dynamic_rotate %17 by %c1_i32 dim 1 : vector<8x8x256xf32>, i32 -> vector<8x8x256xf32>
    %cst_13 = arith.constant 0xFF800000 : f32
    %22 = vector.broadcast %cst_13 : f32 to vector<8x8x256xf32>
    %23 = arith.select %20, %22, %21 : vector<8x8x256xi1>, vector<8x8x256xf32>
    %24 = arith.maximumf %8, %17 : vector<8x8x256xf32>
    %25 = arith.maximumf %24, %23 : vector<8x8x256xf32>
    %cst_14 = arith.constant 1.732100e+00 : f32
    %26 = vector.broadcast %cst_14 : f32 to vector<8x8x256xf32>
    %27 = arith.subf %25, %26 : vector<8x8x256xf32>
    %cst_15 = arith.constant 0.000000e+00 : f32
    %28 = vector.broadcast %cst_15 : f32 to vector<8x8x256xf32>
    %29 = arith.maximumf %27, %28 : vector<8x8x256xf32>
    %30 = vector.shape_cast %29 : vector<8x8x256xf32> to vector<64x256xf32>
    %31 = arith.truncf %30 : vector<64x256xf32> to vector<64x256xbf16>
    %c0_16 = arith.constant 0 : index
    %c0_17 = arith.constant 0 : index
    %32 = vector.load %arg1[%c0_16, %c0_17] : memref<256x512xbf16, #tpu.memory_space<vmem>>, vector<256x512xbf16>
    %cst_18 = arith.constant dense<0.000000e+00> : vector<64x512xf32>
    %33 = tpu.matmul %31, %32, %cst_18 {dimension_numbers = #tpu.dot_dimension_numbers<[1], [0], [0], [1], [0, 0, 1, 1], [], []>} : vector<64x256xbf16>, vector<256x512xbf16>, vector<64x512xf32> -> vector<64x512xf32>
    %c0_19 = arith.constant 0 : index
    %c0_20 = arith.constant 0 : index
    %34 = vector.load %arg2[%c0_19, %c0_20] : memref<1x512xf32, #tpu.memory_space<vmem>>, vector<1x512xf32>
    %35 = vector.broadcast %34 : vector<1x512xf32> to vector<64x512xf32>
    %36 = arith.addf %33, %35 : vector<64x512xf32>
    %37 = arith.mulf %36, %36 : vector<64x512xf32>
    %38 = tpu.iota {dimensions = array<i32: 1>} : vector<64x512xi32>
    %c1_i32_21 = arith.constant 1 : i32
    %39 = vector.broadcast %c1_i32_21 : i32 to vector<64x512xi32>
    %40 = arith.cmpi sge, %38, %39 : vector<64x512xi32>
    %c1_i32_22 = arith.constant 1 : i32
    %41 = tpu.dynamic_rotate %37 by %c1_i32_22 dim 1 : vector<64x512xf32>, i32 -> vector<64x512xf32>
    %cst_23 = arith.constant 0.000000e+00 : f32
    %42 = vector.broadcast %cst_23 : f32 to vector<64x512xf32>
    %43 = arith.select %40, %41, %42 : vector<64x512xi1>, vector<64x512xf32>
    %44 = arith.addf %37, %43 : vector<64x512xf32>
    %c2_i32 = arith.constant 2 : i32
    %45 = vector.broadcast %c2_i32 : i32 to vector<64x512xi32>
    %46 = arith.cmpi sge, %38, %45 : vector<64x512xi32>
    %c2_i32_24 = arith.constant 2 : i32
    %47 = tpu.dynamic_rotate %37 by %c2_i32_24 dim 1 : vector<64x512xf32>, i32 -> vector<64x512xf32>
    %cst_25 = arith.constant 0.000000e+00 : f32
    %48 = vector.broadcast %cst_25 : f32 to vector<64x512xf32>
    %49 = arith.select %46, %47, %48 : vector<64x512xi1>, vector<64x512xf32>
    %50 = arith.addf %44, %49 : vector<64x512xf32>
    %c511_i32 = arith.constant 511 : i32
    %51 = vector.broadcast %c511_i32 : i32 to vector<64x512xi32>
    %52 = arith.cmpi slt, %38, %51 : vector<64x512xi32>
    %c511_i32_26 = arith.constant 511 : i32
    %53 = tpu.dynamic_rotate %37 by %c511_i32_26 dim 1 : vector<64x512xf32>, i32 -> vector<64x512xf32>
    %cst_27 = arith.constant 0.000000e+00 : f32
    %54 = vector.broadcast %cst_27 : f32 to vector<64x512xf32>
    %55 = arith.select %52, %53, %54 : vector<64x512xi1>, vector<64x512xf32>
    %56 = arith.addf %50, %55 : vector<64x512xf32>
    %c510_i32 = arith.constant 510 : i32
    %57 = vector.broadcast %c510_i32 : i32 to vector<64x512xi32>
    %58 = arith.cmpi slt, %38, %57 : vector<64x512xi32>
    %c510_i32_28 = arith.constant 510 : i32
    %59 = tpu.dynamic_rotate %37 by %c510_i32_28 dim 1 : vector<64x512xf32>, i32 -> vector<64x512xf32>
    %cst_29 = arith.constant 0.000000e+00 : f32
    %60 = vector.broadcast %cst_29 : f32 to vector<64x512xf32>
    %61 = arith.select %58, %59, %60 : vector<64x512xi1>, vector<64x512xf32>
    %62 = arith.addf %56, %61 : vector<64x512xf32>
    %cst_30 = arith.constant 2.000000e-05 : f32
    %63 = vector.broadcast %cst_30 : f32 to vector<64x512xf32>
    %64 = arith.mulf %63, %62 : vector<64x512xf32>
    %cst_31 = arith.constant 1.000000e+00 : f32
    %65 = vector.broadcast %cst_31 : f32 to vector<64x512xf32>
    %66 = arith.addf %65, %64 : vector<64x512xf32>
    %67 = math.rsqrt %66 : vector<64x512xf32>
    %68 = math.sqrt %67 : vector<64x512xf32>
    %69 = arith.mulf %67, %68 : vector<64x512xf32>
    %70 = arith.mulf %36, %69 : vector<64x512xf32>
    %c0_32 = arith.constant 0 : index
    %c0_33 = arith.constant 0 : index
    %71 = vector.load %arg3[%c0_32, %c0_33] : memref<64x512xf32, #tpu.memory_space<vmem>>, vector<64x512xf32>
    tpu.vector_store %arg3[%c0_32, %c0_33], %70 {strides = array<i32>} : memref<64x512xf32, #tpu.memory_space<vmem>>, vector<64x512xf32>,
    return
  }
}

</mosaic_0001>

<llo_original>
// kernel: model_forward.3
$region0: #{model_forward.3}
  #allocation0 [shape = 'u32[]', space=smem, size = 0x4, offset = 0x4, fixed_abs, tag = 'smem constant byte address 0x4 - core index']
  #allocation1 [shape = 'u32[144,128]{1,0:T(1,128)}', space=vmem, size = 0x12000, scoped, tag = 'internal scratch']
  %s0 = inlined_call_operand.vmem [shape: f32[4,8,8,256], index: 0, kind: input, shape index: {}]
  %s1 = inlined_call_operand.vmem [shape: bf16[256,512], index: 1, kind: input, shape index: {}]
  %s2 = inlined_call_operand.vmem [shape: f32[1,512], index: 2, kind: input, shape index: {}]
  %s3 = inlined_call_operand.hbm [shape: f32[64,512], index: 3, kind: output, shape index: {}]
  %s4 = sld [smem:[#allocation0]]
  $region22: #{model_forward.3} parent=0
    _
  %s6 = ssub.s32 1, %s4
  %s7 = scalar_select 0, %s6, %s4
  $region1: #{model_forward.3} parent=0
    #allocation2 [shape = 'u8[131072]{0}', space=vmem, size = 0x20000, scoped, tag = 'output window, operand 0, single buffered']
    #allocation3 [shape = 's32[1]{0}', space=sflag, size = 0x4, scoped, tag = 'scoped memory for model_forward.3']
    %8 = vsyncpa [#allocation3], 0
    // Predicated region
    $region2: #{model_forward.3} parent=1 // pred_check
      _
    $region3: #{model_forward.3} parent=1 // pred_check_branch
      %10 = sbr.rel (0) target = $region5
    $region4: #{model_forward.3} parent=1 // pred_region
      _
    $region5: #{model_forward.3} parent=1 // pred_fallthru
      _
    // Predicated region
    $region6: #{model_forward.3} parent=1 // pred_check
      _
    $region7: #{model_forward.3} parent=1 // pred_check_branch
      %12 = sbr.rel (0) target = $region9
    $region8: #{model_forward.3} parent=1 // pred_region
      _
    $region9: #{model_forward.3} parent=1 // pred_fallthru
      _
    // Predicated region
    $region10: #{model_forward.3} parent=1 // pred_check
      _
    $region11: #{model_forward.3} parent=1 // pred_check_branch
      %14 = sbr.rel (0) target = $region13
    $region12: #{model_forward.3} parent=1 // pred_region
      _
    $region13: #{model_forward.3} parent=1 // pred_fallthru
      _
    %s15 = scalar_lea.vmem %s0, 256
    %v16 = vld [vmem:[%s15] sm:$0xff]
    %v17 = vld [vmem:[%s15 + $0x8] sm:$0xff]
    %v18 = vld [vmem:[%s15 + $0x10] sm:$0xff]
    %v19 = vld [vmem:[%s15 + $0x18] sm:$0xff]
    %v20 = vld [vmem:[%s15 + $0x20] sm:$0xff]
    %v21 = vld [vmem:[%s15 + $0x28] sm:$0xff]
    %v22 = vld [vmem:[%s15 + $0x30] sm:$0xff]
    %v23 = vld [vmem:[%s15 + $0x38] sm:$0xff]
    %v24 = vld [vmem:[%s15 + $0x40] sm:$0xff]
    %v25 = vld [vmem:[%s15 + $0x48] sm:$0xff]
    %v26 = vld [vmem:[%s15 + $0x50] sm:$0xff]
    %v27 = vld [vmem:[%s15 + $0x58] sm:$0xff]
    %v28 = vld [vmem:[%s15 + $0x60] sm:$0xff]
    %v29 = vld [vmem:[%s15 + $0x68] sm:$0xff]
    %v30 = vld [vmem:[%s15 + $0x70] sm:$0xff]
    %v31 = vld [vmem:[%s15 + $0x78] sm:$0xff]
    %v32 = vld [vmem:[%s0] sm:$0xff]
    %v33 = vld [vmem:[%s0 + $0x8] sm:$0xff]
    %v34 = vld [vmem:[%s0 + $0x10] sm:$0xff]
    %v35 = vld [vmem:[%s0 + $0x18] sm:$0xff]
    %v36 = vld [vmem:[%s0 + $0x20] sm:$0xff]
    %v37 = vld [vmem:[%s0 + $0x28] sm:$0xff]
    %v38 = vld [vmem:[%s0 + $0x30] sm:$0xff]
    %v39 = vld [vmem:[%s0 + $0x38] sm:$0xff]
    %v40 = vld [vmem:[%s0 + $0x40] sm:$0xff]
    %v41 = vld [vmem:[%s0 + $0x48] sm:$0xff]
    %v42 = vld [vmem:[%s0 + $0x50] sm:$0xff]
    %v43 = vld [vmem:[%s0 + $0x58] sm:$0xff]
    %v44 = vld [vmem:[%s0 + $0x60] sm:$0xff]
    %v45 = vld [vmem:[%s0 + $0x68] sm:$0xff]
    %v46 = vld [vmem:[%s0 + $0x70] sm:$0xff]
    %v47 = vld [vmem:[%s0 + $0x78] sm:$0xff]
    %v48 = vmax.f32 %v32, %v16
    %v49 = vmax.f32 %v33, %v17
    %v50 = vmax.f32 %v34, %v18
    %v51 = vmax.f32 %v35, %v19
    %v52 = vmax.f32 %v36, %v20
    %v53 = vmax.f32 %v37, %v21
    %v54 = vmax.f32 %v38, %v22
    %v55 = vmax.f32 %v39, %v23
    %v56 = vmax.f32 %v40, %v24
    %v57 = vmax.f32 %v41, %v25
    %v58 = vmax.f32 %v42, %v26
    %v59 = vmax.f32 %v43, %v27
    %v60 = vmax.f32 %v44, %v28
    %v61 = vmax.f32 %v45, %v29
    %v62 = vmax.f32 %v46, %v30
    %v63 = vmax.f32 %v47, %v31
    %v64 = vmax.f32 %v50, %v16
    %v65 = vmax.f32 %v51, %v17
    %v66 = vmax.f32 %v52, %v18
    %v67 = vmax.f32 %v53, %v19
    %v68 = vmax.f32 %v54, %v20
    %v69 = vmax.f32 %v55, %v21
    %v70 = vmax.f32 %v56, %v22
    %v71 = vmax.f32 %v57, %v23
    %v72 = vmax.f32 %v58, %v24
    %v73 = vmax.f32 %v59, %v25
    %v74 = vmax.f32 %v60, %v26
    %v75 = vmax.f32 %v61, %v27
    %v76 = vmax.f32 %v62, %v28
    %v77 = vmax.f32 %v63, %v29
    %s78 = scalar_lea.vmem %s0, 384
    %v79 = vld [vmem:[%s78] sm:$0xff]
    %v80 = vld [vmem:[%s78 + $0x8] sm:$0xff]
    %v81 = vld [vmem:[%s78 + $0x10] sm:$0xff]
    %v82 = vld [vmem:[%s78 + $0x18] sm:$0xff]
    %v83 = vld [vmem:[%s78 + $0x20] sm:$0xff]
    %v84 = vld [vmem:[%s78 + $0x28] sm:$0xff]
    %v85 = vld [vmem:[%s78 + $0x30] sm:$0xff]
    %v86 = vld [vmem:[%s78 + $0x38] sm:$0xff]
    %v87 = vld [vmem:[%s78 + $0x40] sm:$0xff]
    %v88 = vld [vmem:[%s78 + $0x48] sm:$0xff]
    %v89 = vld [vmem:[%s78 + $0x50] sm:$0xff]
    %v90 = vld [vmem:[%s78 + $0x58] sm:$0xff]
    %v91 = vld [vmem:[%s78 + $0x60] sm:$0xff]
    %v92 = vld [vmem:[%s78 + $0x68] sm:$0xff]
    %v93 = vld [vmem:[%s78 + $0x70] sm:$0xff]
    %v94 = vld [vmem:[%s78 + $0x78] sm:$0xff]
    %s95 = scalar_lea.vmem %s0, 128
    %v96 = vld [vmem:[%s95] sm:$0xff]
    %v97 = vld [vmem:[%s95 + $0x8] sm:$0xff]
    %v98 = vld [vmem:[%s95 + $0x10] sm:$0xff]
    %v99 = vld [vmem:[%s95 + $0x18] sm:$0xff]
    %v100 = vld [vmem:[%s95 + $0x20] sm:$0xff]
    %v101 = vld [vmem:[%s95 + $0x28] sm:$0xff]
    %v102 = vld [vmem:[%s95 + $0x30] sm:$0xff]
    %v103 = vld [vmem:[%s95 + $0x38] sm:$0xff]
    %v104 = vld [vmem:[%s95 + $0x40] sm:$0xff]
    %v105 = vld [vmem:[%s95 + $0x48] sm:$0xff]
    %v106 = vld [vmem:[%s95 + $0x50] sm:$0xff]
    %v107 = vld [vmem:[%s95 + $0x58] sm:$0xff]
    %v108 = vld [vmem:[%s95 + $0x60] sm:$0xff]
    %v109 = vld [vmem:[%s95 + $0x68] sm:$0xff]
    %v110 = vld [vmem:[%s95 + $0x70] sm:$0xff]
    %v111 = vld [vmem:[%s95 + $0x78] sm:$0xff]
    %v112 = vmax.f32 %v96, %v79
    %v113 = vmax.f32 %v97, %v80
    %v114 = vmax.f32 %v98, %v81
    %v115 = vmax.f32 %v99, %v82
    %v116 = vmax.f32 %v100, %v83
    %v117 = vmax.f32 %v101, %v84
    %v118 = vmax.f32 %v102, %v85
    %v119 = vmax.f32 %v103, %v86
    %v120 = vmax.f32 %v104, %v87
    %v121 = vmax.f32 %v105, %v88
    %v122 = vmax.f32 %v106, %v89
    %v123 = vmax.f32 %v107, %v90
    %v124 = vmax.f32 %v108, %v91
    %v125 = vmax.f32 %v109, %v92
    %v126 = vmax.f32 %v110, %v93
    %v127 = vmax.f32 %v111, %v94
    %v128 = vmax.f32 %v114, %v79
    %v129 = vmax.f32 %v115, %v80
    %v130 = vmax.f32 %v116, %v81
    %v131 = vmax.f32 %v117, %v82
    %v132 = vmax.f32 %v118, %v83
    %v133 = vmax.f32 %v119, %v84
    %v134 = vmax.f32 %v120, %v85
    %v135 = vmax.f32 %v121, %v86
    %v136 = vmax.f32 %v122, %v87
    %v137 = vmax.f32 %v123, %v88
    %v138 = vmax.f32 %v124, %v89
    %v139 = vmax.f32 %v125, %v90
    %v140 = vmax.f32 %v126, %v91
    %v141 = vmax.f32 %v127, %v92
    %v142 = vlaneseq
    %v143 = vshrl.u32 %v142, 7
    %vm144 = vcmp.eq.s32.totalorder %v143, 0
    %v145 = vrot.slane %v112, 7
    %v146 = vrot.slane %v113, 7
    %v147 = vrot.slane %v128, 7
    %v148 = vrot.slane %v129, 7
    %v149 = vrot.slane %v130, 7
    %v150 = vrot.slane %v131, 7
    %v151 = vrot.slane %v132, 7
    %v152 = vrot.slane %v133, 7
    %v153 = vrot.slane %v134, 7
    %v154 = vrot.slane %v135, 7
    %v155 = vrot.slane %v136, 7
    %v156 = vrot.slane %v137, 7
    %v157 = vrot.slane %v138, 7
    %v158 = vrot.slane %v139, 7
    %v159 = vrot.slane %v140, 7
    %v160 = vrot.slane %v141, 7
    %v161 = vsel %vm144, -inf, %v145
    %v162 = vsel %vm144, -inf, %v146
    %v163 = vsel %vm144, -inf, %v147
    %v164 = vsel %vm144, -inf, %v148
    %v165 = vsel %vm144, -inf, %v149
    %v166 = vsel %vm144, -inf, %v150
    %v167 = vsel %vm144, -inf, %v151
    %v168 = vsel %vm144, -inf, %v152
    %v169 = vsel %vm144, -inf, %v153
    %v170 = vsel %vm144, -inf, %v154
    %v171 = vsel %vm144, -inf, %v155
    %v172 = vsel %vm144, -inf, %v156
    %v173 = vsel %vm144, -inf, %v157
    %v174 = vsel %vm144, -inf, %v158
    %v175 = vsel %vm144, -inf, %v159
    %v176 = vsel %vm144, -inf, %v160
    %v177 = vmax.f32 %v48, %v112
    %v178 = vmax.f32 %v49, %v113
    %v179 = vmax.f32 %v64, %v128
    %v180 = vmax.f32 %v65, %v129
    %v181 = vmax.f32 %v66, %v130
    %v182 = vmax.f32 %v67, %v131
    %v183 = vmax.f32 %v68, %v132
    %v184 = vmax.f32 %v69, %v133
    %v185 = vmax.f32 %v70, %v134
    %v186 = vmax.f32 %v71, %v135
    %v187 = vmax.f32 %v72, %v136
    %v188 = vmax.f32 %v73, %v137
    %v189 = vmax.f32 %v74, %v138
    %v190 = vmax.f32 %v75, %v139
    %v191 = vmax.f32 %v76, %v140
    %v192 = vmax.f32 %v77, %v141
    %v193 = vmax.f32 %v177, %v161
    %v194 = vmax.f32 %v178, %v162
    %v195 = vmax.f32 %v179, %v163
    %v196 = vmax.f32 %v180, %v164
    %v197 = vmax.f32 %v181, %v165
    %v198 = vmax.f32 %v182, %v166
    %v199 = vmax.f32 %v183, %v167
    %v200 = vmax.f32 %v184, %v168
    %v201 = vmax.f32 %v185, %v169
    %v202 = vmax.f32 %v186, %v170
    %v203 = vmax.f32 %v187, %v171
    %v204 = vmax.f32 %v188, %v172
    %v205 = vmax.f32 %v189, %v173
    %v206 = vmax.f32 %v190, %v174
    %v207 = vmax.f32 %v191, %v175
    %v208 = vmax.f32 %v192, %v176
    %v209 = vsub.f32 %v193, 1.7321
    %v210 = vsub.f32 %v194, 1.7321
    %v211 = vsub.f32 %v195, 1.7321
    %v212 = vsub.f32 %v196, 1.7321
    %v213 = vsub.f32 %v197, 1.7321
    %v214 = vsub.f32 %v198, 1.7321
    %v215 = vsub.f32 %v199, 1.7321
    %v216 = vsub.f32 %v200, 1.7321
    %v217 = vsub.f32 %v201, 1.7321
    %v218 = vsub.f32 %v202, 1.7321
    %v219 = vsub.f32 %v203, 1.7321
    %v220 = vsub.f32 %v204, 1.7321
    %v221 = vsub.f32 %v205, 1.7321
    %v222 = vsub.f32 %v206, 1.7321
    %v223 = vsub.f32 %v207, 1.7321
    %v224 = vsub.f32 %v208, 1.7321
    %v225 = vmax.f32 %v209, 0.0
    %v226 = vmax.f32 %v210, 0.0
    %v227 = vmax.f32 %v211, 0.0
    %v228 = vmax.f32 %v212, 0.0
    %v229 = vmax.f32 %v213, 0.0
    %v230 = vmax.f32 %v214, 0.0
    %v231 = vmax.f32 %v215, 0.0
    %v232 = vmax.f32 %v216, 0.0
    %v233 = vmax.f32 %v217, 0.0
    %v234 = vmax.f32 %v218, 0.0
    %v235 = vmax.f32 %v219, 0.0
    %v236 = vmax.f32 %v220, 0.0
    %v237 = vmax.f32 %v221, 0.0
    %v238 = vmax.f32 %v222, 0.0
    %v239 = vmax.f32 %v223, 0.0
    %v240 = vmax.f32 %v224, 0.0
    %v241 = vpack.c.bf16 %v227, %v225
    %v242 = vpack.c.bf16 %v228, %v226
    %v243 = vpack.c.bf16 %v231, %v229
    %v244 = vpack.c.bf16 %v232, %v230
    %v245 = vpack.c.bf16 %v235, %v233
    %v246 = vpack.c.bf16 %v236, %v234
    %v247 = vpack.c.bf16 %v239, %v237
    %v248 = vpack.c.bf16 %v240, %v238
    %v249 = vld [vmem:[%s1] sm:$0xff]
    %v250 = vld [vmem:[%s1 + $0x8] sm:$0xff]
    %v251 = vld [vmem:[%s1 + $0x10] sm:$0xff]
    %v252 = vld [vmem:[%s1 + $0x18] sm:$0xff]
    %v253 = vld [vmem:[%s1 + $0x20] sm:$0xff]
    %v254 = vld [vmem:[%s1 + $0x28] sm:$0xff]
    %v255 = vld [vmem:[%s1 + $0x30] sm:$0xff]
    %v256 = vld [vmem:[%s1 + $0x38] sm:$0xff]
    %v257 = vld [vmem:[%s1 + $0x40] sm:$0xff]
    %v258 = vld [vmem:[%s1 + $0x48] sm:$0xff]
    %v259 = vld [vmem:[%s1 + $0x50] sm:$0xff]
    %v260 = vld [vmem:[%s1 + $0x58] sm:$0xff]
    %v261 = vld [vmem:[%s1 + $0x60] sm:$0xff]
    %v262 = vld [vmem:[%s1 + $0x68] sm:$0xff]
    %v263 = vld [vmem:[%s1 + $0x70] sm:$0xff]
    %v264 = vld [vmem:[%s1 + $0x78] sm:$0xff]
    %v265 = vld [vmem:[%s1 + $0x80] sm:$0xff]
    %v266 = vld [vmem:[%s1 + $0x88] sm:$0xff]
    %v267 = vld [vmem:[%s1 + $0x90] sm:$0xff]
    %v268 = vld [vmem:[%s1 + $0x98] sm:$0xff]
    %v269 = vld [vmem:[%s1 + $0xa0] sm:$0xff]
    %v270 = vld [vmem:[%s1 + $0xa8] sm:$0xff]
    %v271 = vld [vmem:[%s1 + $0xb0] sm:$0xff]
    %v272 = vld [vmem:[%s1 + $0xb8] sm:$0xff]
    %v273 = vld [vmem:[%s1 + $0xc0] sm:$0xff]
    %v274 = vld [vmem:[%s1 + $0xc8] sm:$0xff]
    %v275 = vld [vmem:[%s1 + $0xd0] sm:$0xff]
    %v276 = vld [vmem:[%s1 + $0xd8] sm:$0xff]
    %v277 = vld [vmem:[%s1 + $0xe0] sm:$0xff]
    %v278 = vld [vmem:[%s1 + $0xe8] sm:$0xff]
    %v279 = vld [vmem:[%s1 + $0xf0] sm:$0xff]
    %v280 = vld [vmem:[%s1 + $0xf8] sm:$0xff]
    %v281 = vld [vmem:[%s1 + $0x100] sm:$0xff]
    %v282 = vld [vmem:[%s1 + $0x108] sm:$0xff]
    %v283 = vld [vmem:[%s1 + $0x110] sm:$0xff]
    %v284 = vld [vmem:[%s1 + $0x118] sm:$0xff]
    %v285 = vld [vmem:[%s1 + $0x120] sm:$0xff]
    %v286 = vld [vmem:[%s1 + $0x128] sm:$0xff]
    %v287 = vld [vmem:[%s1 + $0x130] sm:$0xff]
    %v288 = vld [vmem:[%s1 + $0x138] sm:$0xff]
    %v289 = vld [vmem:[%s1 + $0x140] sm:$0xff]
    %v290 = vld [vmem:[%s1 + $0x148] sm:$0xff]
    %v291 = vld [vmem:[%s1 + $0x150] sm:$0xff]
    %v292 = vld [vmem:[%s1 + $0x158] sm:$0xff]
    %v293 = vld [vmem:[%s1 + $0x160] sm:$0xff]
    %v294 = vld [vmem:[%s1 + $0x168] sm:$0xff]
    %v295 = vld [vmem:[%s1 + $0x170] sm:$0xff]
    %v296 = vld [vmem:[%s1 + $0x178] sm:$0xff]
    %v297 = vld [vmem:[%s1 + $0x180] sm:$0xff]
    %v298 = vld [vmem:[%s1 + $0x188] sm:$0xff]
    %v299 = vld [vmem:[%s1 + $0x190] sm:$0xff]
    %v300 = vld [vmem:[%s1 + $0x198] sm:$0xff]
    %v301 = vld [vmem:[%s1 + $0x1a0] sm:$0xff]
    %v302 = vld [vmem:[%s1 + $0x1a8] sm:$0xff]
    %v303 = vld [vmem:[%s1 + $0x1b0] sm:$0xff]
    %v304 = vld [vmem:[%s1 + $0x1b8] sm:$0xff]
    %v305 = vld [vmem:[%s1 + $0x1c0] sm:$0xff]
    %v306 = vld [vmem:[%s1 + $0x1c8] sm:$0xff]
    %v307 = vld [vmem:[%s1 + $0x1d0] sm:$0xff]
    %v308 = vld [vmem:[%s1 + $0x1d8] sm:$0xff]
    %v309 = vld [vmem:[%s1 + $0x1e0] sm:$0xff]
    %v310 = vld [vmem:[%s1 + $0x1e8] sm:$0xff]
    %v311 = vld [vmem:[%s1 + $0x1f0] sm:$0xff]
    %v312 = vld [vmem:[%s1 + $0x1f8] sm:$0xff]
    %v313 = vld [vmem:[%s2] sm:$0xf]
    %v315 = vlaneseq
    %v316 = vshrl.u32 %v315, 7
    %v317 = vsub.s32 0, %v316
    %v318 = vrot.slane %v313, %v317
    %v319 = vlaneseq
    %v320 = vshrl.u32 %v319, 7
    %v321 = vsub.s32 1, %v320
    %v322 = vrot.slane %v313, %v321
    %v323 = vlaneseq
    %v324 = vshrl.u32 %v323, 7
    %v325 = vsub.s32 2, %v324
    %v326 = vrot.slane %v313, %v325
    %v327 = vlaneseq
    %v328 = vshrl.u32 %v327, 7
    %v329 = vsub.s32 3, %v328
    %v330 = vrot.slane %v313, %v329
    %v399 = vunpack.c.l.b16 %v249
    %v400 = vunpack.c.h.b16 %v249
    %v401 = vunpack.c.l.b16 %v250
    %v402 = vunpack.c.h.b16 %v250
    %v403 = vunpack.c.l.b16 %v251
    %v404 = vunpack.c.h.b16 %v251
    %v405 = vunpack.c.l.b16 %v252
    %v406 = vunpack.c.h.b16 %v252
    %v407 = vunpack.c.l.b16 %v253
    %v408 = vunpack.c.h.b16 %v253
    %v409 = vunpack.c.l.b16 %v254
    %v410 = vunpack.c.h.b16 %v254
    %v411 = vunpack.c.l.b16 %v255
    %v412 = vunpack.c.h.b16 %v255
    %v413 = vunpack.c.l.b16 %v256
    %v414 = vunpack.c.h.b16 %v256
    %v415 = vunpack.c.l.b16 %v257
    %v416 = vunpack.c.h.b16 %v257
    %v417 = vunpack.c.l.b16 %v258
    %v418 = vunpack.c.h.b16 %v258
    %v419 = vunpack.c.l.b16 %v259
    %v420 = vunpack.c.h.b16 %v259
    %v421 = vunpack.c.l.b16 %v260
    %v422 = vunpack.c.h.b16 %v260
    %v423 = vunpack.c.l.b16 %v261
    %v424 = vunpack.c.h.b16 %v261
    %v425 = vunpack.c.l.b16 %v262
    %v426 = vunpack.c.h.b16 %v262
    %v427 = vunpack.c.l.b16 %v263
    %v428 = vunpack.c.h.b16 %v263
    %v429 = vunpack.c.l.b16 %v264
    %v430 = vunpack.c.h.b16 %v264
    %v431 = vunpack.c.l.b16 %v265
    %v432 = vunpack.c.h.b16 %v265
    %v433 = vunpack.c.l.b16 %v266
    %v434 = vunpack.c.h.b16 %v266
    %v435 = vunpack.c.l.b16 %v267
    %v436 = vunpack.c.h.b16 %v267
    %v437 = vunpack.c.l.b16 %v268
    %v438 = vunpack.c.h.b16 %v268
    %v439 = vunpack.c.l.b16 %v269
    %v440 = vunpack.c.h.b16 %v269
    %v441 = vunpack.c.l.b16 %v270
    %v442 = vunpack.c.h.b16 %v270
    %v443 = vunpack.c.l.b16 %v271
    %v444 = vunpack.c.h.b16 %v271
    %v445 = vunpack.c.l.b16 %v272
    %v446 = vunpack.c.h.b16 %v272
    %v447 = vunpack.c.l.b16 %v273
    %v448 = vunpack.c.h.b16 %v273
    %v449 = vunpack.c.l.b16 %v274
    %v450 = vunpack.c.h.b16 %v274
    %v451 = vunpack.c.l.b16 %v275
    %v452 = vunpack.c.h.b16 %v275
    %v453 = vunpack.c.l.b16 %v276
    %v454 = vunpack.c.h.b16 %v276
    %v455 = vunpack.c.l.b16 %v277
    %v456 = vunpack.c.h.b16 %v277
    %v457 = vunpack.c.l.b16 %v278
    %v458 = vunpack.c.h.b16 %v278
    %v459 = vunpack.c.l.b16 %v279
    %v460 = vunpack.c.h.b16 %v279
    %v461 = vunpack.c.l.b16 %v280
    %v462 = vunpack.c.h.b16 %v280
    %v463 = vunpack.c.l.b16 %v281
    %v464 = vunpack.c.h.b16 %v281
    %v465 = vunpack.c.l.b16 %v282
    %v466 = vunpack.c.h.b16 %v282
    %v467 = vunpack.c.l.b16 %v283
    %v468 = vunpack.c.h.b16 %v283
    %v469 = vunpack.c.l.b16 %v284
    %v470 = vunpack.c.h.b16 %v284
    %v471 = vunpack.c.l.b16 %v285
    %v472 = vunpack.c.h.b16 %v285
    %v473 = vunpack.c.l.b16 %v286
    %v474 = vunpack.c.h.b16 %v286
    %v475 = vunpack.c.l.b16 %v287
    %v476 = vunpack.c.h.b16 %v287
    %v477 = vunpack.c.l.b16 %v288
    %v478 = vunpack.c.h.b16 %v288
    %v479 = vunpack.c.l.b16 %v289
    %v480 = vunpack.c.h.b16 %v289
    %v481 = vunpack.c.l.b16 %v290
    %v482 = vunpack.c.h.b16 %v290
    %v483 = vunpack.c.l.b16 %v291
    %v484 = vunpack.c.h.b16 %v291
    %v485 = vunpack.c.l.b16 %v292
    %v486 = vunpack.c.h.b16 %v292
    %v487 = vunpack.c.l.b16 %v293
    %v488 = vunpack.c.h.b16 %v293
    %v489 = vunpack.c.l.b16 %v294
    %v490 = vunpack.c.h.b16 %v294
    %v491 = vunpack.c.l.b16 %v295
    %v492 = vunpack.c.h.b16 %v295
    %v493 = vunpack.c.l.b16 %v296
    %v494 = vunpack.c.h.b16 %v296
    %v495 = vunpack.c.l.b16 %v297
    %v496 = vunpack.c.h.b16 %v297
    %v497 = vunpack.c.l.b16 %v298
    %v498 = vunpack.c.h.b16 %v298
    %v499 = vunpack.c.l.b16 %v299
    %v500 = vunpack.c.h.b16 %v299
    %v501 = vunpack.c.l.b16 %v300
    %v502 = vunpack.c.h.b16 %v300
    %v503 = vunpack.c.l.b16 %v301
    %v504 = vunpack.c.h.b16 %v301
    %v505 = vunpack.c.l.b16 %v302
    %v506 = vunpack.c.h.b16 %v302
    %v507 = vunpack.c.l.b16 %v303
    %v508 = vunpack.c.h.b16 %v303
    %v509 = vunpack.c.l.b16 %v304
    %v510 = vunpack.c.h.b16 %v304
    %v511 = vunpack.c.l.b16 %v305
    %v512 = vunpack.c.h.b16 %v305
    %v513 = vunpack.c.l.b16 %v306
    %v514 = vunpack.c.h.b16 %v306
    %v515 = vunpack.c.l.b16 %v307
    %v516 = vunpack.c.h.b16 %v307
    %v517 = vunpack.c.l.b16 %v308
    %v518 = vunpack.c.h.b16 %v308
    %v519 = vunpack.c.l.b16 %v309
    %v520 = vunpack.c.h.b16 %v309
    %v521 = vunpack.c.l.b16 %v310
    %v522 = vunpack.c.h.b16 %v310
    %v523 = vunpack.c.l.b16 %v311
    %v524 = vunpack.c.h.b16 %v311
    %v525 = vunpack.c.l.b16 %v312
    %v526 = vunpack.c.h.b16 %v312
    %v527 = vpack.c.b16 %v403, %v399
    %v528 = vpack.c.b16 %v404, %v400
    %v529 = vpack.c.b16 %v405, %v401
    %v530 = vpack.c.b16 %v406, %v402
    %v531 = vpack.c.b16 %v411, %v407
    %v532 = vpack.c.b16 %v412, %v408
    %v533 = vpack.c.b16 %v413, %v409
    %v534 = vpack.c.b16 %v414, %v410
    %v535 = vpack.c.b16 %v419, %v415
    %v536 = vpack.c.b16 %v420, %v416
    %v537 = vpack.c.b16 %v421, %v417
    %v538 = vpack.c.b16 %v422, %v418
    %v539 = vpack.c.b16 %v427, %v423
    %v540 = vpack.c.b16 %v428, %v424
    %v541 = vpack.c.b16 %v429, %v425
    %v542 = vpack.c.b16 %v430, %v426
    %v543 = vpack.c.b16 %v435, %v431
    %v544 = vpack.c.b16 %v436, %v432
    %v545 = vpack.c.b16 %v437, %v433
    %v546 = vpack.c.b16 %v438, %v434
    %v547 = vpack.c.b16 %v443, %v439
    %v548 = vpack.c.b16 %v444, %v440
    %v549 = vpack.c.b16 %v445, %v441
    %v550 = vpack.c.b16 %v446, %v442
    %v551 = vpack.c.b16 %v451, %v447
    %v552 = vpack.c.b16 %v452, %v448
    %v553 = vpack.c.b16 %v453, %v449
    %v554 = vpack.c.b16 %v454, %v450
    %v555 = vpack.c.b16 %v459, %v455
    %v556 = vpack.c.b16 %v460, %v456
    %v557 = vpack.c.b16 %v461, %v457
    %v558 = vpack.c.b16 %v462, %v458
    %v559 = vpack.c.b16 %v467, %v463
    %v560 = vpack.c.b16 %v468, %v464
    %v561 = vpack.c.b16 %v469, %v465
    %v562 = vpack.c.b16 %v470, %v466
    %v563 = vpack.c.b16 %v475, %v471
    %v564 = vpack.c.b16 %v476, %v472
    %v565 = vpack.c.b16 %v477, %v473
    %v566 = vpack.c.b16 %v478, %v474
    %v567 = vpack.c.b16 %v483, %v479
    %v568 = vpack.c.b16 %v484, %v480
    %v569 = vpack.c.b16 %v485, %v481
    %v570 = vpack.c.b16 %v486, %v482
    %v571 = vpack.c.b16 %v491, %v487
    %v572 = vpack.c.b16 %v492, %v488
    %v573 = vpack.c.b16 %v493, %v489
    %v574 = vpack.c.b16 %v494, %v490
    %v575 = vpack.c.b16 %v499, %v495
    %v576 = vpack.c.b16 %v500, %v496
    %v577 = vpack.c.b16 %v501, %v497
    %v578 = vpack.c.b16 %v502, %v498
    %v579 = vpack.c.b16 %v507, %v503
    %v580 = vpack.c.b16 %v508, %v504
    %v581 = vpack.c.b16 %v509, %v505
    %v582 = vpack.c.b16 %v510, %v506
    %v583 = vpack.c.b16 %v515, %v511
    %v584 = vpack.c.b16 %v516, %v512
    %v585 = vpack.c.b16 %v517, %v513
    %v586 = vpack.c.b16 %v518, %v514
    %v587 = vpack.c.b16 %v523, %v519
    %v588 = vpack.c.b16 %v524, %v520
    %v589 = vpack.c.b16 %v525, %v521
    %v590 = vpack.c.b16 %v526, %v522
    %655 = vmatprep.subr.bf16.mxu0 %v528
    %656 = vmatpush1.bf16.msra.mxu0 %v527
    %657 = vmatprep.subr.bf16.mxu0 %v532
    %658 = vmatpush1.bf16.msra.mxu0 %v531
    %659 = vmatprep.subr.bf16.mxu0 %v536
    %660 = vmatpush1.bf16.msra.mxu0 %v535
    %661 = vmatprep.subr.bf16.mxu0 %v540
    %662 = vmatpush1.bf16.msra.mxu0 %v539
    %663 = vmatprep.subr.bf16.mxu0 %v544
    %664 = vmatpush1.bf16.msra.mxu0 %v543
    %665 = vmatprep.subr.bf16.mxu0 %v548
    %666 = vmatpush1.bf16.msra.mxu0 %v547
    %667 = vmatprep.subr.bf16.mxu0 %v552
    %668 = vmatpush1.bf16.msra.mxu0 %v551
    %669 = vmatprep.subr.bf16.mxu0 %v556
    %670 = vmatpush1.bf16.msra.mxu0 %v555
    %671 = vmatprep.subr.bf16.mxu0 %v560
    %672 = vmatpush1.bf16.msra.mxu0 %v559
    %673 = vmatprep.subr.bf16.mxu0 %v564
    %674 = vmatpush1.bf16.msra.mxu0 %v563
    %675 = vmatprep.subr.bf16.mxu0 %v568
    %676 = vmatpush1.bf16.msra.mxu0 %v567
    %677 = vmatprep.subr.bf16.mxu0 %v572
    %678 = vmatpush1.bf16.msra.mxu0 %v571
    %679 = vmatprep.subr.bf16.mxu0 %v576
    %680 = vmatpush1.bf16.msra.mxu0 %v575
    %681 = vmatprep.subr.bf16.mxu0 %v580
    %682 = vmatpush1.bf16.msra.mxu0 %v579
    %683 = vmatprep.subr.bf16.mxu0 %v584
    %684 = vmatpush1.bf16.msra.mxu0 %v583
    %685 = vmatprep.subr.bf16.mxu0 %v588
    %686 = vmatpush1.bf16.msra.mxu0 %v587
    %687 = vmatprep.mubr.bf16.mxu0 %v242
    %688 = vmatmul.mubr.bf16.gmra.mrb[0].mxu0 %v241
    %v689 = vpop.f32.mrb[0].mxu0
    %v690 = vadd.f32 %v318, %v689
    %v691 = vpop.f32.mrb[0].mxu0
    %v692 = vadd.f32 %v322, %v691
    %v693 = vpop.f32.mrb[0].mxu0
    %v694 = vadd.f32 %v318, %v693
    %v695 = vpop.f32.mrb[0].mxu0
    %v696 = vadd.f32 %v322, %v695
    %697 = vmatprep.mubr.bf16.mxu0 %v244
    %698 = vmatmul.mubr.bf16.gmra.mrb[0].mxu0 %v243
    %v699 = vpop.f32.mrb[0].mxu0
    %v700 = vadd.f32 %v318, %v699
    %v701 = vpop.f32.mrb[0].mxu0
    %v702 = vadd.f32 %v322, %v701
    %v703 = vpop.f32.mrb[0].mxu0
    %v704 = vadd.f32 %v318, %v703
    %v705 = vpop.f32.mrb[0].mxu0
    %v706 = vadd.f32 %v322, %v705
    %707 = vmatprep.mubr.bf16.mxu0 %v246
    %708 = vmatmul.mubr.bf16.gmra.mrb[0].mxu0 %v245
    %v709 = vpop.f32.mrb[0].mxu0
    %v710 = vadd.f32 %v318, %v709
    %v711 = vpop.f32.mrb[0].mxu0
    %v712 = vadd.f32 %v322, %v711
    %v713 = vpop.f32.mrb[0].mxu0
    %v714 = vadd.f32 %v318, %v713
    %v715 = vpop.f32.mrb[0].mxu0
    %v716 = vadd.f32 %v322, %v715
    %717 = vmatprep.mubr.bf16.mxu0 %v248
    %718 = vmatmul.mubr.bf16.gmra.mrb[0].mxu0 %v247
    %v719 = vpop.f32.mrb[0].mxu0
    %v720 = vadd.f32 %v318, %v719
    %v721 = vpop.f32.mrb[0].mxu0
    %v722 = vadd.f32 %v322, %v721
    %v723 = vpop.f32.mrb[0].mxu0
    %v724 = vadd.f32 %v318, %v723
    %v725 = vpop.f32.mrb[0].mxu0
    %v726 = vadd.f32 %v322, %v725
    %727 = vdwg.mxu0
    %728 = vmatprep.subr.bf16.mxu0 %v530
    %729 = vmatpush1.bf16.msra.mxu0 %v529
    %730 = vmatprep.subr.bf16.mxu0 %v534
    %731 = vmatpush1.bf16.msra.mxu0 %v533
    %732 = vmatprep.subr.bf16.mxu0 %v538
    %733 = vmatpush1.bf16.msra.mxu0 %v537
    %734 = vmatprep.subr.bf16.mxu0 %v542
    %735 = vmatpush1.bf16.msra.mxu0 %v541
    %736 = vmatprep.subr.bf16.mxu0 %v546
    %737 = vmatpush1.bf16.msra.mxu0 %v545
    %738 = vmatprep.subr.bf16.mxu0 %v550
    %739 = vmatpush1.bf16.msra.mxu0 %v549
    %740 = vmatprep.subr.bf16.mxu0 %v554
    %741 = vmatpush1.bf16.msra.mxu0 %v553
    %742 = vmatprep.subr.bf16.mxu0 %v558
    %743 = vmatpush1.bf16.msra.mxu0 %v557
    %744 = vmatprep.subr.bf16.mxu0 %v562
    %745 = vmatpush1.bf16.msra.mxu0 %v561
    %746 = vmatprep.subr.bf16.mxu0 %v566
    %747 = vmatpush1.bf16.msra.mxu0 %v565
    %748 = vmatprep.subr.bf16.mxu0 %v570
    %749 = vmatpush1.bf16.msra.mxu0 %v569
    %750 = vmatprep.subr.bf16.mxu0 %v574
    %751 = vmatpush1.bf16.msra.mxu0 %v573
    %752 = vmatprep.subr.bf16.mxu0 %v578
    %753 = vmatpush1.bf16.msra.mxu0 %v577
    %754 = vmatprep.subr.bf16.mxu0 %v582
    %755 = vmatpush1.bf16.msra.mxu0 %v581
    %756 = vmatprep.subr.bf16.mxu0 %v586
    %757 = vmatpush1.bf16.msra.mxu0 %v585
    %758 = vmatprep.subr.bf16.mxu0 %v590
    %759 = vmatpush1.bf16.msra.mxu0 %v589
    %760 = vmatprep.mubr.bf16.mxu0 %v242
    %761 = vmatmul.mubr.bf16.gmra.mrb[0].mxu0 %v241
    %v762 = vpop.f32.mrb[0].mxu0
    %v763 = vadd.f32 %v326, %v762
    %v764 = vpop.f32.mrb[0].mxu0
    %v765 = vadd.f32 %v330, %v764
    %v766 = vpop.f32.mrb[0].mxu0
    %v767 = vadd.f32 %v326, %v766
    %v768 = vpop.f32.mrb[0].mxu0
    %v769 = vadd.f32 %v330, %v768
    %770 = vmatprep.mubr.bf16.mxu0 %v244
    %771 = vmatmul.mubr.bf16.gmra.mrb[0].mxu0 %v243
    %v772 = vpop.f32.mrb[0].mxu0
    %v773 = vadd.f32 %v326, %v772
    %v774 = vpop.f32.mrb[0].mxu0
    %v775 = vadd.f32 %v330, %v774
    %v776 = vpop.f32.mrb[0].mxu0
    %v777 = vadd.f32 %v326, %v776
    %v778 = vpop.f32.mrb[0].mxu0
    %v779 = vadd.f32 %v330, %v778
    %780 = vmatprep.mubr.bf16.mxu0 %v246
    %781 = vmatmul.mubr.bf16.gmra.mrb[0].mxu0 %v245
    %v782 = vpop.f32.mrb[0].mxu0
    %v783 = vadd.f32 %v326, %v782
    %v784 = vpop.f32.mrb[0].mxu0
    %v785 = vadd.f32 %v330, %v784
    %v786 = vpop.f32.mrb[0].mxu0
    %v787 = vadd.f32 %v326, %v786
    %v788 = vpop.f32.mrb[0].mxu0
    %v789 = vadd.f32 %v330, %v788
    %790 = vmatprep.mubr.bf16.mxu0 %v248
    %791 = vmatmul.mubr.bf16.gmra.mrb[0].mxu0 %v247
    %v792 = vpop.f32.mrb[0].mxu0
    %v793 = vadd.f32 %v326, %v792
    %v794 = vpop.f32.mrb[0].mxu0
    %v795 = vadd.f32 %v330, %v794
    %v796 = vpop.f32.mrb[0].mxu0
    %v797 = vadd.f32 %v326, %v796
    %v798 = vpop.f32.mrb[0].mxu0
    %v799 = vadd.f32 %v330, %v798
    %800 = vdwg.mxu0
    %v801 = vmul.f32 %v690, %v690
    %v802 = vmul.f32 %v692, %v692
    %v803 = vmul.f32 %v763, %v763
    %v804 = vmul.f32 %v765, %v765
    %v805 = vmul.f32 %v694, %v694
    %v806 = vmul.f32 %v696, %v696
    %v807 = vmul.f32 %v767, %v767
    %v808 = vmul.f32 %v769, %v769
    %v809 = vmul.f32 %v700, %v700
    %v810 = vmul.f32 %v702, %v702
    %v811 = vmul.f32 %v773, %v773
    %v812 = vmul.f32 %v775, %v775
    %v813 = vmul.f32 %v704, %v704
    %v814 = vmul.f32 %v706, %v706
    %v815 = vmul.f32 %v777, %v777
    %v816 = vmul.f32 %v779, %v779
    %v817 = vmul.f32 %v710, %v710
    %v818 = vmul.f32 %v712, %v712
    %v819 = vmul.f32 %v783, %v783
    %v820 = vmul.f32 %v785, %v785
    %v821 = vmul.f32 %v714, %v714
    %v822 = vmul.f32 %v716, %v716
    %v823 = vmul.f32 %v787, %v787
    %v824 = vmul.f32 %v789, %v789
    %v825 = vmul.f32 %v720, %v720
    %v826 = vmul.f32 %v722, %v722
    %v827 = vmul.f32 %v793, %v793
    %v828 = vmul.f32 %v795, %v795
    %v829 = vmul.f32 %v724, %v724
    %v830 = vmul.f32 %v726, %v726
    %v831 = vmul.f32 %v797, %v797
    %v832 = vmul.f32 %v799, %v799
    %v833 = vlaneseq
    %v834 = vand.u32 %v833, 127
    %v835 = vadd.s32 %v834, 128
    %v836 = vadd.s32 %v834, 256
    %v837 = vadd.s32 %v834, 384
    %vm838 = vcmp.ge.s32.totalorder %v834, 1
    %vm839 = vcmp.ge.s32.totalorder %v835, 1
    %vm840 = vcmp.ge.s32.totalorder %v836, 1
    %vm841 = vcmp.ge.s32.totalorder %v837, 1
    %842 = vrot.lane.b32.xlu0 %v801, 1
    %v843 = vpop.permute.xlu0 %842
    %844 = vrot.lane.b32.xlu0 %v805, 1
    %v845 = vpop.permute.xlu0 %844
    %846 = vrot.lane.b32.xlu0 %v809, 1
    %v847 = vpop.permute.xlu0 %846
    %848 = vrot.lane.b32.xlu0 %v813, 1
    %v849 = vpop.permute.xlu0 %848
    %850 = vrot.lane.b32.xlu0 %v817, 1
    %v851 = vpop.permute.xlu0 %850
    %852 = vrot.lane.b32.xlu0 %v821, 1
    %v853 = vpop.permute.xlu0 %852
    %854 = vrot.lane.b32.xlu0 %v825, 1
    %v855 = vpop.permute.xlu0 %854
    %856 = vrot.lane.b32.xlu0 %v829, 1
    %v857 = vpop.permute.xlu0 %856
    %858 = vrot.lane.b32.xlu0 %v802, 1
    %v859 = vpop.permute.xlu0 %858
    %860 = vrot.lane.b32.xlu0 %v806, 1
    %v861 = vpop.permute.xlu0 %860
    %862 = vrot.lane.b32.xlu0 %v810, 1
    %v863 = vpop.permute.xlu0 %862
    %864 = vrot.lane.b32.xlu0 %v814, 1
    %v865 = vpop.permute.xlu0 %864
    %866 = vrot.lane.b32.xlu0 %v818, 1
    %v867 = vpop.permute.xlu0 %866
    %868 = vrot.lane.b32.xlu0 %v822, 1
    %v869 = vpop.permute.xlu0 %868
    %870 = vrot.lane.b32.xlu0 %v826, 1
    %v871 = vpop.permute.xlu0 %870
    %872 = vrot.lane.b32.xlu0 %v830, 1
    %v873 = vpop.permute.xlu0 %872
    %874 = vrot.lane.b32.xlu0 %v803, 1
    %v875 = vpop.permute.xlu0 %874
    %876 = vrot.lane.b32.xlu0 %v807, 1
    %v877 = vpop.permute.xlu0 %876
    %878 = vrot.lane.b32.xlu0 %v811, 1
    %v879 = vpop.permute.xlu0 %878
    %880 = vrot.lane.b32.xlu0 %v815, 1
    %v881 = vpop.permute.xlu0 %880
    %882 = vrot.lane.b32.xlu0 %v819, 1
    %v883 = vpop.permute.xlu0 %882
    %884 = vrot.lane.b32.xlu0 %v823, 1
    %v885 = vpop.permute.xlu0 %884
    %886 = vrot.lane.b32.xlu0 %v827, 1
    %v887 = vpop.permute.xlu0 %886
    %888 = vrot.lane.b32.xlu0 %v831, 1
    %v889 = vpop.permute.xlu0 %888
    %890 = vrot.lane.b32.xlu0 %v804, 1
    %v891 = vpop.permute.xlu0 %890
    %892 = vrot.lane.b32.xlu0 %v808, 1
    %v893 = vpop.permute.xlu0 %892
    %894 = vrot.lane.b32.xlu0 %v812, 1
    %v895 = vpop.permute.xlu0 %894
    %896 = vrot.lane.b32.xlu0 %v816, 1
    %v897 = vpop.permute.xlu0 %896
    %898 = vrot.lane.b32.xlu0 %v820, 1
    %v899 = vpop.permute.xlu0 %898
    %900 = vrot.lane.b32.xlu0 %v824, 1
    %v901 = vpop.permute.xlu0 %900
    %902 = vrot.lane.b32.xlu0 %v828, 1
    %v903 = vpop.permute.xlu0 %902
    %904 = vrot.lane.b32.xlu0 %v832, 1
    %v905 = vpop.permute.xlu0 %904
    %vm906 = vcmp.lt.s32.totalorder %v834, 1
    %v907 = vsel %vm906, %v875, %v891
    %v908 = vsel %vm906, %v877, %v893
    %v909 = vsel %vm906, %v879, %v895
    %v910 = vsel %vm906, %v881, %v897
    %v911 = vsel %vm906, %v883, %v899
    %v912 = vsel %vm906, %v885, %v901
    %v913 = vsel %vm906, %v887, %v903
    %v914 = vsel %vm906, %v889, %v905
    %v915 = vsel %vm906, %v859, %v875
    %v916 = vsel %vm906, %v861, %v877
    %v917 = vsel %vm906, %v863, %v879
    %v918 = vsel %vm906, %v865, %v881
    %v919 = vsel %vm906, %v867, %v883
    %v920 = vsel %vm906, %v869, %v885
    %v921 = vsel %vm906, %v871, %v887
    %v922 = vsel %vm906, %v873, %v889
    %v923 = vsel %vm906, %v843, %v859
    %v924 = vsel %vm906, %v845, %v861
    %v925 = vsel %vm906, %v847, %v863
    %v926 = vsel %vm906, %v849, %v865
    %v927 = vsel %vm906, %v851, %v867
    %v928 = vsel %vm906, %v853, %v869
    %v929 = vsel %vm906, %v855, %v871
    %v930 = vsel %vm906, %v857, %v873
    %v931 = vsel %vm906, %v891, %v843
    %v932 = vsel %vm906, %v893, %v845
    %v933 = vsel %vm906, %v895, %v847
    %v934 = vsel %vm906, %v897, %v849
    %v935 = vsel %vm906, %v899, %v851
    %v936 = vsel %vm906, %v901, %v853
    %v937 = vsel %vm906, %v903, %v855
    %v938 = vsel %vm906, %v905, %v857
    %v939 = vsel %vm838, %v931, 0.0
    %v940 = vsel %vm839, %v923, 0.0
    %v941 = vsel %vm840, %v915, 0.0
    %v942 = vsel %vm841, %v907, 0.0
    %v943 = vsel %vm838, %v932, 0.0
    %v944 = vsel %vm839, %v924, 0.0
    %v945 = vsel %vm840, %v916, 0.0
    %v946 = vsel %vm841, %v908, 0.0
    %v947 = vsel %vm838, %v933, 0.0
    %v948 = vsel %vm839, %v925, 0.0
    %v949 = vsel %vm840, %v917, 0.0
    %v950 = vsel %vm841, %v909, 0.0
    %v951 = vsel %vm838, %v934, 0.0
    %v952 = vsel %vm839, %v926, 0.0
    %v953 = vsel %vm840, %v918, 0.0
    %v954 = vsel %vm841, %v910, 0.0
    %v955 = vsel %vm838, %v935, 0.0
    %v956 = vsel %vm839, %v927, 0.0
    %v957 = vsel %vm840, %v919, 0.0
    %v958 = vsel %vm841, %v911, 0.0
    %v959 = vsel %vm838, %v936, 0.0
    %v960 = vsel %vm839, %v928, 0.0
    %v961 = vsel %vm840, %v920, 0.0
    %v962 = vsel %vm841, %v912, 0.0
    %v963 = vsel %vm838, %v937, 0.0
    %v964 = vsel %vm839, %v929, 0.0
    %v965 = vsel %vm840, %v921, 0.0
    %v966 = vsel %vm841, %v913, 0.0
    %v967 = vsel %vm838, %v938, 0.0
    %v968 = vsel %vm839, %v930, 0.0
    %v969 = vsel %vm840, %v922, 0.0
    %v970 = vsel %vm841, %v914, 0.0
    %v971 = vadd.f32 %v801, %v939
    %v972 = vadd.f32 %v802, %v940
    %v973 = vadd.f32 %v803, %v941
    %v974 = vadd.f32 %v804, %v942
    %v975 = vadd.f32 %v805, %v943
    %v976 = vadd.f32 %v806, %v944
    %v977 = vadd.f32 %v807, %v945
    %v978 = vadd.f32 %v808, %v946
    %v979 = vadd.f32 %v809, %v947
    %v980 = vadd.f32 %v810, %v948
    %v981 = vadd.f32 %v811, %v949
    %v982 = vadd.f32 %v812, %v950
    %v983 = vadd.f32 %v813, %v951
    %v984 = vadd.f32 %v814, %v952
    %v985 = vadd.f32 %v815, %v953
    %v986 = vadd.f32 %v816, %v954
    %v987 = vadd.f32 %v817, %v955
    %v988 = vadd.f32 %v818, %v956
    %v989 = vadd.f32 %v819, %v957
    %v990 = vadd.f32 %v820, %v958
    %v991 = vadd.f32 %v821, %v959
    %v992 = vadd.f32 %v822, %v960
    %v993 = vadd.f32 %v823, %v961
    %v994 = vadd.f32 %v824, %v962
    %v995 = vadd.f32 %v825, %v963
    %v996 = vadd.f32 %v826, %v964
    %v997 = vadd.f32 %v827, %v965
    %v998 = vadd.f32 %v828, %v966
    %v999 = vadd.f32 %v829, %v967
    %v1000 = vadd.f32 %v830, %v968
    %v1001 = vadd.f32 %v831, %v969
    %v1002 = vadd.f32 %v832, %v970
    %vm1003 = vcmp.ge.s32.totalorder %v834, 2
    %vm1004 = vcmp.ge.s32.totalorder %v835, 2
    %vm1005 = vcmp.ge.s32.totalorder %v836, 2
    %vm1006 = vcmp.ge.s32.totalorder %v837, 2
    %1007 = vrot.lane.b32.xlu0 %v801, 2
    %v1008 = vpop.permute.xlu0 %1007
    %1009 = vrot.lane.b32.xlu0 %v805, 2
    %v1010 = vpop.permute.xlu0 %1009
    %1011 = vrot.lane.b32.xlu0 %v809, 2
    %v1012 = vpop.permute.xlu0 %1011
    %1013 = vrot.lane.b32.xlu0 %v813, 2
    %v1014 = vpop.permute.xlu0 %1013
    %1015 = vrot.lane.b32.xlu0 %v817, 2
    %v1016 = vpop.permute.xlu0 %1015
    %1017 = vrot.lane.b32.xlu0 %v821, 2
    %v1018 = vpop.permute.xlu0 %1017
    %1019 = vrot.lane.b32.xlu0 %v825, 2
    %v1020 = vpop.permute.xlu0 %1019
    %1021 = vrot.lane.b32.xlu0 %v829, 2
    %v1022 = vpop.permute.xlu0 %1021
    %1023 = vrot.lane.b32.xlu0 %v802, 2
    %v1024 = vpop.permute.xlu0 %1023
    %1025 = vrot.lane.b32.xlu0 %v806, 2
    %v1026 = vpop.permute.xlu0 %1025
    %1027 = vrot.lane.b32.xlu0 %v810, 2
    %v1028 = vpop.permute.xlu0 %1027
    %1029 = vrot.lane.b32.xlu0 %v814, 2
    %v1030 = vpop.permute.xlu0 %1029
    %1031 = vrot.lane.b32.xlu0 %v818, 2
    %v1032 = vpop.permute.xlu0 %1031
    %1033 = vrot.lane.b32.xlu0 %v822, 2
    %v1034 = vpop.permute.xlu0 %1033
    %1035 = vrot.lane.b32.xlu0 %v826, 2
    %v1036 = vpop.permute.xlu0 %1035
    %1037 = vrot.lane.b32.xlu0 %v830, 2
    %v1038 = vpop.permute.xlu0 %1037
    %1039 = vrot.lane.b32.xlu0 %v803, 2
    %v1040 = vpop.permute.xlu0 %1039
    %1041 = vrot.lane.b32.xlu0 %v807, 2
    %v1042 = vpop.permute.xlu0 %1041
    %1043 = vrot.lane.b32.xlu0 %v811, 2
    %v1044 = vpop.permute.xlu0 %1043
    %1045 = vrot.lane.b32.xlu0 %v815, 2
    %v1046 = vpop.permute.xlu0 %1045
    %1047 = vrot.lane.b32.xlu0 %v819, 2
    %v1048 = vpop.permute.xlu0 %1047
    %1049 = vrot.lane.b32.xlu0 %v823, 2
    %v1050 = vpop.permute.xlu0 %1049
    %1051 = vrot.lane.b32.xlu0 %v827, 2
    %v1052 = vpop.permute.xlu0 %1051
    %1053 = vrot.lane.b32.xlu0 %v831, 2
    %v1054 = vpop.permute.xlu0 %1053
    %1055 = vrot.lane.b32.xlu0 %v804, 2
    %v1056 = vpop.permute.xlu0 %1055
    %1057 = vrot.lane.b32.xlu0 %v808, 2
    %v1058 = vpop.permute.xlu0 %1057
    %1059 = vrot.lane.b32.xlu0 %v812, 2
    %v1060 = vpop.permute.xlu0 %1059
    %1061 = vrot.lane.b32.xlu0 %v816, 2
    %v1062 = vpop.permute.xlu0 %1061
    %1063 = vrot.lane.b32.xlu0 %v820, 2
    %v1064 = vpop.permute.xlu0 %1063
    %1065 = vrot.lane.b32.xlu0 %v824, 2
    %v1066 = vpop.permute.xlu0 %1065
    %1067 = vrot.lane.b32.xlu0 %v828, 2
    %v1068 = vpop.permute.xlu0 %1067
    %1069 = vrot.lane.b32.xlu0 %v832, 2
    %v1070 = vpop.permute.xlu0 %1069
    %vm1071 = vcmp.lt.s32.totalorder %v834, 2
    %v1072 = vsel %vm1071, %v1040, %v1056
    %v1073 = vsel %vm1071, %v1042, %v1058
    %v1074 = vsel %vm1071, %v1044, %v1060
    %v1075 = vsel %vm1071, %v1046, %v1062
    %v1076 = vsel %vm1071, %v1048, %v1064
    %v1077 = vsel %vm1071, %v1050, %v1066
    %v1078 = vsel %vm1071, %v1052, %v1068
    %v1079 = vsel %vm1071, %v1054, %v1070
    %v1080 = vsel %vm1071, %v1024, %v1040
    %v1081 = vsel %vm1071, %v1026, %v1042
    %v1082 = vsel %vm1071, %v1028, %v1044
    %v1083 = vsel %vm1071, %v1030, %v1046
    %v1084 = vsel %vm1071, %v1032, %v1048
    %v1085 = vsel %vm1071, %v1034, %v1050
    %v1086 = vsel %vm1071, %v1036, %v1052
    %v1087 = vsel %vm1071, %v1038, %v1054
    %v1088 = vsel %vm1071, %v1008, %v1024
    %v1089 = vsel %vm1071, %v1010, %v1026
    %v1090 = vsel %vm1071, %v1012, %v1028
    %v1091 = vsel %vm1071, %v1014, %v1030
    %v1092 = vsel %vm1071, %v1016, %v1032
    %v1093 = vsel %vm1071, %v1018, %v1034
    %v1094 = vsel %vm1071, %v1020, %v1036
    %v1095 = vsel %vm1071, %v1022, %v1038
    %v1096 = vsel %vm1071, %v1056, %v1008
    %v1097 = vsel %vm1071, %v1058, %v1010
    %v1098 = vsel %vm1071, %v1060, %v1012
    %v1099 = vsel %vm1071, %v1062, %v1014
    %v1100 = vsel %vm1071, %v1064, %v1016
    %v1101 = vsel %vm1071, %v1066, %v1018
    %v1102 = vsel %vm1071, %v1068, %v1020
    %v1103 = vsel %vm1071, %v1070, %v1022
    %v1104 = vsel %vm1003, %v1096, 0.0
    %v1105 = vsel %vm1004, %v1088, 0.0
    %v1106 = vsel %vm1005, %v1080, 0.0
    %v1107 = vsel %vm1006, %v1072, 0.0
    %v1108 = vsel %vm1003, %v1097, 0.0
    %v1109 = vsel %vm1004, %v1089, 0.0
    %v1110 = vsel %vm1005, %v1081, 0.0
    %v1111 = vsel %vm1006, %v1073, 0.0
    %v1112 = vsel %vm1003, %v1098, 0.0
    %v1113 = vsel %vm1004, %v1090, 0.0
    %v1114 = vsel %vm1005, %v1082, 0.0
    %v1115 = vsel %vm1006, %v1074, 0.0
    %v1116 = vsel %vm1003, %v1099, 0.0
    %v1117 = vsel %vm1004, %v1091, 0.0
    %v1118 = vsel %vm1005, %v1083, 0.0
    %v1119 = vsel %vm1006, %v1075, 0.0
    %v1120 = vsel %vm1003, %v1100, 0.0
    %v1121 = vsel %vm1004, %v1092, 0.0
    %v1122 = vsel %vm1005, %v1084, 0.0
    %v1123 = vsel %vm1006, %v1076, 0.0
    %v1124 = vsel %vm1003, %v1101, 0.0
    %v1125 = vsel %vm1004, %v1093, 0.0
    %v1126 = vsel %vm1005, %v1085, 0.0
    %v1127 = vsel %vm1006, %v1077, 0.0
    %v1128 = vsel %vm1003, %v1102, 0.0
    %v1129 = vsel %vm1004, %v1094, 0.0
    %v1130 = vsel %vm1005, %v1086, 0.0
    %v1131 = vsel %vm1006, %v1078, 0.0
    %v1132 = vsel %vm1003, %v1103, 0.0
    %v1133 = vsel %vm1004, %v1095, 0.0
    %v1134 = vsel %vm1005, %v1087, 0.0
    %v1135 = vsel %vm1006, %v1079, 0.0
    %v1136 = vadd.f32 %v971, %v1104
    %v1137 = vadd.f32 %v972, %v1105
    %v1138 = vadd.f32 %v973, %v1106
    %v1139 = vadd.f32 %v974, %v1107
    %v1140 = vadd.f32 %v975, %v1108
    %v1141 = vadd.f32 %v976, %v1109
    %v1142 = vadd.f32 %v977, %v1110
    %v1143 = vadd.f32 %v978, %v1111
    %v1144 = vadd.f32 %v979, %v1112
    %v1145 = vadd.f32 %v980, %v1113
    %v1146 = vadd.f32 %v981, %v1114
    %v1147 = vadd.f32 %v982, %v1115
    %v1148 = vadd.f32 %v983, %v1116
    %v1149 = vadd.f32 %v984, %v1117
    %v1150 = vadd.f32 %v985, %v1118
    %v1151 = vadd.f32 %v986, %v1119
    %v1152 = vadd.f32 %v987, %v1120
    %v1153 = vadd.f32 %v988, %v1121
    %v1154 = vadd.f32 %v989, %v1122
    %v1155 = vadd.f32 %v990, %v1123
    %v1156 = vadd.f32 %v991, %v1124
    %v1157 = vadd.f32 %v992, %v1125
    %v1158 = vadd.f32 %v993, %v1126
    %v1159 = vadd.f32 %v994, %v1127
    %v1160 = vadd.f32 %v995, %v1128
    %v1161 = vadd.f32 %v996, %v1129
    %v1162 = vadd.f32 %v997, %v1130
    %v1163 = vadd.f32 %v998, %v1131
    %v1164 = vadd.f32 %v999, %v1132
    %v1165 = vadd.f32 %v1000, %v1133
    %v1166 = vadd.f32 %v1001, %v1134
    %v1167 = vadd.f32 %v1002, %v1135
    %vm1168 = vcmp.lt.s32.totalorder %v834, 511
    %vm1169 = vcmp.lt.s32.totalorder %v835, 511
    %vm1170 = vcmp.lt.s32.totalorder %v836, 511
    %vm1171 = vcmp.lt.s32.totalorder %v837, 511
    %1172 = vrot.lane.b32.xlu0 %v801, 127
    %v1173 = vpop.permute.xlu0 %1172
    %1174 = vrot.lane.b32.xlu0 %v805, 127
    %v1175 = vpop.permute.xlu0 %1174
    %1176 = vrot.lane.b32.xlu0 %v809, 127
    %v1177 = vpop.permute.xlu0 %1176
    %1178 = vrot.lane.b32.xlu0 %v813, 127
    %v1179 = vpop.permute.xlu0 %1178
    %1180 = vrot.lane.b32.xlu0 %v817, 127
    %v1181 = vpop.permute.xlu0 %1180
    %1182 = vrot.lane.b32.xlu0 %v821, 127
    %v1183 = vpop.permute.xlu0 %1182
    %1184 = vrot.lane.b32.xlu0 %v825, 127
    %v1185 = vpop.permute.xlu0 %1184
    %1186 = vrot.lane.b32.xlu0 %v829, 127
    %v1187 = vpop.permute.xlu0 %1186
    %1188 = vrot.lane.b32.xlu0 %v802, 127
    %v1189 = vpop.permute.xlu0 %1188
    %1190 = vrot.lane.b32.xlu0 %v806, 127
    %v1191 = vpop.permute.xlu0 %1190
    %1192 = vrot.lane.b32.xlu0 %v810, 127
    %v1193 = vpop.permute.xlu0 %1192
    %1194 = vrot.lane.b32.xlu0 %v814, 127
    %v1195 = vpop.permute.xlu0 %1194
    %1196 = vrot.lane.b32.xlu0 %v818, 127
    %v1197 = vpop.permute.xlu0 %1196
    %1198 = vrot.lane.b32.xlu0 %v822, 127
    %v1199 = vpop.permute.xlu0 %1198
    %1200 = vrot.lane.b32.xlu0 %v826, 127
    %v1201 = vpop.permute.xlu0 %1200
    %1202 = vrot.lane.b32.xlu0 %v830, 127
    %v1203 = vpop.permute.xlu0 %1202
    %1204 = vrot.lane.b32.xlu0 %v803, 127
    %v1205 = vpop.permute.xlu0 %1204
    %1206 = vrot.lane.b32.xlu0 %v807, 127
    %v1207 = vpop.permute.xlu0 %1206
    %1208 = vrot.lane.b32.xlu0 %v811, 127
    %v1209 = vpop.permute.xlu0 %1208
    %1210 = vrot.lane.b32.xlu0 %v815, 127
    %v1211 = vpop.permute.xlu0 %1210
    %1212 = vrot.lane.b32.xlu0 %v819, 127
    %v1213 = vpop.permute.xlu0 %1212
    %1214 = vrot.lane.b32.xlu0 %v823, 127
    %v1215 = vpop.permute.xlu0 %1214
    %1216 = vrot.lane.b32.xlu0 %v827, 127
    %v1217 = vpop.permute.xlu0 %1216
    %1218 = vrot.lane.b32.xlu0 %v831, 127
    %v1219 = vpop.permute.xlu0 %1218
    %1220 = vrot.lane.b32.xlu0 %v804, 127
    %v1221 = vpop.permute.xlu0 %1220
    %1222 = vrot.lane.b32.xlu0 %v808, 127
    %v1223 = vpop.permute.xlu0 %1222
    %1224 = vrot.lane.b32.xlu0 %v812, 127
    %v1225 = vpop.permute.xlu0 %1224
    %1226 = vrot.lane.b32.xlu0 %v816, 127
    %v1227 = vpop.permute.xlu0 %1226
    %1228 = vrot.lane.b32.xlu0 %v820, 127
    %v1229 = vpop.permute.xlu0 %1228
    %1230 = vrot.lane.b32.xlu0 %v824, 127
    %v1231 = vpop.permute.xlu0 %1230
    %1232 = vrot.lane.b32.xlu0 %v828, 127
    %v1233 = vpop.permute.xlu0 %1232
    %1234 = vrot.lane.b32.xlu0 %v832, 127
    %v1235 = vpop.permute.xlu0 %1234
    %vm1236 = vcmp.lt.s32.totalorder %v834, 127
    %v1237 = vsel %vm1236, %v1205, %v1221
    %v1238 = vsel %vm1236, %v1207, %v1223
    %v1239 = vsel %vm1236, %v1209, %v1225
    %v1240 = vsel %vm1236, %v1211, %v1227
    %v1241 = vsel %vm1236, %v1213, %v1229
    %v1242 = vsel %vm1236, %v1215, %v1231
    %v1243 = vsel %vm1236, %v1217, %v1233
    %v1244 = vsel %vm1236, %v1219, %v1235
    %v1245 = vsel %vm1236, %v1189, %v1205
    %v1246 = vsel %vm1236, %v1191, %v1207
    %v1247 = vsel %vm1236, %v1193, %v1209
    %v1248 = vsel %vm1236, %v1195, %v1211
    %v1249 = vsel %vm1236, %v1197, %v1213
    %v1250 = vsel %vm1236, %v1199, %v1215
    %v1251 = vsel %vm1236, %v1201, %v1217
    %v1252 = vsel %vm1236, %v1203, %v1219
    %v1253 = vsel %vm1236, %v1173, %v1189
    %v1254 = vsel %vm1236, %v1175, %v1191
    %v1255 = vsel %vm1236, %v1177, %v1193
    %v1256 = vsel %vm1236, %v1179, %v1195
    %v1257 = vsel %vm1236, %v1181, %v1197
    %v1258 = vsel %vm1236, %v1183, %v1199
    %v1259 = vsel %vm1236, %v1185, %v1201
    %v1260 = vsel %vm1236, %v1187, %v1203
    %v1261 = vsel %vm1236, %v1221, %v1173
    %v1262 = vsel %vm1236, %v1223, %v1175
    %v1263 = vsel %vm1236, %v1225, %v1177
    %v1264 = vsel %vm1236, %v1227, %v1179
    %v1265 = vsel %vm1236, %v1229, %v1181
    %v1266 = vsel %vm1236, %v1231, %v1183
    %v1267 = vsel %vm1236, %v1233, %v1185
    %v1268 = vsel %vm1236, %v1235, %v1187
    %v1269 = vsel %vm1168, %v1253, 0.0
    %v1270 = vsel %vm1169, %v1245, 0.0
    %v1271 = vsel %vm1170, %v1237, 0.0
    %v1272 = vsel %vm1171, %v1261, 0.0
    %v1273 = vsel %vm1168, %v1254, 0.0
    %v1274 = vsel %vm1169, %v1246, 0.0
    %v1275 = vsel %vm1170, %v1238, 0.0
    %v1276 = vsel %vm1171, %v1262, 0.0
    %v1277 = vsel %vm1168, %v1255, 0.0
    %v1278 = vsel %vm1169, %v1247, 0.0
    %v1279 = vsel %vm1170, %v1239, 0.0
    %v1280 = vsel %vm1171, %v1263, 0.0
    %v1281 = vsel %vm1168, %v1256, 0.0
    %v1282 = vsel %vm1169, %v1248, 0.0
    %v1283 = vsel %vm1170, %v1240, 0.0
    %v1284 = vsel %vm1171, %v1264, 0.0
    %v1285 = vsel %vm1168, %v1257, 0.0
    %v1286 = vsel %vm1169, %v1249, 0.0
    %v1287 = vsel %vm1170, %v1241, 0.0
    %v1288 = vsel %vm1171, %v1265, 0.0
    %v1289 = vsel %vm1168, %v1258, 0.0
    %v1290 = vsel %vm1169, %v1250, 0.0
    %v1291 = vsel %vm1170, %v1242, 0.0
    %v1292 = vsel %vm1171, %v1266, 0.0
    %v1293 = vsel %vm1168, %v1259, 0.0
    %v1294 = vsel %vm1169, %v1251, 0.0
    %v1295 = vsel %vm1170, %v1243, 0.0
    %v1296 = vsel %vm1171, %v1267, 0.0
    %v1297 = vsel %vm1168, %v1260, 0.0
    %v1298 = vsel %vm1169, %v1252, 0.0
    %v1299 = vsel %vm1170, %v1244, 0.0
    %v1300 = vsel %vm1171, %v1268, 0.0
    %v1301 = vadd.f32 %v1136, %v1269
    %v1302 = vadd.f32 %v1137, %v1270
    %v1303 = vadd.f32 %v1138, %v1271
    %v1304 = vadd.f32 %v1139, %v1272
    %v1305 = vadd.f32 %v1140, %v1273
    %v1306 = vadd.f32 %v1141, %v1274
    %v1307 = vadd.f32 %v1142, %v1275
    %v1308 = vadd.f32 %v1143, %v1276
    %v1309 = vadd.f32 %v1144, %v1277
    %v1310 = vadd.f32 %v1145, %v1278
    %v1311 = vadd.f32 %v1146, %v1279
    %v1312 = vadd.f32 %v1147, %v1280
    %v1313 = vadd.f32 %v1148, %v1281
    %v1314 = vadd.f32 %v1149, %v1282
    %v1315 = vadd.f32 %v1150, %v1283
    %v1316 = vadd.f32 %v1151, %v1284
    %v1317 = vadd.f32 %v1152, %v1285
    %v1318 = vadd.f32 %v1153, %v1286
    %v1319 = vadd.f32 %v1154, %v1287
    %v1320 = vadd.f32 %v1155, %v1288
    %v1321 = vadd.f32 %v1156, %v1289
    %v1322 = vadd.f32 %v1157, %v1290
    %v1323 = vadd.f32 %v1158, %v1291
    %v1324 = vadd.f32 %v1159, %v1292
    %v1325 = vadd.f32 %v1160, %v1293
    %v1326 = vadd.f32 %v1161, %v1294
    %v1327 = vadd.f32 %v1162, %v1295
    %v1328 = vadd.f32 %v1163, %v1296
    %v1329 = vadd.f32 %v1164, %v1297
    %v1330 = vadd.f32 %v1165, %v1298
    %v1331 = vadd.f32 %v1166, %v1299
    %v1332 = vadd.f32 %v1167, %v1300
    %vm1333 = vcmp.lt.s32.totalorder %v834, 510
    %vm1334 = vcmp.lt.s32.totalorder %v835, 510
    %vm1335 = vcmp.lt.s32.totalorder %v836, 510
    %vm1336 = vcmp.lt.s32.totalorder %v837, 510
    %1337 = vrot.lane.b32.xlu0 %v801, 126
    %v1338 = vpop.permute.xlu0 %1337
    %1339 = vrot.lane.b32.xlu0 %v805, 126
    %v1340 = vpop.permute.xlu0 %1339
    %1341 = vrot.lane.b32.xlu0 %v809, 126
    %v1342 = vpop.permute.xlu0 %1341
    %1343 = vrot.lane.b32.xlu0 %v813, 126
    %v1344 = vpop.permute.xlu0 %1343
    %1345 = vrot.lane.b32.xlu0 %v817, 126
    %v1346 = vpop.permute.xlu0 %1345
    %1347 = vrot.lane.b32.xlu0 %v821, 126
    %v1348 = vpop.permute.xlu0 %1347
    %1349 = vrot.lane.b32.xlu0 %v825, 126
    %v1350 = vpop.permute.xlu0 %1349
    %1351 = vrot.lane.b32.xlu0 %v829, 126
    %v1352 = vpop.permute.xlu0 %1351
    %1353 = vrot.lane.b32.xlu0 %v802, 126
    %v1354 = vpop.permute.xlu0 %1353
    %1355 = vrot.lane.b32.xlu0 %v806, 126
    %v1356 = vpop.permute.xlu0 %1355
    %1357 = vrot.lane.b32.xlu0 %v810, 126
    %v1358 = vpop.permute.xlu0 %1357
    %1359 = vrot.lane.b32.xlu0 %v814, 126
    %v1360 = vpop.permute.xlu0 %1359
    %1361 = vrot.lane.b32.xlu0 %v818, 126
    %v1362 = vpop.permute.xlu0 %1361
    %1363 = vrot.lane.b32.xlu0 %v822, 126
    %v1364 = vpop.permute.xlu0 %1363
    %1365 = vrot.lane.b32.xlu0 %v826, 126
    %v1366 = vpop.permute.xlu0 %1365
    %1367 = vrot.lane.b32.xlu0 %v830, 126
    %v1368 = vpop.permute.xlu0 %1367
    %1369 = vrot.lane.b32.xlu0 %v803, 126
    %v1370 = vpop.permute.xlu0 %1369
    %1371 = vrot.lane.b32.xlu0 %v807, 126
    %v1372 = vpop.permute.xlu0 %1371
    %1373 = vrot.lane.b32.xlu0 %v811, 126
    %v1374 = vpop.permute.xlu0 %1373
    %1375 = vrot.lane.b32.xlu0 %v815, 126
    %v1376 = vpop.permute.xlu0 %1375
    %1377 = vrot.lane.b32.xlu0 %v819, 126
    %v1378 = vpop.permute.xlu0 %1377
    %1379 = vrot.lane.b32.xlu0 %v823, 126
    %v1380 = vpop.permute.xlu0 %1379
    %1381 = vrot.lane.b32.xlu0 %v827, 126
    %v1382 = vpop.permute.xlu0 %1381
    %1383 = vrot.lane.b32.xlu0 %v831, 126
    %v1384 = vpop.permute.xlu0 %1383
    %1385 = vrot.lane.b32.xlu0 %v804, 126
    %v1386 = vpop.permute.xlu0 %1385
    %1387 = vrot.lane.b32.xlu0 %v808, 126
    %v1388 = vpop.permute.xlu0 %1387
    %1389 = vrot.lane.b32.xlu0 %v812, 126
    %v1390 = vpop.permute.xlu0 %1389
    %1391 = vrot.lane.b32.xlu0 %v816, 126
    %v1392 = vpop.permute.xlu0 %1391
    %1393 = vrot.lane.b32.xlu0 %v820, 126
    %v1394 = vpop.permute.xlu0 %1393
    %1395 = vrot.lane.b32.xlu0 %v824, 126
    %v1396 = vpop.permute.xlu0 %1395
    %1397 = vrot.lane.b32.xlu0 %v828, 126
    %v1398 = vpop.permute.xlu0 %1397
    %1399 = vrot.lane.b32.xlu0 %v832, 126
    %v1400 = vpop.permute.xlu0 %1399
    %vm1401 = vcmp.lt.s32.totalorder %v834, 126
    %v1402 = vsel %vm1401, %v1370, %v1386
    %v1403 = vsel %vm1401, %v1372, %v1388
    %v1404 = vsel %vm1401, %v1374, %v1390
    %v1405 = vsel %vm1401, %v1376, %v1392
    %v1406 = vsel %vm1401, %v1378, %v1394
    %v1407 = vsel %vm1401, %v1380, %v1396
    %v1408 = vsel %vm1401, %v1382, %v1398
    %v1409 = vsel %vm1401, %v1384, %v1400
    %v1410 = vsel %vm1401, %v1354, %v1370
    %v1411 = vsel %vm1401, %v1356, %v1372
    %v1412 = vsel %vm1401, %v1358, %v1374
    %v1413 = vsel %vm1401, %v1360, %v1376
    %v1414 = vsel %vm1401, %v1362, %v1378
    %v1415 = vsel %vm1401, %v1364, %v1380
    %v1416 = vsel %vm1401, %v1366, %v1382
    %v1417 = vsel %vm1401, %v1368, %v1384
    %v1418 = vsel %vm1401, %v1338, %v1354
    %v1419 = vsel %vm1401, %v1340, %v1356
    %v1420 = vsel %vm1401, %v1342, %v1358
    %v1421 = vsel %vm1401, %v1344, %v1360
    %v1422 = vsel %vm1401, %v1346, %v1362
    %v1423 = vsel %vm1401, %v1348, %v1364
    %v1424 = vsel %vm1401, %v1350, %v1366
    %v1425 = vsel %vm1401, %v1352, %v1368
    %v1426 = vsel %vm1401, %v1386, %v1338
    %v1427 = vsel %vm1401, %v1388, %v1340
    %v1428 = vsel %vm1401, %v1390, %v1342
    %v1429 = vsel %vm1401, %v1392, %v1344
    %v1430 = vsel %vm1401, %v1394, %v1346
    %v1431 = vsel %vm1401, %v1396, %v1348
    %v1432 = vsel %vm1401, %v1398, %v1350
    %v1433 = vsel %vm1401, %v1400, %v1352
    %v1434 = vsel %vm1333, %v1418, 0.0
    %v1435 = vsel %vm1334, %v1410, 0.0
    %v1436 = vsel %vm1335, %v1402, 0.0
    %v1437 = vsel %vm1336, %v1426, 0.0
    %v1438 = vsel %vm1333, %v1419, 0.0
    %v1439 = vsel %vm1334, %v1411, 0.0
    %v1440 = vsel %vm1335, %v1403, 0.0
    %v1441 = vsel %vm1336, %v1427, 0.0
    %v1442 = vsel %vm1333, %v1420, 0.0
    %v1443 = vsel %vm1334, %v1412, 0.0
    %v1444 = vsel %vm1335, %v1404, 0.0
    %v1445 = vsel %vm1336, %v1428, 0.0
    %v1446 = vsel %vm1333, %v1421, 0.0
    %v1447 = vsel %vm1334, %v1413, 0.0
    %v1448 = vsel %vm1335, %v1405, 0.0
    %v1449 = vsel %vm1336, %v1429, 0.0
    %v1450 = vsel %vm1333, %v1422, 0.0
    %v1451 = vsel %vm1334, %v1414, 0.0
    %v1452 = vsel %vm1335, %v1406, 0.0
    %v1453 = vsel %vm1336, %v1430, 0.0
    %v1454 = vsel %vm1333, %v1423, 0.0
    %v1455 = vsel %vm1334, %v1415, 0.0
    %v1456 = vsel %vm1335, %v1407, 0.0
    %v1457 = vsel %vm1336, %v1431, 0.0
    %v1458 = vsel %vm1333, %v1424, 0.0
    %v1459 = vsel %vm1334, %v1416, 0.0
    %v1460 = vsel %vm1335, %v1408, 0.0
    %v1461 = vsel %vm1336, %v1432, 0.0
    %v1462 = vsel %vm1333, %v1425, 0.0
    %v1463 = vsel %vm1334, %v1417, 0.0
    %v1464 = vsel %vm1335, %v1409, 0.0
    %v1465 = vsel %vm1336, %v1433, 0.0
    %v1466 = vadd.f32 %v1301, %v1434
    %v1467 = vadd.f32 %v1302, %v1435
    %v1468 = vadd.f32 %v1303, %v1436
    %v1469 = vadd.f32 %v1304, %v1437
    %v1470 = vadd.f32 %v1305, %v1438
    %v1471 = vadd.f32 %v1306, %v1439
    %v1472 = vadd.f32 %v1307, %v1440
    %v1473 = vadd.f32 %v1308, %v1441
    %v1474 = vadd.f32 %v1309, %v1442
    %v1475 = vadd.f32 %v1310, %v1443
    %v1476 = vadd.f32 %v1311, %v1444
    %v1477 = vadd.f32 %v1312, %v1445
    %v1478 = vadd.f32 %v1313, %v1446
    %v1479 = vadd.f32 %v1314, %v1447
    %v1480 = vadd.f32 %v1315, %v1448
    %v1481 = vadd.f32 %v1316, %v1449
    %v1482 = vadd.f32 %v1317, %v1450
    %v1483 = vadd.f32 %v1318, %v1451
    %v1484 = vadd.f32 %v1319, %v1452
    %v1485 = vadd.f32 %v1320, %v1453
    %v1486 = vadd.f32 %v1321, %v1454
    %v1487 = vadd.f32 %v1322, %v1455
    %v1488 = vadd.f32 %v1323, %v1456
    %v1489 = vadd.f32 %v1324, %v1457
    %v1490 = vadd.f32 %v1325, %v1458
    %v1491 = vadd.f32 %v1326, %v1459
    %v1492 = vadd.f32 %v1327, %v1460
    %v1493 = vadd.f32 %v1328, %v1461
    %v1494 = vadd.f32 %v1329, %v1462
    %v1495 = vadd.f32 %v1330, %v1463
    %v1496 = vadd.f32 %v1331, %v1464
    %v1497 = vadd.f32 %v1332, %v1465
    %v1498 = vmul.f32 %v1466, 2e-05
    %v1499 = vmul.f32 %v1467, 2e-05
    %v1500 = vmul.f32 %v1468, 2e-05
    %v1501 = vmul.f32 %v1469, 2e-05
    %v1502 = vmul.f32 %v1470, 2e-05
    %v1503 = vmul.f32 %v1471, 2e-05
    %v1504 = vmul.f32 %v1472, 2e-05
    %v1505 = vmul.f32 %v1473, 2e-05
    %v1506 = vmul.f32 %v1474, 2e-05
    %v1507 = vmul.f32 %v1475, 2e-05
    %v1508 = vmul.f32 %v1476, 2e-05
    %v1509 = vmul.f32 %v1477, 2e-05
    %v1510 = vmul.f32 %v1478, 2e-05
    %v1511 = vmul.f32 %v1479, 2e-05
    %v1512 = vmul.f32 %v1480, 2e-05
    %v1513 = vmul.f32 %v1481, 2e-05
    %v1514 = vmul.f32 %v1482, 2e-05
    %v1515 = vmul.f32 %v1483, 2e-05
    %v1516 = vmul.f32 %v1484, 2e-05
    %v1517 = vmul.f32 %v1485, 2e-05
    %v1518 = vmul.f32 %v1486, 2e-05
    %v1519 = vmul.f32 %v1487, 2e-05
    %v1520 = vmul.f32 %v1488, 2e-05
    %v1521 = vmul.f32 %v1489, 2e-05
    %v1522 = vmul.f32 %v1490, 2e-05
    %v1523 = vmul.f32 %v1491, 2e-05
    %v1524 = vmul.f32 %v1492, 2e-05
    %v1525 = vmul.f32 %v1493, 2e-05
    %v1526 = vmul.f32 %v1494, 2e-05
    %v1527 = vmul.f32 %v1495, 2e-05
    %v1528 = vmul.f32 %v1496, 2e-05
    %v1529 = vmul.f32 %v1497, 2e-05
    %v1530 = vadd.f32 %v1498, 1.0
    %v1531 = vadd.f32 %v1499, 1.0
    %v1532 = vadd.f32 %v1500, 1.0
    %v1533 = vadd.f32 %v1501, 1.0
    %v1534 = vadd.f32 %v1502, 1.0
    %v1535 = vadd.f32 %v1503, 1.0
    %v1536 = vadd.f32 %v1504, 1.0
    %v1537 = vadd.f32 %v1505, 1.0
    %v1538 = vadd.f32 %v1506, 1.0
    %v1539 = vadd.f32 %v1507, 1.0
    %v1540 = vadd.f32 %v1508, 1.0
    %v1541 = vadd.f32 %v1509, 1.0
    %v1542 = vadd.f32 %v1510, 1.0
    %v1543 = vadd.f32 %v1511, 1.0
    %v1544 = vadd.f32 %v1512, 1.0
    %v1545 = vadd.f32 %v1513, 1.0
    %v1546 = vadd.f32 %v1514, 1.0
    %v1547 = vadd.f32 %v1515, 1.0
    %v1548 = vadd.f32 %v1516, 1.0
    %v1549 = vadd.f32 %v1517, 1.0
    %v1550 = vadd.f32 %v1518, 1.0
    %v1551 = vadd.f32 %v1519, 1.0
    %v1552 = vadd.f32 %v1520, 1.0
    %v1553 = vadd.f32 %v1521, 1.0
    %v1554 = vadd.f32 %v1522, 1.0
    %v1555 = vadd.f32 %v1523, 1.0
    %v1556 = vadd.f32 %v1524, 1.0
    %v1557 = vadd.f32 %v1525, 1.0
    %v1558 = vadd.f32 %v1526, 1.0
    %v1559 = vadd.f32 %v1527, 1.0
    %v1560 = vadd.f32 %v1528, 1.0
    %v1561 = vadd.f32 %v1529, 1.0
    %v1562 = vrsqrt.pop %v1530
    %v1563 = vrsqrt.pop %v1531
    %v1564 = vrsqrt.pop %v1532
    %v1565 = vrsqrt.pop %v1533
    %v1566 = vrsqrt.pop %v1534
    %v1567 = vrsqrt.pop %v1535
    %v1568 = vrsqrt.pop %v1536
    %v1569 = vrsqrt.pop %v1537
    %v1570 = vrsqrt.pop %v1538
    %v1571 = vrsqrt.pop %v1539
    %v1572 = vrsqrt.pop %v1540
    %v1573 = vrsqrt.pop %v1541
    %v1574 = vrsqrt.pop %v1542
    %v1575 = vrsqrt.pop %v1543
    %v1576 = vrsqrt.pop %v1544
    %v1577 = vrsqrt.pop %v1545
    %v1578 = vrsqrt.pop %v1546
    %v1579 = vrsqrt.pop %v1547
    %v1580 = vrsqrt.pop %v1548
    %v1581 = vrsqrt.pop %v1549
    %v1582 = vrsqrt.pop %v1550
    %v1583 = vrsqrt.pop %v1551
    %v1584 = vrsqrt.pop %v1552
    %v1585 = vrsqrt.pop %v1553
    %v1586 = vrsqrt.pop %v1554
    %v1587 = vrsqrt.pop %v1555
    %v1588 = vrsqrt.pop %v1556
    %v1589 = vrsqrt.pop %v1557
    %v1590 = vrsqrt.pop %v1558
    %v1591 = vrsqrt.pop %v1559
    %v1592 = vrsqrt.pop %v1560
    %v1593 = vrsqrt.pop %v1561
    %v1594 = vrsqrt.pop %v1562
    %v1595 = vmul.f32 %v1562, %v1594
    %vm1596 = vcmp.eq.f32.partialorder %v1562, inf
    %v1597 = vsel %vm1596, %v1562, %v1595
    %vm1598 = vcmp.eq.f32.partialorder %v1562, 0.0
    %v1599 = vand.u32 %v1562, 2147483648
    %v1600 = vsel %vm1598, %v1599, %v1597
    %v1601 = vrsqrt.pop %v1563
    %v1602 = vmul.f32 %v1563, %v1601
    %vm1603 = vcmp.eq.f32.partialorder %v1563, inf
    %v1604 = vsel %vm1603, %v1563, %v1602
    %vm1605 = vcmp.eq.f32.partialorder %v1563, 0.0
    %v1606 = vand.u32 %v1563, 2147483648
    %v1607 = vsel %vm1605, %v1606, %v1604
    %v1608 = vrsqrt.pop %v1564
    %v1609 = vmul.f32 %v1564, %v1608
    %vm1610 = vcmp.eq.f32.partialorder %v1564, inf
    %v1611 = vsel %vm1610, %v1564, %v1609
    %vm1612 = vcmp.eq.f32.partialorder %v1564, 0.0
    %v1613 = vand.u32 %v1564, 2147483648
    %v1614 = vsel %vm1612, %v1613, %v1611
    %v1615 = vrsqrt.pop %v1565
    %v1616 = vmul.f32 %v1565, %v1615
    %vm1617 = vcmp.eq.f32.partialorder %v1565, inf
    %v1618 = vsel %vm1617, %v1565, %v1616
    %vm1619 = vcmp.eq.f32.partialorder %v1565, 0.0
    %v1620 = vand.u32 %v1565, 2147483648
    %v1621 = vsel %vm1619, %v1620, %v1618
    %v1622 = vrsqrt.pop %v1566
    %v1623 = vmul.f32 %v1566, %v1622
    %vm1624 = vcmp.eq.f32.partialorder %v1566, inf
    %v1625 = vsel %vm1624, %v1566, %v1623
    %vm1626 = vcmp.eq.f32.partialorder %v1566, 0.0
    %v1627 = vand.u32 %v1566, 2147483648
    %v1628 = vsel %vm1626, %v1627, %v1625
    %v1629 = vrsqrt.pop %v1567
    %v1630 = vmul.f32 %v1567, %v1629
    %vm1631 = vcmp.eq.f32.partialorder %v1567, inf
    %v1632 = vsel %vm1631, %v1567, %v1630
    %vm1633 = vcmp.eq.f32.partialorder %v1567, 0.0
    %v1634 = vand.u32 %v1567, 2147483648
    %v1635 = vsel %vm1633, %v1634, %v1632
    %v1636 = vrsqrt.pop %v1568
    %v1637 = vmul.f32 %v1568, %v1636
    %vm1638 = vcmp.eq.f32.partialorder %v1568, inf
    %v1639 = vsel %vm1638, %v1568, %v1637
    %vm1640 = vcmp.eq.f32.partialorder %v1568, 0.0
    %v1641 = vand.u32 %v1568, 2147483648
    %v1642 = vsel %vm1640, %v1641, %v1639
    %v1643 = vrsqrt.pop %v1569
    %v1644 = vmul.f32 %v1569, %v1643
    %vm1645 = vcmp.eq.f32.partialorder %v1569, inf
    %v1646 = vsel %vm1645, %v1569, %v1644
    %vm1647 = vcmp.eq.f32.partialorder %v1569, 0.0
    %v1648 = vand.u32 %v1569, 2147483648
    %v1649 = vsel %vm1647, %v1648, %v1646
    %v1650 = vrsqrt.pop %v1570
    %v1651 = vmul.f32 %v1570, %v1650
    %vm1652 = vcmp.eq.f32.partialorder %v1570, inf
    %v1653 = vsel %vm1652, %v1570, %v1651
    %vm1654 = vcmp.eq.f32.partialorder %v1570, 0.0
    %v1655 = vand.u32 %v1570, 2147483648
    %v1656 = vsel %vm1654, %v1655, %v1653
    %v1657 = vrsqrt.pop %v1571
    %v1658 = vmul.f32 %v1571, %v1657
    %vm1659 = vcmp.eq.f32.partialorder %v1571, inf
    %v1660 = vsel %vm1659, %v1571, %v1658
    %vm1661 = vcmp.eq.f32.partialorder %v1571, 0.0
    %v1662 = vand.u32 %v1571, 2147483648
    %v1663 = vsel %vm1661, %v1662, %v1660
    %v1664 = vrsqrt.pop %v1572
    %v1665 = vmul.f32 %v1572, %v1664
    %vm1666 = vcmp.eq.f32.partialorder %v1572, inf
    %v1667 = vsel %vm1666, %v1572, %v1665
    %vm1668 = vcmp.eq.f32.partialorder %v1572, 0.0
    %v1669 = vand.u32 %v1572, 2147483648
    %v1670 = vsel %vm1668, %v1669, %v1667
    %v1671 = vrsqrt.pop %v1573
    %v1672 = vmul.f32 %v1573, %v1671
    %vm1673 = vcmp.eq.f32.partialorder %v1573, inf
    %v1674 = vsel %vm1673, %v1573, %v1672
    %vm1675 = vcmp.eq.f32.partialorder %v1573, 0.0
    %v1676 = vand.u32 %v1573, 2147483648
    %v1677 = vsel %vm1675, %v1676, %v1674
    %v1678 = vrsqrt.pop %v1574
    %v1679 = vmul.f32 %v1574, %v1678
    %vm1680 = vcmp.eq.f32.partialorder %v1574, inf
    %v1681 = vsel %vm1680, %v1574, %v1679
    %vm1682 = vcmp.eq.f32.partialorder %v1574, 0.0
    %v1683 = vand.u32 %v1574, 2147483648
    %v1684 = vsel %vm1682, %v1683, %v1681
    %v1685 = vrsqrt.pop %v1575
    %v1686 = vmul.f32 %v1575, %v1685
    %vm1687 = vcmp.eq.f32.partialorder %v1575, inf
    %v1688 = vsel %vm1687, %v1575, %v1686
    %vm1689 = vcmp.eq.f32.partialorder %v1575, 0.0
    %v1690 = vand.u32 %v1575, 2147483648
    %v1691 = vsel %vm1689, %v1690, %v1688
    %v1692 = vrsqrt.pop %v1576
    %v1693 = vmul.f32 %v1576, %v1692
    %vm1694 = vcmp.eq.f32.partialorder %v1576, inf
    %v1695 = vsel %vm1694, %v1576, %v1693
    %vm1696 = vcmp.eq.f32.partialorder %v1576, 0.0
    %v1697 = vand.u32 %v1576, 2147483648
    %v1698 = vsel %vm1696, %v1697, %v1695
    %v1699 = vrsqrt.pop %v1577
    %v1700 = vmul.f32 %v1577, %v1699
    %vm1701 = vcmp.eq.f32.partialorder %v1577, inf
    %v1702 = vsel %vm1701, %v1577, %v1700
    %vm1703 = vcmp.eq.f32.partialorder %v1577, 0.0
    %v1704 = vand.u32 %v1577, 2147483648
    %v1705 = vsel %vm1703, %v1704, %v1702
    %v1706 = vrsqrt.pop %v1578
    %v1707 = vmul.f32 %v1578, %v1706
    %vm1708 = vcmp.eq.f32.partialorder %v1578, inf
    %v1709 = vsel %vm1708, %v1578, %v1707
    %vm1710 = vcmp.eq.f32.partialorder %v1578, 0.0
    %v1711 = vand.u32 %v1578, 2147483648
    %v1712 = vsel %vm1710, %v1711, %v1709
    %v1713 = vrsqrt.pop %v1579
    %v1714 = vmul.f32 %v1579, %v1713
    %vm1715 = vcmp.eq.f32.partialorder %v1579, inf
    %v1716 = vsel %vm1715, %v1579, %v1714
    %vm1717 = vcmp.eq.f32.partialorder %v1579, 0.0
    %v1718 = vand.u32 %v1579, 2147483648
    %v1719 = vsel %vm1717, %v1718, %v1716
    %v1720 = vrsqrt.pop %v1580
    %v1721 = vmul.f32 %v1580, %v1720
    %vm1722 = vcmp.eq.f32.partialorder %v1580, inf
    %v1723 = vsel %vm1722, %v1580, %v1721
    %vm1724 = vcmp.eq.f32.partialorder %v1580, 0.0
    %v1725 = vand.u32 %v1580, 2147483648
    %v1726 = vsel %vm1724, %v1725, %v1723
    %v1727 = vrsqrt.pop %v1581
    %v1728 = vmul.f32 %v1581, %v1727
    %vm1729 = vcmp.eq.f32.partialorder %v1581, inf
    %v1730 = vsel %vm1729, %v1581, %v1728
    %vm1731 = vcmp.eq.f32.partialorder %v1581, 0.0
    %v1732 = vand.u32 %v1581, 2147483648
    %v1733 = vsel %vm1731, %v1732, %v1730
    %v1734 = vrsqrt.pop %v1582
    %v1735 = vmul.f32 %v1582, %v1734
    %vm1736 = vcmp.eq.f32.partialorder %v1582, inf
    %v1737 = vsel %vm1736, %v1582, %v1735
    %vm1738 = vcmp.eq.f32.partialorder %v1582, 0.0
    %v1739 = vand.u32 %v1582, 2147483648
    %v1740 = vsel %vm1738, %v1739, %v1737
    %v1741 = vrsqrt.pop %v1583
    %v1742 = vmul.f32 %v1583, %v1741
    %vm1743 = vcmp.eq.f32.partialorder %v1583, inf
    %v1744 = vsel %vm1743, %v1583, %v1742
    %vm1745 = vcmp.eq.f32.partialorder %v1583, 0.0
    %v1746 = vand.u32 %v1583, 2147483648
    %v1747 = vsel %vm1745, %v1746, %v1744
    %v1748 = vrsqrt.pop %v1584
    %v1749 = vmul.f32 %v1584, %v1748
    %vm1750 = vcmp.eq.f32.partialorder %v1584, inf
    %v1751 = vsel %vm1750, %v1584, %v1749
    %vm1752 = vcmp.eq.f32.partialorder %v1584, 0.0
    %v1753 = vand.u32 %v1584, 2147483648
    %v1754 = vsel %vm1752, %v1753, %v1751
    %v1755 = vrsqrt.pop %v1585
    %v1756 = vmul.f32 %v1585, %v1755
    %vm1757 = vcmp.eq.f32.partialorder %v1585, inf
    %v1758 = vsel %vm1757, %v1585, %v1756
    %vm1759 = vcmp.eq.f32.partialorder %v1585, 0.0
    %v1760 = vand.u32 %v1585, 2147483648
    %v1761 = vsel %vm1759, %v1760, %v1758
    %v1762 = vrsqrt.pop %v1586
    %v1763 = vmul.f32 %v1586, %v1762
    %vm1764 = vcmp.eq.f32.partialorder %v1586, inf
    %v1765 = vsel %vm1764, %v1586, %v1763
    %vm1766 = vcmp.eq.f32.partialorder %v1586, 0.0
    %v1767 = vand.u32 %v1586, 2147483648
    %v1768 = vsel %vm1766, %v1767, %v1765
    %v1769 = vrsqrt.pop %v1587
    %v1770 = vmul.f32 %v1587, %v1769
    %vm1771 = vcmp.eq.f32.partialorder %v1587, inf
    %v1772 = vsel %vm1771, %v1587, %v1770
    %vm1773 = vcmp.eq.f32.partialorder %v1587, 0.0
    %v1774 = vand.u32 %v1587, 2147483648
    %v1775 = vsel %vm1773, %v1774, %v1772
    %v1776 = vrsqrt.pop %v1588
    %v1777 = vmul.f32 %v1588, %v1776
    %vm1778 = vcmp.eq.f32.partialorder %v1588, inf
    %v1779 = vsel %vm1778, %v1588, %v1777
    %vm1780 = vcmp.eq.f32.partialorder %v1588, 0.0
    %v1781 = vand.u32 %v1588, 2147483648
    %v1782 = vsel %vm1780, %v1781, %v1779
    %v1783 = vrsqrt.pop %v1589
    %v1784 = vmul.f32 %v1589, %v1783
    %vm1785 = vcmp.eq.f32.partialorder %v1589, inf
    %v1786 = vsel %vm1785, %v1589, %v1784
    %vm1787 = vcmp.eq.f32.partialorder %v1589, 0.0
    %v1788 = vand.u32 %v1589, 2147483648
    %v1789 = vsel %vm1787, %v1788, %v1786
    %v1790 = vrsqrt.pop %v1590
    %v1791 = vmul.f32 %v1590, %v1790
    %vm1792 = vcmp.eq.f32.partialorder %v1590, inf
    %v1793 = vsel %vm1792, %v1590, %v1791
    %vm1794 = vcmp.eq.f32.partialorder %v1590, 0.0
    %v1795 = vand.u32 %v1590, 2147483648
    %v1796 = vsel %vm1794, %v1795, %v1793
    %v1797 = vrsqrt.pop %v1591
    %v1798 = vmul.f32 %v1591, %v1797
    %vm1799 = vcmp.eq.f32.partialorder %v1591, inf
    %v1800 = vsel %vm1799, %v1591, %v1798
    %vm1801 = vcmp.eq.f32.partialorder %v1591, 0.0
    %v1802 = vand.u32 %v1591, 2147483648
    %v1803 = vsel %vm1801, %v1802, %v1800
    %v1804 = vrsqrt.pop %v1592
    %v1805 = vmul.f32 %v1592, %v1804
    %vm1806 = vcmp.eq.f32.partialorder %v1592, inf
    %v1807 = vsel %vm1806, %v1592, %v1805
    %vm1808 = vcmp.eq.f32.partialorder %v1592, 0.0
    %v1809 = vand.u32 %v1592, 2147483648
    %v1810 = vsel %vm1808, %v1809, %v1807
    %v1811 = vrsqrt.pop %v1593
    %v1812 = vmul.f32 %v1593, %v1811
    %vm1813 = vcmp.eq.f32.partialorder %v1593, inf
    %v1814 = vsel %vm1813, %v1593, %v1812
    %vm1815 = vcmp.eq.f32.partialorder %v1593, 0.0
    %v1816 = vand.u32 %v1593, 2147483648
    %v1817 = vsel %vm1815, %v1816, %v1814
    %v1818 = vmul.f32 %v1562, %v1600
    %v1819 = vmul.f32 %v1563, %v1607
    %v1820 = vmul.f32 %v1564, %v1614
    %v1821 = vmul.f32 %v1565, %v1621
    %v1822 = vmul.f32 %v1566, %v1628
    %v1823 = vmul.f32 %v1567, %v1635
    %v1824 = vmul.f32 %v1568, %v1642
    %v1825 = vmul.f32 %v1569, %v1649
    %v1826 = vmul.f32 %v1570, %v1656
    %v1827 = vmul.f32 %v1571, %v1663
    %v1828 = vmul.f32 %v1572, %v1670
    %v1829 = vmul.f32 %v1573, %v1677
    %v1830 = vmul.f32 %v1574, %v1684
    %v1831 = vmul.f32 %v1575, %v1691
    %v1832 = vmul.f32 %v1576, %v1698
    %v1833 = vmul.f32 %v1577, %v1705
    %v1834 = vmul.f32 %v1578, %v1712
    %v1835 = vmul.f32 %v1579, %v1719
    %v1836 = vmul.f32 %v1580, %v1726
    %v1837 = vmul.f32 %v1581, %v1733
    %v1838 = vmul.f32 %v1582, %v1740
    %v1839 = vmul.f32 %v1583, %v1747
    %v1840 = vmul.f32 %v1584, %v1754
    %v1841 = vmul.f32 %v1585, %v1761
    %v1842 = vmul.f32 %v1586, %v1768
    %v1843 = vmul.f32 %v1587, %v1775
    %v1844 = vmul.f32 %v1588, %v1782
    %v1845 = vmul.f32 %v1589, %v1789
    %v1846 = vmul.f32 %v1590, %v1796
    %v1847 = vmul.f32 %v1591, %v1803
    %v1848 = vmul.f32 %v1592, %v1810
    %v1849 = vmul.f32 %v1593, %v1817
    %v1850 = vmul.f32 %v690, %v1818
    %v1851 = vmul.f32 %v692, %v1819
    %v1852 = vmul.f32 %v763, %v1820
    %v1853 = vmul.f32 %v765, %v1821
    %v1854 = vmul.f32 %v694, %v1822
    %v1855 = vmul.f32 %v696, %v1823
    %v1856 = vmul.f32 %v767, %v1824
    %v1857 = vmul.f32 %v769, %v1825
    %v1858 = vmul.f32 %v700, %v1826
    %v1859 = vmul.f32 %v702, %v1827
    %v1860 = vmul.f32 %v773, %v1828
    %v1861 = vmul.f32 %v775, %v1829
    %v1862 = vmul.f32 %v704, %v1830
    %v1863 = vmul.f32 %v706, %v1831
    %v1864 = vmul.f32 %v777, %v1832
    %v1865 = vmul.f32 %v779, %v1833
    %v1866 = vmul.f32 %v710, %v1834
    %v1867 = vmul.f32 %v712, %v1835
    %v1868 = vmul.f32 %v783, %v1836
    %v1869 = vmul.f32 %v785, %v1837
    %v1870 = vmul.f32 %v714, %v1838
    %v1871 = vmul.f32 %v716, %v1839
    %v1872 = vmul.f32 %v787, %v1840
    %v1873 = vmul.f32 %v789, %v1841
    %v1874 = vmul.f32 %v720, %v1842
    %v1875 = vmul.f32 %v722, %v1843
    %v1876 = vmul.f32 %v793, %v1844
    %v1877 = vmul.f32 %v795, %v1845
    %v1878 = vmul.f32 %v724, %v1846
    %v1879 = vmul.f32 %v726, %v1847
    %v1880 = vmul.f32 %v797, %v1848
    %v1881 = vmul.f32 %v799, %v1849
    %1882 = vst [vmem:[#allocation2] sm:$0xff] %v1850
    %1883 = vst [vmem:[#allocation2 + $0x8] sm:$0xff] %v1851
    %1884 = vst [vmem:[#allocation2 + $0x10] sm:$0xff] %v1852
    %1885 = vst [vmem:[#allocation2 + $0x18] sm:$0xff] %v1853
    %1886 = vst [vmem:[#allocation2 + $0x20] sm:$0xff] %v1854
    %1887 = vst [vmem:[#allocation2 + $0x28] sm:$0xff] %v1855
    %1888 = vst [vmem:[#allocation2 + $0x30] sm:$0xff] %v1856
    %1889 = vst [vmem:[#allocation2 + $0x38] sm:$0xff] %v1857
    %1890 = vst [vmem:[#allocation2 + $0x40] sm:$0xff] %v1858
    %1891 = vst [vmem:[#allocation2 + $0x48] sm:$0xff] %v1859
    %1892 = vst [vmem:[#allocation2 + $0x50] sm:$0xff] %v1860
    %1893 = vst [vmem:[#allocation2 + $0x58] sm:$0xff] %v1861
    %1894 = vst [vmem:[#allocation2 + $0x60] sm:$0xff] %v1862
    %1895 = vst [vmem:[#allocation2 + $0x68] sm:$0xff] %v1863
    %1896 = vst [vmem:[#allocation2 + $0x70] sm:$0xff] %v1864
    %1897 = vst [vmem:[#allocation2 + $0x78] sm:$0xff] %v1865
    %1898 = vst [vmem:[#allocation2 + $0x80] sm:$0xff] %v1866
    %1899 = vst [vmem:[#allocation2 + $0x88] sm:$0xff] %v1867
    %1900 = vst [vmem:[#allocation2 + $0x90] sm:$0xff] %v1868
    %1901 = vst [vmem:[#allocation2 + $0x98] sm:$0xff] %v1869
    %1902 = vst [vmem:[#allocation2 + $0xa0] sm:$0xff] %v1870
    %1903 = vst [vmem:[#allocation2 + $0xa8] sm:$0xff] %v1871
    %1904 = vst [vmem:[#allocation2 + $0xb0] sm:$0xff] %v1872
    %1905 = vst [vmem:[#allocation2 + $0xb8] sm:$0xff] %v1873
    %1906 = vst [vmem:[#allocation2 + $0xc0] sm:$0xff] %v1874
    %1907 = vst [vmem:[#allocation2 + $0xc8] sm:$0xff] %v1875
    %1908 = vst [vmem:[#allocation2 + $0xd0] sm:$0xff] %v1876
    %1909 = vst [vmem:[#allocation2 + $0xd8] sm:$0xff] %v1877
    %1910 = vst [vmem:[#allocation2 + $0xe0] sm:$0xff] %v1878
    %1911 = vst [vmem:[#allocation2 + $0xe8] sm:$0xff] %v1879
    %1912 = vst [vmem:[#allocation2 + $0xf0] sm:$0xff] %v1880
    %1913 = vst [vmem:[#allocation2 + $0xf8] sm:$0xff] %v1881
    // Predicated region
    $region14: #{model_forward.3} parent=1 // pred_check
      _
    $region15: #{model_forward.3} parent=1 // pred_check_branch
      %1915 = sbr.rel (0) target = $region17
    $region16: #{model_forward.3} parent=1 // pred_region
      %s1917 = ssub.s32 4096, 4096
      %1918 = vsyncadd [#allocation3], %s1917
      %s1919 = sshll.u32 [#allocation2], 4
      %s1920 = int_to_ptr.vmem [resolvable:$true] %s1919
      %1925 = dma.vmem_to_hbm [thread:$0]  %s1920, 4096, %s3, [#allocation3], 512, 512, 32
    $region17: #{model_forward.3} parent=1 // pred_fallthru
      _
    // Predicated region
    $region18: #{model_forward.3} parent=1 // pred_check
      _
    $region19: #{model_forward.3} parent=1 // pred_check_branch
      %1927 = sbr.rel (0) target = $region21
    $region20: #{model_forward.3} parent=1 // pred_region
      %1928 = dma.done [#allocation3], 4096
    $region21: #{model_forward.3} parent=1 // pred_fallthru
      _
    %1929 = vsyncpa [#allocation3], 1

// kernel: model_forward.2
$region0: #{model_forward.2}
  #allocation0 [shape = 'u32[]', space=smem, size = 0x4, offset = 0x4, fixed_abs, tag = 'smem constant byte address 0x4 - core index']
  #allocation1 [shape = 'u32[144,128]{1,0:T(1,128)}', space=vmem, size = 0x12000, scoped, tag = 'internal scratch']
  %s0 = inlined_call_operand.vmem [shape: bf16[256,6272], index: 0, kind: input, shape index: {}]
  %s1 = inlined_call_operand.vmem [shape: bf16[6272,256], index: 1, kind: input, shape index: {}]
  %s2 = inlined_call_operand.vmem [shape: f32[1,256], index: 2, kind: input, shape index: {}]
  %s3 = inlined_call_operand.vmem [shape: f32[256,256], index: 3, kind: output, shape index: {}]
  %s4 = sld [smem:[#allocation0]]
  $region45: #{model_forward.2} parent=0
    _
  %s6 = ssub.s32 1, %s4
  %s7 = scalar_select 0, %s6, %s4
  loop: start=0, step=1, limit=4
  $region2: #{model_forward.2} parent=0 // loop_pre_header
    _
  $region3: #{model_forward.2} parent=0 // loop_header
    %s9 = sphi 0, %s13
    %p10 = scmp.ge.s32.totalorder %s9, 4
    %s19 = sphi 0, %s21
    %s22 = sphi 0, %s19
    %s23 = sphi 0, %s22
    %s39 = sphi 0, %s23
    %s43 = sphi 0, %s43
    %s45 = sphi 0, %s43
    %s46 = sphi 0, %s45
    %s60 = sphi 0, %s46
    %s64 = sphi 0, %s64
    %s66 = sphi 0, %s64
    %s67 = sphi 0, %s66
    %s81 = sphi 0, %s67
    %s87 = sphi 0, %s89
    %s90 = sphi 0, %s87
    %s91 = sphi 0, %s90
    %s107 = sphi 0, %s91
  $region4: #{model_forward.2} parent=0 // loop_header_branch
    %12 = sbr.rel (%p10) target = $region8
  $region5: #{model_forward.2} parent=0 // loop_body
    %s14 = ssub.s32 %s9, 1
    %s15 = ssub.s32 %s9, 2
    %s16 = sadd.s32 %s9, 1
    %s17 = ssub.s32 %s9, %s16
    %p18 = scmp.eq.s32.totalorder %s17, 0
    %s20 = sadd.s32 %s19, 1
    %s21 = scalar_select %p18, %s19, %s20
    %p24 = pneg %p18
    %p25 = scmp.eq.s32.totalorder %s9, 1
    %p26 = por %p24, %p25
    %p27 = scmp.ne.s32.totalorder %s19, %s22
    %p28 = scmp.eq.s32.totalorder %s9, 0
    %p29 = por %p27, %p28
    %p30 = scmp.ne.s32.totalorder %s19, %s22
    %p31 = scmp.eq.s32.totalorder %s14, 1
    %p32 = por %p30, %p31
    %p33 = scmp.ne.s32.totalorder %s22, %s23
    %p34 = scmp.eq.s32.totalorder %s14, 0
    %p35 = por %p33, %p34
    %p36 = scmp.ne.s32.totalorder %s22, %s23
    %p37 = scmp.eq.s32.totalorder %s15, 1
    %p38 = por %p36, %p37
    %p40 = scmp.ne.s32.totalorder %s23, %s39
    %p41 = scmp.eq.s32.totalorder %s15, 0
    %p42 = por %p40, %p41
    %s44 = sadd.s32 %s43, 1
    %p47 = scmp.eq.s32.totalorder %s9, 1
    %p48 = scmp.ne.s32.totalorder %s43, %s45
    %p49 = scmp.eq.s32.totalorder %s9, 0
    %p50 = por %p48, %p49
    %p51 = scmp.ne.s32.totalorder %s43, %s45
    %p52 = scmp.eq.s32.totalorder %s14, 1
    %p53 = por %p51, %p52
    %p54 = scmp.ne.s32.totalorder %s45, %s46
    %p55 = scmp.eq.s32.totalorder %s14, 0
    %p56 = por %p54, %p55
    %p57 = scmp.ne.s32.totalorder %s45, %s46
    %p58 = scmp.eq.s32.totalorder %s15, 1
    %p59 = por %p57, %p58
    %p61 = scmp.ne.s32.totalorder %s46, %s60
    %p62 = scmp.eq.s32.totalorder %s15, 0
    %p63 = por %p61, %p62
    %s65 = sadd.s32 %s64, 1
    %p68 = scmp.eq.s32.totalorder %s9, 1
    %p69 = scmp.ne.s32.totalorder %s64, %s66
    %p70 = scmp.eq.s32.totalorder %s9, 0
    %p71 = por %p69, %p70
    %p72 = scmp.ne.s32.totalorder %s64, %s66
    %p73 = scmp.eq.s32.totalorder %s14, 1
    %p74 = por %p72, %p73
    %p75 = scmp.ne.s32.totalorder %s66, %s67
    %p76 = scmp.eq.s32.totalorder %s14, 0
    %p77 = por %p75, %p76
    %p78 = scmp.ne.s32.totalorder %s66, %s67
    %p79 = scmp.eq.s32.totalorder %s15, 1
    %p80 = por %p78, %p79
    %p82 = scmp.ne.s32.totalorder %s67, %s81
    %p83 = scmp.eq.s32.totalorder %s15, 0
    %p84 = por %p82, %p83
    %s85 = ssub.s32 %s9, %s16
    %p86 = scmp.eq.s32.totalorder %s85, 0
    %s88 = sadd.s32 %s87, 1
    %s89 = scalar_select %p86, %s87, %s88
    %p92 = pneg %p86
    %p93 = scmp.eq.s32.totalorder %s9, 1
    %p94 = por %p92, %p93
    %p95 = scmp.ne.s32.totalorder %s87, %s90
    %p96 = scmp.eq.s32.totalorder %s9, 0
    %p97 = por %p95, %p96
    %p98 = scmp.ne.s32.totalorder %s87, %s90
    %p99 = scmp.eq.s32.totalorder %s14, 1
    %p100 = por %p98, %p99
    %p101 = scmp.ne.s32.totalorder %s90, %s91
    %p102 = scmp.eq.s32.totalorder %s14, 0
    %p103 = por %p101, %p102
    %p104 = scmp.ne.s32.totalorder %s90, %s91
    %p105 = scmp.eq.s32.totalorder %s15, 1
    %p106 = por %p104, %p105
    %p108 = scmp.ne.s32.totalorder %s91, %s107
    %p109 = scmp.eq.s32.totalorder %s15, 0
    %p110 = por %p108, %p109
    %p111 = scmp.le.s32.totalorder 1, %s9
    %p112 = scmp.lt.s32.totalorder %s9, 3
    %p113 = pnand %p111, %p112
    %p114 = pneg %p113
    // Predicated region
    $region9: #{model_forward.2} parent=5 // pred_check
      _
    $region10: #{model_forward.2} parent=5 // pred_check_branch
      %116 = sbr.rel (%p113) target = $region12
    $region11: #{model_forward.2} parent=5 // pred_region
      %s117 = ssub.s32 %s9, 1
      // Predicated region
      $region13: #{model_forward.2} parent=11 // pred_check
        %p118 = pneg %p56
      $region14: #{model_forward.2} parent=11 // pred_check_branch
        %120 = sbr.rel (%p118) target = $region16
      $region15: #{model_forward.2} parent=11 // pred_region
        _
      $region16: #{model_forward.2} parent=11 // pred_fallthru
        _
      // Predicated region
      $region17: #{model_forward.2} parent=11 // pred_check
        %p121 = pneg %p77
      $region18: #{model_forward.2} parent=11 // pred_check_branch
        %123 = sbr.rel (%p121) target = $region20
      $region19: #{model_forward.2} parent=11 // pred_region
        _
      $region20: #{model_forward.2} parent=11 // pred_fallthru
        _
    $region12: #{model_forward.2} parent=5 // pred_fallthru
      _
    %p124 = scmp.lt.s32.totalorder %s9, 2
    // Predicated region
    $region21: #{model_forward.2} parent=5 // pred_check
      %p125 = pneg %p124
    $region22: #{model_forward.2} parent=5 // pred_check_branch
      %127 = sbr.rel (%p125) target = $region24
    $region23: #{model_forward.2} parent=5 // pred_region
      // Predicated region
      $region25: #{model_forward.2} parent=23 // pred_check
        %p128 = pneg %p29
      $region26: #{model_forward.2} parent=23 // pred_check_branch
        %130 = sbr.rel (%p128) target = $region28
      $region27: #{model_forward.2} parent=23 // pred_region
        %s131 = smul.u32 16, %s9
        %p132 = scmp.lt.s32.totalorder %s131, 31
        %s133 = scalar_select %p132, %s131, 31
        %s134 = smul.addr %s133, 49
        %s135 = smul.addr %s134, 4
        %s136 = scalar_lea.vmem %s0, %s135
        %s137 = smul.u32 16, %s9
      $region28: #{model_forward.2} parent=23 // pred_fallthru
        _
    $region24: #{model_forward.2} parent=5 // pred_fallthru
      _
    %p138 = scmp.le.s32.totalorder 1, %s9
    %p139 = scmp.lt.s32.totalorder %s9, 3
    %p140 = pnand %p138, %p139
    %p141 = pneg %p140
    // Predicated region
    $region29: #{model_forward.2} parent=5 // pred_check
      _
    $region30: #{model_forward.2} parent=5 // pred_check_branch
      %143 = sbr.rel (%p140) target = $region32
    $region31: #{model_forward.2} parent=5 // pred_region
      %s144 = ssub.s32 %s9, 1
      %s145 = smul.u32 16, %s14
      %p146 = scmp.lt.s32.totalorder %s145, 31
      %s147 = scalar_select %p146, %s145, 31
      %s148 = smul.addr %s147, 49
      %s149 = smul.addr %s148, 4
      %s150 = scalar_lea.vmem %s0, %s149
      %p151 = pneg %p35
      %p152 = pneg %p32
      %p153 = pneg %p56
      %p154 = pneg %p53
      %p155 = pneg %p77
      %p156 = pneg %p74
      %p157 = pneg %p103
      %p158 = pneg %p100
      %s159 = smul.u32 16, %s14
      %p160 = scmp.lt.s32.totalorder %s159, 31
      %s161 = scalar_select %p160, %s159, 31
      %s162 = smul.addr %s161, 2
      %s163 = smul.addr %s162, 8
      %s164 = scalar_lea.vmem %s3, %s163
      %s165 = smul.u32 16, %s14
      %p166 = scmp.lt.s32.totalorder %s165, 31
      %s167 = scalar_select %p166, %s165, 31
      %s168 = smul.addr %s167, 49
      %s169 = smul.addr %s168, 4
      %s170 = scalar_lea.vmem %s0, %s169
      %s171 = smul.u32 16, %s14
      %s172 = smul.u32 16, %s14
      %p173 = scmp.lt.s32.totalorder %s172, 31
      %s174 = scalar_select %p173, %s172, 31
      %s175 = smul.addr %s174, 2
      %s176 = smul.addr %s175, 8
      %s177 = scalar_lea.vmem %s3, %s176
      %s178 = smul.u32 16, %s14
      %v180 = vld [vmem:[%s170] sm:$0xff]
      %v181 = vld [vmem:[%s170 + $0x8] sm:$0xff]
      %v182 = vld [vmem:[%s170 + $0x10] sm:$0xff]
      %v183 = vld [vmem:[%s170 + $0x18] sm:$0xff]
      %v184 = vld [vmem:[%s170 + $0x20] sm:$0xff]
      %v185 = vld [vmem:[%s170 + $0x28] sm:$0xff]
      %v186 = vld [vmem:[%s170 + $0x30] sm:$0xff]
      %v187 = vld [vmem:[%s170 + $0x38] sm:$0xff]
      %v188 = vld [vmem:[%s170 + $0x40] sm:$0xff]
      %v189 = vld [vmem:[%s170 + $0x48] sm:$0xff]
      %v190 = vld [vmem:[%s170 + $0x50] sm:$0xff]
      %v191 = vld [vmem:[%s170 + $0x58] sm:$0xff]
      %v192 = vld [vmem:[%s170 + $0x60] sm:$0xff]
      %v193 = vld [vmem:[%s170 + $0x68] sm:$0xff]
      %v194 = vld [vmem:[%s170 + $0x70] sm:$0xff]
      %v195 = vld [vmem:[%s170 + $0x78] sm:$0xff]
      %v196 = vld [vmem:[%s170 + $0x80] sm:$0xff]
      %v197 = vld [vmem:[%s170 + $0x88] sm:$0xff]
      %v198 = vld [vmem:[%s170 + $0x90] sm:$0xff]
      %v199 = vld [vmem:[%s170 + $0x98] sm:$0xff]
      %v200 = vld [vmem:[%s170 + $0xa0] sm:$0xff]
      %v201 = vld [vmem:[%s170 + $0xa8] sm:$0xff]
      %v202 = vld [vmem:[%s170 + $0xb0] sm:$0xff]
      %v203 = vld [vmem:[%s170 + $0xb8] sm:$0xff]
      %v204 = vld [vmem:[%s170 + $0xc0] sm:$0xf]
      %v205 = vld [vmem:[%s170 + $0xc4] sm:$0xff]
      %v206 = vld [vmem:[%s170 + $0xcc] sm:$0xff]
      %v207 = vld [vmem:[%s170 + $0xd4] sm:$0xff]
      %v208 = vld [vmem:[%s170 + $0xdc] sm:$0xff]
      %v209 = vld [vmem:[%s170 + $0xe4] sm:$0xff]
      %v210 = vld [vmem:[%s170 + $0xec] sm:$0xff]
      %v211 = vld [vmem:[%s170 + $0xf4] sm:$0xff]
      %v212 = vld [vmem:[%s170 + $0xfc] sm:$0xff]
      %v213 = vld [vmem:[%s170 + $0x104] sm:$0xff]
      %v214 = vld [vmem:[%s170 + $0x10c] sm:$0xff]
      %v215 = vld [vmem:[%s170 + $0x114] sm:$0xff]
      %v216 = vld [vmem:[%s170 + $0x11c] sm:$0xff]
      %v217 = vld [vmem:[%s170 + $0x124] sm:$0xff]
      %v218 = vld [vmem:[%s170 + $0x12c] sm:$0xff]
      %v219 = vld [vmem:[%s170 + $0x134] sm:$0xff]
      %v220 = vld [vmem:[%s170 + $0x13c] sm:$0xff]
      %v221 = vld [vmem:[%s170 + $0x144] sm:$0xff]
      %v222 = vld [vmem:[%s170 + $0x14c] sm:$0xff]
      %v223 = vld [vmem:[%s170 + $0x154] sm:$0xff]
      %v224 = vld [vmem:[%s170 + $0x15c] sm:$0xff]
      %v225 = vld [vmem:[%s170 + $0x164] sm:$0xff]
      %v226 = vld [vmem:[%s170 + $0x16c] sm:$0xff]
      %v227 = vld [vmem:[%s170 + $0x174] sm:$0xff]
      %v228 = vld [vmem:[%s170 + $0x17c] sm:$0xff]
      %v229 = vld [vmem:[%s170 + $0x184] sm:$0xf]
      %v230 = vld [vmem:[%s170 + $0x188] sm:$0xff]
      %v231 = vld [vmem:[%s170 + $0x190] sm:$0xff]
      %v232 = vld [vmem:[%s170 + $0x198] sm:$0xff]
      %v233 = vld [vmem:[%s170 + $0x1a0] sm:$0xff]
      %v234 = vld [vmem:[%s170 + $0x1a8] sm:$0xff]
      %v235 = vld [vmem:[%s170 + $0x1b0] sm:$0xff]
      %v236 = vld [vmem:[%s170 + $0x1b8] sm:$0xff]
      %v237 = vld [vmem:[%s170 + $0x1c0] sm:$0xff]
      %v238 = vld [vmem:[%s170 + $0x1c8] sm:$0xff]
      %v239 = vld [vmem:[%s170 + $0x1d0] sm:$0xff]
      %v240 = vld [vmem:[%s170 + $0x1d8] sm:$0xff]
      %v241 = vld [vmem:[%s170 + $0x1e0] sm:$0xff]
      %v242 = vld [vmem:[%s170 + $0x1e8] sm:$0xff]
      %v243 = vld [vmem:[%s170 + $0x1f0] sm:$0xff]
      %v244 = vld [vmem:[%s170 + $0x1f8] sm:$0xff]
      %v245 = vld [vmem:[%s170 + $0x200] sm:$0xff]
      %v246 = vld [vmem:[%s170 + $0x208] sm:$0xff]
      %v247 = vld [vmem:[%s170 + $0x210] sm:$0xff]
      %v248 = vld [vmem:[%s170 + $0x218] sm:$0xff]
      %v249 = vld [vmem:[%s170 + $0x220] sm:$0xff]
      %v250 = vld [vmem:[%s170 + $0x228] sm:$0xff]
      %v251 = vld [vmem:[%s170 + $0x230] sm:$0xff]
      %v252 = vld [vmem:[%s170 + $0x238] sm:$0xff]
      %v253 = vld [vmem:[%s170 + $0x240] sm:$0xff]
      %v254 = vld [vmem:[%s170 + $0x248] sm:$0xf]
      %v255 = vld [vmem:[%s170 + $0x24c] sm:$0xff]
      %v256 = vld [vmem:[%s170 + $0x254] sm:$0xff]
      %v257 = vld [vmem:[%s170 + $0x25c] sm:$0xff]
      %v258 = vld [vmem:[%s170 + $0x264] sm:$0xff]
      %v259 = vld [vmem:[%s170 + $0x26c] sm:$0xff]
      %v260 = vld [vmem:[%s170 + $0x274] sm:$0xff]
      %v261 = vld [vmem:[%s170 + $0x27c] sm:$0xff]
      %v262 = vld [vmem:[%s170 + $0x284] sm:$0xff]
      %v263 = vld [vmem:[%s170 + $0x28c] sm:$0xff]
      %v264 = vld [vmem:[%s170 + $0x294] sm:$0xff]
      %v265 = vld [vmem:[%s170 + $0x29c] sm:$0xff]
      %v266 = vld [vmem:[%s170 + $0x2a4] sm:$0xff]
      %v267 = vld [vmem:[%s170 + $0x2ac] sm:$0xff]
      %v268 = vld [vmem:[%s170 + $0x2b4] sm:$0xff]
      %v269 = vld [vmem:[%s170 + $0x2bc] sm:$0xff]
      %v270 = vld [vmem:[%s170 + $0x2c4] sm:$0xff]
      %v271 = vld [vmem:[%s170 + $0x2cc] sm:$0xff]
      %v272 = vld [vmem:[%s170 + $0x2d4] sm:$0xff]
      %v273 = vld [vmem:[%s170 + $0x2dc] sm:$0xff]
      %v274 = vld [vmem:[%s170 + $0x2e4] sm:$0xff]
      %v275 = vld [vmem:[%s170 + $0x2ec] sm:$0xff]
      %v276 = vld [vmem:[%s170 + $0x2f4] sm:$0xff]
      %v277 = vld [vmem:[%s170 + $0x2fc] sm:$0xff]
      %v278 = vld [vmem:[%s170 + $0x304] sm:$0xff]
      %v279 = vld [vmem:[%s170 + $0x30c] sm:$0xf]
      %v280 = vld [vmem:[%s170 + $0x310] sm:$0xff]
      %v281 = vld [vmem:[%s170 + $0x318] sm:$0xff]
      %v282 = vld [vmem:[%s170 + $0x320] sm:$0xff]
      %v283 = vld [vmem:[%s170 + $0x328] sm:$0xff]
      %v284 = vld [vmem:[%s170 + $0x330] sm:$0xff]
      %v285 = vld [vmem:[%s170 + $0x338] sm:$0xff]
      %v286 = vld [vmem:[%s170 + $0x340] sm:$0xff]
      %v287 = vld [vmem:[%s170 + $0x348] sm:$0xff]
      %v288 = vld [vmem:[%s170 + $0x350] sm:$0xff]
      %v289 = vld [vmem:[%s170 + $0x358] sm:$0xff]
      %v290 = vld [vmem:[%s170 + $0x360] sm:$0xff]
      %v291 = vld [vmem:[%s170 + $0x368] sm:$0xff]
      %v292 = vld [vmem:[%s170 + $0x370] sm:$0xff]
      %v293 = vld [vmem:[%s170 + $0x378] sm:$0xff]
      %v294 = vld [vmem:[%s170 + $0x380] sm:$0xff]
      %v295 = vld [vmem:[%s170 + $0x388] sm:$0xff]
      %v296 = vld [vmem:[%s170 + $0x390] sm:$0xff]
      %v297 = vld [vmem:[%s170 + $0x398] sm:$0xff]
      %v298 = vld [vmem:[%s170 + $0x3a0] sm:$0xff]
      %v299 = vld [vmem:[%s170 + $0x3a8] sm:$0xff]
      %v300 = vld [vmem:[%s170 + $0x3b0] sm:$0xff]
      %v301 = vld [vmem:[%s170 + $0x3b8] sm:$0xff]
      %v302 = vld [vmem:[%s170 + $0x3c0] sm:$0xff]
      %v303 = vld [vmem:[%s170 + $0x3c8] sm:$0xff]
      %v304 = vld [vmem:[%s170 + $0x3d0] sm:$0xf]
      %v305 = vld [vmem:[%s170 + $0x3d4] sm:$0xff]
      %v306 = vld [vmem:[%s170 + $0x3dc] sm:$0xff]
      %v307 = vld [vmem:[%s170 + $0x3e4] sm:$0xff]
      %v308 = vld [vmem:[%s170 + $0x3ec] sm:$0xff]
      %v309 = vld [vmem:[%s170 + $0x3f4] sm:$0xff]
      %v310 = vld [vmem:[%s170 + $0x3fc] sm:$0xff]
      %v311 = vld [vmem:[%s170 + $0x404] sm:$0xff]
      %v312 = vld [vmem:[%s170 + $0x40c] sm:$0xff]
      %v313 = vld [vmem:[%s170 + $0x414] sm:$0xff]
      %v314 = vld [vmem:[%s170 + $0x41c] sm:$0xff]
      %v315 = vld [vmem:[%s170 + $0x424] sm:$0xff]
      %v316 = vld [vmem:[%s170 + $0x42c] sm:$0xff]
      %v317 = vld [vmem:[%s170 + $0x434] sm:$0xff]
      %v318 = vld [vmem:[%s170 + $0x43c] sm:$0xff]
      %v319 = vld [vmem:[%s170 + $0x444] sm:$0xff]
      %v320 = vld [vmem:[%s170 + $0x44c] sm:$0xff]
      %v321 = vld [vmem:[%s170 + $0x454] sm:$0xff]
      %v322 = vld [vmem:[%s170 + $0x45c] sm:$0xff]
      %v323 = vld [vmem:[%s170 + $0x464] sm:$0xff]
      %v324 = vld [vmem:[%s170 + $0x46c] sm:$0xff]
      %v325 = vld [vmem:[%s170 + $0x474] sm:$0xff]
      %v326 = vld [vmem:[%s170 + $0x47c] sm:$0xff]
      %v327 = vld [vmem:[%s170 + $0x484] sm:$0xff]
      %v328 = vld [vmem:[%s170 + $0x48c] sm:$0xff]
      %v329 = vld [vmem:[%s170 + $0x494] sm:$0xf]
      %v330 = vld [vmem:[%s170 + $0x498] sm:$0xff]
      %v331 = vld [vmem:[%s170 + $0x4a0] sm:$0xff]
      %v332 = vld [vmem:[%s170 + $0x4a8] sm:$0xff]
      %v333 = vld [vmem:[%s170 + $0x4b0] sm:$0xff]
      %v334 = vld [vmem:[%s170 + $0x4b8] sm:$0xff]
      %v335 = vld [vmem:[%s170 + $0x4c0] sm:$0xff]
      %v336 = vld [vmem:[%s170 + $0x4c8] sm:$0xff]
      %v337 = vld [vmem:[%s170 + $0x4d0] sm:$0xff]
      %v338 = vld [vmem:[%s170 + $0x4d8] sm:$0xff]
      %v339 = vld [vmem:[%s170 + $0x4e0] sm:$0xff]
      %v340 = vld [vmem:[%s170 + $0x4e8] sm:$0xff]
      %v341 = vld [vmem:[%s170 + $0x4f0] sm:$0xff]
      %v342 = vld [vmem:[%s170 + $0x4f8] sm:$0xff]
      %v343 = vld [vmem:[%s170 + $0x500] sm:$0xff]
      %v344 = vld [vmem:[%s170 + $0x508] sm:$0xff]
      %v345 = vld [vmem:[%s170 + $0x510] sm:$0xff]
      %v346 = vld [vmem:[%s170 + $0x518] sm:$0xff]
      %v347 = vld [vmem:[%s170 + $0x520] sm:$0xff]
      %v348 = vld [vmem:[%s170 + $0x528] sm:$0xff]
      %v349 = vld [vmem:[%s170 + $0x530] sm:$0xff]
      %v350 = vld [vmem:[%s170 + $0x538] sm:$0xff]
      %v351 = vld [vmem:[%s170 + $0x540] sm:$0xff]
      %v352 = vld [vmem:[%s170 + $0x548] sm:$0xff]
      %v353 = vld [vmem:[%s170 + $0x550] sm:$0xff]
      %v354 = vld [vmem:[%s170 + $0x558] sm:$0xf]
      %v355 = vld [vmem:[%s170 + $0x55c] sm:$0xff]
      %v356 = vld [vmem:[%s170 + $0x564] sm:$0xff]
      %v357 = vld [vmem:[%s170 + $0x56c] sm:$0xff]
      %v358 = vld [vmem:[%s170 + $0x574] sm:$0xff]
      %v359 = vld [vmem:[%s170 + $0x57c] sm:$0xff]
      %v360 = vld [vmem:[%s170 + $0x584] sm:$0xff]
      %v361 = vld [vmem:[%s170 + $0x58c] sm:$0xff]
      %v362 = vld [vmem:[%s170 + $0x594] sm:$0xff]
      %v363 = vld [vmem:[%s170 + $0x59c] sm:$0xff]
      %v364 = vld [vmem:[%s170 + $0x5a4] sm:$0xff]
      %v365 = vld [vmem:[%s170 + $0x5ac] sm:$0xff]
      %v366 = vld [vmem:[%s170 + $0x5b4] sm:$0xff]
      %v367 = vld [vmem:[%s170 + $0x5bc] sm:$0xff]
      %v368 = vld [vmem:[%s170 + $0x5c4] sm:$0xff]
      %v369 = vld [vmem:[%s170 + $0x5cc] sm:$0xff]
      %v370 = vld [vmem:[%s170 + $0x5d4] sm:$0xff]
      %v371 = vld [vmem:[%s170 + $0x5dc] sm:$0xff]
      %v372 = vld [vmem:[%s170 + $0x5e4] sm:$0xff]
      %v373 = vld [vmem:[%s170 + $0x5ec] sm:$0xff]
      %v374 = vld [vmem:[%s170 + $0x5f4] sm:$0xff]
      %v375 = vld [vmem:[%s170 + $0x5fc] sm:$0xff]
      %v376 = vld [vmem:[%s170 + $0x604] sm:$0xff]
      %v377 = vld [vmem:[%s170 + $0x60c] sm:$0xff]
      %v378 = vld [vmem:[%s170 + $0x614] sm:$0xff]
      %v379 = vld [vmem:[%s170 + $0x61c] sm:$0xf]
      %v380 = vld [vmem:[%s170 + $0x620] sm:$0xff]
      %v381 = vld [vmem:[%s170 + $0x628] sm:$0xff]
      %v382 = vld [vmem:[%s170 + $0x630] sm:$0xff]
      %v383 = vld [vmem:[%s170 + $0x638] sm:$0xff]
      %v384 = vld [vmem:[%s170 + $0x640] sm:$0xff]
      %v385 = vld [vmem:[%s170 + $0x648] sm:$0xff]
      %v386 = vld [vmem:[%s170 + $0x650] sm:$0xff]
      %v387 = vld [vmem:[%s170 + $0x658] sm:$0xff]
      %v388 = vld [vmem:[%s170 + $0x660] sm:$0xff]
      %v389 = vld [vmem:[%s170 + $0x668] sm:$0xff]
      %v390 = vld [vmem:[%s170 + $0x670] sm:$0xff]
      %v391 = vld [vmem:[%s170 + $0x678] sm:$0xff]
      %v392 = vld [vmem:[%s170 + $0x680] sm:$0xff]
      %v393 = vld [vmem:[%s170 + $0x688] sm:$0xff]
      %v394 = vld [vmem:[%s170 + $0x690] sm:$0xff]
      %v395 = vld [vmem:[%s170 + $0x698] sm:$0xff]
      %v396 = vld [vmem:[%s170 + $0x6a0] sm:$0xff]
      %v397 = vld [vmem:[%s170 + $0x6a8] sm:$0xff]
      %v398 = vld [vmem:[%s170 + $0x6b0] sm:$0xff]
      %v399 = vld [vmem:[%s170 + $0x6b8] sm:$0xff]
      %v400 = vld [vmem:[%s170 + $0x6c0] sm:$0xff]
      %v401 = vld [vmem:[%s170 + $0x6c8] sm:$0xff]
      %v402 = vld [vmem:[%s170 + $0x6d0] sm:$0xff]
      %v403 = vld [vmem:[%s170 + $0x6d8] sm:$0xff]
      %v404 = vld [vmem:[%s170 + $0x6e0] sm:$0xf]
      %v405 = vld [vmem:[%s170 + $0x6e4] sm:$0xff]
      %v406 = vld [vmem:[%s170 + $0x6ec] sm:$0xff]
      %v407 = vld [vmem:[%s170 + $0x6f4] sm:$0xff]
      %v408 = vld [vmem:[%s170 + $0x6fc] sm:$0xff]
      %v409 = vld [vmem:[%s170 + $0x704] sm:$0xff]
      %v410 = vld [vmem:[%s170 + $0x70c] sm:$0xff]
      %v411 = vld [vmem:[%s170 + $0x714] sm:$0xff]
      %v412 = vld [vmem:[%s170 + $0x71c] sm:$0xff]
      %v413 = vld [vmem:[%s170 + $0x724] sm:$0xff]
      %v414 = vld [vmem:[%s170 + $0x72c] sm:$0xff]
      %v415 = vld [vmem:[%s170 + $0x734] sm:$0xff]
      %v416 = vld [vmem:[%s170 + $0x73c] sm:$0xff]
      %v417 = vld [vmem:[%s170 + $0x744] sm:$0xff]
      %v418 = vld [vmem:[%s170 + $0x74c] sm:$0xff]
      %v419 = vld [vmem:[%s170 + $0x754] sm:$0xff]
      %v420 = vld [vmem:[%s170 + $0x75c] sm:$0xff]
      %v421 = vld [vmem:[%s170 + $0x764] sm:$0xff]
      %v422 = vld [vmem:[%s170 + $0x76c] sm:$0xff]
      %v423 = vld [vmem:[%s170 + $0x774] sm:$0xff]
      %v424 = vld [vmem:[%s170 + $0x77c] sm:$0xff]
      %v425 = vld [vmem:[%s170 + $0x784] sm:$0xff]
      %v426 = vld [vmem:[%s170 + $0x78c] sm:$0xff]
      %v427 = vld [vmem:[%s170 + $0x794] sm:$0xff]
      %v428 = vld [vmem:[%s170 + $0x79c] sm:$0xff]
      %v429 = vld [vmem:[%s170 + $0x7a4] sm:$0xf]
      %v430 = vld [vmem:[%s170 + $0x7a8] sm:$0xff]
      %v431 = vld [vmem:[%s170 + $0x7b0] sm:$0xff]
      %v432 = vld [vmem:[%s170 + $0x7b8] sm:$0xff]
      %v433 = vld [vmem:[%s170 + $0x7c0] sm:$0xff]
      %v434 = vld [vmem:[%s170 + $0x7c8] sm:$0xff]
      %v435 = vld [vmem:[%s170 + $0x7d0] sm:$0xff]
      %v436 = vld [vmem:[%s170 + $0x7d8] sm:$0xff]
      %v437 = vld [vmem:[%s170 + $0x7e0] sm:$0xff]
      %v438 = vld [vmem:[%s170 + $0x7e8] sm:$0xff]
      %v439 = vld [vmem:[%s170 + $0x7f0] sm:$0xff]
      %v440 = vld [vmem:[%s170 + $0x7f8] sm:$0xff]
      %v441 = vld [vmem:[%s170 + $0x800] sm:$0xff]
      %v442 = vld [vmem:[%s170 + $0x808] sm:$0xff]
      %v443 = vld [vmem:[%s170 + $0x810] sm:$0xff]
      %v444 = vld [vmem:[%s170 + $0x818] sm:$0xff]
      %v445 = vld [vmem:[%s170 + $0x820] sm:$0xff]
      %v446 = vld [vmem:[%s170 + $0x828] sm:$0xff]
      %v447 = vld [vmem:[%s170 + $0x830] sm:$0xff]
      %v448 = vld [vmem:[%s170 + $0x838] sm:$0xff]
      %v449 = vld [vmem:[%s170 + $0x840] sm:$0xff]
      %v450 = vld [vmem:[%s170 + $0x848] sm:$0xff]
      %v451 = vld [vmem:[%s170 + $0x850] sm:$0xff]
      %v452 = vld [vmem:[%s170 + $0x858] sm:$0xff]
      %v453 = vld [vmem:[%s170 + $0x860] sm:$0xff]
      %v454 = vld [vmem:[%s170 + $0x868] sm:$0xf]
      %v455 = vld [vmem:[%s170 + $0x86c] sm:$0xff]
      %v456 = vld [vmem:[%s170 + $0x874] sm:$0xff]
      %v457 = vld [vmem:[%s170 + $0x87c] sm:$0xff]
      %v458 = vld [vmem:[%s170 + $0x884] sm:$0xff]
      %v459 = vld [vmem:[%s170 + $0x88c] sm:$0xff]
      %v460 = vld [vmem:[%s170 + $0x894] sm:$0xff]
      %v461 = vld [vmem:[%s170 + $0x89c] sm:$0xff]
      %v462 = vld [vmem:[%s170 + $0x8a4] sm:$0xff]
      %v463 = vld [vmem:[%s170 + $0x8ac] sm:$0xff]
      %v464 = vld [vmem:[%s170 + $0x8b4] sm:$0xff]
      %v465 = vld [vmem:[%s170 + $0x8bc] sm:$0xff]
      %v466 = vld [vmem:[%s170 + $0x8c4] sm:$0xff]
      %v467 = vld [vmem:[%s170 + $0x8cc] sm:$0xff]
      %v468 = vld [vmem:[%s170 + $0x8d4] sm:$0xff]
      %v469 = vld [vmem:[%s170 + $0x8dc] sm:$0xff]
      %v470 = vld [vmem:[%s170 + $0x8e4] sm:$0xff]
      %v471 = vld [vmem:[%s170 + $0x8ec] sm:$0xff]
      %v472 = vld [vmem:[%s170 + $0x8f4] sm:$0xff]
      %v473 = vld [vmem:[%s170 + $0x8fc] sm:$0xff]
      %v474 = vld [vmem:[%s170 + $0x904] sm:$0xff]
      %v475 = vld [vmem:[%s170 + $0x90c] sm:$0xff]
      %v476 = vld [vmem:[%s170 + $0x914] sm:$0xff]
      %v477 = vld [vmem:[%s170 + $0x91c] sm:$0xff]
      %v478 = vld [vmem:[%s170 + $0x924] sm:$0xff]
      %v479 = vld [vmem:[%s170 + $0x92c] sm:$0xf]
      %v480 = vld [vmem:[%s170 + $0x930] sm:$0xff]
      %v481 = vld [vmem:[%s170 + $0x938] sm:$0xff]
      %v482 = vld [vmem:[%s170 + $0x940] sm:$0xff]
      %v483 = vld [vmem:[%s170 + $0x948] sm:$0xff]
      %v484 = vld [vmem:[%s170 + $0x950] sm:$0xff]
      %v485 = vld [vmem:[%s170 + $0x958] sm:$0xff]
      %v486 = vld [vmem:[%s170 + $0x960] sm:$0xff]
      %v487 = vld [vmem:[%s170 + $0x968] sm:$0xff]
      %v488 = vld [vmem:[%s170 + $0x970] sm:$0xff]
      %v489 = vld [vmem:[%s170 + $0x978] sm:$0xff]
      %v490 = vld [vmem:[%s170 + $0x980] sm:$0xff]
      %v491 = vld [vmem:[%s170 + $0x988] sm:$0xff]
      %v492 = vld [vmem:[%s170 + $0x990] sm:$0xff]
      %v493 = vld [vmem:[%s170 + $0x998] sm:$0xff]
      %v494 = vld [vmem:[%s170 + $0x9a0] sm:$0xff]
      %v495 = vld [vmem:[%s170 + $0x9a8] sm:$0xff]
      %v496 = vld [vmem:[%s170 + $0x9b0] sm:$0xff]
      %v497 = vld [vmem:[%s170 + $0x9b8] sm:$0xff]
      %v498 = vld [vmem:[%s170 + $0x9c0] sm:$0xff]
      %v499 = vld [vmem:[%s170 + $0x9c8] sm:$0xff]
      %v500 = vld [vmem:[%s170 + $0x9d0] sm:$0xff]
      %v501 = vld [vmem:[%s170 + $0x9d8] sm:$0xff]
      %v502 = vld [vmem:[%s170 + $0x9e0] sm:$0xff]
      %v503 = vld [vmem:[%s170 + $0x9e8] sm:$0xff]
      %v504 = vld [vmem:[%s170 + $0x9f0] sm:$0xf]
      %v505 = vld [vmem:[%s170 + $0x9f4] sm:$0xff]
      %v506 = vld [vmem:[%s170 + $0x9fc] sm:$0xff]
      %v507 = vld [vmem:[%s170 + $0xa04] sm:$0xff]
      %v508 = vld [vmem:[%s170 + $0xa0c] sm:$0xff]
      %v509 = vld [vmem:[%s170 + $0xa14] sm:$0xff]
      %v510 = vld [vmem:[%s170 + $0xa1c] sm:$0xff]
      %v511 = vld [vmem:[%s170 + $0xa24] sm:$0xff]
      %v512 = vld [vmem:[%s170 + $0xa2c] sm:$0xff]
      %v513 = vld [vmem:[%s170 + $0xa34] sm:$0xff]
      %v514 = vld [vmem:[%s170 + $0xa3c] sm:$0xff]
      %v515 = vld [vmem:[%s170 + $0xa44] sm:$0xff]
      %v516 = vld [vmem:[%s170 + $0xa4c] sm:$0xff]
      %v517 = vld [vmem:[%s170 + $0xa54] sm:$0xff]
      %v518 = vld [vmem:[%s170 + $0xa5c] sm:$0xff]
      %v519 = vld [vmem:[%s170 + $0xa64] sm:$0xff]
      %v520 = vld [vmem:[%s170 + $0xa6c] sm:$0xff]
      %v521 = vld [vmem:[%s170 + $0xa74] sm:$0xff]
      %v522 = vld [vmem:[%s170 + $0xa7c] sm:$0xff]
      %v523 = vld [vmem:[%s170 + $0xa84] sm:$0xff]
      %v524 = vld [vmem:[%s170 + $0xa8c] sm:$0xff]
      %v525 = vld [vmem:[%s170 + $0xa94] sm:$0xff]
      %v526 = vld [vmem:[%s170 + $0xa9c] sm:$0xff]
      %v527 = vld [vmem:[%s170 + $0xaa4] sm:$0xff]
      %v528 = vld [vmem:[%s170 + $0xaac] sm:$0xff]
      %v529 = vld [vmem:[%s170 + $0xab4] sm:$0xf]
      %v530 = vld [vmem:[%s170 + $0xab8] sm:$0xff]
      %v531 = vld [vmem:[%s170 + $0xac0] sm:$0xff]
      %v532 = vld [vmem:[%s170 + $0xac8] sm:$0xff]
      %v533 = vld [vmem:[%s170 + $0xad0] sm:$0xff]
      %v534 = vld [vmem:[%s170 + $0xad8] sm:$0xff]
      %v535 = vld [vmem:[%s170 + $0xae0] sm:$0xff]
      %v536 = vld [vmem:[%s170 + $0xae8] sm:$0xff]
      %v537 = vld [vmem:[%s170 + $0xaf0] sm:$0xff]
      %v538 = vld [vmem:[%s170 + $0xaf8] sm:$0xff]
      %v539 = vld [vmem:[%s170 + $0xb00] sm:$0xff]
      %v540 = vld [vmem:[%s170 + $0xb08] sm:$0xff]
      %v541 = vld [vmem:[%s170 + $0xb10] sm:$0xff]
      %v542 = vld [vmem:[%s170 + $0xb18] sm:$0xff]
      %v543 = vld [vmem:[%s170 + $0xb20] sm:$0xff]
      %v544 = vld [vmem:[%s170 + $0xb28] sm:$0xff]
      %v545 = vld [vmem:[%s170 + $0xb30] sm:$0xff]
      %v546 = vld [vmem:[%s170 + $0xb38] sm:$0xff]
      %v547 = vld [vmem:[%s170 + $0xb40] sm:$0xff]
      %v548 = vld [vmem:[%s170 + $0xb48] sm:$0xff]
      %v549 = vld [vmem:[%s170 + $0xb50] sm:$0xff]
      %v550 = vld [vmem:[%s170 + $0xb58] sm:$0xff]
      %v551 = vld [vmem:[%s170 + $0xb60] sm:$0xff]
      %v552 = vld [vmem:[%s170 + $0xb68] sm:$0xff]
      %v553 = vld [vmem:[%s170 + $0xb70] sm:$0xff]
      %v554 = vld [vmem:[%s170 + $0xb78] sm:$0xf]
      %v555 = vld [vmem:[%s170 + $0xb7c] sm:$0xff]
      %v556 = vld [vmem:[%s170 + $0xb84] sm:$0xff]
      %v557 = vld [vmem:[%s170 + $0xb8c] sm:$0xff]
      %v558 = vld [vmem:[%s170 + $0xb94] sm:$0xff]
      %v559 = vld [vmem:[%s170 + $0xb9c] sm:$0xff]
      %v560 = vld [vmem:[%s170 + $0xba4] sm:$0xff]
      %v561 = vld [vmem:[%s170 + $0xbac] sm:$0xff]
      %v562 = vld [vmem:[%s170 + $0xbb4] sm:$0xff]
      %v563 = vld [vmem:[%s170 + $0xbbc] sm:$0xff]
      %v564 = vld [vmem:[%s170 + $0xbc4] sm:$0xff]
      %v565 = vld [vmem:[%s170 + $0xbcc] sm:$0xff]
      %v566 = vld [vmem:[%s170 + $0xbd4] sm:$0xff]
      %v567 = vld [vmem:[%s170 + $0xbdc] sm:$0xff]
      %v568 = vld [vmem:[%s170 + $0xbe4] sm:$0xff]
      %v569 = vld [vmem:[%s170 + $0xbec] sm:$0xff]
      %v570 = vld [vmem:[%s170 + $0xbf4] sm:$0xff]
      %v571 = vld [vmem:[%s170 + $0xbfc] sm:$0xff]
      %v572 = vld [vmem:[%s170 + $0xc04] sm:$0xff]
      %v573 = vld [vmem:[%s170 + $0xc0c] sm:$0xff]
      %v574 = vld [vmem:[%s170 + $0xc14] sm:$0xff]
      %v575 = vld [vmem:[%s170 + $0xc1c] sm:$0xff]
      %v576 = vld [vmem:[%s170 + $0xc24] sm:$0xff]
      %v577 = vld [vmem:[%s170 + $0xc2c] sm:$0xff]
      %v578 = vld [vmem:[%s170 + $0xc34] sm:$0xff]
      %v579 = vld [vmem:[%s170 + $0xc3c] sm:$0xf]
      %v580 = vld [vmem:[%s1] sm:$0xff]
      %v581 = vld [vmem:[%s1 + $0x8] sm:$0xff]
      %v582 = vld [vmem:[%s1 + $0x10] sm:$0xff]
      %v583 = vld [vmem:[%s1 + $0x18] sm:$0xff]
      %v584 = vld [vmem:[%s1 + $0x20] sm:$0xff]
      %v585 = vld [vmem:[%s1 + $0x28] sm:$0xff]
      %v586 = vld [vmem:[%s1 + $0x30] sm:$0xff]
      %v587 = vld [vmem:[%s1 + $0x38] sm:$0xff]
      %v588 = vld [vmem:[%s1 + $0x40] sm:$0xff]
      %v589 = vld [vmem:[%s1 + $0x48] sm:$0xff]
      %v590 = vld [vmem:[%s1 + $0x50] sm:$0xff]
      %v591 = vld [vmem:[%s1 + $0x58] sm:$0xff]
      %v592 = vld [vmem:[%s1 + $0x60] sm:$0xff]
      %v593 = vld [vmem:[%s1 + $0x68] sm:$0xff]
      %v594 = vld [vmem:[%s1 + $0x70] sm:$0xff]
      %v595 = vld [vmem:[%s1 + $0x78] sm:$0xff]
      %v596 = vld [vmem:[%s1 + $0x80] sm:$0xff]
      %v597 = vld [vmem:[%s1 + $0x88] sm:$0xff]
      %v598 = vld [vmem:[%s1 + $0x90] sm:$0xff]
      %v599 = vld [vmem:[%s1 + $0x98] sm:$0xff]
      %v600 = vld [vmem:[%s1 + $0xa0] sm:$0xff]
      %v601 = vld [vmem:[%s1 + $0xa8] sm:$0xff]
      %v602 = vld [vmem:[%s1 + $0xb0] sm:$0xff]
      %v603 = vld [vmem:[%s1 + $0xb8] sm:$0xff]
      %v604 = vld [vmem:[%s1 + $0xc0] sm:$0xff]
      %v605 = vld [vmem:[%s1 + $0xc8] sm:$0xff]
      %v606 = vld [vmem:[%s1 + $0xd0] sm:$0xff]
      %v607 = vld [vmem:[%s1 + $0xd8] sm:$0xff]
      %v608 = vld [vmem:[%s1 + $0xe0] sm:$0xff]
      %v609 = vld [vmem:[%s1 + $0xe8] sm:$0xff]
      %v610 = vld [vmem:[%s1 + $0xf0] sm:$0xff]
      %v611 = vld [vmem:[%s1 + $0xf8] sm:$0xff]
      %v612 = vld [vmem:[%s1 + $0x100] sm:$0xff]
      %v613 = vld [vmem:[%s1 + $0x108] sm:$0xff]
      %v614 = vld [vmem:[%s1 + $0x110] sm:$0xff]
      %v615 = vld [vmem:[%s1 + $0x118] sm:$0xff]
      %v616 = vld [vmem:[%s1 + $0x120] sm:$0xff]
      %v617 = vld [vmem:[%s1 + $0x128] sm:$0xff]
      %v618 = vld [vmem:[%s1 + $0x130] sm:$0xff]
      %v619 = vld [vmem:[%s1 + $0x138] sm:$0xff]
      %v620 = vld [vmem:[%s1 + $0x140] sm:$0xff]
      %v621 = vld [vmem:[%s1 + $0x148] sm:$0xff]
      %v622 = vld [vmem:[%s1 + $0x150] sm:$0xff]
      %v623 = vld [vmem:[%s1 + $0x158] sm:$0xff]
      %v624 = vld [vmem:[%s1 + $0x160] sm:$0xff]
      %v625 = vld [vmem:[%s1 + $0x168] sm:$0xff]
      %v626 = vld [vmem:[%s1 + $0x170] sm:$0xff]
      %v627 = vld [vmem:[%s1 + $0x178] sm:$0xff]
      %v628 = vld [vmem:[%s1 + $0x180] sm:$0xff]
      %v629 = vld [vmem:[%s1 + $0x188] sm:$0xff]
      %v630 = vld [vmem:[%s1 + $0x190] sm:$0xff]
      %v631 = vld [vmem:[%s1 + $0x198] sm:$0xff]
      %v632 = vld [vmem:[%s1 + $0x1a0] sm:$0xff]
      %v633 = vld [vmem:[%s1 + $0x1a8] sm:$0xff]
      %v634 = vld [vmem:[%s1 + $0x1b0] sm:$0xff]
      %v635 = vld [vmem:[%s1 + $0x1b8] sm:$0xff]
      %v636 = vld [vmem:[%s1 + $0x1c0] sm:$0xff]
      %v637 = vld [vmem:[%s1 + $0x1c8] sm:$0xff]
      %v638 = vld [vmem:[%s1 + $0x1d0] sm:$0xff]
      %v639 = vld [vmem:[%s1 + $0x1d8] sm:$0xff]
      %v640 = vld [vmem:[%s1 + $0x1e0] sm:$0xff]
      %v641 = vld [vmem:[%s1 + $0x1e8] sm:$0xff]
      %v642 = vld [vmem:[%s1 + $0x1f0] sm:$0xff]
      %v643 = vld [vmem:[%s1 + $0x1f8] sm:$0xff]
      %v644 = vld [vmem:[%s1 + $0x200] sm:$0xff]
      %v645 = vld [vmem:[%s1 + $0x208] sm:$0xff]
      %v646 = vld [vmem:[%s1 + $0x210] sm:$0xff]
      %v647 = vld [vmem:[%s1 + $0x218] sm:$0xff]
      %v648 = vld [vmem:[%s1 + $0x220] sm:$0xff]
      %v649 = vld [vmem:[%s1 + $0x228] sm:$0xff]
      %v650 = vld [vmem:[%s1 + $0x230] sm:$0xff]
      %v651 = vld [vmem:[%s1 + $0x238] sm:$0xff]
      %v652 = vld [vmem:[%s1 + $0x240] sm:$0xff]
      %v653 = vld [vmem:[%s1 + $0x248] sm:$0xff]
      %v654 = vld [vmem:[%s1 + $0x250] sm:$0xff]
      %v655 = vld [vmem:[%s1 + $0x258] sm:$0xff]
      %v656 = vld [vmem:[%s1 + $0x260] sm:$0xff]
      %v657 = vld [vmem:[%s1 + $0x268] sm:$0xff]
      %v658 = vld [vmem:[%s1 + $0x270] sm:$0xff]
      %v659 = vld [vmem:[%s1 + $0x278] sm:$0xff]
      %v660 = vld [vmem:[%s1 + $0x280] sm:$0xff]
      %v661 = vld [vmem:[%s1 + $0x288] sm:$0xff]
      %v662 = vld [vmem:[%s1 + $0x290] sm:$0xff]
      %v663 = vld [vmem:[%s1 + $0x298] sm:$0xff]
      %v664 = vld [vmem:[%s1 + $0x2a0] sm:$0xff]
      %v665 = vld [vmem:[%s1 + $0x2a8] sm:$0xff]
      %v666 = vld [vmem:[%s1 + $0x2b0] sm:$0xff]
      %v667 = vld [vmem:[%s1 + $0x2b8] sm:$0xff]
      %v668 = vld [vmem:[%s1 + $0x2c0] sm:$0xff]
      %v669 = vld [vmem:[%s1 + $0x2c8] sm:$0xff]
      %v670 = vld [vmem:[%s1 + $0x2d0] sm:$0xff]
      %v671 = vld [vmem:[%s1 + $0x2d8] sm:$0xff]
      %v672 = vld [vmem:[%s1 + $0x2e0] sm:$0xff]
      %v673 = vld [vmem:[%s1 + $0x2e8] sm:$0xff]
      %v674 = vld [vmem:[%s1 + $0x2f0] sm:$0xff]
      %v675 = vld [vmem:[%s1 + $0x2f8] sm:$0xff]
      %v676 = vld [vmem:[%s1 + $0x300] sm:$0xff]
      %v677 = vld [vmem:[%s1 + $0x308] sm:$0xff]
      %v678 = vld [vmem:[%s1 + $0x310] sm:$0xff]
      %v679 = vld [vmem:[%s1 + $0x318] sm:$0xff]
      %v680 = vld [vmem:[%s1 + $0x320] sm:$0xff]
      %v681 = vld [vmem:[%s1 + $0x328] sm:$0xff]
      %v682 = vld [vmem:[%s1 + $0x330] sm:$0xff]
      %v683 = vld [vmem:[%s1 + $0x338] sm:$0xff]
      %v684 = vld [vmem:[%s1 + $0x340] sm:$0xff]
      %v685 = vld [vmem:[%s1 + $0x348] sm:$0xff]
      %v686 = vld [vmem:[%s1 + $0x350] sm:$0xff]
      %v687 = vld [vmem:[%s1 + $0x358] sm:$0xff]
      %v688 = vld [vmem:[%s1 + $0x360] sm:$0xff]
      %v689 = vld [vmem:[%s1 + $0x368] sm:$0xff]
      %v690 = vld [vmem:[%s1 + $0x370] sm:$0xff]
      %v691 = vld [vmem:[%s1 + $0x378] sm:$0xff]
      %v692 = vld [vmem:[%s1 + $0x380] sm:$0xff]
      %v693 = vld [vmem:[%s1 + $0x388] sm:$0xff]
      %v694 = vld [vmem:[%s1 + $0x390] sm:$0xff]
      %v695 = vld [vmem:[%s1 + $0x398] sm:$0xff]
      %v696 = vld [vmem:[%s1 + $0x3a0] sm:$0xff]
      %v697 = vld [vmem:[%s1 + $0x3a8] sm:$0xff]
      %v698 = vld [vmem:[%s1 + $0x3b0] sm:$0xff]
      %v699 = vld [vmem:[%s1 + $0x3b8] sm:$0xff]
      %v700 = vld [vmem:[%s1 + $0x3c0] sm:$0xff]
      %v701 = vld [vmem:[%s1 + $0x3c8] sm:$0xff]
      %v702 = vld [vmem:[%s1 + $0x3d0] sm:$0xff]
      %v703 = vld [vmem:[%s1 + $0x3d8] sm:$0xff]
      %v704 = vld [vmem:[%s1 + $0x3e0] sm:$0xff]
      %v705 = vld [vmem:[%s1 + $0x3e8] sm:$0xff]
      %v706 = vld [vmem:[%s1 + $0x3f0] sm:$0xff]
      %v707 = vld [vmem:[%s1 + $0x3f8] sm:$0xff]
      %v708 = vld [vmem:[%s1 + $0x400] sm:$0xff]
      %v709 = vld [vmem:[%s1 + $0x408] sm:$0xff]
      %v710 = vld [vmem:[%s1 + $0x410] sm:$0xff]
      %v711 = vld [vmem:[%s1 + $0x418] sm:$0xff]
      %v712 = vld [vmem:[%s1 + $0x420] sm:$0xff]
      %v713 = vld [vmem:[%s1 + $0x428] sm:$0xff]
      %v714 = vld [vmem:[%s1 + $0x430] sm:$0xff]
      %v715 = vld [vmem:[%s1 + $0x438] sm:$0xff]
      %v716 = vld [vmem:[%s1 + $0x440] sm:$0xff]
      %v717 = vld [vmem:[%s1 + $0x448] sm:$0xff]
      %v718 = vld [vmem:[%s1 + $0x450] sm:$0xff]
      %v719 = vld [vmem:[%s1 + $0x458] sm:$0xff]
      %v720 = vld [vmem:[%s1 + $0x460] sm:$0xff]
      %v721 = vld [vmem:[%s1 + $0x468] sm:$0xff]
      %v722 = vld [vmem:[%s1 + $0x470] sm:$0xff]
      %v723 = vld [vmem:[%s1 + $0x478] sm:$0xff]
      %v724 = vld [vmem:[%s1 + $0x480] sm:$0xff]
      %v725 = vld [vmem:[%s1 + $0x488] sm:$0xff]
      %v726 = vld [vmem:[%s1 + $0x490] sm:$0xff]
      %v727 = vld [vmem:[%s1 + $0x498] sm:$0xff]
      %v728 = vld [vmem:[%s1 + $0x4a0] sm:$0xff]
      %v729 = vld [vmem:[%s1 + $0x4a8] sm:$0xff]
      %v730 = vld [vmem:[%s1 + $0x4b0] sm:$0xff]
      %v731 = vld [vmem:[%s1 + $0x4b8] sm:$0xff]
      %v732 = vld [vmem:[%s1 + $0x4c0] sm:$0xff]
      %v733 = vld [vmem:[%s1 + $0x4c8] sm:$0xff]
      %v734 = vld [vmem:[%s1 + $0x4d0] sm:$0xff]
      %v735 = vld [vmem:[%s1 + $0x4d8] sm:$0xff]
      %v736 = vld [vmem:[%s1 + $0x4e0] sm:$0xff]
      %v737 = vld [vmem:[%s1 + $0x4e8] sm:$0xff]
      %v738 = vld [vmem:[%s1 + $0x4f0] sm:$0xff]
      %v739 = vld [vmem:[%s1 + $0x4f8] sm:$0xff]
      %v740 = vld [vmem:[%s1 + $0x500] sm:$0xff]
      %v741 = vld [vmem:[%s1 + $0x508] sm:$0xff]
      %v742 = vld [vmem:[%s1 + $0x510] sm:$0xff]
      %v743 = vld [vmem:[%s1 + $0x518] sm:$0xff]
      %v744 = vld [vmem:[%s1 + $0x520] sm:$0xff]
      %v745 = vld [vmem:[%s1 + $0x528] sm:$0xff]
      %v746 = vld [vmem:[%s1 + $0x530] sm:$0xff]
      %v747 = vld [vmem:[%s1 + $0x538] sm:$0xff]
      %v748 = vld [vmem:[%s1 + $0x540] sm:$0xff]
      %v749 = vld [vmem:[%s1 + $0x548] sm:$0xff]
      %v750 = vld [vmem:[%s1 + $0x550] sm:$0xff]
      %v751 = vld [vmem:[%s1 + $0x558] sm:$0xff]
      %v752 = vld [vmem:[%s1 + $0x560] sm:$0xff]
      %v753 = vld [vmem:[%s1 + $0x568] sm:$0xff]
      %v754 = vld [vmem:[%s1 + $0x570] sm:$0xff]
      %v755 = vld [vmem:[%s1 + $0x578] sm:$0xff]
      %v756 = vld [vmem:[%s1 + $0x580] sm:$0xff]
      %v757 = vld [vmem:[%s1 + $0x588] sm:$0xff]
      %v758 = vld [vmem:[%s1 + $0x590] sm:$0xff]
      %v759 = vld [vmem:[%s1 + $0x598] sm:$0xff]
      %v760 = vld [vmem:[%s1 + $0x5a0] sm:$0xff]
      %v761 = vld [vmem:[%s1 + $0x5a8] sm:$0xff]
      %v762 = vld [vmem:[%s1 + $0x5b0] sm:$0xff]
      %v763 = vld [vmem:[%s1 + $0x5b8] sm:$0xff]
      %v764 = vld [vmem:[%s1 + $0x5c0] sm:$0xff]
      %v765 = vld [vmem:[%s1 + $0x5c8] sm:$0xff]
      %v766 = vld [vmem:[%s1 + $0x5d0] sm:$0xff]
      %v767 = vld [vmem:[%s1 + $0x5d8] sm:$0xff]
      %v768 = vld [vmem:[%s1 + $0x5e0] sm:$0xff]
      %v769 = vld [vmem:[%s1 + $0x5e8] sm:$0xff]
      %v770 = vld [vmem:[%s1 + $0x5f0] sm:$0xff]
      %v771 = vld [vmem:[%s1 + $0x5f8] sm:$0xff]
      %v772 = vld [vmem:[%s1 + $0x600] sm:$0xff]
      %v773 = vld [vmem:[%s1 + $0x608] sm:$0xff]
      %v774 = vld [vmem:[%s1 + $0x610] sm:$0xff]
      %v775 = vld [vmem:[%s1 + $0x618] sm:$0xff]
      %v776 = vld [vmem:[%s1 + $0x620] sm:$0xff]
      %v777 = vld [vmem:[%s1 + $0x628] sm:$0xff]
      %v778 = vld [vmem:[%s1 + $0x630] sm:$0xff]
      %v779 = vld [vmem:[%s1 + $0x638] sm:$0xff]
      %v780 = vld [vmem:[%s1 + $0x640] sm:$0xff]
      %v781 = vld [vmem:[%s1 + $0x648] sm:$0xff]
      %v782 = vld [vmem:[%s1 + $0x650] sm:$0xff]
      %v783 = vld [vmem:[%s1 + $0x658] sm:$0xff]
      %v784 = vld [vmem:[%s1 + $0x660] sm:$0xff]
      %v785 = vld [vmem:[%s1 + $0x668] sm:$0xff]
      %v786 = vld [vmem:[%s1 + $0x670] sm:$0xff]
      %v787 = vld [vmem:[%s1 + $0x678] sm:$0xff]
      %v788 = vld [vmem:[%s1 + $0x680] sm:$0xff]
      %v789 = vld [vmem:[%s1 + $0x688] sm:$0xff]
      %v790 = vld [vmem:[%s1 + $0x690] sm:$0xff]
      %v791 = vld [vmem:[%s1 + $0x698] sm:$0xff]
      %v792 = vld [vmem:[%s1 + $0x6a0] sm:$0xff]
      %v793 = vld [vmem:[%s1 + $0x6a8] sm:$0xff]
      %v794 = vld [vmem:[%s1 + $0x6b0] sm:$0xff]
      %v795 = vld [vmem:[%s1 + $0x6b8] sm:$0xff]
      %v796 = vld [vmem:[%s1 + $0x6c0] sm:$0xff]
      %v797 = vld [vmem:[%s1 + $0x6c8] sm:$0xff]
      %v798 = vld [vmem:[%s1 + $0x6d0] sm:$0xff]
      %v799 = vld [vmem:[%s1 + $0x6d8] sm:$0xff]
      %v800 = vld [vmem:[%s1 + $0x6e0] sm:$0xff]
      %v801 = vld [vmem:[%s1 + $0x6e8] sm:$0xff]
      %v802 = vld [vmem:[%s1 + $0x6f0] sm:$0xff]
      %v803 = vld [vmem:[%s1 + $0x6f8] sm:$0xff]
      %v804 = vld [vmem:[%s1 + $0x700] sm:$0xff]
      %v805 = vld [vmem:[%s1 + $0x708] sm:$0xff]
      %v806 = vld [vmem:[%s1 + $0x710] sm:$0xff]
      %v807 = vld [vmem:[%s1 + $0x718] sm:$0xff]
      %v808 = vld [vmem:[%s1 + $0x720] sm:$0xff]
      %v809 = vld [vmem:[%s1 + $0x728] sm:$0xff]
      %v810 = vld [vmem:[%s1 + $0x730] sm:$0xff]
      %v811 = vld [vmem:[%s1 + $0x738] sm:$0xff]
      %v812 = vld [vmem:[%s1 + $0x740] sm:$0xff]
      %v813 = vld [vmem:[%s1 + $0x748] sm:$0xff]
      %v814 = vld [vmem:[%s1 + $0x750] sm:$0xff]
      %v815 = vld [vmem:[%s1 + $0x758] sm:$0xff]
      %v816 = vld [vmem:[%s1 + $0x760] sm:$0xff]
      %v817 = vld [vmem:[%s1 + $0x768] sm:$0xff]
      %v818 = vld [vmem:[%s1 + $0x770] sm:$0xff]
      %v819 = vld [vmem:[%s1 + $0x778] sm:$0xff]
      %v820 = vld [vmem:[%s1 + $0x780] sm:$0xff]
      %v821 = vld [vmem:[%s1 + $0x788] sm:$0xff]
      %v822 = vld [vmem:[%s1 + $0x790] sm:$0xff]
      %v823 = vld [vmem:[%s1 + $0x798] sm:$0xff]
      %v824 = vld [vmem:[%s1 + $0x7a0] sm:$0xff]
      %v825 = vld [vmem:[%s1 + $0x7a8] sm:$0xff]
      %v826 = vld [vmem:[%s1 + $0x7b0] sm:$0xff]
      %v827 = vld [vmem:[%s1 + $0x7b8] sm:$0xff]
      %v828 = vld [vmem:[%s1 + $0x7c0] sm:$0xff]
      %v829 = vld [vmem:[%s1 + $0x7c8] sm:$0xff]
      %v830 = vld [vmem:[%s1 + $0x7d0] sm:$0xff]
      %v831 = vld [vmem:[%s1 + $0x7d8] sm:$0xff]
      %v832 = vld [vmem:[%s1 + $0x7e0] sm:$0xff]
      %v833 = vld [vmem:[%s1 + $0x7e8] sm:$0xff]
      %v834 = vld [vmem:[%s1 + $0x7f0] sm:$0xff]
      %v835 = vld [vmem:[%s1 + $0x7f8] sm:$0xff]
      %v836 = vld [vmem:[%s1 + $0x800] sm:$0xff]
      %v837 = vld [vmem:[%s1 + $0x808] sm:$0xff]
      %v838 = vld [vmem:[%s1 + $0x810] sm:$0xff]
      %v839 = vld [vmem:[%s1 + $0x818] sm:$0xff]
      %v840 = vld [vmem:[%s1 + $0x820] sm:$0xff]
      %v841 = vld [vmem:[%s1 + $0x828] sm:$0xff]
      %v842 = vld [vmem:[%s1 + $0x830] sm:$0xff]
      %v843 = vld [vmem:[%s1 + $0x838] sm:$0xff]
      %v844 = vld [vmem:[%s1 + $0x840] sm:$0xff]
      %v845 = vld [vmem:[%s1 + $0x848] sm:$0xff]
      %v846 = vld [vmem:[%s1 + $0x850] sm:$0xff]
      %v847 = vld [vmem:[%s1 + $0x858] sm:$0xff]
      %v848 = vld [vmem:[%s1 + $0x860] sm:$0xff]
      %v849 = vld [vmem:[%s1 + $0x868] sm:$0xff]
      %v850 = vld [vmem:[%s1 + $0x870] sm:$0xff]
      %v851 = vld [vmem:[%s1 + $0x878] sm:$0xff]
      %v852 = vld [vmem:[%s1 + $0x880] sm:$0xff]
      %v853 = vld [vmem:[%s1 + $0x888] sm:$0xff]
      %v854 = vld [vmem:[%s1 + $0x890] sm:$0xff]
      %v855 = vld [vmem:[%s1 + $0x898] sm:$0xff]
      %v856 = vld [vmem:[%s1 + $0x8a0] sm:$0xff]
      %v857 = vld [vmem:[%s1 + $0x8a8] sm:$0xff]
      %v858 = vld [vmem:[%s1 + $0x8b0] sm:$0xff]
      %v859 = vld [vmem:[%s1 + $0x8b8] sm:$0xff]
      %v860 = vld [vmem:[%s1 + $0x8c0] sm:$0xff]
      %v861 = vld [vmem:[%s1 + $0x8c8] sm:$0xff]
      %v862 = vld [vmem:[%s1 + $0x8d0] sm:$0xff]
      %v863 = vld [vmem:[%s1 + $0x8d8] sm:$0xff]
      %v864 = vld [vmem:[%s1 + $0x8e0] sm:$0xff]
      %v865 = vld [vmem:[%s1 + $0x8e8] sm:$0xff]
      %v866 = vld [vmem:[%s1 + $0x8f0] sm:$0xff]
      %v867 = vld [vmem:[%s1 + $0x8f8] sm:$0xff]
      %v868 = vld [vmem:[%s1 + $0x900] sm:$0xff]
      %v869 = vld [vmem:[%s1 + $0x908] sm:$0xff]
      %v870 = vld [vmem:[%s1 + $0x910] sm:$0xff]
      %v871 = vld [vmem:[%s1 + $0x918] sm:$0xff]
      %v872 = vld [vmem:[%s1 + $0x920] sm:$0xff]
      %v873 = vld [vmem:[%s1 + $0x928] sm:$0xff]
      %v874 = vld [vmem:[%s1 + $0x930] sm:$0xff]
      %v875 = vld [vmem:[%s1 + $0x938] sm:$0xff]
      %v876 = vld [vmem:[%s1 + $0x940] sm:$0xff]
      %v877 = vld [vmem:[%s1 + $0x948] sm:$0xff]
      %v878 = vld [vmem:[%s1 + $0x950] sm:$0xff]
      %v879 = vld [vmem:[%s1 + $0x958] sm:$0xff]
      %v880 = vld [vmem:[%s1 + $0x960] sm:$0xff]
      %v881 = vld [vmem:[%s1 + $0x968] sm:$0xff]
      %v882 = vld [vmem:[%s1 + $0x970] sm:$0xff]
      %v883 = vld [vmem:[%s1 + $0x978] sm:$0xff]
      %v884 = vld [vmem:[%s1 + $0x980] sm:$0xff]
      %v885 = vld [vmem:[%s1 + $0x988] sm:$0xff]
      %v886 = vld [vmem:[%s1 + $0x990] sm:$0xff]
      %v887 = vld [vmem:[%s1 + $0x998] sm:$0xff]
      %v888 = vld [vmem:[%s1 + $0x9a0] sm:$0xff]
      %v889 = vld [vmem:[%s1 + $0x9a8] sm:$0xff]
      %v890 = vld [vmem:[%s1 + $0x9b0] sm:$0xff]
      %v891 = vld [vmem:[%s1 + $0x9b8] sm:$0xff]
      %v892 = vld [vmem:[%s1 + $0x9c0] sm:$0xff]
      %v893 = vld [vmem:[%s1 + $0x9c8] sm:$0xff]
      %v894 = vld [vmem:[%s1 + $0x9d0] sm:$0xff]
      %v895 = vld [vmem:[%s1 + $0x9d8] sm:$0xff]
      %v896 = vld [vmem:[%s1 + $0x9e0] sm:$0xff]
      %v897 = vld [vmem:[%s1 + $0x9e8] sm:$0xff]
      %v898 = vld [vmem:[%s1 + $0x9f0] sm:$0xff]
      %v899 = vld [vmem:[%s1 + $0x9f8] sm:$0xff]
      %v900 = vld [vmem:[%s1 + $0xa00] sm:$0xff]
      %v901 = vld [vmem:[%s1 + $0xa08] sm:$0xff]
      %v902 = vld [vmem:[%s1 + $0xa10] sm:$0xff]
      %v903 = vld [vmem:[%s1 + $0xa18] sm:$0xff]
      %v904 = vld [vmem:[%s1 + $0xa20] sm:$0xff]
      %v905 = vld [vmem:[%s1 + $0xa28] sm:$0xff]
      %v906 = vld [vmem:[%s1 + $0xa30] sm:$0xff]
      %v907 = vld [vmem:[%s1 + $0xa38] sm:$0xff]
      %v908 = vld [vmem:[%s1 + $0xa40] sm:$0xff]
      %v909 = vld [vmem:[%s1 + $0xa48] sm:$0xff]
      %v910 = vld [vmem:[%s1 + $0xa50] sm:$0xff]
      %v911 = vld [vmem:[%s1 + $0xa58] sm:$0xff]
      %v912 = vld [vmem:[%s1 + $0xa60] sm:$0xff]
      %v913 = vld [vmem:[%s1 + $0xa68] sm:$0xff]
      %v914 = vld [vmem:[%s1 + $0xa70] sm:$0xff]
      %v915 = vld [vmem:[%s1 + $0xa78] sm:$0xff]
      %v916 = vld [vmem:[%s1 + $0xa80] sm:$0xff]
      %v917 = vld [vmem:[%s1 + $0xa88] sm:$0xff]
      %v918 = vld [vmem:[%s1 + $0xa90] sm:$0xff]
      %v919 = vld [vmem:[%s1 + $0xa98] sm:$0xff]
      %v920 = vld [vmem:[%s1 + $0xaa0] sm:$0xff]
      %v921 = vld [vmem:[%s1 + $0xaa8] sm:$0xff]
      %v922 = vld [vmem:[%s1 + $0xab0] sm:$0xff]
      %v923 = vld [vmem:[%s1 + $0xab8] sm:$0xff]
      %v924 = vld [vmem:[%s1 + $0xac0] sm:$0xff]
      %v925 = vld [vmem:[%s1 + $0xac8] sm:$0xff]
      %v926 = vld [vmem:[%s1 + $0xad0] sm:$0xff]
      %v927 = vld [vmem:[%s1 + $0xad8] sm:$0xff]
      %v928 = vld [vmem:[%s1 + $0xae0] sm:$0xff]
      %v929 = vld [vmem:[%s1 + $0xae8] sm:$0xff]
      %v930 = vld [vmem:[%s1 + $0xaf0] sm:$0xff]
      %v931 = vld [vmem:[%s1 + $0xaf8] sm:$0xff]
      %v932 = vld [vmem:[%s1 + $0xb00] sm:$0xff]
      %v933 = vld [vmem:[%s1 + $0xb08] sm:$0xff]
      %v934 = vld [vmem:[%s1 + $0xb10] sm:$0xff]
      %v935 = vld [vmem:[%s1 + $0xb18] sm:$0xff]
      %v936 = vld [vmem:[%s1 + $0xb20] sm:$0xff]
      %v937 = vld [vmem:[%s1 + $0xb28] sm:$0xff]
      %v938 = vld [vmem:[%s1 + $0xb30] sm:$0xff]
      %v939 = vld [vmem:[%s1 + $0xb38] sm:$0xff]
      %v940 = vld [vmem:[%s1 + $0xb40] sm:$0xff]
      %v941 = vld [vmem:[%s1 + $0xb48] sm:$0xff]
      %v942 = vld [vmem:[%s1 + $0xb50] sm:$0xff]
      %v943 = vld [vmem:[%s1 + $0xb58] sm:$0xff]
      %v944 = vld [vmem:[%s1 + $0xb60] sm:$0xff]
      %v945 = vld [vmem:[%s1 + $0xb68] sm:$0xff]
      %v946 = vld [vmem:[%s1 + $0xb70] sm:$0xff]
      %v947 = vld [vmem:[%s1 + $0xb78] sm:$0xff]
      %v948 = vld [vmem:[%s1 + $0xb80] sm:$0xff]
      %v949 = vld [vmem:[%s1 + $0xb88] sm:$0xff]
      %v950 = vld [vmem:[%s1 + $0xb90] sm:$0xff]
      %v951 = vld [vmem:[%s1 + $0xb98] sm:$0xff]
      %v952 = vld [vmem:[%s1 + $0xba0] sm:$0xff]
      %v953 = vld [vmem:[%s1 + $0xba8] sm:$0xff]
      %v954 = vld [vmem:[%s1 + $0xbb0] sm:$0xff]
      %v955 = vld [vmem:[%s1 + $0xbb8] sm:$0xff]
      %v956 = vld [vmem:[%s1 + $0xbc0] sm:$0xff]
      %v957 = vld [vmem:[%s1 + $0xbc8] sm:$0xff]
      %v958 = vld [vmem:[%s1 + $0xbd0] sm:$0xff]
      %v959 = vld [vmem:[%s1 + $0xbd8] sm:$0xff]
      %v960 = vld [vmem:[%s1 + $0xbe0] sm:$0xff]
      %v961 = vld [vmem:[%s1 + $0xbe8] sm:$0xff]
      %v962 = vld [vmem:[%s1 + $0xbf0] sm:$0xff]
      %v963 = vld [vmem:[%s1 + $0xbf8] sm:$0xff]
      %v964 = vld [vmem:[%s1 + $0xc00] sm:$0xff]
      %v965 = vld [vmem:[%s1 + $0xc08] sm:$0xff]
      %v966 = vld [vmem:[%s1 + $0xc10] sm:$0xff]
      %v967 = vld [vmem:[%s1 + $0xc18] sm:$0xff]
      %v968 = vld [vmem:[%s1 + $0xc20] sm:$0xff]
      %v969 = vld [vmem:[%s1 + $0xc28] sm:$0xff]
      %v970 = vld [vmem:[%s1 + $0xc30] sm:$0xff]
      %v971 = vld [vmem:[%s1 + $0xc38] sm:$0xff]
      %v972 = vld [vmem:[%s1 + $0xc40] sm:$0xff]
      %v973 = vld [vmem:[%s1 + $0xc48] sm:$0xff]
      %v974 = vld [vmem:[%s1 + $0xc50] sm:$0xff]
      %v975 = vld [vmem:[%s1 + $0xc58] sm:$0xff]
      %v976 = vld [vmem:[%s1 + $0xc60] sm:$0xff]
      %v977 = vld [vmem:[%s1 + $0xc68] sm:$0xff]
      %v978 = vld [vmem:[%s1 + $0xc70] sm:$0xff]
      %v979 = vld [vmem:[%s1 + $0xc78] sm:$0xff]
      %v980 = vld [vmem:[%s1 + $0xc80] sm:$0xff]
      %v981 = vld [vmem:[%s1 + $0xc88] sm:$0xff]
      %v982 = vld [vmem:[%s1 + $0xc90] sm:$0xff]
      %v983 = vld [vmem:[%s1 + $0xc98] sm:$0xff]
      %v984 = vld [vmem:[%s1 + $0xca0] sm:$0xff]
      %v985 = vld [vmem:[%s1 + $0xca8] sm:$0xff]
      %v986 = vld [vmem:[%s1 + $0xcb0] sm:$0xff]
      %v987 = vld [vmem:[%s1 + $0xcb8] sm:$0xff]
      %v988 = vld [vmem:[%s1 + $0xcc0] sm:$0xff]
      %v989 = vld [vmem:[%s1 + $0xcc8] sm:$0xff]
      %v990 = vld [vmem:[%s1 + $0xcd0] sm:$0xff]
      %v991 = vld [vmem:[%s1 + $0xcd8] sm:$0xff]
      %v992 = vld [vmem:[%s1 + $0xce0] sm:$0xff]
      %v993 = vld [vmem:[%s1 + $0xce8] sm:$0xff]
      %v994 = vld [vmem:[%s1 + $0xcf0] sm:$0xff]
      %v995 = vld [vmem:[%s1 + $0xcf8] sm:$0xff]
      %v996 = vld [vmem:[%s1 + $0xd00] sm:$0xff]
      %v997 = vld [vmem:[%s1 + $0xd08] sm:$0xff]
      %v998 = vld [vmem:[%s1 + $0xd10] sm:$0xff]
      %v999 = vld [vmem:[%s1 + $0xd18] sm:$0xff]
      %v1000 = vld [vmem:[%s1 + $0xd20] sm:$0xff]
      %v1001 = vld [vmem:[%s1 + $0xd28] sm:$0xff]
      %v1002 = vld [vmem:[%s1 + $0xd30] sm:$0xff]
      %v1003 = vld [vmem:[%s1 + $0xd38] sm:$0xff]
      %v1004 = vld [vmem:[%s1 + $0xd40] sm:$0xff]
      %v1005 = vld [vmem:[%s1 + $0xd48] sm:$0xff]
      %v1006 = vld [vmem:[%s1 + $0xd50] sm:$0xff]
      %v1007 = vld [vmem:[%s1 + $0xd58] sm:$0xff]
      %v1008 = vld [vmem:[%s1 + $0xd60] sm:$0xff]
      %v1009 = vld [vmem:[%s1 + $0xd68] sm:$0xff]
      %v1010 = vld [vmem:[%s1 + $0xd70] sm:$0xff]
      %v1011 = vld [vmem:[%s1 + $0xd78] sm:$0xff]
      %v1012 = vld [vmem:[%s1 + $0xd80] sm:$0xff]
      %v1013 = vld [vmem:[%s1 + $0xd88] sm:$0xff]
      %v1014 = vld [vmem:[%s1 + $0xd90] sm:$0xff]
      %v1015 = vld [vmem:[%s1 + $0xd98] sm:$0xff]
      %v1016 = vld [vmem:[%s1 + $0xda0] sm:$0xff]
      %v1017 = vld [vmem:[%s1 + $0xda8] sm:$0xff]
      %v1018 = vld [vmem:[%s1 + $0xdb0] sm:$0xff]
      %v1019 = vld [vmem:[%s1 + $0xdb8] sm:$0xff]
      %v1020 = vld [vmem:[%s1 + $0xdc0] sm:$0xff]
      %v1021 = vld [vmem:[%s1 + $0xdc8] sm:$0xff]
      %v1022 = vld [vmem:[%s1 + $0xdd0] sm:$0xff]
      %v1023 = vld [vmem:[%s1 + $0xdd8] sm:$0xff]
      %v1024 = vld [vmem:[%s1 + $0xde0] sm:$0xff]
      %v1025 = vld [vmem:[%s1 + $0xde8] sm:$0xff]
      %v1026 = vld [vmem:[%s1 + $0xdf0] sm:$0xff]
      %v1027 = vld [vmem:[%s1 + $0xdf8] sm:$0xff]
      %v1028 = vld [vmem:[%s1 + $0xe00] sm:$0xff]
      %v1029 = vld [vmem:[%s1 + $0xe08] sm:$0xff]
      %v1030 = vld [vmem:[%s1 + $0xe10] sm:$0xff]
      %v1031 = vld [vmem:[%s1 + $0xe18] sm:$0xff]
      %v1032 = vld [vmem:[%s1 + $0xe20] sm:$0xff]
      %v1033 = vld [vmem:[%s1 + $0xe28] sm:$0xff]
      %v1034 = vld [vmem:[%s1 + $0xe30] sm:$0xff]
      %v1035 = vld [vmem:[%s1 + $0xe38] sm:$0xff]
      %v1036 = vld [vmem:[%s1 + $0xe40] sm:$0xff]
      %v1037 = vld [vmem:[%s1 + $0xe48] sm:$0xff]
      %v1038 = vld [vmem:[%s1 + $0xe50] sm:$0xff]
      %v1039 = vld [vmem:[%s1 + $0xe58] sm:$0xff]
      %v1040 = vld [vmem:[%s1 + $0xe60] sm:$0xff]
      %v1041 = vld [vmem:[%s1 + $0xe68] sm:$0xff]
      %v1042 = vld [vmem:[%s1 + $0xe70] sm:$0xff]
      %v1043 = vld [vmem:[%s1 + $0xe78] sm:$0xff]
      %v1044 = vld [vmem:[%s1 + $0xe80] sm:$0xff]
      %v1045 = vld [vmem:[%s1 + $0xe88] sm:$0xff]
      %v1046 = vld [vmem:[%s1 + $0xe90] sm:$0xff]
      %v1047 = vld [vmem:[%s1 + $0xe98] sm:$0xff]
      %v1048 = vld [vmem:[%s1 + $0xea0] sm:$0xff]
      %v1049 = vld [vmem:[%s1 + $0xea8] sm:$0xff]
      %v1050 = vld [vmem:[%s1 + $0xeb0] sm:$0xff]
      %v1051 = vld [vmem:[%s1 + $0xeb8] sm:$0xff]
      %v1052 = vld [vmem:[%s1 + $0xec0] sm:$0xff]
      %v1053 = vld [vmem:[%s1 + $0xec8] sm:$0xff]
      %v1054 = vld [vmem:[%s1 + $0xed0] sm:$0xff]
      %v1055 = vld [vmem:[%s1 + $0xed8] sm:$0xff]
      %v1056 = vld [vmem:[%s1 + $0xee0] sm:$0xff]
      %v1057 = vld [vmem:[%s1 + $0xee8] sm:$0xff]
      %v1058 = vld [vmem:[%s1 + $0xef0] sm:$0xff]
      %v1059 = vld [vmem:[%s1 + $0xef8] sm:$0xff]
      %v1060 = vld [vmem:[%s1 + $0xf00] sm:$0xff]
      %v1061 = vld [vmem:[%s1 + $0xf08] sm:$0xff]
      %v1062 = vld [vmem:[%s1 + $0xf10] sm:$0xff]
      %v1063 = vld [vmem:[%s1 + $0xf18] sm:$0xff]
      %v1064 = vld [vmem:[%s1 + $0xf20] sm:$0xff]
      %v1065 = vld [vmem:[%s1 + $0xf28] sm:$0xff]
      %v1066 = vld [vmem:[%s1 + $0xf30] sm:$0xff]
      %v1067 = vld [vmem:[%s1 + $0xf38] sm:$0xff]
      %v1068 = vld [vmem:[%s1 + $0xf40] sm:$0xff]
      %v1069 = vld [vmem:[%s1 + $0xf48] sm:$0xff]
      %v1070 = vld [vmem:[%s1 + $0xf50] sm:$0xff]
      %v1071 = vld [vmem:[%s1 + $0xf58] sm:$0xff]
      %v1072 = vld [vmem:[%s1 + $0xf60] sm:$0xff]
      %v1073 = vld [vmem:[%s1 + $0xf68] sm:$0xff]
      %v1074 = vld [vmem:[%s1 + $0xf70] sm:$0xff]
      %v1075 = vld [vmem:[%s1 + $0xf78] sm:$0xff]
      %v1076 = vld [vmem:[%s1 + $0xf80] sm:$0xff]
      %v1077 = vld [vmem:[%s1 + $0xf88] sm:$0xff]
      %v1078 = vld [vmem:[%s1 + $0xf90] sm:$0xff]
      %v1079 = vld [vmem:[%s1 + $0xf98] sm:$0xff]
      %v1080 = vld [vmem:[%s1 + $0xfa0] sm:$0xff]
      %v1081 = vld [vmem:[%s1 + $0xfa8] sm:$0xff]
      %v1082 = vld [vmem:[%s1 + $0xfb0] sm:$0xff]
      %v1083 = vld [vmem:[%s1 + $0xfb8] sm:$0xff]
      %v1084 = vld [vmem:[%s1 + $0xfc0] sm:$0xff]
      %v1085 = vld [vmem:[%s1 + $0xfc8] sm:$0xff]
      %v1086 = vld [vmem:[%s1 + $0xfd0] sm:$0xff]
      %v1087 = vld [vmem:[%s1 + $0xfd8] sm:$0xff]
      %v1088 = vld [vmem:[%s1 + $0xfe0] sm:$0xff]
      %v1089 = vld [vmem:[%s1 + $0xfe8] sm:$0xff]
      %v1090 = vld [vmem:[%s1 + $0xff0] sm:$0xff]
      %v1091 = vld [vmem:[%s1 + $0xff8] sm:$0xff]
      %v1092 = vld [vmem:[%s1 + $0x1000] sm:$0xff]
      %v1093 = vld [vmem:[%s1 + $0x1008] sm:$0xff]
      %v1094 = vld [vmem:[%s1 + $0x1010] sm:$0xff]
      %v1095 = vld [vmem:[%s1 + $0x1018] sm:$0xff]
      %v1096 = vld [vmem:[%s1 + $0x1020] sm:$0xff]
      %v1097 = vld [vmem:[%s1 + $0x1028] sm:$0xff]
      %v1098 = vld [vmem:[%s1 + $0x1030] sm:$0xff]
      %v1099 = vld [vmem:[%s1 + $0x1038] sm:$0xff]
      %v1100 = vld [vmem:[%s1 + $0x1040] sm:$0xff]
      %v1101 = vld [vmem:[%s1 + $0x1048] sm:$0xff]
      %v1102 = vld [vmem:[%s1 + $0x1050] sm:$0xff]
      %v1103 = vld [vmem:[%s1 + $0x1058] sm:$0xff]
      %v1104 = vld [vmem:[%s1 + $0x1060] sm:$0xff]
      %v1105 = vld [vmem:[%s1 + $0x1068] sm:$0xff]
      %v1106 = vld [vmem:[%s1 + $0x1070] sm:$0xff]
      %v1107 = vld [vmem:[%s1 + $0x1078] sm:$0xff]
      %v1108 = vld [vmem:[%s1 + $0x1080] sm:$0xff]
      %v1109 = vld [vmem:[%s1 + $0x1088] sm:$0xff]
      %v1110 = vld [vmem:[%s1 + $0x1090] sm:$0xff]
      %v1111 = vld [vmem:[%s1 + $0x1098] sm:$0xff]
      %v1112 = vld [vmem:[%s1 + $0x10a0] sm:$0xff]
      %v1113 = vld [vmem:[%s1 + $0x10a8] sm:$0xff]
      %v1114 = vld [vmem:[%s1 + $0x10b0] sm:$0xff]
      %v1115 = vld [vmem:[%s1 + $0x10b8] sm:$0xff]
      %v1116 = vld [vmem:[%s1 + $0x10c0] sm:$0xff]
      %v1117 = vld [vmem:[%s1 + $0x10c8] sm:$0xff]
      %v1118 = vld [vmem:[%s1 + $0x10d0] sm:$0xff]
      %v1119 = vld [vmem:[%s1 + $0x10d8] sm:$0xff]
      %v1120 = vld [vmem:[%s1 + $0x10e0] sm:$0xff]
      %v1121 = vld [vmem:[%s1 + $0x10e8] sm:$0xff]
      %v1122 = vld [vmem:[%s1 + $0x10f0] sm:$0xff]
      %v1123 = vld [vmem:[%s1 + $0x10f8] sm:$0xff]
      %v1124 = vld [vmem:[%s1 + $0x1100] sm:$0xff]
      %v1125 = vld [vmem:[%s1 + $0x1108] sm:$0xff]
      %v1126 = vld [vmem:[%s1 + $0x1110] sm:$0xff]
      %v1127 = vld [vmem:[%s1 + $0x1118] sm:$0xff]
      %v1128 = vld [vmem:[%s1 + $0x1120] sm:$0xff]
      %v1129 = vld [vmem:[%s1 + $0x1128] sm:$0xff]
      %v1130 = vld [vmem:[%s1 + $0x1130] sm:$0xff]
      %v1131 = vld [vmem:[%s1 + $0x1138] sm:$0xff]
      %v1132 = vld [vmem:[%s1 + $0x1140] sm:$0xff]
      %v1133 = vld [vmem:[%s1 + $0x1148] sm:$0xff]
      %v1134 = vld [vmem:[%s1 + $0x1150] sm:$0xff]
      %v1135 = vld [vmem:[%s1 + $0x1158] sm:$0xff]
      %v1136 = vld [vmem:[%s1 + $0x1160] sm:$0xff]
      %v1137 = vld [vmem:[%s1 + $0x1168] sm:$0xff]
      %v1138 = vld [vmem:[%s1 + $0x1170] sm:$0xff]
      %v1139 = vld [vmem:[%s1 + $0x1178] sm:$0xff]
      %v1140 = vld [vmem:[%s1 + $0x1180] sm:$0xff]
      %v1141 = vld [vmem:[%s1 + $0x1188] sm:$0xff]
      %v1142 = vld [vmem:[%s1 + $0x1190] sm:$0xff]
      %v1143 = vld [vmem:[%s1 + $0x1198] sm:$0xff]
      %v1144 = vld [vmem:[%s1 + $0x11a0] sm:$0xff]
      %v1145 = vld [vmem:[%s1 + $0x11a8] sm:$0xff]
      %v1146 = vld [vmem:[%s1 + $0x11b0] sm:$0xff]
      %v1147 = vld [vmem:[%s1 + $0x11b8] sm:$0xff]
      %v1148 = vld [vmem:[%s1 + $0x11c0] sm:$0xff]
      %v1149 = vld [vmem:[%s1 + $0x11c8] sm:$0xff]
      %v1150 = vld [vmem:[%s1 + $0x11d0] sm:$0xff]
      %v1151 = vld [vmem:[%s1 + $0x11d8] sm:$0xff]
      %v1152 = vld [vmem:[%s1 + $0x11e0] sm:$0xff]
      %v1153 = vld [vmem:[%s1 + $0x11e8] sm:$0xff]
      %v1154 = vld [vmem:[%s1 + $0x11f0] sm:$0xff]
      %v1155 = vld [vmem:[%s1 + $0x11f8] sm:$0xff]
      %v1156 = vld [vmem:[%s1 + $0x1200] sm:$0xff]
      %v1157 = vld [vmem:[%s1 + $0x1208] sm:$0xff]
      %v1158 = vld [vmem:[%s1 + $0x1210] sm:$0xff]
      %v1159 = vld [vmem:[%s1 + $0x1218] sm:$0xff]
      %v1160 = vld [vmem:[%s1 + $0x1220] sm:$0xff]
      %v1161 = vld [vmem:[%s1 + $0x1228] sm:$0xff]
      %v1162 = vld [vmem:[%s1 + $0x1230] sm:$0xff]
      %v1163 = vld [vmem:[%s1 + $0x1238] sm:$0xff]
      %v1164 = vld [vmem:[%s1 + $0x1240] sm:$0xff]
      %v1165 = vld [vmem:[%s1 + $0x1248] sm:$0xff]
      %v1166 = vld [vmem:[%s1 + $0x1250] sm:$0xff]
      %v1167 = vld [vmem:[%s1 + $0x1258] sm:$0xff]
      %v1168 = vld [vmem:[%s1 + $0x1260] sm:$0xff]
      %v1169 = vld [vmem:[%s1 + $0x1268] sm:$0xff]
      %v1170 = vld [vmem:[%s1 + $0x1270] sm:$0xff]
      %v1171 = vld [vmem:[%s1 + $0x1278] sm:$0xff]
      %v1172 = vld [vmem:[%s1 + $0x1280] sm:$0xff]
      %v1173 = vld [vmem:[%s1 + $0x1288] sm:$0xff]
      %v1174 = vld [vmem:[%s1 + $0x1290] sm:$0xff]
      %v1175 = vld [vmem:[%s1 + $0x1298] sm:$0xff]
      %v1176 = vld [vmem:[%s1 + $0x12a0] sm:$0xff]
      %v1177 = vld [vmem:[%s1 + $0x12a8] sm:$0xff]
      %v1178 = vld [vmem:[%s1 + $0x12b0] sm:$0xff]
      %v1179 = vld [vmem:[%s1 + $0x12b8] sm:$0xff]
      %v1180 = vld [vmem:[%s1 + $0x12c0] sm:$0xff]
      %v1181 = vld [vmem:[%s1 + $0x12c8] sm:$0xff]
      %v1182 = vld [vmem:[%s1 + $0x12d0] sm:$0xff]
      %v1183 = vld [vmem:[%s1 + $0x12d8] sm:$0xff]
      %v1184 = vld [vmem:[%s1 + $0x12e0] sm:$0xff]
      %v1185 = vld [vmem:[%s1 + $0x12e8] sm:$0xff]
      %v1186 = vld [vmem:[%s1 + $0x12f0] sm:$0xff]
      %v1187 = vld [vmem:[%s1 + $0x12f8] sm:$0xff]
      %v1188 = vld [vmem:[%s1 + $0x1300] sm:$0xff]
      %v1189 = vld [vmem:[%s1 + $0x1308] sm:$0xff]
      %v1190 = vld [vmem:[%s1 + $0x1310] sm:$0xff]
      %v1191 = vld [vmem:[%s1 + $0x1318] sm:$0xff]
      %v1192 = vld [vmem:[%s1 + $0x1320] sm:$0xff]
      %v1193 = vld [vmem:[%s1 + $0x1328] sm:$0xff]
      %v1194 = vld [vmem:[%s1 + $0x1330] sm:$0xff]
      %v1195 = vld [vmem:[%s1 + $0x1338] sm:$0xff]
      %v1196 = vld [vmem:[%s1 + $0x1340] sm:$0xff]
      %v1197 = vld [vmem:[%s1 + $0x1348] sm:$0xff]
      %v1198 = vld [vmem:[%s1 + $0x1350] sm:$0xff]
      %v1199 = vld [vmem:[%s1 + $0x1358] sm:$0xff]
      %v1200 = vld [vmem:[%s1 + $0x1360] sm:$0xff]
      %v1201 = vld [vmem:[%s1 + $0x1368] sm:$0xff]
      %v1202 = vld [vmem:[%s1 + $0x1370] sm:$0xff]
      %v1203 = vld [vmem:[%s1 + $0x1378] sm:$0xff]
      %v1204 = vld [vmem:[%s1 + $0x1380] sm:$0xff]
      %v1205 = vld [vmem:[%s1 + $0x1388] sm:$0xff]
      %v1206 = vld [vmem:[%s1 + $0x1390] sm:$0xff]
      %v1207 = vld [vmem:[%s1 + $0x1398] sm:$0xff]
      %v1208 = vld [vmem:[%s1 + $0x13a0] sm:$0xff]
      %v1209 = vld [vmem:[%s1 + $0x13a8] sm:$0xff]
      %v1210 = vld [vmem:[%s1 + $0x13b0] sm:$0xff]
      %v1211 = vld [vmem:[%s1 + $0x13b8] sm:$0xff]
      %v1212 = vld [vmem:[%s1 + $0x13c0] sm:$0xff]
      %v1213 = vld [vmem:[%s1 + $0x13c8] sm:$0xff]
      %v1214 = vld [vmem:[%s1 + $0x13d0] sm:$0xff]
      %v1215 = vld [vmem:[%s1 + $0x13d8] sm:$0xff]
      %v1216 = vld [vmem:[%s1 + $0x13e0] sm:$0xff]
      %v1217 = vld [vmem:[%s1 + $0x13e8] sm:$0xff]
      %v1218 = vld [vmem:[%s1 + $0x13f0] sm:$0xff]
      %v1219 = vld [vmem:[%s1 + $0x13f8] sm:$0xff]
      %v1220 = vld [vmem:[%s1 + $0x1400] sm:$0xff]
      %v1221 = vld [vmem:[%s1 + $0x1408] sm:$0xff]
      %v1222 = vld [vmem:[%s1 + $0x1410] sm:$0xff]
      %v1223 = vld [vmem:[%s1 + $0x1418] sm:$0xff]
      %v1224 = vld [vmem:[%s1 + $0x1420] sm:$0xff]
      %v1225 = vld [vmem:[%s1 + $0x1428] sm:$0xff]
      %v1226 = vld [vmem:[%s1 + $0x1430] sm:$0xff]
      %v1227 = vld [vmem:[%s1 + $0x1438] sm:$0xff]
      %v1228 = vld [vmem:[%s1 + $0x1440] sm:$0xff]
      %v1229 = vld [vmem:[%s1 + $0x1448] sm:$0xff]
      %v1230 = vld [vmem:[%s1 + $0x1450] sm:$0xff]
      %v1231 = vld [vmem:[%s1 + $0x1458] sm:$0xff]
      %v1232 = vld [vmem:[%s1 + $0x1460] sm:$0xff]
      %v1233 = vld [vmem:[%s1 + $0x1468] sm:$0xff]
      %v1234 = vld [vmem:[%s1 + $0x1470] sm:$0xff]
      %v1235 = vld [vmem:[%s1 + $0x1478] sm:$0xff]
      %v1236 = vld [vmem:[%s1 + $0x1480] sm:$0xff]
      %v1237 = vld [vmem:[%s1 + $0x1488] sm:$0xff]
      %v1238 = vld [vmem:[%s1 + $0x1490] sm:$0xff]
      %v1239 = vld [vmem:[%s1 + $0x1498] sm:$0xff]
      %v1240 = vld [vmem:[%s1 + $0x14a0] sm:$0xff]
      %v1241 = vld [vmem:[%s1 + $0x14a8] sm:$0xff]
      %v1242 = vld [vmem:[%s1 + $0x14b0] sm:$0xff]
      %v1243 = vld [vmem:[%s1 + $0x14b8] sm:$0xff]
      %v1244 = vld [vmem:[%s1 + $0x14c0] sm:$0xff]
      %v1245 = vld [vmem:[%s1 + $0x14c8] sm:$0xff]
      %v1246 = vld [vmem:[%s1 + $0x14d0] sm:$0xff]
      %v1247 = vld [vmem:[%s1 + $0x14d8] sm:$0xff]
      %v1248 = vld [vmem:[%s1 + $0x14e0] sm:$0xff]
      %v1249 = vld [vmem:[%s1 + $0x14e8] sm:$0xff]
      %v1250 = vld [vmem:[%s1 + $0x14f0] sm:$0xff]
      %v1251 = vld [vmem:[%s1 + $0x14f8] sm:$0xff]
      %v1252 = vld [vmem:[%s1 + $0x1500] sm:$0xff]
      %v1253 = vld [vmem:[%s1 + $0x1508] sm:$0xff]
      %v1254 = vld [vmem:[%s1 + $0x1510] sm:$0xff]
      %v1255 = vld [vmem:[%s1 + $0x1518] sm:$0xff]
      %v1256 = vld [vmem:[%s1 + $0x1520] sm:$0xff]
      %v1257 = vld [vmem:[%s1 + $0x1528] sm:$0xff]
      %v1258 = vld [vmem:[%s1 + $0x1530] sm:$0xff]
      %v1259 = vld [vmem:[%s1 + $0x1538] sm:$0xff]
      %v1260 = vld [vmem:[%s1 + $0x1540] sm:$0xff]
      %v1261 = vld [vmem:[%s1 + $0x1548] sm:$0xff]
      %v1262 = vld [vmem:[%s1 + $0x1550] sm:$0xff]
      %v1263 = vld [vmem:[%s1 + $0x1558] sm:$0xff]
      %v1264 = vld [vmem:[%s1 + $0x1560] sm:$0xff]
      %v1265 = vld [vmem:[%s1 + $0x1568] sm:$0xff]
      %v1266 = vld [vmem:[%s1 + $0x1570] sm:$0xff]
      %v1267 = vld [vmem:[%s1 + $0x1578] sm:$0xff]
      %v1268 = vld [vmem:[%s1 + $0x1580] sm:$0xff]
      %v1269 = vld [vmem:[%s1 + $0x1588] sm:$0xff]
      %v1270 = vld [vmem:[%s1 + $0x1590] sm:$0xff]
      %v1271 = vld [vmem:[%s1 + $0x1598] sm:$0xff]
      %v1272 = vld [vmem:[%s1 + $0x15a0] sm:$0xff]
      %v1273 = vld [vmem:[%s1 + $0x15a8] sm:$0xff]
      %v1274 = vld [vmem:[%s1 + $0x15b0] sm:$0xff]
      %v1275 = vld [vmem:[%s1 + $0x15b8] sm:$0xff]
      %v1276 = vld [vmem:[%s1 + $0x15c0] sm:$0xff]
      %v1277 = vld [vmem:[%s1 + $0x15c8] sm:$0xff]
      %v1278 = vld [vmem:[%s1 + $0x15d0] sm:$0xff]
      %v1279 = vld [vmem:[%s1 + $0x15d8] sm:$0xff]
      %v1280 = vld [vmem:[%s1 + $0x15e0] sm:$0xff]
      %v1281 = vld [vmem:[%s1 + $0x15e8] sm:$0xff]
      %v1282 = vld [vmem:[%s1 + $0x15f0] sm:$0xff]
      %v1283 = vld [vmem:[%s1 + $0x15f8] sm:$0xff]
      %v1284 = vld [vmem:[%s1 + $0x1600] sm:$0xff]
      %v1285 = vld [vmem:[%s1 + $0x1608] sm:$0xff]
      %v1286 = vld [vmem:[%s1 + $0x1610] sm:$0xff]
      %v1287 = vld [vmem:[%s1 + $0x1618] sm:$0xff]
      %v1288 = vld [vmem:[%s1 + $0x1620] sm:$0xff]
      %v1289 = vld [vmem:[%s1 + $0x1628] sm:$0xff]
      %v1290 = vld [vmem:[%s1 + $0x1630] sm:$0xff]
      %v1291 = vld [vmem:[%s1 + $0x1638] sm:$0xff]
      %v1292 = vld [vmem:[%s1 + $0x1640] sm:$0xff]
      %v1293 = vld [vmem:[%s1 + $0x1648] sm:$0xff]
      %v1294 = vld [vmem:[%s1 + $0x1650] sm:$0xff]
      %v1295 = vld [vmem:[%s1 + $0x1658] sm:$0xff]
      %v1296 = vld [vmem:[%s1 + $0x1660] sm:$0xff]
      %v1297 = vld [vmem:[%s1 + $0x1668] sm:$0xff]
      %v1298 = vld [vmem:[%s1 + $0x1670] sm:$0xff]
      %v1299 = vld [vmem:[%s1 + $0x1678] sm:$0xff]
      %v1300 = vld [vmem:[%s1 + $0x1680] sm:$0xff]
      %v1301 = vld [vmem:[%s1 + $0x1688] sm:$0xff]
      %v1302 = vld [vmem:[%s1 + $0x1690] sm:$0xff]
      %v1303 = vld [vmem:[%s1 + $0x1698] sm:$0xff]
      %v1304 = vld [vmem:[%s1 + $0x16a0] sm:$0xff]
      %v1305 = vld [vmem:[%s1 + $0x16a8] sm:$0xff]
      %v1306 = vld [vmem:[%s1 + $0x16b0] sm:$0xff]
      %v1307 = vld [vmem:[%s1 + $0x16b8] sm:$0xff]
      %v1308 = vld [vmem:[%s1 + $0x16c0] sm:$0xff]
      %v1309 = vld [vmem:[%s1 + $0x16c8] sm:$0xff]
      %v1310 = vld [vmem:[%s1 + $0x16d0] sm:$0xff]
      %v1311 = vld [vmem:[%s1 + $0x16d8] sm:$0xff]
      %v1312 = vld [vmem:[%s1 + $0x16e0] sm:$0xff]
      %v1313 = vld [vmem:[%s1 + $0x16e8] sm:$0xff]
      %v1314 = vld [vmem:[%s1 + $0x16f0] sm:$0xff]
      %v1315 = vld [vmem:[%s1 + $0x16f8] sm:$0xff]
      %v1316 = vld [vmem:[%s1 + $0x1700] sm:$0xff]
      %v1317 = vld [vmem:[%s1 + $0x1708] sm:$0xff]
      %v1318 = vld [vmem:[%s1 + $0x1710] sm:$0xff]
      %v1319 = vld [vmem:[%s1 + $0x1718] sm:$0xff]
      %v1320 = vld [vmem:[%s1 + $0x1720] sm:$0xff]
      %v1321 = vld [vmem:[%s1 + $0x1728] sm:$0xff]
      %v1322 = vld [vmem:[%s1 + $0x1730] sm:$0xff]
      %v1323 = vld [vmem:[%s1 + $0x1738] sm:$0xff]
      %v1324 = vld [vmem:[%s1 + $0x1740] sm:$0xff]
      %v1325 = vld [vmem:[%s1 + $0x1748] sm:$0xff]
      %v1326 = vld [vmem:[%s1 + $0x1750] sm:$0xff]
      %v1327 = vld [vmem:[%s1 + $0x1758] sm:$0xff]
      %v1328 = vld [vmem:[%s1 + $0x1760] sm:$0xff]
      %v1329 = vld [vmem:[%s1 + $0x1768] sm:$0xff]
      %v1330 = vld [vmem:[%s1 + $0x1770] sm:$0xff]
      %v1331 = vld [vmem:[%s1 + $0x1778] sm:$0xff]
      %v1332 = vld [vmem:[%s1 + $0x1780] sm:$0xff]
      %v1333 = vld [vmem:[%s1 + $0x1788] sm:$0xff]
      %v1334 = vld [vmem:[%s1 + $0x1790] sm:$0xff]
      %v1335 = vld [vmem:[%s1 + $0x1798] sm:$0xff]
      %v1336 = vld [vmem:[%s1 + $0x17a0] sm:$0xff]
      %v1337 = vld [vmem:[%s1 + $0x17a8] sm:$0xff]
      %v1338 = vld [vmem:[%s1 + $0x17b0] sm:$0xff]
      %v1339 = vld [vmem:[%s1 + $0x17b8] sm:$0xff]
      %v1340 = vld [vmem:[%s1 + $0x17c0] sm:$0xff]
      %v1341 = vld [vmem:[%s1 + $0x17c8] sm:$0xff]
      %v1342 = vld [vmem:[%s1 + $0x17d0] sm:$0xff]
      %v1343 = vld [vmem:[%s1 + $0x17d8] sm:$0xff]
      %v1344 = vld [vmem:[%s1 + $0x17e0] sm:$0xff]
      %v1345 = vld [vmem:[%s1 + $0x17e8] sm:$0xff]
      %v1346 = vld [vmem:[%s1 + $0x17f0] sm:$0xff]
      %v1347 = vld [vmem:[%s1 + $0x17f8] sm:$0xff]
      %v1348 = vld [vmem:[%s1 + $0x1800] sm:$0xff]
      %v1349 = vld [vmem:[%s1 + $0x1808] sm:$0xff]
      %v1350 = vld [vmem:[%s1 + $0x1810] sm:$0xff]
      %v1351 = vld [vmem:[%s1 + $0x1818] sm:$0xff]
      %v1352 = vld [vmem:[%s1 + $0x1820] sm:$0xff]
      %v1353 = vld [vmem:[%s1 + $0x1828] sm:$0xff]
      %v1354 = vld [vmem:[%s1 + $0x1830] sm:$0xff]
      %v1355 = vld [vmem:[%s1 + $0x1838] sm:$0xff]
      %v1356 = vld [vmem:[%s1 + $0x1840] sm:$0xff]
      %v1357 = vld [vmem:[%s1 + $0x1848] sm:$0xff]
      %v1358 = vld [vmem:[%s1 + $0x1850] sm:$0xff]
      %v1359 = vld [vmem:[%s1 + $0x1858] sm:$0xff]
      %v1360 = vld [vmem:[%s1 + $0x1860] sm:$0xff]
      %v1361 = vld [vmem:[%s1 + $0x1868] sm:$0xff]
      %v1362 = vld [vmem:[%s1 + $0x1870] sm:$0xff]
      %v1363 = vld [vmem:[%s1 + $0x1878] sm:$0xff]
      %v1364 = vld [vmem:[%s2] sm:$0x3]
      %v1366 = vlaneseq
      %v1367 = vshrl.u32 %v1366, 7
      %v1368 = vsub.s32 0, %v1367
      %v1369 = vrot.slane %v1364, %v1368
      %v1370 = vlaneseq
      %v1371 = vshrl.u32 %v1370, 7
      %v1372 = vsub.s32 1, %v1371
      %v1373 = vrot.slane %v1364, %v1372
      %v1776 = vunpack.c.l.b16 %v180
      %v1777 = vunpack.c.h.b16 %v180
      %v1778 = vunpack.c.l.b16 %v181
      %v1779 = vunpack.c.h.b16 %v181
      %v1780 = vunpack.c.l.b16 %v182
      %v1781 = vunpack.c.h.b16 %v182
      %v1782 = vunpack.c.l.b16 %v183
      %v1783 = vunpack.c.h.b16 %v183
      %v1784 = vunpack.c.l.b16 %v184
      %v1785 = vunpack.c.h.b16 %v184
      %v1786 = vunpack.c.l.b16 %v185
      %v1787 = vunpack.c.h.b16 %v185
      %v1788 = vunpack.c.l.b16 %v186
      %v1789 = vunpack.c.h.b16 %v186
      %v1790 = vunpack.c.l.b16 %v187
      %v1791 = vunpack.c.h.b16 %v187
      %v1792 = vunpack.c.l.b16 %v188
      %v1793 = vunpack.c.h.b16 %v188
      %v1794 = vunpack.c.l.b16 %v189
      %v1795 = vunpack.c.h.b16 %v189
      %v1796 = vunpack.c.l.b16 %v190
      %v1797 = vunpack.c.h.b16 %v190
      %v1798 = vunpack.c.l.b16 %v191
      %v1799 = vunpack.c.h.b16 %v191
      %v1800 = vunpack.c.l.b16 %v192
      %v1801 = vunpack.c.h.b16 %v192
      %v1802 = vunpack.c.l.b16 %v193
      %v1803 = vunpack.c.h.b16 %v193
      %v1804 = vunpack.c.l.b16 %v194
      %v1805 = vunpack.c.h.b16 %v194
      %v1806 = vunpack.c.l.b16 %v195
      %v1807 = vunpack.c.h.b16 %v195
      %v1808 = vunpack.c.l.b16 %v196
      %v1809 = vunpack.c.h.b16 %v196
      %v1810 = vunpack.c.l.b16 %v197
      %v1811 = vunpack.c.h.b16 %v197
      %v1812 = vunpack.c.l.b16 %v198
      %v1813 = vunpack.c.h.b16 %v198
      %v1814 = vunpack.c.l.b16 %v199
      %v1815 = vunpack.c.h.b16 %v199
      %v1816 = vunpack.c.l.b16 %v200
      %v1817 = vunpack.c.h.b16 %v200
      %v1818 = vunpack.c.l.b16 %v201
      %v1819 = vunpack.c.h.b16 %v201
      %v1820 = vunpack.c.l.b16 %v202
      %v1821 = vunpack.c.h.b16 %v202
      %v1822 = vunpack.c.l.b16 %v203
      %v1823 = vunpack.c.h.b16 %v203
      %v1824 = vunpack.c.l.b16 %v204
      %v1825 = vunpack.c.l.b16 %v205
      %v1826 = vunpack.c.h.b16 %v205
      %v1827 = vunpack.c.l.b16 %v206
      %v1828 = vunpack.c.h.b16 %v206
      %v1829 = vunpack.c.l.b16 %v207
      %v1830 = vunpack.c.h.b16 %v207
      %v1831 = vunpack.c.l.b16 %v208
      %v1832 = vunpack.c.h.b16 %v208
      %v1833 = vunpack.c.l.b16 %v209
      %v1834 = vunpack.c.h.b16 %v209
      %v1835 = vunpack.c.l.b16 %v210
      %v1836 = vunpack.c.h.b16 %v210
      %v1837 = vunpack.c.l.b16 %v211
      %v1838 = vunpack.c.h.b16 %v211
      %v1839 = vunpack.c.l.b16 %v212
      %v1840 = vunpack.c.h.b16 %v212
      %v1841 = vunpack.c.l.b16 %v213
      %v1842 = vunpack.c.h.b16 %v213
      %v1843 = vunpack.c.l.b16 %v214
      %v1844 = vunpack.c.h.b16 %v214
      %v1845 = vunpack.c.l.b16 %v215
      %v1846 = vunpack.c.h.b16 %v215
      %v1847 = vunpack.c.l.b16 %v216
      %v1848 = vunpack.c.h.b16 %v216
      %v1849 = vunpack.c.l.b16 %v217
      %v1850 = vunpack.c.h.b16 %v217
      %v1851 = vunpack.c.l.b16 %v218
      %v1852 = vunpack.c.h.b16 %v218
      %v1853 = vunpack.c.l.b16 %v219
      %v1854 = vunpack.c.h.b16 %v219
      %v1855 = vunpack.c.l.b16 %v220
      %v1856 = vunpack.c.h.b16 %v220
      %v1857 = vunpack.c.l.b16 %v221
      %v1858 = vunpack.c.h.b16 %v221
      %v1859 = vunpack.c.l.b16 %v222
      %v1860 = vunpack.c.h.b16 %v222
      %v1861 = vunpack.c.l.b16 %v223
      %v1862 = vunpack.c.h.b16 %v223
      %v1863 = vunpack.c.l.b16 %v224
      %v1864 = vunpack.c.h.b16 %v224
      %v1865 = vunpack.c.l.b16 %v225
      %v1866 = vunpack.c.h.b16 %v225
      %v1867 = vunpack.c.l.b16 %v226
      %v1868 = vunpack.c.h.b16 %v226
      %v1869 = vunpack.c.l.b16 %v227
      %v1870 = vunpack.c.h.b16 %v227
      %v1871 = vunpack.c.l.b16 %v228
      %v1872 = vunpack.c.h.b16 %v228
      %v1873 = vunpack.c.l.b16 %v229
      %v1874 = vunpack.c.l.b16 %v230
      %v1875 = vunpack.c.h.b16 %v230
      %v1876 = vunpack.c.l.b16 %v231
      %v1877 = vunpack.c.h.b16 %v231
      %v1878 = vunpack.c.l.b16 %v232
      %v1879 = vunpack.c.h.b16 %v232
      %v1880 = vunpack.c.l.b16 %v233
      %v1881 = vunpack.c.h.b16 %v233
      %v1882 = vunpack.c.l.b16 %v234
      %v1883 = vunpack.c.h.b16 %v234
      %v1884 = vunpack.c.l.b16 %v235
      %v1885 = vunpack.c.h.b16 %v235
      %v1886 = vunpack.c.l.b16 %v236
      %v1887 = vunpack.c.h.b16 %v236
      %v1888 = vunpack.c.l.b16 %v237
      %v1889 = vunpack.c.h.b16 %v237
      %v1890 = vunpack.c.l.b16 %v238
      %v1891 = vunpack.c.h.b16 %v238
      %v1892 = vunpack.c.l.b16 %v239
      %v1893 = vunpack.c.h.b16 %v239
      %v1894 = vunpack.c.l.b16 %v240
      %v1895 = vunpack.c.h.b16 %v240
      %v1896 = vunpack.c.l.b16 %v241
      %v1897 = vunpack.c.h.b16 %v241
      %v1898 = vunpack.c.l.b16 %v242
      %v1899 = vunpack.c.h.b16 %v242
      %v1900 = vunpack.c.l.b16 %v243
      %v1901 = vunpack.c.h.b16 %v243
      %v1902 = vunpack.c.l.b16 %v244
      %v1903 = vunpack.c.h.b16 %v244
      %v1904 = vunpack.c.l.b16 %v245
      %v1905 = vunpack.c.h.b16 %v245
      %v1906 = vunpack.c.l.b16 %v246
      %v1907 = vunpack.c.h.b16 %v246
      %v1908 = vunpack.c.l.b16 %v247
      %v1909 = vunpack.c.h.b16 %v247
      %v1910 = vunpack.c.l.b16 %v248
      %v1911 = vunpack.c.h.b16 %v248
      %v1912 = vunpack.c.l.b16 %v249
      %v1913 = vunpack.c.h.b16 %v249
      %v1914 = vunpack.c.l.b16 %v250
      %v1915 = vunpack.c.h.b16 %v250
      %v1916 = vunpack.c.l.b16 %v251
      %v1917 = vunpack.c.h.b16 %v251
      %v1918 = vunpack.c.l.b16 %v252
      %v1919 = vunpack.c.h.b16 %v252
      %v1920 = vunpack.c.l.b16 %v253
      %v1921 = vunpack.c.h.b16 %v253
      %v1922 = vunpack.c.l.b16 %v254
      %v1923 = vunpack.c.l.b16 %v255
      %v1924 = vunpack.c.h.b16 %v255
      %v1925 = vunpack.c.l.b16 %v256
      %v1926 = vunpack.c.h.b16 %v256
      %v1927 = vunpack.c.l.b16 %v257
      %v1928 = vunpack.c.h.b16 %v257
      %v1929 = vunpack.c.l.b16 %v258
      %v1930 = vunpack.c.h.b16 %v258
      %v1931 = vunpack.c.l.b16 %v259
      %v1932 = vunpack.c.h.b16 %v259
      %v1933 = vunpack.c.l.b16 %v260
      %v1934 = vunpack.c.h.b16 %v260
      %v1935 = vunpack.c.l.b16 %v261
      %v1936 = vunpack.c.h.b16 %v261
      %v1937 = vunpack.c.l.b16 %v262
      %v1938 = vunpack.c.h.b16 %v262
      %v1939 = vunpack.c.l.b16 %v263
      %v1940 = vunpack.c.h.b16 %v263
      %v1941 = vunpack.c.l.b16 %v264
      %v1942 = vunpack.c.h.b16 %v264
      %v1943 = vunpack.c.l.b16 %v265
      %v1944 = vunpack.c.h.b16 %v265
      %v1945 = vunpack.c.l.b16 %v266
      %v1946 = vunpack.c.h.b16 %v266
      %v1947 = vunpack.c.l.b16 %v267
      %v1948 = vunpack.c.h.b16 %v267
      %v1949 = vunpack.c.l.b16 %v268
      %v1950 = vunpack.c.h.b16 %v268
      %v1951 = vunpack.c.l.b16 %v269
      %v1952 = vunpack.c.h.b16 %v269
      %v1953 = vunpack.c.l.b16 %v270
      %v1954 = vunpack.c.h.b16 %v270
      %v1955 = vunpack.c.l.b16 %v271
      %v1956 = vunpack.c.h.b16 %v271
      %v1957 = vunpack.c.l.b16 %v272
      %v1958 = vunpack.c.h.b16 %v272
      %v1959 = vunpack.c.l.b16 %v273
      %v1960 = vunpack.c.h.b16 %v273
      %v1961 = vunpack.c.l.b16 %v274
      %v1962 = vunpack.c.h.b16 %v274
      %v1963 = vunpack.c.l.b16 %v275
      %v1964 = vunpack.c.h.b16 %v275
      %v1965 = vunpack.c.l.b16 %v276
      %v1966 = vunpack.c.h.b16 %v276
      %v1967 = vunpack.c.l.b16 %v277
      %v1968 = vunpack.c.h.b16 %v277
      %v1969 = vunpack.c.l.b16 %v278
      %v1970 = vunpack.c.h.b16 %v278
      %v1971 = vunpack.c.l.b16 %v279
      %v1972 = vunpack.c.l.b16 %v280
      %v1973 = vunpack.c.h.b16 %v280
      %v1974 = vunpack.c.l.b16 %v281
      %v1975 = vunpack.c.h.b16 %v281
      %v1976 = vunpack.c.l.b16 %v282
      %v1977 = vunpack.c.h.b16 %v282
      %v1978 = vunpack.c.l.b16 %v283
      %v1979 = vunpack.c.h.b16 %v283
      %v1980 = vunpack.c.l.b16 %v284
      %v1981 = vunpack.c.h.b16 %v284
      %v1982 = vunpack.c.l.b16 %v285
      %v1983 = vunpack.c.h.b16 %v285
      %v1984 = vunpack.c.l.b16 %v286
      %v1985 = vunpack.c.h.b16 %v286
      %v1986 = vunpack.c.l.b16 %v287
      %v1987 = vunpack.c.h.b16 %v287
      %v1988 = vunpack.c.l.b16 %v288
      %v1989 = vunpack.c.h.b16 %v288
      %v1990 = vunpack.c.l.b16 %v289
      %v1991 = vunpack.c.h.b16 %v289
      %v1992 = vunpack.c.l.b16 %v290
      %v1993 = vunpack.c.h.b16 %v290
      %v1994 = vunpack.c.l.b16 %v291
      %v1995 = vunpack.c.h.b16 %v291
      %v1996 = vunpack.c.l.b16 %v292
      %v1997 = vunpack.c.h.b16 %v292
      %v1998 = vunpack.c.l.b16 %v293
      %v1999 = vunpack.c.h.b16 %v293
      %v2000 = vunpack.c.l.b16 %v294
      %v2001 = vunpack.c.h.b16 %v294
      %v2002 = vunpack.c.l.b16 %v295
      %v2003 = vunpack.c.h.b16 %v295
      %v2004 = vunpack.c.l.b16 %v296
      %v2005 = vunpack.c.h.b16 %v296
      %v2006 = vunpack.c.l.b16 %v297
      %v2007 = vunpack.c.h.b16 %v297
      %v2008 = vunpack.c.l.b16 %v298
      %v2009 = vunpack.c.h.b16 %v298
      %v2010 = vunpack.c.l.b16 %v299
      %v2011 = vunpack.c.h.b16 %v299
      %v2012 = vunpack.c.l.b16 %v300
      %v2013 = vunpack.c.h.b16 %v300
      %v2014 = vunpack.c.l.b16 %v301
      %v2015 = vunpack.c.h.b16 %v301
      %v2016 = vunpack.c.l.b16 %v302
      %v2017 = vunpack.c.h.b16 %v302
      %v2018 = vunpack.c.l.b16 %v303
      %v2019 = vunpack.c.h.b16 %v303
      %v2020 = vunpack.c.l.b16 %v304
      %v2021 = vunpack.c.l.b16 %v305
      %v2022 = vunpack.c.h.b16 %v305
      %v2023 = vunpack.c.l.b16 %v306
      %v2024 = vunpack.c.h.b16 %v306
      %v2025 = vunpack.c.l.b16 %v307
      %v2026 = vunpack.c.h.b16 %v307
      %v2027 = vunpack.c.l.b16 %v308
      %v2028 = vunpack.c.h.b16 %v308
      %v2029 = vunpack.c.l.b16 %v309
      %v2030 = vunpack.c.h.b16 %v309
      %v2031 = vunpack.c.l.b16 %v310
      %v2032 = vunpack.c.h.b16 %v310
      %v2033 = vunpack.c.l.b16 %v311
      %v2034 = vunpack.c.h.b16 %v311
      %v2035 = vunpack.c.l.b16 %v312
      %v2036 = vunpack.c.h.b16 %v312
      %v2037 = vunpack.c.l.b16 %v313
      %v2038 = vunpack.c.h.b16 %v313
      %v2039 = vunpack.c.l.b16 %v314
      %v2040 = vunpack.c.h.b16 %v314
      %v2041 = vunpack.c.l.b16 %v315
      %v2042 = vunpack.c.h.b16 %v315
      %v2043 = vunpack.c.l.b16 %v316
      %v2044 = vunpack.c.h.b16 %v316
      %v2045 = vunpack.c.l.b16 %v317
      %v2046 = vunpack.c.h.b16 %v317
      %v2047 = vunpack.c.l.b16 %v318
      %v2048 = vunpack.c.h.b16 %v318
      %v2049 = vunpack.c.l.b16 %v319
      %v2050 = vunpack.c.h.b16 %v319
      %v2051 = vunpack.c.l.b16 %v320
      %v2052 = vunpack.c.h.b16 %v320
      %v2053 = vunpack.c.l.b16 %v321
      %v2054 = vunpack.c.h.b16 %v321
      %v2055 = vunpack.c.l.b16 %v322
      %v2056 = vunpack.c.h.b16 %v322
      %v2057 = vunpack.c.l.b16 %v323
      %v2058 = vunpack.c.h.b16 %v323
      %v2059 = vunpack.c.l.b16 %v324
      %v2060 = vunpack.c.h.b16 %v324
      %v2061 = vunpack.c.l.b16 %v325
      %v2062 = vunpack.c.h.b16 %v325
      %v2063 = vunpack.c.l.b16 %v326
      %v2064 = vunpack.c.h.b16 %v326
      %v2065 = vunpack.c.l.b16 %v327
      %v2066 = vunpack.c.h.b16 %v327
      %v2067 = vunpack.c.l.b16 %v328
      %v2068 = vunpack.c.h.b16 %v328
      %v2069 = vunpack.c.l.b16 %v329
      %v2070 = vunpack.c.l.b16 %v330
      %v2071 = vunpack.c.h.b16 %v330
      %v2072 = vunpack.c.l.b16 %v331
      %v2073 = vunpack.c.h.b16 %v331
      %v2074 = vunpack.c.l.b16 %v332
      %v2075 = vunpack.c.h.b16 %v332
      %v2076 = vunpack.c.l.b16 %v333
      %v2077 = vunpack.c.h.b16 %v333
      %v2078 = vunpack.c.l.b16 %v334
      %v2079 = vunpack.c.h.b16 %v334
      %v2080 = vunpack.c.l.b16 %v335
      %v2081 = vunpack.c.h.b16 %v335
      %v2082 = vunpack.c.l.b16 %v336
      %v2083 = vunpack.c.h.b16 %v336
      %v2084 = vunpack.c.l.b16 %v337
      %v2085 = vunpack.c.h.b16 %v337
      %v2086 = vunpack.c.l.b16 %v338
      %v2087 = vunpack.c.h.b16 %v338
      %v2088 = vunpack.c.l.b16 %v339
      %v2089 = vunpack.c.h.b16 %v339
      %v2090 = vunpack.c.l.b16 %v340
      %v2091 = vunpack.c.h.b16 %v340
      %v2092 = vunpack.c.l.b16 %v341
      %v2093 = vunpack.c.h.b16 %v341
      %v2094 = vunpack.c.l.b16 %v342
      %v2095 = vunpack.c.h.b16 %v342
      %v2096 = vunpack.c.l.b16 %v343
      %v2097 = vunpack.c.h.b16 %v343
      %v2098 = vunpack.c.l.b16 %v344
      %v2099 = vunpack.c.h.b16 %v344
      %v2100 = vunpack.c.l.b16 %v345
      %v2101 = vunpack.c.h.b16 %v345
      %v2102 = vunpack.c.l.b16 %v346
      %v2103 = vunpack.c.h.b16 %v346
      %v2104 = vunpack.c.l.b16 %v347
      %v2105 = vunpack.c.h.b16 %v347
      %v2106 = vunpack.c.l.b16 %v348
      %v2107 = vunpack.c.h.b16 %v348
      %v2108 = vunpack.c.l.b16 %v349
      %v2109 = vunpack.c.h.b16 %v349
      %v2110 = vunpack.c.l.b16 %v350
      %v2111 = vunpack.c.h.b16 %v350
      %v2112 = vunpack.c.l.b16 %v351
      %v2113 = vunpack.c.h.b16 %v351
      %v2114 = vunpack.c.l.b16 %v352
      %v2115 = vunpack.c.h.b16 %v352
      %v2116 = vunpack.c.l.b16 %v353
      %v2117 = vunpack.c.h.b16 %v353
      %v2118 = vunpack.c.l.b16 %v354
      %v2119 = vunpack.c.l.b16 %v355
      %v2120 = vunpack.c.h.b16 %v355
      %v2121 = vunpack.c.l.b16 %v356
      %v2122 = vunpack.c.h.b16 %v356
      %v2123 = vunpack.c.l.b16 %v357
      %v2124 = vunpack.c.h.b16 %v357
      %v2125 = vunpack.c.l.b16 %v358
      %v2126 = vunpack.c.h.b16 %v358
      %v2127 = vunpack.c.l.b16 %v359
      %v2128 = vunpack.c.h.b16 %v359
      %v2129 = vunpack.c.l.b16 %v360
      %v2130 = vunpack.c.h.b16 %v360
      %v2131 = vunpack.c.l.b16 %v361
      %v2132 = vunpack.c.h.b16 %v361
      %v2133 = vunpack.c.l.b16 %v362
      %v2134 = vunpack.c.h.b16 %v362
      %v2135 = vunpack.c.l.b16 %v363
      %v2136 = vunpack.c.h.b16 %v363
      %v2137 = vunpack.c.l.b16 %v364
      %v2138 = vunpack.c.h.b16 %v364
      %v2139 = vunpack.c.l.b16 %v365
      %v2140 = vunpack.c.h.b16 %v365
      %v2141 = vunpack.c.l.b16 %v366
      %v2142 = vunpack.c.h.b16 %v366
      %v2143 = vunpack.c.l.b16 %v367
      %v2144 = vunpack.c.h.b16 %v367
      %v2145 = vunpack.c.l.b16 %v368
      %v2146 = vunpack.c.h.b16 %v368
      %v2147 = vunpack.c.l.b16 %v369
      %v2148 = vunpack.c.h.b16 %v369
      %v2149 = vunpack.c.l.b16 %v370
      %v2150 = vunpack.c.h.b16 %v370
      %v2151 = vunpack.c.l.b16 %v371
      %v2152 = vunpack.c.h.b16 %v371
      %v2153 = vunpack.c.l.b16 %v372
      %v2154 = vunpack.c.h.b16 %v372
      %v2155 = vunpack.c.l.b16 %v373
      %v2156 = vunpack.c.h.b16 %v373
      %v2157 = vunpack.c.l.b16 %v374
      %v2158 = vunpack.c.h.b16 %v374
      %v2159 = vunpack.c.l.b16 %v375
      %v2160 = vunpack.c.h.b16 %v375
      %v2161 = vunpack.c.l.b16 %v376
      %v2162 = vunpack.c.h.b16 %v376
      %v2163 = vunpack.c.l.b16 %v377
      %v2164 = vunpack.c.h.b16 %v377
      %v2165 = vunpack.c.l.b16 %v378
      %v2166 = vunpack.c.h.b16 %v378
      %v2167 = vunpack.c.l.b16 %v379
      %v2168 = vunpack.c.l.b16 %v380
      %v2169 = vunpack.c.h.b16 %v380
      %v2170 = vunpack.c.l.b16 %v381
      %v2171 = vunpack.c.h.b16 %v381
      %v2172 = vunpack.c.l.b16 %v382
      %v2173 = vunpack.c.h.b16 %v382
      %v2174 = vunpack.c.l.b16 %v383
      %v2175 = vunpack.c.h.b16 %v383
      %v2176 = vunpack.c.l.b16 %v384
      %v2177 = vunpack.c.h.b16 %v384
      %v2178 = vunpack.c.l.b16 %v385
      %v2179 = vunpack.c.h.b16 %v385
      %v2180 = vunpack.c.l.b16 %v386
      %v2181 = vunpack.c.h.b16 %v386
      %v2182 = vunpack.c.l.b16 %v387
      %v2183 = vunpack.c.h.b16 %v387
      %v2184 = vunpack.c.l.b16 %v388
      %v2185 = vunpack.c.h.b16 %v388
      %v2186 = vunpack.c.l.b16 %v389
      %v2187 = vunpack.c.h.b16 %v389
      %v2188 = vunpack.c.l.b16 %v390
      %v2189 = vunpack.c.h.b16 %v390
      %v2190 = vunpack.c.l.b16 %v391
      %v2191 = vunpack.c.h.b16 %v391
      %v2192 = vunpack.c.l.b16 %v392
      %v2193 = vunpack.c.h.b16 %v392
      %v2194 = vunpack.c.l.b16 %v393
      %v2195 = vunpack.c.h.b16 %v393
      %v2196 = vunpack.c.l.b16 %v394
      %v2197 = vunpack.c.h.b16 %v394
      %v2198 = vunpack.c.l.b16 %v395
      %v2199 = vunpack.c.h.b16 %v395
      %v2200 = vunpack.c.l.b16 %v396
      %v2201 = vunpack.c.h.b16 %v396
      %v2202 = vunpack.c.l.b16 %v397
      %v2203 = vunpack.c.h.b16 %v397
      %v2204 = vunpack.c.l.b16 %v398
      %v2205 = vunpack.c.h.b16 %v398
      %v2206 = vunpack.c.l.b16 %v399
      %v2207 = vunpack.c.h.b16 %v399
      %v2208 = vunpack.c.l.b16 %v400
      %v2209 = vunpack.c.h.b16 %v400
      %v2210 = vunpack.c.l.b16 %v401
      %v2211 = vunpack.c.h.b16 %v401
      %v2212 = vunpack.c.l.b16 %v402
      %v2213 = vunpack.c.h.b16 %v402
      %v2214 = vunpack.c.l.b16 %v403
      %v2215 = vunpack.c.h.b16 %v403
      %v2216 = vunpack.c.l.b16 %v404
      %v2217 = vunpack.c.l.b16 %v405
      %v2218 = vunpack.c.h.b16 %v405
      %v2219 = vunpack.c.l.b16 %v406
      %v2220 = vunpack.c.h.b16 %v406
      %v2221 = vunpack.c.l.b16 %v407
      %v2222 = vunpack.c.h.b16 %v407
      %v2223 = vunpack.c.l.b16 %v408
      %v2224 = vunpack.c.h.b16 %v408
      %v2225 = vunpack.c.l.b16 %v409
      %v2226 = vunpack.c.h.b16 %v409
      %v2227 = vunpack.c.l.b16 %v410
      %v2228 = vunpack.c.h.b16 %v410
      %v2229 = vunpack.c.l.b16 %v411
      %v2230 = vunpack.c.h.b16 %v411
      %v2231 = vunpack.c.l.b16 %v412
      %v2232 = vunpack.c.h.b16 %v412
      %v2233 = vunpack.c.l.b16 %v413
      %v2234 = vunpack.c.h.b16 %v413
      %v2235 = vunpack.c.l.b16 %v414
      %v2236 = vunpack.c.h.b16 %v414
      %v2237 = vunpack.c.l.b16 %v415
      %v2238 = vunpack.c.h.b16 %v415
      %v2239 = vunpack.c.l.b16 %v416
      %v2240 = vunpack.c.h.b16 %v416
      %v2241 = vunpack.c.l.b16 %v417
      %v2242 = vunpack.c.h.b16 %v417
      %v2243 = vunpack.c.l.b16 %v418
      %v2244 = vunpack.c.h.b16 %v418
      %v2245 = vunpack.c.l.b16 %v419
      %v2246 = vunpack.c.h.b16 %v419
      %v2247 = vunpack.c.l.b16 %v420
      %v2248 = vunpack.c.h.b16 %v420
      %v2249 = vunpack.c.l.b16 %v421
      %v2250 = vunpack.c.h.b16 %v421
      %v2251 = vunpack.c.l.b16 %v422
      %v2252 = vunpack.c.h.b16 %v422
      %v2253 = vunpack.c.l.b16 %v423
      %v2254 = vunpack.c.h.b16 %v423
      %v2255 = vunpack.c.l.b16 %v424
      %v2256 = vunpack.c.h.b16 %v424
      %v2257 = vunpack.c.l.b16 %v425
      %v2258 = vunpack.c.h.b16 %v425
      %v2259 = vunpack.c.l.b16 %v426
      %v2260 = vunpack.c.h.b16 %v426
      %v2261 = vunpack.c.l.b16 %v427
      %v2262 = vunpack.c.h.b16 %v427
      %v2263 = vunpack.c.l.b16 %v428
      %v2264 = vunpack.c.h.b16 %v428
      %v2265 = vunpack.c.l.b16 %v429
      %v2266 = vunpack.c.l.b16 %v430
      %v2267 = vunpack.c.h.b16 %v430
      %v2268 = vunpack.c.l.b16 %v431
      %v2269 = vunpack.c.h.b16 %v431
      %v2270 = vunpack.c.l.b16 %v432
      %v2271 = vunpack.c.h.b16 %v432
      %v2272 = vunpack.c.l.b16 %v433
      %v2273 = vunpack.c.h.b16 %v433
      %v2274 = vunpack.c.l.b16 %v434
      %v2275 = vunpack.c.h.b16 %v434
      %v2276 = vunpack.c.l.b16 %v435
      %v2277 = vunpack.c.h.b16 %v435
      %v2278 = vunpack.c.l.b16 %v436
      %v2279 = vunpack.c.h.b16 %v436
      %v2280 = vunpack.c.l.b16 %v437
      %v2281 = vunpack.c.h.b16 %v437
      %v2282 = vunpack.c.l.b16 %v438
      %v2283 = vunpack.c.h.b16 %v438
      %v2284 = vunpack.c.l.b16 %v439
      %v2285 = vunpack.c.h.b16 %v439
      %v2286 = vunpack.c.l.b16 %v440
      %v2287 = vunpack.c.h.b16 %v440
      %v2288 = vunpack.c.l.b16 %v441
      %v2289 = vunpack.c.h.b16 %v441
      %v2290 = vunpack.c.l.b16 %v442
      %v2291 = vunpack.c.h.b16 %v442
      %v2292 = vunpack.c.l.b16 %v443
      %v2293 = vunpack.c.h.b16 %v443
      %v2294 = vunpack.c.l.b16 %v444
      %v2295 = vunpack.c.h.b16 %v444
      %v2296 = vunpack.c.l.b16 %v445
      %v2297 = vunpack.c.h.b16 %v445
      %v2298 = vunpack.c.l.b16 %v446
      %v2299 = vunpack.c.h.b16 %v446
      %v2300 = vunpack.c.l.b16 %v447
      %v2301 = vunpack.c.h.b16 %v447
      %v2302 = vunpack.c.l.b16 %v448
      %v2303 = vunpack.c.h.b16 %v448
      %v2304 = vunpack.c.l.b16 %v449
      %v2305 = vunpack.c.h.b16 %v449
      %v2306 = vunpack.c.l.b16 %v450
      %v2307 = vunpack.c.h.b16 %v450
      %v2308 = vunpack.c.l.b16 %v451
      %v2309 = vunpack.c.h.b16 %v451
      %v2310 = vunpack.c.l.b16 %v452
      %v2311 = vunpack.c.h.b16 %v452
      %v2312 = vunpack.c.l.b16 %v453
      %v2313 = vunpack.c.h.b16 %v453
      %v2314 = vunpack.c.l.b16 %v454
      %v2315 = vunpack.c.l.b16 %v455
      %v2316 = vunpack.c.h.b16 %v455
      %v2317 = vunpack.c.l.b16 %v456
      %v2318 = vunpack.c.h.b16 %v456
      %v2319 = vunpack.c.l.b16 %v457
      %v2320 = vunpack.c.h.b16 %v457
      %v2321 = vunpack.c.l.b16 %v458
      %v2322 = vunpack.c.h.b16 %v458
      %v2323 = vunpack.c.l.b16 %v459
      %v2324 = vunpack.c.h.b16 %v459
      %v2325 = vunpack.c.l.b16 %v460
      %v2326 = vunpack.c.h.b16 %v460
      %v2327 = vunpack.c.l.b16 %v461
      %v2328 = vunpack.c.h.b16 %v461
      %v2329 = vunpack.c.l.b16 %v462
      %v2330 = vunpack.c.h.b16 %v462
      %v2331 = vunpack.c.l.b16 %v463
      %v2332 = vunpack.c.h.b16 %v463
      %v2333 = vunpack.c.l.b16 %v464
      %v2334 = vunpack.c.h.b16 %v464
      %v2335 = vunpack.c.l.b16 %v465
      %v2336 = vunpack.c.h.b16 %v465
      %v2337 = vunpack.c.l.b16 %v466
      %v2338 = vunpack.c.h.b16 %v466
      %v2339 = vunpack.c.l.b16 %v467
      %v2340 = vunpack.c.h.b16 %v467
      %v2341 = vunpack.c.l.b16 %v468
      %v2342 = vunpack.c.h.b16 %v468
      %v2343 = vunpack.c.l.b16 %v469
      %v2344 = vunpack.c.h.b16 %v469
      %v2345 = vunpack.c.l.b16 %v470
      %v2346 = vunpack.c.h.b16 %v470
      %v2347 = vunpack.c.l.b16 %v471
      %v2348 = vunpack.c.h.b16 %v471
      %v2349 = vunpack.c.l.b16 %v472
      %v2350 = vunpack.c.h.b16 %v472
      %v2351 = vunpack.c.l.b16 %v473
      %v2352 = vunpack.c.h.b16 %v473
      %v2353 = vunpack.c.l.b16 %v474
      %v2354 = vunpack.c.h.b16 %v474
      %v2355 = vunpack.c.l.b16 %v475
      %v2356 = vunpack.c.h.b16 %v475
      %v2357 = vunpack.c.l.b16 %v476
      %v2358 = vunpack.c.h.b16 %v476
      %v2359 = vunpack.c.l.b16 %v477
      %v2360 = vunpack.c.h.b16 %v477
      %v2361 = vunpack.c.l.b16 %v478
      %v2362 = vunpack.c.h.b16 %v478
      %v2363 = vunpack.c.l.b16 %v479
      %v2364 = vunpack.c.l.b16 %v480
      %v2365 = vunpack.c.h.b16 %v480
      %v2366 = vunpack.c.l.b16 %v481
      %v2367 = vunpack.c.h.b16 %v481
      %v2368 = vunpack.c.l.b16 %v482
      %v2369 = vunpack.c.h.b16 %v482
      %v2370 = vunpack.c.l.b16 %v483
      %v2371 = vunpack.c.h.b16 %v483
      %v2372 = vunpack.c.l.b16 %v484
      %v2373 = vunpack.c.h.b16 %v484
      %v2374 = vunpack.c.l.b16 %v485
      %v2375 = vunpack.c.h.b16 %v485
      %v2376 = vunpack.c.l.b16 %v486
      %v2377 = vunpack.c.h.b16 %v486
      %v2378 = vunpack.c.l.b16 %v487
      %v2379 = vunpack.c.h.b16 %v487
      %v2380 = vunpack.c.l.b16 %v488
      %v2381 = vunpack.c.h.b16 %v488
      %v2382 = vunpack.c.l.b16 %v489
      %v2383 = vunpack.c.h.b16 %v489
      %v2384 = vunpack.c.l.b16 %v490
      %v2385 = vunpack.c.h.b16 %v490
      %v2386 = vunpack.c.l.b16 %v491
      %v2387 = vunpack.c.h.b16 %v491
      %v2388 = vunpack.c.l.b16 %v492
      %v2389 = vunpack.c.h.b16 %v492
      %v2390 = vunpack.c.l.b16 %v493
      %v2391 = vunpack.c.h.b16 %v493
      %v2392 = vunpack.c.l.b16 %v494
      %v2393 = vunpack.c.h.b16 %v494
      %v2394 = vunpack.c.l.b16 %v495
      %v2395 = vunpack.c.h.b16 %v495
      %v2396 = vunpack.c.l.b16 %v496
      %v2397 = vunpack.c.h.b16 %v496
      %v2398 = vunpack.c.l.b16 %v497
      %v2399 = vunpack.c.h.b16 %v497
      %v2400 = vunpack.c.l.b16 %v498
      %v2401 = vunpack.c.h.b16 %v498
      %v2402 = vunpack.c.l.b16 %v499
      %v2403 = vunpack.c.h.b16 %v499
      %v2404 = vunpack.c.l.b16 %v500
      %v2405 = vunpack.c.h.b16 %v500
      %v2406 = vunpack.c.l.b16 %v501
      %v2407 = vunpack.c.h.b16 %v501
      %v2408 = vunpack.c.l.b16 %v502
      %v2409 = vunpack.c.h.b16 %v502
      %v2410 = vunpack.c.l.b16 %v503
      %v2411 = vunpack.c.h.b16 %v503
      %v2412 = vunpack.c.l.b16 %v504
      %v2413 = vunpack.c.l.b16 %v505
      %v2414 = vunpack.c.h.b16 %v505
      %v2415 = vunpack.c.l.b16 %v506
      %v2416 = vunpack.c.h.b16 %v506
      %v2417 = vunpack.c.l.b16 %v507
      %v2418 = vunpack.c.h.b16 %v507
      %v2419 = vunpack.c.l.b16 %v508
      %v2420 = vunpack.c.h.b16 %v508
      %v2421 = vunpack.c.l.b16 %v509
      %v2422 = vunpack.c.h.b16 %v509
      %v2423 = vunpack.c.l.b16 %v510
      %v2424 = vunpack.c.h.b16 %v510
      %v2425 = vunpack.c.l.b16 %v511
      %v2426 = vunpack.c.h.b16 %v511
      %v2427 = vunpack.c.l.b16 %v512
      %v2428 = vunpack.c.h.b16 %v512
      %v2429 = vunpack.c.l.b16 %v513
      %v2430 = vunpack.c.h.b16 %v513
      %v2431 = vunpack.c.l.b16 %v514
      %v2432 = vunpack.c.h.b16 %v514
      %v2433 = vunpack.c.l.b16 %v515
      %v2434 = vunpack.c.h.b16 %v515
      %v2435 = vunpack.c.l.b16 %v516
      %v2436 = vunpack.c.h.b16 %v516
      %v2437 = vunpack.c.l.b16 %v517
      %v2438 = vunpack.c.h.b16 %v517
      %v2439 = vunpack.c.l.b16 %v518
      %v2440 = vunpack.c.h.b16 %v518
      %v2441 = vunpack.c.l.b16 %v519
      %v2442 = vunpack.c.h.b16 %v519
      %v2443 = vunpack.c.l.b16 %v520
      %v2444 = vunpack.c.h.b16 %v520
      %v2445 = vunpack.c.l.b16 %v521
      %v2446 = vunpack.c.h.b16 %v521
      %v2447 = vunpack.c.l.b16 %v522
      %v2448 = vunpack.c.h.b16 %v522
      %v2449 = vunpack.c.l.b16 %v523
      %v2450 = vunpack.c.h.b16 %v523
      %v2451 = vunpack.c.l.b16 %v524
      %v2452 = vunpack.c.h.b16 %v524
      %v2453 = vunpack.c.l.b16 %v525
      %v2454 = vunpack.c.h.b16 %v525
      %v2455 = vunpack.c.l.b16 %v526
      %v2456 = vunpack.c.h.b16 %v526
      %v2457 = vunpack.c.l.b16 %v527
      %v2458 = vunpack.c.h.b16 %v527
      %v2459 = vunpack.c.l.b16 %v528
      %v2460 = vunpack.c.h.b16 %v528
      %v2461 = vunpack.c.l.b16 %v529
      %v2462 = vunpack.c.l.b16 %v530
      %v2463 = vunpack.c.h.b16 %v530
      %v2464 = vunpack.c.l.b16 %v531
      %v2465 = vunpack.c.h.b16 %v531
      %v2466 = vunpack.c.l.b16 %v532
      %v2467 = vunpack.c.h.b16 %v532
      %v2468 = vunpack.c.l.b16 %v533
      %v2469 = vunpack.c.h.b16 %v533
      %v2470 = vunpack.c.l.b16 %v534
      %v2471 = vunpack.c.h.b16 %v534
      %v2472 = vunpack.c.l.b16 %v535
      %v2473 = vunpack.c.h.b16 %v535
      %v2474 = vunpack.c.l.b16 %v536
      %v2475 = vunpack.c.h.b16 %v536
      %v2476 = vunpack.c.l.b16 %v537
      %v2477 = vunpack.c.h.b16 %v537
      %v2478 = vunpack.c.l.b16 %v538
      %v2479 = vunpack.c.h.b16 %v538
      %v2480 = vunpack.c.l.b16 %v539
      %v2481 = vunpack.c.h.b16 %v539
      %v2482 = vunpack.c.l.b16 %v540
      %v2483 = vunpack.c.h.b16 %v540
      %v2484 = vunpack.c.l.b16 %v541
      %v2485 = vunpack.c.h.b16 %v541
      %v2486 = vunpack.c.l.b16 %v542
      %v2487 = vunpack.c.h.b16 %v542
      %v2488 = vunpack.c.l.b16 %v543
      %v2489 = vunpack.c.h.b16 %v543
      %v2490 = vunpack.c.l.b16 %v544
      %v2491 = vunpack.c.h.b16 %v544
      %v2492 = vunpack.c.l.b16 %v545
      %v2493 = vunpack.c.h.b16 %v545
      %v2494 = vunpack.c.l.b16 %v546
      %v2495 = vunpack.c.h.b16 %v546
      %v2496 = vunpack.c.l.b16 %v547
      %v2497 = vunpack.c.h.b16 %v547
      %v2498 = vunpack.c.l.b16 %v548
      %v2499 = vunpack.c.h.b16 %v548
      %v2500 = vunpack.c.l.b16 %v549
      %v2501 = vunpack.c.h.b16 %v549
      %v2502 = vunpack.c.l.b16 %v550
      %v2503 = vunpack.c.h.b16 %v550
      %v2504 = vunpack.c.l.b16 %v551
      %v2505 = vunpack.c.h.b16 %v551
      %v2506 = vunpack.c.l.b16 %v552
      %v2507 = vunpack.c.h.b16 %v552
      %v2508 = vunpack.c.l.b16 %v553
      %v2509 = vunpack.c.h.b16 %v553
      %v2510 = vunpack.c.l.b16 %v554
      %v2511 = vunpack.c.l.b16 %v555
      %v2512 = vunpack.c.h.b16 %v555
      %v2513 = vunpack.c.l.b16 %v556
      %v2514 = vunpack.c.h.b16 %v556
      %v2515 = vunpack.c.l.b16 %v557
      %v2516 = vunpack.c.h.b16 %v557
      %v2517 = vunpack.c.l.b16 %v558
      %v2518 = vunpack.c.h.b16 %v558
      %v2519 = vunpack.c.l.b16 %v559
      %v2520 = vunpack.c.h.b16 %v559
      %v2521 = vunpack.c.l.b16 %v560
      %v2522 = vunpack.c.h.b16 %v560
      %v2523 = vunpack.c.l.b16 %v561
      %v2524 = vunpack.c.h.b16 %v561
      %v2525 = vunpack.c.l.b16 %v562
      %v2526 = vunpack.c.h.b16 %v562
      %v2527 = vunpack.c.l.b16 %v563
      %v2528 = vunpack.c.h.b16 %v563
      %v2529 = vunpack.c.l.b16 %v564
      %v2530 = vunpack.c.h.b16 %v564
      %v2531 = vunpack.c.l.b16 %v565
      %v2532 = vunpack.c.h.b16 %v565
      %v2533 = vunpack.c.l.b16 %v566
      %v2534 = vunpack.c.h.b16 %v566
      %v2535 = vunpack.c.l.b16 %v567
      %v2536 = vunpack.c.h.b16 %v567
      %v2537 = vunpack.c.l.b16 %v568
      %v2538 = vunpack.c.h.b16 %v568
      %v2539 = vunpack.c.l.b16 %v569
      %v2540 = vunpack.c.h.b16 %v569
      %v2541 = vunpack.c.l.b16 %v570
      %v2542 = vunpack.c.h.b16 %v570
      %v2543 = vunpack.c.l.b16 %v571
      %v2544 = vunpack.c.h.b16 %v571
      %v2545 = vunpack.c.l.b16 %v572
      %v2546 = vunpack.c.h.b16 %v572
      %v2547 = vunpack.c.l.b16 %v573
      %v2548 = vunpack.c.h.b16 %v573
      %v2549 = vunpack.c.l.b16 %v574
      %v2550 = vunpack.c.h.b16 %v574
      %v2551 = vunpack.c.l.b16 %v575
      %v2552 = vunpack.c.h.b16 %v575
      %v2553 = vunpack.c.l.b16 %v576
      %v2554 = vunpack.c.h.b16 %v576
      %v2555 = vunpack.c.l.b16 %v577
      %v2556 = vunpack.c.h.b16 %v577
      %v2557 = vunpack.c.l.b16 %v578
      %v2558 = vunpack.c.h.b16 %v578
      %v2559 = vunpack.c.l.b16 %v579
      %v2560 = vpack.c.b16 %v1825, %v1776
      %v2561 = vpack.c.b16 %v1826, %v1777
      %v2562 = vpack.c.b16 %v1827, %v1778
      %v2563 = vpack.c.b16 %v1828, %v1779
      %v2564 = vpack.c.b16 %v1829, %v1780
      %v2565 = vpack.c.b16 %v1830, %v1781
      %v2566 = vpack.c.b16 %v1831, %v1782
      %v2567 = vpack.c.b16 %v1832, %v1783
      %v2568 = vpack.c.b16 %v1833, %v1784
      %v2569 = vpack.c.b16 %v1834, %v1785
      %v2570 = vpack.c.b16 %v1835, %v1786
      %v2571 = vpack.c.b16 %v1836, %v1787
      %v2572 = vpack.c.b16 %v1837, %v1788
      %v2573 = vpack.c.b16 %v1838, %v1789
      %v2574 = vpack.c.b16 %v1839, %v1790
      %v2575 = vpack.c.b16 %v1840, %v1791
      %v2576 = vpack.c.b16 %v1841, %v1792
      %v2577 = vpack.c.b16 %v1842, %v1793
      %v2578 = vpack.c.b16 %v1843, %v1794
      %v2579 = vpack.c.b16 %v1844, %v1795
      %v2580 = vpack.c.b16 %v1845, %v1796
      %v2581 = vpack.c.b16 %v1846, %v1797
      %v2582 = vpack.c.b16 %v1847, %v1798
      %v2583 = vpack.c.b16 %v1848, %v1799
      %v2584 = vpack.c.b16 %v1849, %v1800
      %v2585 = vpack.c.b16 %v1850, %v1801
      %v2586 = vpack.c.b16 %v1851, %v1802
      %v2587 = vpack.c.b16 %v1852, %v1803
      %v2588 = vpack.c.b16 %v1853, %v1804
      %v2589 = vpack.c.b16 %v1854, %v1805
      %v2590 = vpack.c.b16 %v1855, %v1806
      %v2591 = vpack.c.b16 %v1856, %v1807
      %v2592 = vpack.c.b16 %v1857, %v1808
      %v2593 = vpack.c.b16 %v1858, %v1809
      %v2594 = vpack.c.b16 %v1859, %v1810
      %v2595 = vpack.c.b16 %v1860, %v1811
      %v2596 = vpack.c.b16 %v1861, %v1812
      %v2597 = vpack.c.b16 %v1862, %v1813
      %v2598 = vpack.c.b16 %v1863, %v1814
      %v2599 = vpack.c.b16 %v1864, %v1815
      %v2600 = vpack.c.b16 %v1865, %v1816
      %v2601 = vpack.c.b16 %v1866, %v1817
      %v2602 = vpack.c.b16 %v1867, %v1818
      %v2603 = vpack.c.b16 %v1868, %v1819
      %v2604 = vpack.c.b16 %v1869, %v1820
      %v2605 = vpack.c.b16 %v1870, %v1821
      %v2606 = vpack.c.b16 %v1871, %v1822
      %v2607 = vpack.c.b16 %v1872, %v1823
      %v2608 = vpack.c.b16 %v1873, %v1824
      %v2609 = vpack.c.b16 %v1923, %v1874
      %v2610 = vpack.c.b16 %v1924, %v1875
      %v2611 = vpack.c.b16 %v1925, %v1876
      %v2612 = vpack.c.b16 %v1926, %v1877
      %v2613 = vpack.c.b16 %v1927, %v1878
      %v2614 = vpack.c.b16 %v1928, %v1879
      %v2615 = vpack.c.b16 %v1929, %v1880
      %v2616 = vpack.c.b16 %v1930, %v1881
      %v2617 = vpack.c.b16 %v1931, %v1882
      %v2618 = vpack.c.b16 %v1932, %v1883
      %v2619 = vpack.c.b16 %v1933, %v1884
      %v2620 = vpack.c.b16 %v1934, %v1885
      %v2621 = vpack.c.b16 %v1935, %v1886
      %v2622 = vpack.c.b16 %v1936, %v1887
      %v2623 = vpack.c.b16 %v1937, %v1888
      %v2624 = vpack.c.b16 %v1938, %v1889
      %v2625 = vpack.c.b16 %v1939, %v1890
      %v2626 = vpack.c.b16 %v1940, %v1891
      %v2627 = vpack.c.b16 %v1941, %v1892
      %v2628 = vpack.c.b16 %v1942, %v1893
      %v2629 = vpack.c.b16 %v1943, %v1894
      %v2630 = vpack.c.b16 %v1944, %v1895
      %v2631 = vpack.c.b16 %v1945, %v1896
      %v2632 = vpack.c.b16 %v1946, %v1897
      %v2633 = vpack.c.b16 %v1947, %v1898
      %v2634 = vpack.c.b16 %v1948, %v1899
      %v2635 = vpack.c.b16 %v1949, %v1900
      %v2636 = vpack.c.b16 %v1950, %v1901
      %v2637 = vpack.c.b16 %v1951, %v1902
      %v2638 = vpack.c.b16 %v1952, %v1903
      %v2639 = vpack.c.b16 %v1953, %v1904
      %v2640 = vpack.c.b16 %v1954, %v1905
      %v2641 = vpack.c.b16 %v1955, %v1906
      %v2642 = vpack.c.b16 %v1956, %v1907
      %v2643 = vpack.c.b16 %v1957, %v1908
      %v2644 = vpack.c.b16 %v1958, %v1909
      %v2645 = vpack.c.b16 %v1959, %v1910
      %v2646 = vpack.c.b16 %v1960, %v1911
      %v2647 = vpack.c.b16 %v1961, %v1912
      %v2648 = vpack.c.b16 %v1962, %v1913
      %v2649 = vpack.c.b16 %v1963, %v1914
      %v2650 = vpack.c.b16 %v1964, %v1915
      %v2651 = vpack.c.b16 %v1965, %v1916
      %v2652 = vpack.c.b16 %v1966, %v1917
      %v2653 = vpack.c.b16 %v1967, %v1918
      %v2654 = vpack.c.b16 %v1968, %v1919
      %v2655 = vpack.c.b16 %v1969, %v1920
      %v2656 = vpack.c.b16 %v1970, %v1921
      %v2657 = vpack.c.b16 %v1971, %v1922
      %v2658 = vpack.c.b16 %v2021, %v1972
      %v2659 = vpack.c.b16 %v2022, %v1973
      %v2660 = vpack.c.b16 %v2023, %v1974
      %v2661 = vpack.c.b16 %v2024, %v1975
      %v2662 = vpack.c.b16 %v2025, %v1976
      %v2663 = vpack.c.b16 %v2026, %v1977
      %v2664 = vpack.c.b16 %v2027, %v1978
      %v2665 = vpack.c.b16 %v2028, %v1979
      %v2666 = vpack.c.b16 %v2029, %v1980
      %v2667 = vpack.c.b16 %v2030, %v1981
      %v2668 = vpack.c.b16 %v2031, %v1982
      %v2669 = vpack.c.b16 %v2032, %v1983
      %v2670 = vpack.c.b16 %v2033, %v1984
      %v2671 = vpack.c.b16 %v2034, %v1985
      %v2672 = vpack.c.b16 %v2035, %v1986
      %v2673 = vpack.c.b16 %v2036, %v1987
      %v2674 = vpack.c.b16 %v2037, %v1988
      %v2675 = vpack.c.b16 %v2038, %v1989
      %v2676 = vpack.c.b16 %v2039, %v1990
      %v2677 = vpack.c.b16 %v2040, %v1991
      %v2678 = vpack.c.b16 %v2041, %v1992
      %v2679 = vpack.c.b16 %v2042, %v1993
      %v2680 = vpack.c.b16 %v2043, %v1994
      %v2681 = vpack.c.b16 %v2044, %v1995
      %v2682 = vpack.c.b16 %v2045, %v1996
      %v2683 = vpack.c.b16 %v2046, %v1997
      %v2684 = vpack.c.b16 %v2047, %v1998
      %v2685 = vpack.c.b16 %v2048, %v1999
      %v2686 = vpack.c.b16 %v2049, %v2000
      %v2687 = vpack.c.b16 %v2050, %v2001
      %v2688 = vpack.c.b16 %v2051, %v2002
      %v2689 = vpack.c.b16 %v2052, %v2003
      %v2690 = vpack.c.b16 %v2053, %v2004
      %v2691 = vpack.c.b16 %v2054, %v2005
      %v2692 = vpack.c.b16 %v2055, %v2006
      %v2693 = vpack.c.b16 %v2056, %v2007
      %v2694 = vpack.c.b16 %v2057, %v2008
      %v2695 = vpack.c.b16 %v2058, %v2009
      %v2696 = vpack.c.b16 %v2059, %v2010
      %v2697 = vpack.c.b16 %v2060, %v2011
      %v2698 = vpack.c.b16 %v2061, %v2012
      %v2699 = vpack.c.b16 %v2062, %v2013
      %v2700 = vpack.c.b16 %v2063, %v2014
      %v2701 = vpack.c.b16 %v2064, %v2015
      %v2702 = vpack.c.b16 %v2065, %v2016
      %v2703 = vpack.c.b16 %v2066, %v2017
      %v2704 = vpack.c.b16 %v2067, %v2018
      %v2705 = vpack.c.b16 %v2068, %v2019
      %v2706 = vpack.c.b16 %v2069, %v2020
      %v2707 = vpack.c.b16 %v2119, %v2070
      %v2708 = vpack.c.b16 %v2120, %v2071
      %v2709 = vpack.c.b16 %v2121, %v2072
      %v2710 = vpack.c.b16 %v2122, %v2073
      %v2711 = vpack.c.b16 %v2123, %v2074
      %v2712 = vpack.c.b16 %v2124, %v2075
      %v2713 = vpack.c.b16 %v2125, %v2076
      %v2714 = vpack.c.b16 %v2126, %v2077
      %v2715 = vpack.c.b16 %v2127, %v2078
      %v2716 = vpack.c.b16 %v2128, %v2079
      %v2717 = vpack.c.b16 %v2129, %v2080
      %v2718 = vpack.c.b16 %v2130, %v2081
      %v2719 = vpack.c.b16 %v2131, %v2082
      %v2720 = vpack.c.b16 %v2132, %v2083
      %v2721 = vpack.c.b16 %v2133, %v2084
      %v2722 = vpack.c.b16 %v2134, %v2085
      %v2723 = vpack.c.b16 %v2135, %v2086
      %v2724 = vpack.c.b16 %v2136, %v2087
      %v2725 = vpack.c.b16 %v2137, %v2088
      %v2726 = vpack.c.b16 %v2138, %v2089
      %v2727 = vpack.c.b16 %v2139, %v2090
      %v2728 = vpack.c.b16 %v2140, %v2091
      %v2729 = vpack.c.b16 %v2141, %v2092
      %v2730 = vpack.c.b16 %v2142, %v2093
      %v2731 = vpack.c.b16 %v2143, %v2094
      %v2732 = vpack.c.b16 %v2144, %v2095
      %v2733 = vpack.c.b16 %v2145, %v2096
      %v2734 = vpack.c.b16 %v2146, %v2097
      %v2735 = vpack.c.b16 %v2147, %v2098
      %v2736 = vpack.c.b16 %v2148, %v2099
      %v2737 = vpack.c.b16 %v2149, %v2100
      %v2738 = vpack.c.b16 %v2150, %v2101
      %v2739 = vpack.c.b16 %v2151, %v2102
      %v2740 = vpack.c.b16 %v2152, %v2103
      %v2741 = vpack.c.b16 %v2153, %v2104
      %v2742 = vpack.c.b16 %v2154, %v2105
      %v2743 = vpack.c.b16 %v2155, %v2106
      %v2744 = vpack.c.b16 %v2156, %v2107
      %v2745 = vpack.c.b16 %v2157, %v2108
      %v2746 = vpack.c.b16 %v2158, %v2109
      %v2747 = vpack.c.b16 %v2159, %v2110
      %v2748 = vpack.c.b16 %v2160, %v2111
      %v2749 = vpack.c.b16 %v2161, %v2112
      %v2750 = vpack.c.b16 %v2162, %v2113
      %v2751 = vpack.c.b16 %v2163, %v2114
      %v2752 = vpack.c.b16 %v2164, %v2115
      %v2753 = vpack.c.b16 %v2165, %v2116
      %v2754 = vpack.c.b16 %v2166, %v2117
      %v2755 = vpack.c.b16 %v2167, %v2118
      %v2756 = vpack.c.b16 %v2217, %v2168
      %v2757 = vpack.c.b16 %v2218, %v2169
      %v2758 = vpack.c.b16 %v2219, %v2170
      %v2759 = vpack.c.b16 %v2220, %v2171
      %v2760 = vpack.c.b16 %v2221, %v2172
      %v2761 = vpack.c.b16 %v2222, %v2173
      %v2762 = vpack.c.b16 %v2223, %v2174
      %v2763 = vpack.c.b16 %v2224, %v2175
      %v2764 = vpack.c.b16 %v2225, %v2176
      %v2765 = vpack.c.b16 %v2226, %v2177
      %v2766 = vpack.c.b16 %v2227, %v2178
      %v2767 = vpack.c.b16 %v2228, %v2179
      %v2768 = vpack.c.b16 %v2229, %v2180
      %v2769 = vpack.c.b16 %v2230, %v2181
      %v2770 = vpack.c.b16 %v2231, %v2182
      %v2771 = vpack.c.b16 %v2232, %v2183
      %v2772 = vpack.c.b16 %v2233, %v2184
      %v2773 = vpack.c.b16 %v2234, %v2185
      %v2774 = vpack.c.b16 %v2235, %v2186
      %v2775 = vpack.c.b16 %v2236, %v2187
      %v2776 = vpack.c.b16 %v2237, %v2188
      %v2777 = vpack.c.b16 %v2238, %v2189
      %v2778 = vpack.c.b16 %v2239, %v2190
      %v2779 = vpack.c.b16 %v2240, %v2191
      %v2780 = vpack.c.b16 %v2241, %v2192
      %v2781 = vpack.c.b16 %v2242, %v2193
      %v2782 = vpack.c.b16 %v2243, %v2194
      %v2783 = vpack.c.b16 %v2244, %v2195
      %v2784 = vpack.c.b16 %v2245, %v2196
      %v2785 = vpack.c.b16 %v2246, %v2197
      %v2786 = vpack.c.b16 %v2247, %v2198
      %v2787 = vpack.c.b16 %v2248, %v2199
      %v2788 = vpack.c.b16 %v2249, %v2200
      %v2789 = vpack.c.b16 %v2250, %v2201
      %v2790 = vpack.c.b16 %v2251, %v2202
      %v2791 = vpack.c.b16 %v2252, %v2203
      %v2792 = vpack.c.b16 %v2253, %v2204
      %v2793 = vpack.c.b16 %v2254, %v2205
      %v2794 = vpack.c.b16 %v2255, %v2206
      %v2795 = vpack.c.b16 %v2256, %v2207
      %v2796 = vpack.c.b16 %v2257, %v2208
      %v2797 = vpack.c.b16 %v2258, %v2209
      %v2798 = vpack.c.b16 %v2259, %v2210
      %v2799 = vpack.c.b16 %v2260, %v2211
      %v2800 = vpack.c.b16 %v2261, %v2212
      %v2801 = vpack.c.b16 %v2262, %v2213
      %v2802 = vpack.c.b16 %v2263, %v2214
      %v2803 = vpack.c.b16 %v2264, %v2215
      %v2804 = vpack.c.b16 %v2265, %v2216
      %v2805 = vpack.c.b16 %v2315, %v2266
      %v2806 = vpack.c.b16 %v2316, %v2267
      %v2807 = vpack.c.b16 %v2317, %v2268
      %v2808 = vpack.c.b16 %v2318, %v2269
      %v2809 = vpack.c.b16 %v2319, %v2270
      %v2810 = vpack.c.b16 %v2320, %v2271
      %v2811 = vpack.c.b16 %v2321, %v2272
      %v2812 = vpack.c.b16 %v2322, %v2273
      %v2813 = vpack.c.b16 %v2323, %v2274
      %v2814 = vpack.c.b16 %v2324, %v2275
      %v2815 = vpack.c.b16 %v2325, %v2276
      %v2816 = vpack.c.b16 %v2326, %v2277
      %v2817 = vpack.c.b16 %v2327, %v2278
      %v2818 = vpack.c.b16 %v2328, %v2279
      %v2819 = vpack.c.b16 %v2329, %v2280
      %v2820 = vpack.c.b16 %v2330, %v2281
      %v2821 = vpack.c.b16 %v2331, %v2282
      %v2822 = vpack.c.b16 %v2332, %v2283
      %v2823 = vpack.c.b16 %v2333, %v2284
      %v2824 = vpack.c.b16 %v2334, %v2285
      %v2825 = vpack.c.b16 %v2335, %v2286
      %v2826 = vpack.c.b16 %v2336, %v2287
      %v2827 = vpack.c.b16 %v2337, %v2288
      %v2828 = vpack.c.b16 %v2338, %v2289
      %v2829 = vpack.c.b16 %v2339, %v2290
      %v2830 = vpack.c.b16 %v2340, %v2291
      %v2831 = vpack.c.b16 %v2341, %v2292
      %v2832 = vpack.c.b16 %v2342, %v2293
      %v2833 = vpack.c.b16 %v2343, %v2294
      %v2834 = vpack.c.b16 %v2344, %v2295
      %v2835 = vpack.c.b16 %v2345, %v2296
      %v2836 = vpack.c.b16 %v2346, %v2297
      %v2837 = vpack.c.b16 %v2347, %v2298
      %v2838 = vpack.c.b16 %v2348, %v2299
      %v2839 = vpack.c.b16 %v2349, %v2300
      %v2840 = vpack.c.b16 %v2350, %v2301
      %v2841 = vpack.c.b16 %v2351, %v2302
      %v2842 = vpack.c.b16 %v2352, %v2303
      %v2843 = vpack.c.b16 %v2353, %v2304
      %v2844 = vpack.c.b16 %v2354, %v2305
      %v2845 = vpack.c.b16 %v2355, %v2306
      %v2846 = vpack.c.b16 %v2356, %v2307
      %v2847 = vpack.c.b16 %v2357, %v2308
      %v2848 = vpack.c.b16 %v2358, %v2309
      %v2849 = vpack.c.b16 %v2359, %v2310
      %v2850 = vpack.c.b16 %v2360, %v2311
      %v2851 = vpack.c.b16 %v2361, %v2312
      %v2852 = vpack.c.b16 %v2362, %v2313
      %v2853 = vpack.c.b16 %v2363, %v2314
      %v2854 = vpack.c.b16 %v2413, %v2364
      %v2855 = vpack.c.b16 %v2414, %v2365
      %v2856 = vpack.c.b16 %v2415, %v2366
      %v2857 = vpack.c.b16 %v2416, %v2367
      %v2858 = vpack.c.b16 %v2417, %v2368
      %v2859 = vpack.c.b16 %v2418, %v2369
      %v2860 = vpack.c.b16 %v2419, %v2370
      %v2861 = vpack.c.b16 %v2420, %v2371
      %v2862 = vpack.c.b16 %v2421, %v2372
      %v2863 = vpack.c.b16 %v2422, %v2373
      %v2864 = vpack.c.b16 %v2423, %v2374
      %v2865 = vpack.c.b16 %v2424, %v2375
      %v2866 = vpack.c.b16 %v2425, %v2376
      %v2867 = vpack.c.b16 %v2426, %v2377
      %v2868 = vpack.c.b16 %v2427, %v2378
      %v2869 = vpack.c.b16 %v2428, %v2379
      %v2870 = vpack.c.b16 %v2429, %v2380
      %v2871 = vpack.c.b16 %v2430, %v2381
      %v2872 = vpack.c.b16 %v2431, %v2382
      %v2873 = vpack.c.b16 %v2432, %v2383
      %v2874 = vpack.c.b16 %v2433, %v2384
      %v2875 = vpack.c.b16 %v2434, %v2385
      %v2876 = vpack.c.b16 %v2435, %v2386
      %v2877 = vpack.c.b16 %v2436, %v2387
      %v2878 = vpack.c.b16 %v2437, %v2388
      %v2879 = vpack.c.b16 %v2438, %v2389
      %v2880 = vpack.c.b16 %v2439, %v2390
      %v2881 = vpack.c.b16 %v2440, %v2391
      %v2882 = vpack.c.b16 %v2441, %v2392
      %v2883 = vpack.c.b16 %v2442, %v2393
      %v2884 = vpack.c.b16 %v2443, %v2394
      %v2885 = vpack.c.b16 %v2444, %v2395
      %v2886 = vpack.c.b16 %v2445, %v2396
      %v2887 = vpack.c.b16 %v2446, %v2397
      %v2888 = vpack.c.b16 %v2447, %v2398
      %v2889 = vpack.c.b16 %v2448, %v2399
      %v2890 = vpack.c.b16 %v2449, %v2400
      %v2891 = vpack.c.b16 %v2450, %v2401
      %v2892 = vpack.c.b16 %v2451, %v2402
      %v2893 = vpack.c.b16 %v2452, %v2403
      %v2894 = vpack.c.b16 %v2453, %v2404
      %v2895 = vpack.c.b16 %v2454, %v2405
      %v2896 = vpack.c.b16 %v2455, %v2406
      %v2897 = vpack.c.b16 %v2456, %v2407
      %v2898 = vpack.c.b16 %v2457, %v2408
      %v2899 = vpack.c.b16 %v2458, %v2409
      %v2900 = vpack.c.b16 %v2459, %v2410
      %v2901 = vpack.c.b16 %v2460, %v2411
      %v2902 = vpack.c.b16 %v2461, %v2412
      %v2903 = vpack.c.b16 %v2511, %v2462
      %v2904 = vpack.c.b16 %v2512, %v2463
      %v2905 = vpack.c.b16 %v2513, %v2464
      %v2906 = vpack.c.b16 %v2514, %v2465
      %v2907 = vpack.c.b16 %v2515, %v2466
      %v2908 = vpack.c.b16 %v2516, %v2467
      %v2909 = vpack.c.b16 %v2517, %v2468
      %v2910 = vpack.c.b16 %v2518, %v2469
      %v2911 = vpack.c.b16 %v2519, %v2470
      %v2912 = vpack.c.b16 %v2520, %v2471
      %v2913 = vpack.c.b16 %v2521, %v2472
      %v2914 = vpack.c.b16 %v2522, %v2473
      %v2915 = vpack.c.b16 %v2523, %v2474
      %v2916 = vpack.c.b16 %v2524, %v2475
      %v2917 = vpack.c.b16 %v2525, %v2476
      %v2918 = vpack.c.b16 %v2526, %v2477
      %v2919 = vpack.c.b16 %v2527, %v2478
      %v2920 = vpack.c.b16 %v2528, %v2479
      %v2921 = vpack.c.b16 %v2529, %v2480
      %v2922 = vpack.c.b16 %v2530, %v2481
      %v2923 = vpack.c.b16 %v2531, %v2482
      %v2924 = vpack.c.b16 %v2532, %v2483
      %v2925 = vpack.c.b16 %v2533, %v2484
      %v2926 = vpack.c.b16 %v2534, %v2485
      %v2927 = vpack.c.b16 %v2535, %v2486
      %v2928 = vpack.c.b16 %v2536, %v2487
      %v2929 = vpack.c.b16 %v2537, %v2488
      %v2930 = vpack.c.b16 %v2538, %v2489
      %v2931 = vpack.c.b16 %v2539, %v2490
      %v2932 = vpack.c.b16 %v2540, %v2491
      %v2933 = vpack.c.b16 %v2541, %v2492
      %v2934 = vpack.c.b16 %v2542, %v2493
      %v2935 = vpack.c.b16 %v2543, %v2494
      %v2936 = vpack.c.b16 %v2544, %v2495
      %v2937 = vpack.c.b16 %v2545, %v2496
      %v2938 = vpack.c.b16 %v2546, %v2497
      %v2939 = vpack.c.b16 %v2547, %v2498
      %v2940 = vpack.c.b16 %v2548, %v2499
      %v2941 = vpack.c.b16 %v2549, %v2500
      %v2942 = vpack.c.b16 %v2550, %v2501
      %v2943 = vpack.c.b16 %v2551, %v2502
      %v2944 = vpack.c.b16 %v2552, %v2503
      %v2945 = vpack.c.b16 %v2553, %v2504
      %v2946 = vpack.c.b16 %v2554, %v2505
      %v2947 = vpack.c.b16 %v2555, %v2506
      %v2948 = vpack.c.b16 %v2556, %v2507
      %v2949 = vpack.c.b16 %v2557, %v2508
      %v2950 = vpack.c.b16 %v2558, %v2509
      %v2951 = vpack.c.b16 %v2559, %v2510
      %v4128 = vunpack.c.l.b16 %v580
      %v4129 = vunpack.c.h.b16 %v580
      %v4130 = vunpack.c.l.b16 %v581
      %v4131 = vunpack.c.h.b16 %v581
      %v4132 = vunpack.c.l.b16 %v582
      %v4133 = vunpack.c.h.b16 %v582
      %v4134 = vunpack.c.l.b16 %v583
      %v4135 = vunpack.c.h.b16 %v583
      %v4136 = vunpack.c.l.b16 %v584
      %v4137 = vunpack.c.h.b16 %v584
      %v4138 = vunpack.c.l.b16 %v585
      %v4139 = vunpack.c.h.b16 %v585
      %v4140 = vunpack.c.l.b16 %v586
      %v4141 = vunpack.c.h.b16 %v586
      %v4142 = vunpack.c.l.b16 %v587
      %v4143 = vunpack.c.h.b16 %v587
      %v4144 = vunpack.c.l.b16 %v588
      %v4145 = vunpack.c.h.b16 %v588
      %v4146 = vunpack.c.l.b16 %v589
      %v4147 = vunpack.c.h.b16 %v589
      %v4148 = vunpack.c.l.b16 %v590
      %v4149 = vunpack.c.h.b16 %v590
      %v4150 = vunpack.c.l.b16 %v591
      %v4151 = vunpack.c.h.b16 %v591
      %v4152 = vunpack.c.l.b16 %v592
      %v4153 = vunpack.c.h.b16 %v592
      %v4154 = vunpack.c.l.b16 %v593
      %v4155 = vunpack.c.h.b16 %v593
      %v4156 = vunpack.c.l.b16 %v594
      %v4157 = vunpack.c.h.b16 %v594
      %v4158 = vunpack.c.l.b16 %v595
      %v4159 = vunpack.c.h.b16 %v595
      %v4160 = vunpack.c.l.b16 %v596
      %v4161 = vunpack.c.h.b16 %v596
      %v4162 = vunpack.c.l.b16 %v597
      %v4163 = vunpack.c.h.b16 %v597
      %v4164 = vunpack.c.l.b16 %v598
      %v4165 = vunpack.c.h.b16 %v598
      %v4166 = vunpack.c.l.b16 %v599
      %v4167 = vunpack.c.h.b16 %v599
      %v4168 = vunpack.c.l.b16 %v600
      %v4169 = vunpack.c.h.b16 %v600
      %v4170 = vunpack.c.l.b16 %v601
      %v4171 = vunpack.c.h.b16 %v601
      %v4172 = vunpack.c.l.b16 %v602
      %v4173 = vunpack.c.h.b16 %v602
      %v4174 = vunpack.c.l.b16 %v603
      %v4175 = vunpack.c.h.b16 %v603
      %v4176 = vunpack.c.l.b16 %v604
      %v4177 = vunpack.c.h.b16 %v604
      %v4178 = vunpack.c.l.b16 %v605
      %v4179 = vunpack.c.h.b16 %v605
      %v4180 = vunpack.c.l.b16 %v606
      %v4181 = vunpack.c.h.b16 %v606
      %v4182 = vunpack.c.l.b16 %v607
      %v4183 = vunpack.c.h.b16 %v607
      %v4184 = vunpack.c.l.b16 %v608
      %v4185 = vunpack.c.h.b16 %v608
      %v4186 = vunpack.c.l.b16 %v609
      %v4187 = vunpack.c.h.b16 %v609
      %v4188 = vunpack.c.l.b16 %v610
      %v4189 = vunpack.c.h.b16 %v610
      %v4190 = vunpack.c.l.b16 %v611
      %v4191 = vunpack.c.h.b16 %v611
      %v4192 = vunpack.c.l.b16 %v612
      %v4193 = vunpack.c.h.b16 %v612
      %v4194 = vunpack.c.l.b16 %v613
      %v4195 = vunpack.c.h.b16 %v613
      %v4196 = vunpack.c.l.b16 %v614
      %v4197 = vunpack.c.h.b16 %v614
      %v4198 = vunpack.c.l.b16 %v615
      %v4199 = vunpack.c.h.b16 %v615
      %v4200 = vunpack.c.l.b16 %v616
      %v4201 = vunpack.c.h.b16 %v616
      %v4202 = vunpack.c.l.b16 %v617
      %v4203 = vunpack.c.h.b16 %v617
      %v4204 = vunpack.c.l.b16 %v618
      %v4205 = vunpack.c.h.b16 %v618
      %v4206 = vunpack.c.l.b16 %v619
      %v4207 = vunpack.c.h.b16 %v619
      %v4208 = vunpack.c.l.b16 %v620
      %v4209 = vunpack.c.h.b16 %v620
      %v4210 = vunpack.c.l.b16 %v621
      %v4211 = vunpack.c.h.b16 %v621
      %v4212 = vunpack.c.l.b16 %v622
      %v4213 = vunpack.c.h.b16 %v622
      %v4214 = vunpack.c.l.b16 %v623
      %v4215 = vunpack.c.h.b16 %v623
      %v4216 = vunpack.c.l.b16 %v624
      %v4217 = vunpack.c.h.b16 %v624
      %v4218 = vunpack.c.l.b16 %v625
      %v4219 = vunpack.c.h.b16 %v625
      %v4220 = vunpack.c.l.b16 %v626
      %v4221 = vunpack.c.h.b16 %v626
      %v4222 = vunpack.c.l.b16 %v627
      %v4223 = vunpack.c.h.b16 %v627
      %v4224 = vunpack.c.l.b16 %v628
      %v4225 = vunpack.c.h.b16 %v628
      %v4226 = vunpack.c.l.b16 %v629
      %v4227 = vunpack.c.h.b16 %v629
      %v4228 = vunpack.c.l.b16 %v630
      %v4229 = vunpack.c.h.b16 %v630
      %v4230 = vunpack.c.l.b16 %v631
      %v4231 = vunpack.c.h.b16 %v631
      %v4232 = vunpack.c.l.b16 %v632
      %v4233 = vunpack.c.h.b16 %v632
      %v4234 = vunpack.c.l.b16 %v633
      %v4235 = vunpack.c.h.b16 %v633
      %v4236 = vunpack.c.l.b16 %v634
      %v4237 = vunpack.c.h.b16 %v634
      %v4238 = vunpack.c.l.b16 %v635
      %v4239 = vunpack.c.h.b16 %v635
      %v4240 = vunpack.c.l.b16 %v636
      %v4241 = vunpack.c.h.b16 %v636
      %v4242 = vunpack.c.l.b16 %v637
      %v4243 = vunpack.c.h.b16 %v637
      %v4244 = vunpack.c.l.b16 %v638
      %v4245 = vunpack.c.h.b16 %v638
      %v4246 = vunpack.c.l.b16 %v639
      %v4247 = vunpack.c.h.b16 %v639
      %v4248 = vunpack.c.l.b16 %v640
      %v4249 = vunpack.c.h.b16 %v640
      %v4250 = vunpack.c.l.b16 %v641
      %v4251 = vunpack.c.h.b16 %v641
      %v4252 = vunpack.c.l.b16 %v642
      %v4253 = vunpack.c.h.b16 %v642
      %v4254 = vunpack.c.l.b16 %v643
      %v4255 = vunpack.c.h.b16 %v643
      %v4256 = vunpack.c.l.b16 %v644
      %v4257 = vunpack.c.h.b16 %v644
      %v4258 = vunpack.c.l.b16 %v645
      %v4259 = vunpack.c.h.b16 %v645
      %v4260 = vunpack.c.l.b16 %v646
      %v4261 = vunpack.c.h.b16 %v646
      %v4262 = vunpack.c.l.b16 %v647
      %v4263 = vunpack.c.h.b16 %v647
      %v4264 = vunpack.c.l.b16 %v648
      %v4265 = vunpack.c.h.b16 %v648
      %v4266 = vunpack.c.l.b16 %v649
      %v4267 = vunpack.c.h.b16 %v649
      %v4268 = vunpack.c.l.b16 %v650
      %v4269 = vunpack.c.h.b16 %v650
      %v4270 = vunpack.c.l.b16 %v651
      %v4271 = vunpack.c.h.b16 %v651
      %v4272 = vunpack.c.l.b16 %v652
      %v4273 = vunpack.c.h.b16 %v652
      %v4274 = vunpack.c.l.b16 %v653
      %v4275 = vunpack.c.h.b16 %v653
      %v4276 = vunpack.c.l.b16 %v654
      %v4277 = vunpack.c.h.b16 %v654
      %v4278 = vunpack.c.l.b16 %v655
      %v4279 = vunpack.c.h.b16 %v655
      %v4280 = vunpack.c.l.b16 %v656
      %v4281 = vunpack.c.h.b16 %v656
      %v4282 = vunpack.c.l.b16 %v657
      %v4283 = vunpack.c.h.b16 %v657
      %v4284 = vunpack.c.l.b16 %v658
      %v4285 = vunpack.c.h.b16 %v658
      %v4286 = vunpack.c.l.b16 %v659
      %v4287 = vunpack.c.h.b16 %v659
      %v4288 = vunpack.c.l.b16 %v660
      %v4289 = vunpack.c.h.b16 %v660
      %v4290 = vunpack.c.l.b16 %v661
      %v4291 = vunpack.c.h.b16 %v661
      %v4292 = vunpack.c.l.b16 %v662
      %v4293 = vunpack.c.h.b16 %v662
      %v4294 = vunpack.c.l.b16 %v663
      %v4295 = vunpack.c.h.b16 %v663
      %v4296 = vunpack.c.l.b16 %v664
      %v4297 = vunpack.c.h.b16 %v664
      %v4298 = vunpack.c.l.b16 %v665
      %v4299 = vunpack.c.h.b16 %v665
      %v4300 = vunpack.c.l.b16 %v666
      %v4301 = vunpack.c.h.b16 %v666
      %v4302 = vunpack.c.l.b16 %v667
      %v4303 = vunpack.c.h.b16 %v667
      %v4304 = vunpack.c.l.b16 %v668
      %v4305 = vunpack.c.h.b16 %v668
      %v4306 = vunpack.c.l.b16 %v669
      %v4307 = vunpack.c.h.b16 %v669
      %v4308 = vunpack.c.l.b16 %v670
      %v4309 = vunpack.c.h.b16 %v670
      %v4310 = vunpack.c.l.b16 %v671
      %v4311 = vunpack.c.h.b16 %v671
      %v4312 = vunpack.c.l.b16 %v672
      %v4313 = vunpack.c.h.b16 %v672
      %v4314 = vunpack.c.l.b16 %v673
      %v4315 = vunpack.c.h.b16 %v673
      %v4316 = vunpack.c.l.b16 %v674
      %v4317 = vunpack.c.h.b16 %v674
      %v4318 = vunpack.c.l.b16 %v675
      %v4319 = vunpack.c.h.b16 %v675
      %v4320 = vunpack.c.l.b16 %v676
      %v4321 = vunpack.c.h.b16 %v676
      %v4322 = vunpack.c.l.b16 %v677
      %v4323 = vunpack.c.h.b16 %v677
      %v4324 = vunpack.c.l.b16 %v678
      %v4325 = vunpack.c.h.b16 %v678
      %v4326 = vunpack.c.l.b16 %v679
      %v4327 = vunpack.c.h.b16 %v679
      %v4328 = vunpack.c.l.b16 %v680
      %v4329 = vunpack.c.h.b16 %v680
      %v4330 = vunpack.c.l.b16 %v681
      %v4331 = vunpack.c.h.b16 %v681
      %v4332 = vunpack.c.l.b16 %v682
      %v4333 = vunpack.c.h.b16 %v682
      %v4334 = vunpack.c.l.b16 %v683
      %v4335 = vunpack.c.h.b16 %v683
      %v4336 = vunpack.c.l.b16 %v684
      %v4337 = vunpack.c.h.b16 %v684
      %v4338 = vunpack.c.l.b16 %v685
      %v4339 = vunpack.c.h.b16 %v685
      %v4340 = vunpack.c.l.b16 %v686
      %v4341 = vunpack.c.h.b16 %v686
      %v4342 = vunpack.c.l.b16 %v687
      %v4343 = vunpack.c.h.b16 %v687
      %v4344 = vunpack.c.l.b16 %v688
      %v4345 = vunpack.c.h.b16 %v688
      %v4346 = vunpack.c.l.b16 %v689
      %v4347 = vunpack.c.h.b16 %v689
      %v4348 = vunpack.c.l.b16 %v690
      %v4349 = vunpack.c.h.b16 %v690
      %v4350 = vunpack.c.l.b16 %v691
      %v4351 = vunpack.c.h.b16 %v691
      %v4352 = vunpack.c.l.b16 %v692
      %v4353 = vunpack.c.h.b16 %v692
      %v4354 = vunpack.c.l.b16 %v693
      %v4355 = vunpack.c.h.b16 %v693
      %v4356 = vunpack.c.l.b16 %v694
      %v4357 = vunpack.c.h.b16 %v694
      %v4358 = vunpack.c.l.b16 %v695
      %v4359 = vunpack.c.h.b16 %v695
      %v4360 = vunpack.c.l.b16 %v696
      %v4361 = vunpack.c.h.b16 %v696
      %v4362 = vunpack.c.l.b16 %v697
      %v4363 = vunpack.c.h.b16 %v697
      %v4364 = vunpack.c.l.b16 %v698
      %v4365 = vunpack.c.h.b16 %v698
      %v4366 = vunpack.c.l.b16 %v699
      %v4367 = vunpack.c.h.b16 %v699
      %v4368 = vunpack.c.l.b16 %v700
      %v4369 = vunpack.c.h.b16 %v700
      %v4370 = vunpack.c.l.b16 %v701
      %v4371 = vunpack.c.h.b16 %v701
      %v4372 = vunpack.c.l.b16 %v702
      %v4373 = vunpack.c.h.b16 %v702
      %v4374 = vunpack.c.l.b16 %v703
      %v4375 = vunpack.c.h.b16 %v703
      %v4376 = vunpack.c.l.b16 %v704
      %v4377 = vunpack.c.h.b16 %v704
      %v4378 = vunpack.c.l.b16 %v705
      %v4379 = vunpack.c.h.b16 %v705
      %v4380 = vunpack.c.l.b16 %v706
      %v4381 = vunpack.c.h.b16 %v706
      %v4382 = vunpack.c.l.b16 %v707
      %v4383 = vunpack.c.h.b16 %v707
      %v4384 = vunpack.c.l.b16 %v708
      %v4385 = vunpack.c.h.b16 %v708
      %v4386 = vunpack.c.l.b16 %v709
      %v4387 = vunpack.c.h.b16 %v709
      %v4388 = vunpack.c.l.b16 %v710
      %v4389 = vunpack.c.h.b16 %v710
      %v4390 = vunpack.c.l.b16 %v711
      %v4391 = vunpack.c.h.b16 %v711
      %v4392 = vunpack.c.l.b16 %v712
      %v4393 = vunpack.c.h.b16 %v712
      %v4394 = vunpack.c.l.b16 %v713
      %v4395 = vunpack.c.h.b16 %v713
      %v4396 = vunpack.c.l.b16 %v714
      %v4397 = vunpack.c.h.b16 %v714
      %v4398 = vunpack.c.l.b16 %v715
      %v4399 = vunpack.c.h.b16 %v715
      %v4400 = vunpack.c.l.b16 %v716
      %v4401 = vunpack.c.h.b16 %v716
      %v4402 = vunpack.c.l.b16 %v717
      %v4403 = vunpack.c.h.b16 %v717
      %v4404 = vunpack.c.l.b16 %v718
      %v4405 = vunpack.c.h.b16 %v718
      %v4406 = vunpack.c.l.b16 %v719
      %v4407 = vunpack.c.h.b16 %v719
      %v4408 = vunpack.c.l.b16 %v720
      %v4409 = vunpack.c.h.b16 %v720
      %v4410 = vunpack.c.l.b16 %v721
      %v4411 = vunpack.c.h.b16 %v721
      %v4412 = vunpack.c.l.b16 %v722
      %v4413 = vunpack.c.h.b16 %v722
      %v4414 = vunpack.c.l.b16 %v723
      %v4415 = vunpack.c.h.b16 %v723
      %v4416 = vunpack.c.l.b16 %v724
      %v4417 = vunpack.c.h.b16 %v724
      %v4418 = vunpack.c.l.b16 %v725
      %v4419 = vunpack.c.h.b16 %v725
      %v4420 = vunpack.c.l.b16 %v726
      %v4421 = vunpack.c.h.b16 %v726
      %v4422 = vunpack.c.l.b16 %v727
      %v4423 = vunpack.c.h.b16 %v727
      %v4424 = vunpack.c.l.b16 %v728
      %v4425 = vunpack.c.h.b16 %v728
      %v4426 = vunpack.c.l.b16 %v729
      %v4427 = vunpack.c.h.b16 %v729
      %v4428 = vunpack.c.l.b16 %v730
      %v4429 = vunpack.c.h.b16 %v730
      %v4430 = vunpack.c.l.b16 %v731
      %v4431 = vunpack.c.h.b16 %v731
      %v4432 = vunpack.c.l.b16 %v732
      %v4433 = vunpack.c.h.b16 %v732
      %v4434 = vunpack.c.l.b16 %v733
      %v4435 = vunpack.c.h.b16 %v733
      %v4436 = vunpack.c.l.b16 %v734
      %v4437 = vunpack.c.h.b16 %v734
      %v4438 = vunpack.c.l.b16 %v735
      %v4439 = vunpack.c.h.b16 %v735
      %v4440 = vunpack.c.l.b16 %v736
      %v4441 = vunpack.c.h.b16 %v736
      %v4442 = vunpack.c.l.b16 %v737
      %v4443 = vunpack.c.h.b16 %v737
      %v4444 = vunpack.c.l.b16 %v738
      %v4445 = vunpack.c.h.b16 %v738
      %v4446 = vunpack.c.l.b16 %v739
      %v4447 = vunpack.c.h.b16 %v739
      %v4448 = vunpack.c.l.b16 %v740
      %v4449 = vunpack.c.h.b16 %v740
      %v4450 = vunpack.c.l.b16 %v741
      %v4451 = vunpack.c.h.b16 %v741
      %v4452 = vunpack.c.l.b16 %v742
      %v4453 = vunpack.c.h.b16 %v742
      %v4454 = vunpack.c.l.b16 %v743
      %v4455 = vunpack.c.h.b16 %v743
      %v4456 = vunpack.c.l.b16 %v744
      %v4457 = vunpack.c.h.b16 %v744
      %v4458 = vunpack.c.l.b16 %v745
      %v4459 = vunpack.c.h.b16 %v745
      %v4460 = vunpack.c.l.b16 %v746
      %v4461 = vunpack.c.h.b16 %v746
      %v4462 = vunpack.c.l.b16 %v747
      %v4463 = vunpack.c.h.b16 %v747
      %v4464 = vunpack.c.l.b16 %v748
      %v4465 = vunpack.c.h.b16 %v748
      %v4466 = vunpack.c.l.b16 %v749
      %v4467 = vunpack.c.h.b16 %v749
      %v4468 = vunpack.c.l.b16 %v750
      %v4469 = vunpack.c.h.b16 %v750
      %v4470 = vunpack.c.l.b16 %v751
      %v4471 = vunpack.c.h.b16 %v751
      %v4472 = vunpack.c.l.b16 %v752
      %v4473 = vunpack.c.h.b16 %v752
      %v4474 = vunpack.c.l.b16 %v753
      %v4475 = vunpack.c.h.b16 %v753
      %v4476 = vunpack.c.l.b16 %v754
      %v4477 = vunpack.c.h.b16 %v754
      %v4478 = vunpack.c.l.b16 %v755
      %v4479 = vunpack.c.h.b16 %v755
      %v4480 = vunpack.c.l.b16 %v756
      %v4481 = vunpack.c.h.b16 %v756
      %v4482 = vunpack.c.l.b16 %v757
      %v4483 = vunpack.c.h.b16 %v757
      %v4484 = vunpack.c.l.b16 %v758
      %v4485 = vunpack.c.h.b16 %v758
      %v4486 = vunpack.c.l.b16 %v759
      %v4487 = vunpack.c.h.b16 %v759
      %v4488 = vunpack.c.l.b16 %v760
      %v4489 = vunpack.c.h.b16 %v760
      %v4490 = vunpack.c.l.b16 %v761
      %v4491 = vunpack.c.h.b16 %v761
      %v4492 = vunpack.c.l.b16 %v762
      %v4493 = vunpack.c.h.b16 %v762
      %v4494 = vunpack.c.l.b16 %v763
      %v4495 = vunpack.c.h.b16 %v763
      %v4496 = vunpack.c.l.b16 %v764
      %v4497 = vunpack.c.h.b16 %v764
      %v4498 = vunpack.c.l.b16 %v765
      %v4499 = vunpack.c.h.b16 %v765
      %v4500 = vunpack.c.l.b16 %v766
      %v4501 = vunpack.c.h.b16 %v766
      %v4502 = vunpack.c.l.b16 %v767
      %v4503 = vunpack.c.h.b16 %v767
      %v4504 = vunpack.c.l.b16 %v768
      %v4505 = vunpack.c.h.b16 %v768
      %v4506 = vunpack.c.l.b16 %v769
      %v4507 = vunpack.c.h.b16 %v769
      %v4508 = vunpack.c.l.b16 %v770
      %v4509 = vunpack.c.h.b16 %v770
      %v4510 = vunpack.c.l.b16 %v771
      %v4511 = vunpack.c.h.b16 %v771
      %v4512 = vunpack.c.l.b16 %v772
      %v4513 = vunpack.c.h.b16 %v772
      %v4514 = vunpack.c.l.b16 %v773
      %v4515 = vunpack.c.h.b16 %v773
      %v4516 = vunpack.c.l.b16 %v774
      %v4517 = vunpack.c.h.b16 %v774
      %v4518 = vunpack.c.l.b16 %v775
      %v4519 = vunpack.c.h.b16 %v775
      %v4520 = vunpack.c.l.b16 %v776
      %v4521 = vunpack.c.h.b16 %v776
      %v4522 = vunpack.c.l.b16 %v777
      %v4523 = vunpack.c.h.b16 %v777
      %v4524 = vunpack.c.l.b16 %v778
      %v4525 = vunpack.c.h.b16 %v778
      %v4526 = vunpack.c.l.b16 %v779
      %v4527 = vunpack.c.h.b16 %v779
      %v4528 = vunpack.c.l.b16 %v780
      %v4529 = vunpack.c.h.b16 %v780
      %v4530 = vunpack.c.l.b16 %v781
      %v4531 = vunpack.c.h.b16 %v781
      %v4532 = vunpack.c.l.b16 %v782
      %v4533 = vunpack.c.h.b16 %v782
      %v4534 = vunpack.c.l.b16 %v783
      %v4535 = vunpack.c.h.b16 %v783
      %v4536 = vunpack.c.l.b16 %v784
      %v4537 = vunpack.c.h.b16 %v784
      %v4538 = vunpack.c.l.b16 %v785
      %v4539 = vunpack.c.h.b16 %v785
      %v4540 = vunpack.c.l.b16 %v786
      %v4541 = vunpack.c.h.b16 %v786
      %v4542 = vunpack.c.l.b16 %v787
      %v4543 = vunpack.c.h.b16 %v787
      %v4544 = vunpack.c.l.b16 %v788
      %v4545 = vunpack.c.h.b16 %v788
      %v4546 = vunpack.c.l.b16 %v789
      %v4547 = vunpack.c.h.b16 %v789
      %v4548 = vunpack.c.l.b16 %v790
      %v4549 = vunpack.c.h.b16 %v790
      %v4550 = vunpack.c.l.b16 %v791
      %v4551 = vunpack.c.h.b16 %v791
      %v4552 = vunpack.c.l.b16 %v792
      %v4553 = vunpack.c.h.b16 %v792
      %v4554 = vunpack.c.l.b16 %v793
      %v4555 = vunpack.c.h.b16 %v793
      %v4556 = vunpack.c.l.b16 %v794
      %v4557 = vunpack.c.h.b16 %v794
      %v4558 = vunpack.c.l.b16 %v795
      %v4559 = vunpack.c.h.b16 %v795
      %v4560 = vunpack.c.l.b16 %v796
      %v4561 = vunpack.c.h.b16 %v796
      %v4562 = vunpack.c.l.b16 %v797
      %v4563 = vunpack.c.h.b16 %v797
      %v4564 = vunpack.c.l.b16 %v798
      %v4565 = vunpack.c.h.b16 %v798
      %v4566 = vunpack.c.l.b16 %v799
      %v4567 = vunpack.c.h.b16 %v799
      %v4568 = vunpack.c.l.b16 %v800
      %v4569 = vunpack.c.h.b16 %v800
      %v4570 = vunpack.c.l.b16 %v801
      %v4571 = vunpack.c.h.b16 %v801
      %v4572 = vunpack.c.l.b16 %v802
      %v4573 = vunpack.c.h.b16 %v802
      %v4574 = vunpack.c.l.b16 %v803
      %v4575 = vunpack.c.h.b16 %v803
      %v4576 = vunpack.c.l.b16 %v804
      %v4577 = vunpack.c.h.b16 %v804
      %v4578 = vunpack.c.l.b16 %v805
      %v4579 = vunpack.c.h.b16 %v805
      %v4580 = vunpack.c.l.b16 %v806
      %v4581 = vunpack.c.h.b16 %v806
      %v4582 = vunpack.c.l.b16 %v807
      %v4583 = vunpack.c.h.b16 %v807
      %v4584 = vunpack.c.l.b16 %v808
      %v4585 = vunpack.c.h.b16 %v808
      %v4586 = vunpack.c.l.b16 %v809
      %v4587 = vunpack.c.h.b16 %v809
      %v4588 = vunpack.c.l.b16 %v810
      %v4589 = vunpack.c.h.b16 %v810
      %v4590 = vunpack.c.l.b16 %v811
      %v4591 = vunpack.c.h.b16 %v811
      %v4592 = vunpack.c.l.b16 %v812
      %v4593 = vunpack.c.h.b16 %v812
      %v4594 = vunpack.c.l.b16 %v813
      %v4595 = vunpack.c.h.b16 %v813
      %v4596 = vunpack.c.l.b16 %v814
      %v4597 = vunpack.c.h.b16 %v814
      %v4598 = vunpack.c.l.b16 %v815
      %v4599 = vunpack.c.h.b16 %v815
      %v4600 = vunpack.c.l.b16 %v816
      %v4601 = vunpack.c.h.b16 %v816
      %v4602 = vunpack.c.l.b16 %v817
      %v4603 = vunpack.c.h.b16 %v817
      %v4604 = vunpack.c.l.b16 %v818
      %v4605 = vunpack.c.h.b16 %v818
      %v4606 = vunpack.c.l.b16 %v819
      %v4607 = vunpack.c.h.b16 %v819
      %v4608 = vunpack.c.l.b16 %v820
      %v4609 = vunpack.c.h.b16 %v820
      %v4610 = vunpack.c.l.b16 %v821
      %v4611 = vunpack.c.h.b16 %v821
      %v4612 = vunpack.c.l.b16 %v822
      %v4613 = vunpack.c.h.b16 %v822
      %v4614 = vunpack.c.l.b16 %v823
      %v4615 = vunpack.c.h.b16 %v823
      %v4616 = vunpack.c.l.b16 %v824
      %v4617 = vunpack.c.h.b16 %v824
      %v4618 = vunpack.c.l.b16 %v825
      %v4619 = vunpack.c.h.b16 %v825
      %v4620 = vunpack.c.l.b16 %v826
      %v4621 = vunpack.c.h.b16 %v826
      %v4622 = vunpack.c.l.b16 %v827
      %v4623 = vunpack.c.h.b16 %v827
      %v4624 = vunpack.c.l.b16 %v828
      %v4625 = vunpack.c.h.b16 %v828
      %v4626 = vunpack.c.l.b16 %v829
      %v4627 = vunpack.c.h.b16 %v829
      %v4628 = vunpack.c.l.b16 %v830
      %v4629 = vunpack.c.h.b16 %v830
      %v4630 = vunpack.c.l.b16 %v831
      %v4631 = vunpack.c.h.b16 %v831
      %v4632 = vunpack.c.l.b16 %v832
      %v4633 = vunpack.c.h.b16 %v832
      %v4634 = vunpack.c.l.b16 %v833
      %v4635 = vunpack.c.h.b16 %v833
      %v4636 = vunpack.c.l.b16 %v834
      %v4637 = vunpack.c.h.b16 %v834
      %v4638 = vunpack.c.l.b16 %v835
      %v4639 = vunpack.c.h.b16 %v835
      %v4640 = vunpack.c.l.b16 %v836
      %v4641 = vunpack.c.h.b16 %v836
      %v4642 = vunpack.c.l.b16 %v837
      %v4643 = vunpack.c.h.b16 %v837
      %v4644 = vunpack.c.l.b16 %v838
      %v4645 = vunpack.c.h.b16 %v838
      %v4646 = vunpack.c.l.b16 %v839
      %v4647 = vunpack.c.h.b16 %v839
      %v4648 = vunpack.c.l.b16 %v840
      %v4649 = vunpack.c.h.b16 %v840
      %v4650 = vunpack.c.l.b16 %v841
      %v4651 = vunpack.c.h.b16 %v841
      %v4652 = vunpack.c.l.b16 %v842
      %v4653 = vunpack.c.h.b16 %v842
      %v4654 = vunpack.c.l.b16 %v843
      %v4655 = vunpack.c.h.b16 %v843
      %v4656 = vunpack.c.l.b16 %v844
      %v4657 = vunpack.c.h.b16 %v844
      %v4658 = vunpack.c.l.b16 %v845
      %v4659 = vunpack.c.h.b16 %v845
      %v4660 = vunpack.c.l.b16 %v846
      %v4661 = vunpack.c.h.b16 %v846
      %v4662 = vunpack.c.l.b16 %v847
      %v4663 = vunpack.c.h.b16 %v847
      %v4664 = vunpack.c.l.b16 %v848
      %v4665 = vunpack.c.h.b16 %v848
      %v4666 = vunpack.c.l.b16 %v849
      %v4667 = vunpack.c.h.b16 %v849
      %v4668 = vunpack.c.l.b16 %v850
      %v4669 = vunpack.c.h.b16 %v850
      %v4670 = vunpack.c.l.b16 %v851
      %v4671 = vunpack.c.h.b16 %v851
      %v4672 = vunpack.c.l.b16 %v852
      %v4673 = vunpack.c.h.b16 %v852
      %v4674 = vunpack.c.l.b16 %v853
      %v4675 = vunpack.c.h.b16 %v853
      %v4676 = vunpack.c.l.b16 %v854
      %v4677 = vunpack.c.h.b16 %v854
      %v4678 = vunpack.c.l.b16 %v855
      %v4679 = vunpack.c.h.b16 %v855
      %v4680 = vunpack.c.l.b16 %v856
      %v4681 = vunpack.c.h.b16 %v856
      %v4682 = vunpack.c.l.b16 %v857
      %v4683 = vunpack.c.h.b16 %v857
      %v4684 = vunpack.c.l.b16 %v858
      %v4685 = vunpack.c.h.b16 %v858
      %v4686 = vunpack.c.l.b16 %v859
      %v4687 = vunpack.c.h.b16 %v859
      %v4688 = vunpack.c.l.b16 %v860
      %v4689 = vunpack.c.h.b16 %v860
      %v4690 = vunpack.c.l.b16 %v861
      %v4691 = vunpack.c.h.b16 %v861
      %v4692 = vunpack.c.l.b16 %v862
      %v4693 = vunpack.c.h.b16 %v862
      %v4694 = vunpack.c.l.b16 %v863
      %v4695 = vunpack.c.h.b16 %v863
      %v4696 = vunpack.c.l.b16 %v864
      %v4697 = vunpack.c.h.b16 %v864
      %v4698 = vunpack.c.l.b16 %v865
      %v4699 = vunpack.c.h.b16 %v865
      %v4700 = vunpack.c.l.b16 %v866
      %v4701 = vunpack.c.h.b16 %v866
      %v4702 = vunpack.c.l.b16 %v867
      %v4703 = vunpack.c.h.b16 %v867
      %v4704 = vunpack.c.l.b16 %v868
      %v4705 = vunpack.c.h.b16 %v868
      %v4706 = vunpack.c.l.b16 %v869
      %v4707 = vunpack.c.h.b16 %v869
      %v4708 = vunpack.c.l.b16 %v870
      %v4709 = vunpack.c.h.b16 %v870
      %v4710 = vunpack.c.l.b16 %v871
      %v4711 = vunpack.c.h.b16 %v871
      %v4712 = vunpack.c.l.b16 %v872
      %v4713 = vunpack.c.h.b16 %v872
      %v4714 = vunpack.c.l.b16 %v873
      %v4715 = vunpack.c.h.b16 %v873
      %v4716 = vunpack.c.l.b16 %v874
      %v4717 = vunpack.c.h.b16 %v874
      %v4718 = vunpack.c.l.b16 %v875
      %v4719 = vunpack.c.h.b16 %v875
      %v4720 = vunpack.c.l.b16 %v876
      %v4721 = vunpack.c.h.b16 %v876
      %v4722 = vunpack.c.l.b16 %v877
      %v4723 = vunpack.c.h.b16 %v877
      %v4724 = vunpack.c.l.b16 %v878
      %v4725 = vunpack.c.h.b16 %v878
      %v4726 = vunpack.c.l.b16 %v879
      %v4727 = vunpack.c.h.b16 %v879
      %v4728 = vunpack.c.l.b16 %v880
      %v4729 = vunpack.c.h.b16 %v880
      %v4730 = vunpack.c.l.b16 %v881
      %v4731 = vunpack.c.h.b16 %v881
      %v4732 = vunpack.c.l.b16 %v882
      %v4733 = vunpack.c.h.b16 %v882
      %v4734 = vunpack.c.l.b16 %v883
      %v4735 = vunpack.c.h.b16 %v883
      %v4736 = vunpack.c.l.b16 %v884
      %v4737 = vunpack.c.h.b16 %v884
      %v4738 = vunpack.c.l.b16 %v885
      %v4739 = vunpack.c.h.b16 %v885
      %v4740 = vunpack.c.l.b16 %v886
      %v4741 = vunpack.c.h.b16 %v886
      %v4742 = vunpack.c.l.b16 %v887
      %v4743 = vunpack.c.h.b16 %v887
      %v4744 = vunpack.c.l.b16 %v888
      %v4745 = vunpack.c.h.b16 %v888
      %v4746 = vunpack.c.l.b16 %v889
      %v4747 = vunpack.c.h.b16 %v889
      %v4748 = vunpack.c.l.b16 %v890
      %v4749 = vunpack.c.h.b16 %v890
      %v4750 = vunpack.c.l.b16 %v891
      %v4751 = vunpack.c.h.b16 %v891
      %v4752 = vunpack.c.l.b16 %v892
      %v4753 = vunpack.c.h.b16 %v892
      %v4754 = vunpack.c.l.b16 %v893
      %v4755 = vunpack.c.h.b16 %v893
      %v4756 = vunpack.c.l.b16 %v894
      %v4757 = vunpack.c.h.b16 %v894
      %v4758 = vunpack.c.l.b16 %v895
      %v4759 = vunpack.c.h.b16 %v895
      %v4760 = vunpack.c.l.b16 %v896
      %v4761 = vunpack.c.h.b16 %v896
      %v4762 = vunpack.c.l.b16 %v897
      %v4763 = vunpack.c.h.b16 %v897
      %v4764 = vunpack.c.l.b16 %v898
      %v4765 = vunpack.c.h.b16 %v898
      %v4766 = vunpack.c.l.b16 %v899
      %v4767 = vunpack.c.h.b16 %v899
      %v4768 = vunpack.c.l.b16 %v900
      %v4769 = vunpack.c.h.b16 %v900
      %v4770 = vunpack.c.l.b16 %v901
      %v4771 = vunpack.c.h.b16 %v901
      %v4772 = vunpack.c.l.b16 %v902
      %v4773 = vunpack.c.h.b16 %v902
      %v4774 = vunpack.c.l.b16 %v903
      %v4775 = vunpack.c.h.b16 %v903
      %v4776 = vunpack.c.l.b16 %v904
      %v4777 = vunpack.c.h.b16 %v904
      %v4778 = vunpack.c.l.b16 %v905
      %v4779 = vunpack.c.h.b16 %v905
      %v4780 = vunpack.c.l.b16 %v906
      %v4781 = vunpack.c.h.b16 %v906
      %v4782 = vunpack.c.l.b16 %v907
      %v4783 = vunpack.c.h.b16 %v907
      %v4784 = vunpack.c.l.b16 %v908
      %v4785 = vunpack.c.h.b16 %v908
      %v4786 = vunpack.c.l.b16 %v909
      %v4787 = vunpack.c.h.b16 %v909
      %v4788 = vunpack.c.l.b16 %v910
      %v4789 = vunpack.c.h.b16 %v910
      %v4790 = vunpack.c.l.b16 %v911
      %v4791 = vunpack.c.h.b16 %v911
      %v4792 = vunpack.c.l.b16 %v912
      %v4793 = vunpack.c.h.b16 %v912
      %v4794 = vunpack.c.l.b16 %v913
      %v4795 = vunpack.c.h.b16 %v913
      %v4796 = vunpack.c.l.b16 %v914
      %v4797 = vunpack.c.h.b16 %v914
      %v4798 = vunpack.c.l.b16 %v915
      %v4799 = vunpack.c.h.b16 %v915
      %v4800 = vunpack.c.l.b16 %v916
      %v4801 = vunpack.c.h.b16 %v916
      %v4802 = vunpack.c.l.b16 %v917
      %v4803 = vunpack.c.h.b16 %v917
      %v4804 = vunpack.c.l.b16 %v918
      %v4805 = vunpack.c.h.b16 %v918
      %v4806 = vunpack.c.l.b16 %v919
      %v4807 = vunpack.c.h.b16 %v919
      %v4808 = vunpack.c.l.b16 %v920
      %v4809 = vunpack.c.h.b16 %v920
      %v4810 = vunpack.c.l.b16 %v921
      %v4811 = vunpack.c.h.b16 %v921
      %v4812 = vunpack.c.l.b16 %v922
      %v4813 = vunpack.c.h.b16 %v922
      %v4814 = vunpack.c.l.b16 %v923
      %v4815 = vunpack.c.h.b16 %v923
      %v4816 = vunpack.c.l.b16 %v924
      %v4817 = vunpack.c.h.b16 %v924
      %v4818 = vunpack.c.l.b16 %v925
      %v4819 = vunpack.c.h.b16 %v925
      %v4820 = vunpack.c.l.b16 %v926
      %v4821 = vunpack.c.h.b16 %v926
      %v4822 = vunpack.c.l.b16 %v927
      %v4823 = vunpack.c.h.b16 %v927
      %v4824 = vunpack.c.l.b16 %v928
      %v4825 = vunpack.c.h.b16 %v928
      %v4826 = vunpack.c.l.b16 %v929
      %v4827 = vunpack.c.h.b16 %v929
      %v4828 = vunpack.c.l.b16 %v930
      %v4829 = vunpack.c.h.b16 %v930
      %v4830 = vunpack.c.l.b16 %v931
      %v4831 = vunpack.c.h.b16 %v931
      %v4832 = vunpack.c.l.b16 %v932
      %v4833 = vunpack.c.h.b16 %v932
      %v4834 = vunpack.c.l.b16 %v933
      %v4835 = vunpack.c.h.b16 %v933
      %v4836 = vunpack.c.l.b16 %v934
      %v4837 = vunpack.c.h.b16 %v934
      %v4838 = vunpack.c.l.b16 %v935
      %v4839 = vunpack.c.h.b16 %v935
      %v4840 = vunpack.c.l.b16 %v936
      %v4841 = vunpack.c.h.b16 %v936
      %v4842 = vunpack.c.l.b16 %v937
      %v4843 = vunpack.c.h.b16 %v937
      %v4844 = vunpack.c.l.b16 %v938
      %v4845 = vunpack.c.h.b16 %v938
      %v4846 = vunpack.c.l.b16 %v939
      %v4847 = vunpack.c.h.b16 %v939
      %v4848 = vunpack.c.l.b16 %v940
      %v4849 = vunpack.c.h.b16 %v940
      %v4850 = vunpack.c.l.b16 %v941
      %v4851 = vunpack.c.h.b16 %v941
      %v4852 = vunpack.c.l.b16 %v942
      %v4853 = vunpack.c.h.b16 %v942
      %v4854 = vunpack.c.l.b16 %v943
      %v4855 = vunpack.c.h.b16 %v943
      %v4856 = vunpack.c.l.b16 %v944
      %v4857 = vunpack.c.h.b16 %v944
      %v4858 = vunpack.c.l.b16 %v945
      %v4859 = vunpack.c.h.b16 %v945
      %v4860 = vunpack.c.l.b16 %v946
      %v4861 = vunpack.c.h.b16 %v946
      %v4862 = vunpack.c.l.b16 %v947
      %v4863 = vunpack.c.h.b16 %v947
      %v4864 = vunpack.c.l.b16 %v948
      %v4865 = vunpack.c.h.b16 %v948
      %v4866 = vunpack.c.l.b16 %v949
      %v4867 = vunpack.c.h.b16 %v949
      %v4868 = vunpack.c.l.b16 %v950
      %v4869 = vunpack.c.h.b16 %v950
      %v4870 = vunpack.c.l.b16 %v951
      %v4871 = vunpack.c.h.b16 %v951
      %v4872 = vunpack.c.l.b16 %v952
      %v4873 = vunpack.c.h.b16 %v952
      %v4874 = vunpack.c.l.b16 %v953
      %v4875 = vunpack.c.h.b16 %v953
      %v4876 = vunpack.c.l.b16 %v954
      %v4877 = vunpack.c.h.b16 %v954
      %v4878 = vunpack.c.l.b16 %v955
      %v4879 = vunpack.c.h.b16 %v955
      %v4880 = vunpack.c.l.b16 %v956
      %v4881 = vunpack.c.h.b16 %v956
      %v4882 = vunpack.c.l.b16 %v957
      %v4883 = vunpack.c.h.b16 %v957
      %v4884 = vunpack.c.l.b16 %v958
      %v4885 = vunpack.c.h.b16 %v958
      %v4886 = vunpack.c.l.b16 %v959
      %v4887 = vunpack.c.h.b16 %v959
      %v4888 = vunpack.c.l.b16 %v960
      %v4889 = vunpack.c.h.b16 %v960
      %v4890 = vunpack.c.l.b16 %v961
      %v4891 = vunpack.c.h.b16 %v961
      %v4892 = vunpack.c.l.b16 %v962
      %v4893 = vunpack.c.h.b16 %v962
      %v4894 = vunpack.c.l.b16 %v963
      %v4895 = vunpack.c.h.b16 %v963
      %v4896 = vunpack.c.l.b16 %v964
      %v4897 = vunpack.c.h.b16 %v964
      %v4898 = vunpack.c.l.b16 %v965
      %v4899 = vunpack.c.h.b16 %v965
      %v4900 = vunpack.c.l.b16 %v966
      %v4901 = vunpack.c.h.b16 %v966
      %v4902 = vunpack.c.l.b16 %v967
      %v4903 = vunpack.c.h.b16 %v967
      %v4904 = vunpack.c.l.b16 %v968
      %v4905 = vunpack.c.h.b16 %v968
      %v4906 = vunpack.c.l.b16 %v969
      %v4907 = vunpack.c.h.b16 %v969
      %v4908 = vunpack.c.l.b16 %v970
      %v4909 = vunpack.c.h.b16 %v970
      %v4910 = vunpack.c.l.b16 %v971
      %v4911 = vunpack.c.h.b16 %v971
      %v4912 = vunpack.c.l.b16 %v972
      %v4913 = vunpack.c.h.b16 %v972
      %v4914 = vunpack.c.l.b16 %v973
      %v4915 = vunpack.c.h.b16 %v973
      %v4916 = vunpack.c.l.b16 %v974
      %v4917 = vunpack.c.h.b16 %v974
      %v4918 = vunpack.c.l.b16 %v975
      %v4919 = vunpack.c.h.b16 %v975
      %v4920 = vunpack.c.l.b16 %v976
      %v4921 = vunpack.c.h.b16 %v976
      %v4922 = vunpack.c.l.b16 %v977
      %v4923 = vunpack.c.h.b16 %v977
      %v4924 = vunpack.c.l.b16 %v978
      %v4925 = vunpack.c.h.b16 %v978
      %v4926 = vunpack.c.l.b16 %v979
      %v4927 = vunpack.c.h.b16 %v979
      %v4928 = vunpack.c.l.b16 %v980
      %v4929 = vunpack.c.h.b16 %v980
      %v4930 = vunpack.c.l.b16 %v981
      %v4931 = vunpack.c.h.b16 %v981
      %v4932 = vunpack.c.l.b16 %v982
      %v4933 = vunpack.c.h.b16 %v982
      %v4934 = vunpack.c.l.b16 %v983
      %v4935 = vunpack.c.h.b16 %v983
      %v4936 = vunpack.c.l.b16 %v984
      %v4937 = vunpack.c.h.b16 %v984
      %v4938 = vunpack.c.l.b16 %v985
      %v4939 = vunpack.c.h.b16 %v985
      %v4940 = vunpack.c.l.b16 %v986
      %v4941 = vunpack.c.h.b16 %v986
      %v4942 = vunpack.c.l.b16 %v987
      %v4943 = vunpack.c.h.b16 %v987
      %v4944 = vunpack.c.l.b16 %v988
      %v4945 = vunpack.c.h.b16 %v988
      %v4946 = vunpack.c.l.b16 %v989
      %v4947 = vunpack.c.h.b16 %v989
      %v4948 = vunpack.c.l.b16 %v990
      %v4949 = vunpack.c.h.b16 %v990
      %v4950 = vunpack.c.l.b16 %v991
      %v4951 = vunpack.c.h.b16 %v991
      %v4952 = vunpack.c.l.b16 %v992
      %v4953 = vunpack.c.h.b16 %v992
      %v4954 = vunpack.c.l.b16 %v993
      %v4955 = vunpack.c.h.b16 %v993
      %v4956 = vunpack.c.l.b16 %v994
      %v4957 = vunpack.c.h.b16 %v994
      %v4958 = vunpack.c.l.b16 %v995
      %v4959 = vunpack.c.h.b16 %v995
      %v4960 = vunpack.c.l.b16 %v996
      %v4961 = vunpack.c.h.b16 %v996
      %v4962 = vunpack.c.l.b16 %v997
      %v4963 = vunpack.c.h.b16 %v997
      %v4964 = vunpack.c.l.b16 %v998
      %v4965 = vunpack.c.h.b16 %v998
      %v4966 = vunpack.c.l.b16 %v999
      %v4967 = vunpack.c.h.b16 %v999
      %v4968 = vunpack.c.l.b16 %v1000
      %v4969 = vunpack.c.h.b16 %v1000
      %v4970 = vunpack.c.l.b16 %v1001
      %v4971 = vunpack.c.h.b16 %v1001
      %v4972 = vunpack.c.l.b16 %v1002
      %v4973 = vunpack.c.h.b16 %v1002
      %v4974 = vunpack.c.l.b16 %v1003
      %v4975 = vunpack.c.h.b16 %v1003
      %v4976 = vunpack.c.l.b16 %v1004
      %v4977 = vunpack.c.h.b16 %v1004
      %v4978 = vunpack.c.l.b16 %v1005
      %v4979 = vunpack.c.h.b16 %v1005
      %v4980 = vunpack.c.l.b16 %v1006
      %v4981 = vunpack.c.h.b16 %v1006
      %v4982 = vunpack.c.l.b16 %v1007
      %v4983 = vunpack.c.h.b16 %v1007
      %v4984 = vunpack.c.l.b16 %v1008
      %v4985 = vunpack.c.h.b16 %v1008
      %v4986 = vunpack.c.l.b16 %v1009
      %v4987 = vunpack.c.h.b16 %v1009
      %v4988 = vunpack.c.l.b16 %v1010
      %v4989 = vunpack.c.h.b16 %v1010
      %v4990 = vunpack.c.l.b16 %v1011
      %v4991 = vunpack.c.h.b16 %v1011
      %v4992 = vunpack.c.l.b16 %v1012
      %v4993 = vunpack.c.h.b16 %v1012
      %v4994 = vunpack.c.l.b16 %v1013
      %v4995 = vunpack.c.h.b16 %v1013
      %v4996 = vunpack.c.l.b16 %v1014
      %v4997 = vunpack.c.h.b16 %v1014
      %v4998 = vunpack.c.l.b16 %v1015
      %v4999 = vunpack.c.h.b16 %v1015
      %v5000 = vunpack.c.l.b16 %v1016
      %v5001 = vunpack.c.h.b16 %v1016
      %v5002 = vunpack.c.l.b16 %v1017
      %v5003 = vunpack.c.h.b16 %v1017
      %v5004 = vunpack.c.l.b16 %v1018
      %v5005 = vunpack.c.h.b16 %v1018
      %v5006 = vunpack.c.l.b16 %v1019
      %v5007 = vunpack.c.h.b16 %v1019
      %v5008 = vunpack.c.l.b16 %v1020
      %v5009 = vunpack.c.h.b16 %v1020
      %v5010 = vunpack.c.l.b16 %v1021
      %v5011 = vunpack.c.h.b16 %v1021
      %v5012 = vunpack.c.l.b16 %v1022
      %v5013 = vunpack.c.h.b16 %v1022
      %v5014 = vunpack.c.l.b16 %v1023
      %v5015 = vunpack.c.h.b16 %v1023
      %v5016 = vunpack.c.l.b16 %v1024
      %v5017 = vunpack.c.h.b16 %v1024
      %v5018 = vunpack.c.l.b16 %v1025
      %v5019 = vunpack.c.h.b16 %v1025
      %v5020 = vunpack.c.l.b16 %v1026
      %v5021 = vunpack.c.h.b16 %v1026
      %v5022 = vunpack.c.l.b16 %v1027
      %v5023 = vunpack.c.h.b16 %v1027
      %v5024 = vunpack.c.l.b16 %v1028
      %v5025 = vunpack.c.h.b16 %v1028
      %v5026 = vunpack.c.l.b16 %v1029
      %v5027 = vunpack.c.h.b16 %v1029
      %v5028 = vunpack.c.l.b16 %v1030
      %v5029 = vunpack.c.h.b16 %v1030
      %v5030 = vunpack.c.l.b16 %v1031
      %v5031 = vunpack.c.h.b16 %v1031
      %v5032 = vunpack.c.l.b16 %v1032
      %v5033 = vunpack.c.h.b16 %v1032
      %v5034 = vunpack.c.l.b16 %v1033
      %v5035 = vunpack.c.h.b16 %v1033
      %v5036 = vunpack.c.l.b16 %v1034
      %v5037 = vunpack.c.h.b16 %v1034
      %v5038 = vunpack.c.l.b16 %v1035
      %v5039 = vunpack.c.h.b16 %v1035
      %v5040 = vunpack.c.l.b16 %v1036
      %v5041 = vunpack.c.h.b16 %v1036
      %v5042 = vunpack.c.l.b16 %v1037
      %v5043 = vunpack.c.h.b16 %v1037
      %v5044 = vunpack.c.l.b16 %v1038
      %v5045 = vunpack.c.h.b16 %v1038
      %v5046 = vunpack.c.l.b16 %v1039
      %v5047 = vunpack.c.h.b16 %v1039
      %v5048 = vunpack.c.l.b16 %v1040
      %v5049 = vunpack.c.h.b16 %v1040
      %v5050 = vunpack.c.l.b16 %v1041
      %v5051 = vunpack.c.h.b16 %v1041
      %v5052 = vunpack.c.l.b16 %v1042
      %v5053 = vunpack.c.h.b16 %v1042
      %v5054 = vunpack.c.l.b16 %v1043
      %v5055 = vunpack.c.h.b16 %v1043
      %v5056 = vunpack.c.l.b16 %v1044
      %v5057 = vunpack.c.h.b16 %v1044
      %v5058 = vunpack.c.l.b16 %v1045
      %v5059 = vunpack.c.h.b16 %v1045
      %v5060 = vunpack.c.l.b16 %v1046
      %v5061 = vunpack.c.h.b16 %v1046
      %v5062 = vunpack.c.l.b16 %v1047
      %v5063 = vunpack.c.h.b16 %v1047
      %v5064 = vunpack.c.l.b16 %v1048
      %v5065 = vunpack.c.h.b16 %v1048
      %v5066 = vunpack.c.l.b16 %v1049
      %v5067 = vunpack.c.h.b16 %v1049
      %v5068 = vunpack.c.l.b16 %v1050
      %v5069 = vunpack.c.h.b16 %v1050
      %v5070 = vunpack.c.l.b16 %v1051
      %v5071 = vunpack.c.h.b16 %v1051
      %v5072 = vunpack.c.l.b16 %v1052
      %v5073 = vunpack.c.h.b16 %v1052
      %v5074 = vunpack.c.l.b16 %v1053
      %v5075 = vunpack.c.h.b16 %v1053
      %v5076 = vunpack.c.l.b16 %v1054
      %v5077 = vunpack.c.h.b16 %v1054
      %v5078 = vunpack.c.l.b16 %v1055
      %v5079 = vunpack.c.h.b16 %v1055
      %v5080 = vunpack.c.l.b16 %v1056
      %v5081 = vunpack.c.h.b16 %v1056
      %v5082 = vunpack.c.l.b16 %v1057
      %v5083 = vunpack.c.h.b16 %v1057
      %v5084 = vunpack.c.l.b16 %v1058
      %v5085 = vunpack.c.h.b16 %v1058
      %v5086 = vunpack.c.l.b16 %v1059
      %v5087 = vunpack.c.h.b16 %v1059
      %v5088 = vunpack.c.l.b16 %v1060
      %v5089 = vunpack.c.h.b16 %v1060
      %v5090 = vunpack.c.l.b16 %v1061
      %v5091 = vunpack.c.h.b16 %v1061
      %v5092 = vunpack.c.l.b16 %v1062
      %v5093 = vunpack.c.h.b16 %v1062
      %v5094 = vunpack.c.l.b16 %v1063
      %v5095 = vunpack.c.h.b16 %v1063
      %v5096 = vunpack.c.l.b16 %v1064
      %v5097 = vunpack.c.h.b16 %v1064
      %v5098 = vunpack.c.l.b16 %v1065
      %v5099 = vunpack.c.h.b16 %v1065
      %v5100 = vunpack.c.l.b16 %v1066
      %v5101 = vunpack.c.h.b16 %v1066
      %v5102 = vunpack.c.l.b16 %v1067
      %v5103 = vunpack.c.h.b16 %v1067
      %v5104 = vunpack.c.l.b16 %v1068
      %v5105 = vunpack.c.h.b16 %v1068
      %v5106 = vunpack.c.l.b16 %v1069
      %v5107 = vunpack.c.h.b16 %v1069
      %v5108 = vunpack.c.l.b16 %v1070
      %v5109 = vunpack.c.h.b16 %v1070
      %v5110 = vunpack.c.l.b16 %v1071
      %v5111 = vunpack.c.h.b16 %v1071
      %v5112 = vunpack.c.l.b16 %v1072
      %v5113 = vunpack.c.h.b16 %v1072
      %v5114 = vunpack.c.l.b16 %v1073
      %v5115 = vunpack.c.h.b16 %v1073
      %v5116 = vunpack.c.l.b16 %v1074
      %v5117 = vunpack.c.h.b16 %v1074
      %v5118 = vunpack.c.l.b16 %v1075
      %v5119 = vunpack.c.h.b16 %v1075
      %v5120 = vunpack.c.l.b16 %v1076
      %v5121 = vunpack.c.h.b16 %v1076
      %v5122 = vunpack.c.l.b16 %v1077
      %v5123 = vunpack.c.h.b16 %v1077
      %v5124 = vunpack.c.l.b16 %v1078
      %v5125 = vunpack.c.h.b16 %v1078
      %v5126 = vunpack.c.l.b16 %v1079
      %v5127 = vunpack.c.h.b16 %v1079
      %v5128 = vunpack.c.l.b16 %v1080
      %v5129 = vunpack.c.h.b16 %v1080
      %v5130 = vunpack.c.l.b16 %v1081
      %v5131 = vunpack.c.h.b16 %v1081
      %v5132 = vunpack.c.l.b16 %v1082
      %v5133 = vunpack.c.h.b16 %v1082
      %v5134 = vunpack.c.l.b16 %v1083
      %v5135 = vunpack.c.h.b16 %v1083
      %v5136 = vunpack.c.l.b16 %v1084
      %v5137 = vunpack.c.h.b16 %v1084
      %v5138 = vunpack.c.l.b16 %v1085
      %v5139 = vunpack.c.h.b16 %v1085
      %v5140 = vunpack.c.l.b16 %v1086
      %v5141 = vunpack.c.h.b16 %v1086
      %v5142 = vunpack.c.l.b16 %v1087
      %v5143 = vunpack.c.h.b16 %v1087
      %v5144 = vunpack.c.l.b16 %v1088
      %v5145 = vunpack.c.h.b16 %v1088
      %v5146 = vunpack.c.l.b16 %v1089
      %v5147 = vunpack.c.h.b16 %v1089
      %v5148 = vunpack.c.l.b16 %v1090
      %v5149 = vunpack.c.h.b16 %v1090
      %v5150 = vunpack.c.l.b16 %v1091
      %v5151 = vunpack.c.h.b16 %v1091
      %v5152 = vunpack.c.l.b16 %v1092
      %v5153 = vunpack.c.h.b16 %v1092
      %v5154 = vunpack.c.l.b16 %v1093
      %v5155 = vunpack.c.h.b16 %v1093
      %v5156 = vunpack.c.l.b16 %v1094
      %v5157 = vunpack.c.h.b16 %v1094
      %v5158 = vunpack.c.l.b16 %v1095
      %v5159 = vunpack.c.h.b16 %v1095
      %v5160 = vunpack.c.l.b16 %v1096
      %v5161 = vunpack.c.h.b16 %v1096
      %v5162 = vunpack.c.l.b16 %v1097
      %v5163 = vunpack.c.h.b16 %v1097
      %v5164 = vunpack.c.l.b16 %v1098
      %v5165 = vunpack.c.h.b16 %v1098
      %v5166 = vunpack.c.l.b16 %v1099
      %v5167 = vunpack.c.h.b16 %v1099
      %v5168 = vunpack.c.l.b16 %v1100
      %v5169 = vunpack.c.h.b16 %v1100
      %v5170 = vunpack.c.l.b16 %v1101
      %v5171 = vunpack.c.h.b16 %v1101
      %v5172 = vunpack.c.l.b16 %v1102
      %v5173 = vunpack.c.h.b16 %v1102
      %v5174 = vunpack.c.l.b16 %v1103
      %v5175 = vunpack.c.h.b16 %v1103
      %v5176 = vunpack.c.l.b16 %v1104
      %v5177 = vunpack.c.h.b16 %v1104
      %v5178 = vunpack.c.l.b16 %v1105
      %v5179 = vunpack.c.h.b16 %v1105
      %v5180 = vunpack.c.l.b16 %v1106
      %v5181 = vunpack.c.h.b16 %v1106
      %v5182 = vunpack.c.l.b16 %v1107
      %v5183 = vunpack.c.h.b16 %v1107
      %v5184 = vunpack.c.l.b16 %v1108
      %v5185 = vunpack.c.h.b16 %v1108
      %v5186 = vunpack.c.l.b16 %v1109
      %v5187 = vunpack.c.h.b16 %v1109
      %v5188 = vunpack.c.l.b16 %v1110
      %v5189 = vunpack.c.h.b16 %v1110
      %v5190 = vunpack.c.l.b16 %v1111
      %v5191 = vunpack.c.h.b16 %v1111
      %v5192 = vunpack.c.l.b16 %v1112
      %v5193 = vunpack.c.h.b16 %v1112
      %v5194 = vunpack.c.l.b16 %v1113
      %v5195 = vunpack.c.h.b16 %v1113
      %v5196 = vunpack.c.l.b16 %v1114
      %v5197 = vunpack.c.h.b16 %v1114
      %v5198 = vunpack.c.l.b16 %v1115
      %v5199 = vunpack.c.h.b16 %v1115
      %v5200 = vunpack.c.l.b16 %v1116
      %v5201 = vunpack.c.h.b16 %v1116
      %v5202 = vunpack.c.l.b16 %v1117
      %v5203 = vunpack.c.h.b16 %v1117
      %v5204 = vunpack.c.l.b16 %v1118
      %v5205 = vunpack.c.h.b16 %v1118
      %v5206 = vunpack.c.l.b16 %v1119
      %v5207 = vunpack.c.h.b16 %v1119
      %v5208 = vunpack.c.l.b16 %v1120
      %v5209 = vunpack.c.h.b16 %v1120
      %v5210 = vunpack.c.l.b16 %v1121
      %v5211 = vunpack.c.h.b16 %v1121
      %v5212 = vunpack.c.l.b16 %v1122
      %v5213 = vunpack.c.h.b16 %v1122
      %v5214 = vunpack.c.l.b16 %v1123
      %v5215 = vunpack.c.h.b16 %v1123
      %v5216 = vunpack.c.l.b16 %v1124
      %v5217 = vunpack.c.h.b16 %v1124
      %v5218 = vunpack.c.l.b16 %v1125
      %v5219 = vunpack.c.h.b16 %v1125
      %v5220 = vunpack.c.l.b16 %v1126
      %v5221 = vunpack.c.h.b16 %v1126
      %v5222 = vunpack.c.l.b16 %v1127
      %v5223 = vunpack.c.h.b16 %v1127
      %v5224 = vunpack.c.l.b16 %v1128
      %v5225 = vunpack.c.h.b16 %v1128
      %v5226 = vunpack.c.l.b16 %v1129
      %v5227 = vunpack.c.h.b16 %v1129
      %v5228 = vunpack.c.l.b16 %v1130
      %v5229 = vunpack.c.h.b16 %v1130
      %v5230 = vunpack.c.l.b16 %v1131
      %v5231 = vunpack.c.h.b16 %v1131
      %v5232 = vunpack.c.l.b16 %v1132
      %v5233 = vunpack.c.h.b16 %v1132
      %v5234 = vunpack.c.l.b16 %v1133
      %v5235 = vunpack.c.h.b16 %v1133
      %v5236 = vunpack.c.l.b16 %v1134
      %v5237 = vunpack.c.h.b16 %v1134
      %v5238 = vunpack.c.l.b16 %v1135
      %v5239 = vunpack.c.h.b16 %v1135
      %v5240 = vunpack.c.l.b16 %v1136
      %v5241 = vunpack.c.h.b16 %v1136
      %v5242 = vunpack.c.l.b16 %v1137
      %v5243 = vunpack.c.h.b16 %v1137
      %v5244 = vunpack.c.l.b16 %v1138
      %v5245 = vunpack.c.h.b16 %v1138
      %v5246 = vunpack.c.l.b16 %v1139
      %v5247 = vunpack.c.h.b16 %v1139
      %v5248 = vunpack.c.l.b16 %v1140
      %v5249 = vunpack.c.h.b16 %v1140
      %v5250 = vunpack.c.l.b16 %v1141
      %v5251 = vunpack.c.h.b16 %v1141
      %v5252 = vunpack.c.l.b16 %v1142
      %v5253 = vunpack.c.h.b16 %v1142
      %v5254 = vunpack.c.l.b16 %v1143
      %v5255 = vunpack.c.h.b16 %v1143
      %v5256 = vunpack.c.l.b16 %v1144
      %v5257 = vunpack.c.h.b16 %v1144
      %v5258 = vunpack.c.l.b16 %v1145
      %v5259 = vunpack.c.h.b16 %v1145
      %v5260 = vunpack.c.l.b16 %v1146
      %v5261 = vunpack.c.h.b16 %v1146
      %v5262 = vunpack.c.l.b16 %v1147
      %v5263 = vunpack.c.h.b16 %v1147
      %v5264 = vunpack.c.l.b16 %v1148
      %v5265 = vunpack.c.h.b16 %v1148
      %v5266 = vunpack.c.l.b16 %v1149
      %v5267 = vunpack.c.h.b16 %v1149
      %v5268 = vunpack.c.l.b16 %v1150
      %v5269 = vunpack.c.h.b16 %v1150
      %v5270 = vunpack.c.l.b16 %v1151
      %v5271 = vunpack.c.h.b16 %v1151
      %v5272 = vunpack.c.l.b16 %v1152
      %v5273 = vunpack.c.h.b16 %v1152
      %v5274 = vunpack.c.l.b16 %v1153
      %v5275 = vunpack.c.h.b16 %v1153
      %v5276 = vunpack.c.l.b16 %v1154
      %v5277 = vunpack.c.h.b16 %v1154
      %v5278 = vunpack.c.l.b16 %v1155
      %v5279 = vunpack.c.h.b16 %v1155
      %v5280 = vunpack.c.l.b16 %v1156
      %v5281 = vunpack.c.h.b16 %v1156
      %v5282 = vunpack.c.l.b16 %v1157
      %v5283 = vunpack.c.h.b16 %v1157
      %v5284 = vunpack.c.l.b16 %v1158
      %v5285 = vunpack.c.h.b16 %v1158
      %v5286 = vunpack.c.l.b16 %v1159
      %v5287 = vunpack.c.h.b16 %v1159
      %v5288 = vunpack.c.l.b16 %v1160
      %v5289 = vunpack.c.h.b16 %v1160
      %v5290 = vunpack.c.l.b16 %v1161
      %v5291 = vunpack.c.h.b16 %v1161
      %v5292 = vunpack.c.l.b16 %v1162
      %v5293 = vunpack.c.h.b16 %v1162
      %v5294 = vunpack.c.l.b16 %v1163
      %v5295 = vunpack.c.h.b16 %v1163
      %v5296 = vunpack.c.l.b16 %v1164
      %v5297 = vunpack.c.h.b16 %v1164
      %v5298 = vunpack.c.l.b16 %v1165
      %v5299 = vunpack.c.h.b16 %v1165
      %v5300 = vunpack.c.l.b16 %v1166
      %v5301 = vunpack.c.h.b16 %v1166
      %v5302 = vunpack.c.l.b16 %v1167
      %v5303 = vunpack.c.h.b16 %v1167
      %v5304 = vunpack.c.l.b16 %v1168
      %v5305 = vunpack.c.h.b16 %v1168
      %v5306 = vunpack.c.l.b16 %v1169
      %v5307 = vunpack.c.h.b16 %v1169
      %v5308 = vunpack.c.l.b16 %v1170
      %v5309 = vunpack.c.h.b16 %v1170
      %v5310 = vunpack.c.l.b16 %v1171
      %v5311 = vunpack.c.h.b16 %v1171
      %v5312 = vunpack.c.l.b16 %v1172
      %v5313 = vunpack.c.h.b16 %v1172
      %v5314 = vunpack.c.l.b16 %v1173
      %v5315 = vunpack.c.h.b16 %v1173
      %v5316 = vunpack.c.l.b16 %v1174
      %v5317 = vunpack.c.h.b16 %v1174
      %v5318 = vunpack.c.l.b16 %v1175
      %v5319 = vunpack.c.h.b16 %v1175
      %v5320 = vunpack.c.l.b16 %v1176
      %v5321 = vunpack.c.h.b16 %v1176
      %v5322 = vunpack.c.l.b16 %v1177
      %v5323 = vunpack.c.h.b16 %v1177
      %v5324 = vunpack.c.l.b16 %v1178
      %v5325 = vunpack.c.h.b16 %v1178
      %v5326 = vunpack.c.l.b16 %v1179
      %v5327 = vunpack.c.h.b16 %v1179
      %v5328 = vunpack.c.l.b16 %v1180
      %v5329 = vunpack.c.h.b16 %v1180
      %v5330 = vunpack.c.l.b16 %v1181
      %v5331 = vunpack.c.h.b16 %v1181
      %v5332 = vunpack.c.l.b16 %v1182
      %v5333 = vunpack.c.h.b16 %v1182
      %v5334 = vunpack.c.l.b16 %v1183
      %v5335 = vunpack.c.h.b16 %v1183
      %v5336 = vunpack.c.l.b16 %v1184
      %v5337 = vunpack.c.h.b16 %v1184
      %v5338 = vunpack.c.l.b16 %v1185
      %v5339 = vunpack.c.h.b16 %v1185
      %v5340 = vunpack.c.l.b16 %v1186
      %v5341 = vunpack.c.h.b16 %v1186
      %v5342 = vunpack.c.l.b16 %v1187
      %v5343 = vunpack.c.h.b16 %v1187
      %v5344 = vunpack.c.l.b16 %v1188
      %v5345 = vunpack.c.h.b16 %v1188
      %v5346 = vunpack.c.l.b16 %v1189
      %v5347 = vunpack.c.h.b16 %v1189
      %v5348 = vunpack.c.l.b16 %v1190
      %v5349 = vunpack.c.h.b16 %v1190
      %v5350 = vunpack.c.l.b16 %v1191
      %v5351 = vunpack.c.h.b16 %v1191
      %v5352 = vunpack.c.l.b16 %v1192
      %v5353 = vunpack.c.h.b16 %v1192
      %v5354 = vunpack.c.l.b16 %v1193
      %v5355 = vunpack.c.h.b16 %v1193
      %v5356 = vunpack.c.l.b16 %v1194
      %v5357 = vunpack.c.h.b16 %v1194
      %v5358 = vunpack.c.l.b16 %v1195
      %v5359 = vunpack.c.h.b16 %v1195
      %v5360 = vunpack.c.l.b16 %v1196
      %v5361 = vunpack.c.h.b16 %v1196
      %v5362 = vunpack.c.l.b16 %v1197
      %v5363 = vunpack.c.h.b16 %v1197
      %v5364 = vunpack.c.l.b16 %v1198
      %v5365 = vunpack.c.h.b16 %v1198
      %v5366 = vunpack.c.l.b16 %v1199
      %v5367 = vunpack.c.h.b16 %v1199
      %v5368 = vunpack.c.l.b16 %v1200
      %v5369 = vunpack.c.h.b16 %v1200
      %v5370 = vunpack.c.l.b16 %v1201
      %v5371 = vunpack.c.h.b16 %v1201
      %v5372 = vunpack.c.l.b16 %v1202
      %v5373 = vunpack.c.h.b16 %v1202
      %v5374 = vunpack.c.l.b16 %v1203
      %v5375 = vunpack.c.h.b16 %v1203
      %v5376 = vunpack.c.l.b16 %v1204
      %v5377 = vunpack.c.h.b16 %v1204
      %v5378 = vunpack.c.l.b16 %v1205
      %v5379 = vunpack.c.h.b16 %v1205
      %v5380 = vunpack.c.l.b16 %v1206
      %v5381 = vunpack.c.h.b16 %v1206
      %v5382 = vunpack.c.l.b16 %v1207
      %v5383 = vunpack.c.h.b16 %v1207
      %v5384 = vunpack.c.l.b16 %v1208
      %v5385 = vunpack.c.h.b16 %v1208
      %v5386 = vunpack.c.l.b16 %v1209
      %v5387 = vunpack.c.h.b16 %v1209
      %v5388 = vunpack.c.l.b16 %v1210
      %v5389 = vunpack.c.h.b16 %v1210
      %v5390 = vunpack.c.l.b16 %v1211
      %v5391 = vunpack.c.h.b16 %v1211
      %v5392 = vunpack.c.l.b16 %v1212
      %v5393 = vunpack.c.h.b16 %v1212
      %v5394 = vunpack.c.l.b16 %v1213
      %v5395 = vunpack.c.h.b16 %v1213
      %v5396 = vunpack.c.l.b16 %v1214
      %v5397 = vunpack.c.h.b16 %v1214
      %v5398 = vunpack.c.l.b16 %v1215
      %v5399 = vunpack.c.h.b16 %v1215
      %v5400 = vunpack.c.l.b16 %v1216
      %v5401 = vunpack.c.h.b16 %v1216
      %v5402 = vunpack.c.l.b16 %v1217
      %v5403 = vunpack.c.h.b16 %v1217
      %v5404 = vunpack.c.l.b16 %v1218
      %v5405 = vunpack.c.h.b16 %v1218
      %v5406 = vunpack.c.l.b16 %v1219
      %v5407 = vunpack.c.h.b16 %v1219
      %v5408 = vunpack.c.l.b16 %v1220
      %v5409 = vunpack.c.h.b16 %v1220
      %v5410 = vunpack.c.l.b16 %v1221
      %v5411 = vunpack.c.h.b16 %v1221
      %v5412 = vunpack.c.l.b16 %v1222
      %v5413 = vunpack.c.h.b16 %v1222
      %v5414 = vunpack.c.l.b16 %v1223
      %v5415 = vunpack.c.h.b16 %v1223
      %v5416 = vunpack.c.l.b16 %v1224
      %v5417 = vunpack.c.h.b16 %v1224
      %v5418 = vunpack.c.l.b16 %v1225
      %v5419 = vunpack.c.h.b16 %v1225
      %v5420 = vunpack.c.l.b16 %v1226
      %v5421 = vunpack.c.h.b16 %v1226
      %v5422 = vunpack.c.l.b16 %v1227
      %v5423 = vunpack.c.h.b16 %v1227
      %v5424 = vunpack.c.l.b16 %v1228
      %v5425 = vunpack.c.h.b16 %v1228
      %v5426 = vunpack.c.l.b16 %v1229
      %v5427 = vunpack.c.h.b16 %v1229
      %v5428 = vunpack.c.l.b16 %v1230
      %v5429 = vunpack.c.h.b16 %v1230
      %v5430 = vunpack.c.l.b16 %v1231
      %v5431 = vunpack.c.h.b16 %v1231
      %v5432 = vunpack.c.l.b16 %v1232
      %v5433 = vunpack.c.h.b16 %v1232
      %v5434 = vunpack.c.l.b16 %v1233
      %v5435 = vunpack.c.h.b16 %v1233
      %v5436 = vunpack.c.l.b16 %v1234
      %v5437 = vunpack.c.h.b16 %v1234
      %v5438 = vunpack.c.l.b16 %v1235
      %v5439 = vunpack.c.h.b16 %v1235
      %v5440 = vunpack.c.l.b16 %v1236
      %v5441 = vunpack.c.h.b16 %v1236
      %v5442 = vunpack.c.l.b16 %v1237
      %v5443 = vunpack.c.h.b16 %v1237
      %v5444 = vunpack.c.l.b16 %v1238
      %v5445 = vunpack.c.h.b16 %v1238
      %v5446 = vunpack.c.l.b16 %v1239
      %v5447 = vunpack.c.h.b16 %v1239
      %v5448 = vunpack.c.l.b16 %v1240
      %v5449 = vunpack.c.h.b16 %v1240
      %v5450 = vunpack.c.l.b16 %v1241
      %v5451 = vunpack.c.h.b16 %v1241
      %v5452 = vunpack.c.l.b16 %v1242
      %v5453 = vunpack.c.h.b16 %v1242
      %v5454 = vunpack.c.l.b16 %v1243
      %v5455 = vunpack.c.h.b16 %v1243
      %v5456 = vunpack.c.l.b16 %v1244
      %v5457 = vunpack.c.h.b16 %v1244
      %v5458 = vunpack.c.l.b16 %v1245
      %v5459 = vunpack.c.h.b16 %v1245
      %v5460 = vunpack.c.l.b16 %v1246
      %v5461 = vunpack.c.h.b16 %v1246
      %v5462 = vunpack.c.l.b16 %v1247
      %v5463 = vunpack.c.h.b16 %v1247
      %v5464 = vunpack.c.l.b16 %v1248
      %v5465 = vunpack.c.h.b16 %v1248
      %v5466 = vunpack.c.l.b16 %v1249
      %v5467 = vunpack.c.h.b16 %v1249
      %v5468 = vunpack.c.l.b16 %v1250
      %v5469 = vunpack.c.h.b16 %v1250
      %v5470 = vunpack.c.l.b16 %v1251
      %v5471 = vunpack.c.h.b16 %v1251
      %v5472 = vunpack.c.l.b16 %v1252
      %v5473 = vunpack.c.h.b16 %v1252
      %v5474 = vunpack.c.l.b16 %v1253
      %v5475 = vunpack.c.h.b16 %v1253
      %v5476 = vunpack.c.l.b16 %v1254
      %v5477 = vunpack.c.h.b16 %v1254
      %v5478 = vunpack.c.l.b16 %v1255
      %v5479 = vunpack.c.h.b16 %v1255
      %v5480 = vunpack.c.l.b16 %v1256
      %v5481 = vunpack.c.h.b16 %v1256
      %v5482 = vunpack.c.l.b16 %v1257
      %v5483 = vunpack.c.h.b16 %v1257
      %v5484 = vunpack.c.l.b16 %v1258
      %v5485 = vunpack.c.h.b16 %v1258
      %v5486 = vunpack.c.l.b16 %v1259
      %v5487 = vunpack.c.h.b16 %v1259
      %v5488 = vunpack.c.l.b16 %v1260
      %v5489 = vunpack.c.h.b16 %v1260
      %v5490 = vunpack.c.l.b16 %v1261
      %v5491 = vunpack.c.h.b16 %v1261
      %v5492 = vunpack.c.l.b16 %v1262
      %v5493 = vunpack.c.h.b16 %v1262
      %v5494 = vunpack.c.l.b16 %v1263
      %v5495 = vunpack.c.h.b16 %v1263
      %v5496 = vunpack.c.l.b16 %v1264
      %v5497 = vunpack.c.h.b16 %v1264
      %v5498 = vunpack.c.l.b16 %v1265
      %v5499 = vunpack.c.h.b16 %v1265
      %v5500 = vunpack.c.l.b16 %v1266
      %v5501 = vunpack.c.h.b16 %v1266
      %v5502 = vunpack.c.l.b16 %v1267
      %v5503 = vunpack.c.h.b16 %v1267
      %v5504 = vunpack.c.l.b16 %v1268
      %v5505 = vunpack.c.h.b16 %v1268
      %v5506 = vunpack.c.l.b16 %v1269
      %v5507 = vunpack.c.h.b16 %v1269
      %v5508 = vunpack.c.l.b16 %v1270
      %v5509 = vunpack.c.h.b16 %v1270
      %v5510 = vunpack.c.l.b16 %v1271
      %v5511 = vunpack.c.h.b16 %v1271
      %v5512 = vunpack.c.l.b16 %v1272
      %v5513 = vunpack.c.h.b16 %v1272
      %v5514 = vunpack.c.l.b16 %v1273
      %v5515 = vunpack.c.h.b16 %v1273
      %v5516 = vunpack.c.l.b16 %v1274
      %v5517 = vunpack.c.h.b16 %v1274
      %v5518 = vunpack.c.l.b16 %v1275
      %v5519 = vunpack.c.h.b16 %v1275
      %v5520 = vunpack.c.l.b16 %v1276
      %v5521 = vunpack.c.h.b16 %v1276
      %v5522 = vunpack.c.l.b16 %v1277
      %v5523 = vunpack.c.h.b16 %v1277
      %v5524 = vunpack.c.l.b16 %v1278
      %v5525 = vunpack.c.h.b16 %v1278
      %v5526 = vunpack.c.l.b16 %v1279
      %v5527 = vunpack.c.h.b16 %v1279
      %v5528 = vunpack.c.l.b16 %v1280
      %v5529 = vunpack.c.h.b16 %v1280
      %v5530 = vunpack.c.l.b16 %v1281
      %v5531 = vunpack.c.h.b16 %v1281
      %v5532 = vunpack.c.l.b16 %v1282
      %v5533 = vunpack.c.h.b16 %v1282
      %v5534 = vunpack.c.l.b16 %v1283
      %v5535 = vunpack.c.h.b16 %v1283
      %v5536 = vunpack.c.l.b16 %v1284
      %v5537 = vunpack.c.h.b16 %v1284
      %v5538 = vunpack.c.l.b16 %v1285
      %v5539 = vunpack.c.h.b16 %v1285
      %v5540 = vunpack.c.l.b16 %v1286
      %v5541 = vunpack.c.h.b16 %v1286
      %v5542 = vunpack.c.l.b16 %v1287
      %v5543 = vunpack.c.h.b16 %v1287
      %v5544 = vunpack.c.l.b16 %v1288
      %v5545 = vunpack.c.h.b16 %v1288
      %v5546 = vunpack.c.l.b16 %v1289
      %v5547 = vunpack.c.h.b16 %v1289
      %v5548 = vunpack.c.l.b16 %v1290
      %v5549 = vunpack.c.h.b16 %v1290
      %v5550 = vunpack.c.l.b16 %v1291
      %v5551 = vunpack.c.h.b16 %v1291
      %v5552 = vunpack.c.l.b16 %v1292
      %v5553 = vunpack.c.h.b16 %v1292
      %v5554 = vunpack.c.l.b16 %v1293
      %v5555 = vunpack.c.h.b16 %v1293
      %v5556 = vunpack.c.l.b16 %v1294
      %v5557 = vunpack.c.h.b16 %v1294
      %v5558 = vunpack.c.l.b16 %v1295
      %v5559 = vunpack.c.h.b16 %v1295
      %v5560 = vunpack.c.l.b16 %v1296
      %v5561 = vunpack.c.h.b16 %v1296
      %v5562 = vunpack.c.l.b16 %v1297
      %v5563 = vunpack.c.h.b16 %v1297
      %v5564 = vunpack.c.l.b16 %v1298
      %v5565 = vunpack.c.h.b16 %v1298
      %v5566 = vunpack.c.l.b16 %v1299
      %v5567 = vunpack.c.h.b16 %v1299
      %v5568 = vunpack.c.l.b16 %v1300
      %v5569 = vunpack.c.h.b16 %v1300
      %v5570 = vunpack.c.l.b16 %v1301
      %v5571 = vunpack.c.h.b16 %v1301
      %v5572 = vunpack.c.l.b16 %v1302
      %v5573 = vunpack.c.h.b16 %v1302
      %v5574 = vunpack.c.l.b16 %v1303
      %v5575 = vunpack.c.h.b16 %v1303
      %v5576 = vunpack.c.l.b16 %v1304
      %v5577 = vunpack.c.h.b16 %v1304
      %v5578 = vunpack.c.l.b16 %v1305
      %v5579 = vunpack.c.h.b16 %v1305
      %v5580 = vunpack.c.l.b16 %v1306
      %v5581 = vunpack.c.h.b16 %v1306
      %v5582 = vunpack.c.l.b16 %v1307
      %v5583 = vunpack.c.h.b16 %v1307
      %v5584 = vunpack.c.l.b16 %v1308
      %v5585 = vunpack.c.h.b16 %v1308
      %v5586 = vunpack.c.l.b16 %v1309
      %v5587 = vunpack.c.h.b16 %v1309
      %v5588 = vunpack.c.l.b16 %v1310
      %v5589 = vunpack.c.h.b16 %v1310
      %v5590 = vunpack.c.l.b16 %v1311
      %v5591 = vunpack.c.h.b16 %v1311
      %v5592 = vunpack.c.l.b16 %v1312
      %v5593 = vunpack.c.h.b16 %v1312
      %v5594 = vunpack.c.l.b16 %v1313
      %v5595 = vunpack.c.h.b16 %v1313
      %v5596 = vunpack.c.l.b16 %v1314
      %v5597 = vunpack.c.h.b16 %v1314
      %v5598 = vunpack.c.l.b16 %v1315
      %v5599 = vunpack.c.h.b16 %v1315
      %v5600 = vunpack.c.l.b16 %v1316
      %v5601 = vunpack.c.h.b16 %v1316
      %v5602 = vunpack.c.l.b16 %v1317
      %v5603 = vunpack.c.h.b16 %v1317
      %v5604 = vunpack.c.l.b16 %v1318
      %v5605 = vunpack.c.h.b16 %v1318
      %v5606 = vunpack.c.l.b16 %v1319
      %v5607 = vunpack.c.h.b16 %v1319
      %v5608 = vunpack.c.l.b16 %v1320
      %v5609 = vunpack.c.h.b16 %v1320
      %v5610 = vunpack.c.l.b16 %v1321
      %v5611 = vunpack.c.h.b16 %v1321
      %v5612 = vunpack.c.l.b16 %v1322
      %v5613 = vunpack.c.h.b16 %v1322
      %v5614 = vunpack.c.l.b16 %v1323
      %v5615 = vunpack.c.h.b16 %v1323
      %v5616 = vunpack.c.l.b16 %v1324
      %v5617 = vunpack.c.h.b16 %v1324
      %v5618 = vunpack.c.l.b16 %v1325
      %v5619 = vunpack.c.h.b16 %v1325
      %v5620 = vunpack.c.l.b16 %v1326
      %v5621 = vunpack.c.h.b16 %v1326
      %v5622 = vunpack.c.l.b16 %v1327
      %v5623 = vunpack.c.h.b16 %v1327
      %v5624 = vunpack.c.l.b16 %v1328
      %v5625 = vunpack.c.h.b16 %v1328
      %v5626 = vunpack.c.l.b16 %v1329
      %v5627 = vunpack.c.h.b16 %v1329
      %v5628 = vunpack.c.l.b16 %v1330
      %v5629 = vunpack.c.h.b16 %v1330
      %v5630 = vunpack.c.l.b16 %v1331
      %v5631 = vunpack.c.h.b16 %v1331
      %v5632 = vunpack.c.l.b16 %v1332
      %v5633 = vunpack.c.h.b16 %v1332
      %v5634 = vunpack.c.l.b16 %v1333
      %v5635 = vunpack.c.h.b16 %v1333
      %v5636 = vunpack.c.l.b16 %v1334
      %v5637 = vunpack.c.h.b16 %v1334
      %v5638 = vunpack.c.l.b16 %v1335
      %v5639 = vunpack.c.h.b16 %v1335
      %v5640 = vunpack.c.l.b16 %v1336
      %v5641 = vunpack.c.h.b16 %v1336
      %v5642 = vunpack.c.l.b16 %v1337
      %v5643 = vunpack.c.h.b16 %v1337
      %v5644 = vunpack.c.l.b16 %v1338
      %v5645 = vunpack.c.h.b16 %v1338
      %v5646 = vunpack.c.l.b16 %v1339
      %v5647 = vunpack.c.h.b16 %v1339
      %v5648 = vunpack.c.l.b16 %v1340
      %v5649 = vunpack.c.h.b16 %v1340
      %v5650 = vunpack.c.l.b16 %v1341
      %v5651 = vunpack.c.h.b16 %v1341
      %v5652 = vunpack.c.l.b16 %v1342
      %v5653 = vunpack.c.h.b16 %v1342
      %v5654 = vunpack.c.l.b16 %v1343
      %v5655 = vunpack.c.h.b16 %v1343
      %v5656 = vunpack.c.l.b16 %v1344
      %v5657 = vunpack.c.h.b16 %v1344
      %v5658 = vunpack.c.l.b16 %v1345
      %v5659 = vunpack.c.h.b16 %v1345
      %v5660 = vunpack.c.l.b16 %v1346
      %v5661 = vunpack.c.h.b16 %v1346
      %v5662 = vunpack.c.l.b16 %v1347
      %v5663 = vunpack.c.h.b16 %v1347
      %v5664 = vunpack.c.l.b16 %v1348
      %v5665 = vunpack.c.h.b16 %v1348
      %v5666 = vunpack.c.l.b16 %v1349
      %v5667 = vunpack.c.h.b16 %v1349
      %v5668 = vunpack.c.l.b16 %v1350
      %v5669 = vunpack.c.h.b16 %v1350
      %v5670 = vunpack.c.l.b16 %v1351
      %v5671 = vunpack.c.h.b16 %v1351
      %v5672 = vunpack.c.l.b16 %v1352
      %v5673 = vunpack.c.h.b16 %v1352
      %v5674 = vunpack.c.l.b16 %v1353
      %v5675 = vunpack.c.h.b16 %v1353
      %v5676 = vunpack.c.l.b16 %v1354
      %v5677 = vunpack.c.h.b16 %v1354
      %v5678 = vunpack.c.l.b16 %v1355
      %v5679 = vunpack.c.h.b16 %v1355
      %v5680 = vunpack.c.l.b16 %v1356
      %v5681 = vunpack.c.h.b16 %v1356
      %v5682 = vunpack.c.l.b16 %v1357
      %v5683 = vunpack.c.h.b16 %v1357
      %v5684 = vunpack.c.l.b16 %v1358
      %v5685 = vunpack.c.h.b16 %v1358
      %v5686 = vunpack.c.l.b16 %v1359
      %v5687 = vunpack.c.h.b16 %v1359
      %v5688 = vunpack.c.l.b16 %v1360
      %v5689 = vunpack.c.h.b16 %v1360
      %v5690 = vunpack.c.l.b16 %v1361
      %v5691 = vunpack.c.h.b16 %v1361
      %v5692 = vunpack.c.l.b16 %v1362
      %v5693 = vunpack.c.h.b16 %v1362
      %v5694 = vunpack.c.l.b16 %v1363
      %v5695 = vunpack.c.h.b16 %v1363
      %v5696 = vpack.c.b16 %v4130, %v4128
      %v5697 = vpack.c.b16 %v4131, %v4129
      %v5698 = vpack.c.b16 %v4134, %v4132
      %v5699 = vpack.c.b16 %v4135, %v4133
      %v5700 = vpack.c.b16 %v4138, %v4136
      %v5701 = vpack.c.b16 %v4139, %v4137
      %v5702 = vpack.c.b16 %v4142, %v4140
      %v5703 = vpack.c.b16 %v4143, %v4141
      %v5704 = vpack.c.b16 %v4146, %v4144
      %v5705 = vpack.c.b16 %v4147, %v4145
      %v5706 = vpack.c.b16 %v4150, %v4148
      %v5707 = vpack.c.b16 %v4151, %v4149
      %v5708 = vpack.c.b16 %v4154, %v4152
      %v5709 = vpack.c.b16 %v4155, %v4153
      %v5710 = vpack.c.b16 %v4158, %v4156
      %v5711 = vpack.c.b16 %v4159, %v4157
      %v5712 = vpack.c.b16 %v4162, %v4160
      %v5713 = vpack.c.b16 %v4163, %v4161
      %v5714 = vpack.c.b16 %v4166, %v4164
      %v5715 = vpack.c.b16 %v4167, %v4165
      %v5716 = vpack.c.b16 %v4170, %v4168
      %v5717 = vpack.c.b16 %v4171, %v4169
      %v5718 = vpack.c.b16 %v4174, %v4172
      %v5719 = vpack.c.b16 %v4175, %v4173
      %v5720 = vpack.c.b16 %v4178, %v4176
      %v5721 = vpack.c.b16 %v4179, %v4177
      %v5722 = vpack.c.b16 %v4182, %v4180
      %v5723 = vpack.c.b16 %v4183, %v4181
      %v5724 = vpack.c.b16 %v4186, %v4184
      %v5725 = vpack.c.b16 %v4187, %v4185
      %v5726 = vpack.c.b16 %v4190, %v4188
      %v5727 = vpack.c.b16 %v4191, %v4189
      %v5728 = vpack.c.b16 %v4194, %v4192
      %v5729 = vpack.c.b16 %v4195, %v4193
      %v5730 = vpack.c.b16 %v4198, %v4196
      %v5731 = vpack.c.b16 %v4199, %v4197
      %v5732 = vpack.c.b16 %v4202, %v4200
      %v5733 = vpack.c.b16 %v4203, %v4201
      %v5734 = vpack.c.b16 %v4206, %v4204
      %v5735 = vpack.c.b16 %v4207, %v4205
      %v5736 = vpack.c.b16 %v4210, %v4208
      %v5737 = vpack.c.b16 %v4211, %v4209
      %v5738 = vpack.c.b16 %v4214, %v4212
      %v5739 = vpack.c.b16 %v4215, %v4213
      %v5740 = vpack.c.b16 %v4218, %v4216
      %v5741 = vpack.c.b16 %v4219, %v4217
      %v5742 = vpack.c.b16 %v4222, %v4220
      %v5743 = vpack.c.b16 %v4223, %v4221
      %v5744 = vpack.c.b16 %v4226, %v4224
      %v5745 = vpack.c.b16 %v4227, %v4225
      %v5746 = vpack.c.b16 %v4230, %v4228
      %v5747 = vpack.c.b16 %v4231, %v4229
      %v5748 = vpack.c.b16 %v4234, %v4232
      %v5749 = vpack.c.b16 %v4235, %v4233
      %v5750 = vpack.c.b16 %v4238, %v4236
      %v5751 = vpack.c.b16 %v4239, %v4237
      %v5752 = vpack.c.b16 %v4242, %v4240
      %v5753 = vpack.c.b16 %v4243, %v4241
      %v5754 = vpack.c.b16 %v4246, %v4244
      %v5755 = vpack.c.b16 %v4247, %v4245
      %v5756 = vpack.c.b16 %v4250, %v4248
      %v5757 = vpack.c.b16 %v4251, %v4249
      %v5758 = vpack.c.b16 %v4254, %v4252
      %v5759 = vpack.c.b16 %v4255, %v4253
      %v5760 = vpack.c.b16 %v4258, %v4256
      %v5761 = vpack.c.b16 %v4259, %v4257
      %v5762 = vpack.c.b16 %v4262, %v4260
      %v5763 = vpack.c.b16 %v4263, %v4261
      %v5764 = vpack.c.b16 %v4266, %v4264
      %v5765 = vpack.c.b16 %v4267, %v4265
      %v5766 = vpack.c.b16 %v4270, %v4268
      %v5767 = vpack.c.b16 %v4271, %v4269
      %v5768 = vpack.c.b16 %v4274, %v4272
      %v5769 = vpack.c.b16 %v4275, %v4273
      %v5770 = vpack.c.b16 %v4278, %v4276
      %v5771 = vpack.c.b16 %v4279, %v4277
      %v5772 = vpack.c.b16 %v4282, %v4280
      %v5773 = vpack.c.b16 %v4283, %v4281
      %v5774 = vpack.c.b16 %v4286, %v4284
      %v5775 = vpack.c.b16 %v4287, %v4285
      %v5776 = vpack.c.b16 %v4290, %v4288
      %v5777 = vpack.c.b16 %v4291, %v4289
      %v5778 = vpack.c.b16 %v4294, %v4292
      %v5779 = vpack.c.b16 %v4295, %v4293
      %v5780 = vpack.c.b16 %v4298, %v4296
      %v5781 = vpack.c.b16 %v4299, %v4297
      %v5782 = vpack.c.b16 %v4302, %v4300
      %v5783 = vpack.c.b16 %v4303, %v4301
      %v5784 = vpack.c.b16 %v4306, %v4304
      %v5785 = vpack.c.b16 %v4307, %v4305
      %v5786 = vpack.c.b16 %v4310, %v4308
      %v5787 = vpack.c.b16 %v4311, %v4309
      %v5788 = vpack.c.b16 %v4314, %v4312
      %v5789 = vpack.c.b16 %v4315, %v4313
      %v5790 = vpack.c.b16 %v4318, %v4316
      %v5791 = vpack.c.b16 %v4319, %v4317
      %v5792 = vpack.c.b16 %v4322, %v4320
      %v5793 = vpack.c.b16 %v4323, %v4321
      %v5794 = vpack.c.b16 %v4326, %v4324
      %v5795 = vpack.c.b16 %v4327, %v4325
      %v5796 = vpack.c.b16 %v4330, %v4328
      %v5797 = vpack.c.b16 %v4331, %v4329
      %v5798 = vpack.c.b16 %v4334, %v4332
      %v5799 = vpack.c.b16 %v4335, %v4333
      %v5800 = vpack.c.b16 %v4338, %v4336
      %v5801 = vpack.c.b16 %v4339, %v4337
      %v5802 = vpack.c.b16 %v4342, %v4340
      %v5803 = vpack.c.b16 %v4343, %v4341
      %v5804 = vpack.c.b16 %v4346, %v4344
      %v5805 = vpack.c.b16 %v4347, %v4345
      %v5806 = vpack.c.b16 %v4350, %v4348
      %v5807 = vpack.c.b16 %v4351, %v4349
      %v5808 = vpack.c.b16 %v4354, %v4352
      %v5809 = vpack.c.b16 %v4355, %v4353
      %v5810 = vpack.c.b16 %v4358, %v4356
      %v5811 = vpack.c.b16 %v4359, %v4357
      %v5812 = vpack.c.b16 %v4362, %v4360
      %v5813 = vpack.c.b16 %v4363, %v4361
      %v5814 = vpack.c.b16 %v4366, %v4364
      %v5815 = vpack.c.b16 %v4367, %v4365
      %v5816 = vpack.c.b16 %v4370, %v4368
      %v5817 = vpack.c.b16 %v4371, %v4369
      %v5818 = vpack.c.b16 %v4374, %v4372
      %v5819 = vpack.c.b16 %v4375, %v4373
      %v5820 = vpack.c.b16 %v4378, %v4376
      %v5821 = vpack.c.b16 %v4379, %v4377
      %v5822 = vpack.c.b16 %v4382, %v4380
      %v5823 = vpack.c.b16 %v4383, %v4381
      %v5824 = vpack.c.b16 %v4386, %v4384
      %v5825 = vpack.c.b16 %v4387, %v4385
      %v5826 = vpack.c.b16 %v4390, %v4388
      %v5827 = vpack.c.b16 %v4391, %v4389
      %v5828 = vpack.c.b16 %v4394, %v4392
      %v5829 = vpack.c.b16 %v4395, %v4393
      %v5830 = vpack.c.b16 %v4398, %v4396
      %v5831 = vpack.c.b16 %v4399, %v4397
      %v5832 = vpack.c.b16 %v4402, %v4400
      %v5833 = vpack.c.b16 %v4403, %v4401
      %v5834 = vpack.c.b16 %v4406, %v4404
      %v5835 = vpack.c.b16 %v4407, %v4405
      %v5836 = vpack.c.b16 %v4410, %v4408
      %v5837 = vpack.c.b16 %v4411, %v4409
      %v5838 = vpack.c.b16 %v4414, %v4412
      %v5839 = vpack.c.b16 %v4415, %v4413
      %v5840 = vpack.c.b16 %v4418, %v4416
      %v5841 = vpack.c.b16 %v4419, %v4417
      %v5842 = vpack.c.b16 %v4422, %v4420
      %v5843 = vpack.c.b16 %v4423, %v4421
      %v5844 = vpack.c.b16 %v4426, %v4424
      %v5845 = vpack.c.b16 %v4427, %v4425
      %v5846 = vpack.c.b16 %v4430, %v4428
      %v5847 = vpack.c.b16 %v4431, %v4429
      %v5848 = vpack.c.b16 %v4434, %v4432
      %v5849 = vpack.c.b16 %v4435, %v4433
      %v5850 = vpack.c.b16 %v4438, %v4436
      %v5851 = vpack.c.b16 %v4439, %v4437
      %v5852 = vpack.c.b16 %v4442, %v4440
      %v5853 = vpack.c.b16 %v4443, %v4441
      %v5854 = vpack.c.b16 %v4446, %v4444
      %v5855 = vpack.c.b16 %v4447, %v4445
      %v5856 = vpack.c.b16 %v4450, %v4448
      %v5857 = vpack.c.b16 %v4451, %v4449
      %v5858 = vpack.c.b16 %v4454, %v4452
      %v5859 = vpack.c.b16 %v4455, %v4453
      %v5860 = vpack.c.b16 %v4458, %v4456
      %v5861 = vpack.c.b16 %v4459, %v4457
      %v5862 = vpack.c.b16 %v4462, %v4460
      %v5863 = vpack.c.b16 %v4463, %v4461
      %v5864 = vpack.c.b16 %v4466, %v4464
      %v5865 = vpack.c.b16 %v4467, %v4465
      %v5866 = vpack.c.b16 %v4470, %v4468
      %v5867 = vpack.c.b16 %v4471, %v4469
      %v5868 = vpack.c.b16 %v4474, %v4472
      %v5869 = vpack.c.b16 %v4475, %v4473
      %v5870 = vpack.c.b16 %v4478, %v4476
      %v5871 = vpack.c.b16 %v4479, %v4477
      %v5872 = vpack.c.b16 %v4482, %v4480
      %v5873 = vpack.c.b16 %v4483, %v4481
      %v5874 = vpack.c.b16 %v4486, %v4484
      %v5875 = vpack.c.b16 %v4487, %v4485
      %v5876 = vpack.c.b16 %v4490, %v4488
      %v5877 = vpack.c.b16 %v4491, %v4489
      %v5878 = vpack.c.b16 %v4494, %v4492
      %v5879 = vpack.c.b16 %v4495, %v4493
      %v5880 = vpack.c.b16 %v4498, %v4496
      %v5881 = vpack.c.b16 %v4499, %v4497
      %v5882 = vpack.c.b16 %v4502, %v4500
      %v5883 = vpack.c.b16 %v4503, %v4501
      %v5884 = vpack.c.b16 %v4506, %v4504
      %v5885 = vpack.c.b16 %v4507, %v4505
      %v5886 = vpack.c.b16 %v4510, %v4508
      %v5887 = vpack.c.b16 %v4511, %v4509
      %v5888 = vpack.c.b16 %v4514, %v4512
      %v5889 = vpack.c.b16 %v4515, %v4513
      %v5890 = vpack.c.b16 %v4518, %v4516
      %v5891 = vpack.c.b16 %v4519, %v4517
      %v5892 = vpack.c.b16 %v4522, %v4520
      %v5893 = vpack.c.b16 %v4523, %v4521
      %v5894 = vpack.c.b16 %v4526, %v4524
      %v5895 = vpack.c.b16 %v4527, %v4525
      %v5896 = vpack.c.b16 %v4530, %v4528
      %v5897 = vpack.c.b16 %v4531, %v4529
      %v5898 = vpack.c.b16 %v4534, %v4532
      %v5899 = vpack.c.b16 %v4535, %v4533
      %v5900 = vpack.c.b16 %v4538, %v4536
      %v5901 = vpack.c.b16 %v4539, %v4537
      %v5902 = vpack.c.b16 %v4542, %v4540
      %v5903 = vpack.c.b16 %v4543, %v4541
      %v5904 = vpack.c.b16 %v4546, %v4544
      %v5905 = vpack.c.b16 %v4547, %v4545
      %v5906 = vpack.c.b16 %v4550, %v4548
      %v5907 = vpack.c.b16 %v4551, %v4549
      %v5908 = vpack.c.b16 %v4554, %v4552
      %v5909 = vpack.c.b16 %v4555, %v4553
      %v5910 = vpack.c.b16 %v4558, %v4556
      %v5911 = vpack.c.b16 %v4559, %v4557
      %v5912 = vpack.c.b16 %v4562, %v4560
      %v5913 = vpack.c.b16 %v4563, %v4561
      %v5914 = vpack.c.b16 %v4566, %v4564
      %v5915 = vpack.c.b16 %v4567, %v4565
      %v5916 = vpack.c.b16 %v4570, %v4568
      %v5917 = vpack.c.b16 %v4571, %v4569
      %v5918 = vpack.c.b16 %v4574, %v4572
      %v5919 = vpack.c.b16 %v4575, %v4573
      %v5920 = vpack.c.b16 %v4578, %v4576
      %v5921 = vpack.c.b16 %v4579, %v4577
      %v5922 = vpack.c.b16 %v4582, %v4580
      %v5923 = vpack.c.b16 %v4583, %v4581
      %v5924 = vpack.c.b16 %v4586, %v4584
      %v5925 = vpack.c.b16 %v4587, %v4585
      %v5926 = vpack.c.b16 %v4590, %v4588
      %v5927 = vpack.c.b16 %v4591, %v4589
      %v5928 = vpack.c.b16 %v4594, %v4592
      %v5929 = vpack.c.b16 %v4595, %v4593
      %v5930 = vpack.c.b16 %v4598, %v4596
      %v5931 = vpack.c.b16 %v4599, %v4597
      %v5932 = vpack.c.b16 %v4602, %v4600
      %v5933 = vpack.c.b16 %v4603, %v4601
      %v5934 = vpack.c.b16 %v4606, %v4604
      %v5935 = vpack.c.b16 %v4607, %v4605
      %v5936 = vpack.c.b16 %v4610, %v4608
      %v5937 = vpack.c.b16 %v4611, %v4609
      %v5938 = vpack.c.b16 %v4614, %v4612
      %v5939 = vpack.c.b16 %v4615, %v4613
      %v5940 = vpack.c.b16 %v4618, %v4616
      %v5941 = vpack.c.b16 %v4619, %v4617
      %v5942 = vpack.c.b16 %v4622, %v4620
      %v5943 = vpack.c.b16 %v4623, %v4621
      %v5944 = vpack.c.b16 %v4626, %v4624
      %v5945 = vpack.c.b16 %v4627, %v4625
      %v5946 = vpack.c.b16 %v4630, %v4628
      %v5947 = vpack.c.b16 %v4631, %v4629
      %v5948 = vpack.c.b16 %v4634, %v4632
      %v5949 = vpack.c.b16 %v4635, %v4633
      %v5950 = vpack.c.b16 %v4638, %v4636
      %v5951 = vpack.c.b16 %v4639, %v4637
      %v5952 = vpack.c.b16 %v4642, %v4640
      %v5953 = vpack.c.b16 %v4643, %v4641
      %v5954 = vpack.c.b16 %v4646, %v4644
      %v5955 = vpack.c.b16 %v4647, %v4645
      %v5956 = vpack.c.b16 %v4650, %v4648
      %v5957 = vpack.c.b16 %v4651, %v4649
      %v5958 = vpack.c.b16 %v4654, %v4652
      %v5959 = vpack.c.b16 %v4655, %v4653
      %v5960 = vpack.c.b16 %v4658, %v4656
      %v5961 = vpack.c.b16 %v4659, %v4657
      %v5962 = vpack.c.b16 %v4662, %v4660
      %v5963 = vpack.c.b16 %v4663, %v4661
      %v5964 = vpack.c.b16 %v4666, %v4664
      %v5965 = vpack.c.b16 %v4667, %v4665
      %v5966 = vpack.c.b16 %v4670, %v4668
      %v5967 = vpack.c.b16 %v4671, %v4669
      %v5968 = vpack.c.b16 %v4674, %v4672
      %v5969 = vpack.c.b16 %v4675, %v4673
      %v5970 = vpack.c.b16 %v4678, %v4676
      %v5971 = vpack.c.b16 %v4679, %v4677
      %v5972 = vpack.c.b16 %v4682, %v4680
      %v5973 = vpack.c.b16 %v4683, %v4681
      %v5974 = vpack.c.b16 %v4686, %v4684
      %v5975 = vpack.c.b16 %v4687, %v4685
      %v5976 = vpack.c.b16 %v4690, %v4688
      %v5977 = vpack.c.b16 %v4691, %v4689
      %v5978 = vpack.c.b16 %v4694, %v4692
      %v5979 = vpack.c.b16 %v4695, %v4693
      %v5980 = vpack.c.b16 %v4698, %v4696
      %v5981 = vpack.c.b16 %v4699, %v4697
      %v5982 = vpack.c.b16 %v4702, %v4700
      %v5983 = vpack.c.b16 %v4703, %v4701
      %v5984 = vpack.c.b16 %v4706, %v4704
      %v5985 = vpack.c.b16 %v4707, %v4705
      %v5986 = vpack.c.b16 %v4710, %v4708
      %v5987 = vpack.c.b16 %v4711, %v4709
      %v5988 = vpack.c.b16 %v4714, %v4712
      %v5989 = vpack.c.b16 %v4715, %v4713
      %v5990 = vpack.c.b16 %v4718, %v4716
      %v5991 = vpack.c.b16 %v4719, %v4717
      %v5992 = vpack.c.b16 %v4722, %v4720
      %v5993 = vpack.c.b16 %v4723, %v4721
      %v5994 = vpack.c.b16 %v4726, %v4724
      %v5995 = vpack.c.b16 %v4727, %v4725
      %v5996 = vpack.c.b16 %v4730, %v4728
      %v5997 = vpack.c.b16 %v4731, %v4729
      %v5998 = vpack.c.b16 %v4734, %v4732
      %v5999 = vpack.c.b16 %v4735, %v4733
      %v6000 = vpack.c.b16 %v4738, %v4736
      %v6001 = vpack.c.b16 %v4739, %v4737
      %v6002 = vpack.c.b16 %v4742, %v4740
      %v6003 = vpack.c.b16 %v4743, %v4741
      %v6004 = vpack.c.b16 %v4746, %v4744
      %v6005 = vpack.c.b16 %v4747, %v4745
      %v6006 = vpack.c.b16 %v4750, %v4748
      %v6007 = vpack.c.b16 %v4751, %v4749
      %v6008 = vpack.c.b16 %v4754, %v4752
      %v6009 = vpack.c.b16 %v4755, %v4753
      %v6010 = vpack.c.b16 %v4758, %v4756
      %v6011 = vpack.c.b16 %v4759, %v4757
      %v6012 = vpack.c.b16 %v4762, %v4760
      %v6013 = vpack.c.b16 %v4763, %v4761
      %v6014 = vpack.c.b16 %v4766, %v4764
      %v6015 = vpack.c.b16 %v4767, %v4765
      %v6016 = vpack.c.b16 %v4770, %v4768
      %v6017 = vpack.c.b16 %v4771, %v4769
      %v6018 = vpack.c.b16 %v4774, %v4772
      %v6019 = vpack.c.b16 %v4775, %v4773
      %v6020 = vpack.c.b16 %v4778, %v4776
      %v6021 = vpack.c.b16 %v4779, %v4777
      %v6022 = vpack.c.b16 %v4782, %v4780
      %v6023 = vpack.c.b16 %v4783, %v4781
      %v6024 = vpack.c.b16 %v4786, %v4784
      %v6025 = vpack.c.b16 %v4787, %v4785
      %v6026 = vpack.c.b16 %v4790, %v4788
      %v6027 = vpack.c.b16 %v4791, %v4789
      %v6028 = vpack.c.b16 %v4794, %v4792
      %v6029 = vpack.c.b16 %v4795, %v4793
      %v6030 = vpack.c.b16 %v4798, %v4796
      %v6031 = vpack.c.b16 %v4799, %v4797
      %v6032 = vpack.c.b16 %v4802, %v4800
      %v6033 = vpack.c.b16 %v4803, %v4801
      %v6034 = vpack.c.b16 %v4806, %v4804
      %v6035 = vpack.c.b16 %v4807, %v4805
      %v6036 = vpack.c.b16 %v4810, %v4808
      %v6037 = vpack.c.b16 %v4811, %v4809
      %v6038 = vpack.c.b16 %v4814, %v4812
      %v6039 = vpack.c.b16 %v4815, %v4813
      %v6040 = vpack.c.b16 %v4818, %v4816
      %v6041 = vpack.c.b16 %v4819, %v4817
      %v6042 = vpack.c.b16 %v4822, %v4820
      %v6043 = vpack.c.b16 %v4823, %v4821
      %v6044 = vpack.c.b16 %v4826, %v4824
      %v6045 = vpack.c.b16 %v4827, %v4825
      %v6046 = vpack.c.b16 %v4830, %v4828
      %v6047 = vpack.c.b16 %v4831, %v4829
      %v6048 = vpack.c.b16 %v4834, %v4832
      %v6049 = vpack.c.b16 %v4835, %v4833
      %v6050 = vpack.c.b16 %v4838, %v4836
      %v6051 = vpack.c.b16 %v4839, %v4837
      %v6052 = vpack.c.b16 %v4842, %v4840
      %v6053 = vpack.c.b16 %v4843, %v4841
      %v6054 = vpack.c.b16 %v4846, %v4844
      %v6055 = vpack.c.b16 %v4847, %v4845
      %v6056 = vpack.c.b16 %v4850, %v4848
      %v6057 = vpack.c.b16 %v4851, %v4849
      %v6058 = vpack.c.b16 %v4854, %v4852
      %v6059 = vpack.c.b16 %v4855, %v4853
      %v6060 = vpack.c.b16 %v4858, %v4856
      %v6061 = vpack.c.b16 %v4859, %v4857
      %v6062 = vpack.c.b16 %v4862, %v4860
      %v6063 = vpack.c.b16 %v4863, %v4861
      %v6064 = vpack.c.b16 %v4866, %v4864
      %v6065 = vpack.c.b16 %v4867, %v4865
      %v6066 = vpack.c.b16 %v4870, %v4868
      %v6067 = vpack.c.b16 %v4871, %v4869
      %v6068 = vpack.c.b16 %v4874, %v4872
      %v6069 = vpack.c.b16 %v4875, %v4873
      %v6070 = vpack.c.b16 %v4878, %v4876
      %v6071 = vpack.c.b16 %v4879, %v4877
      %v6072 = vpack.c.b16 %v4882, %v4880
      %v6073 = vpack.c.b16 %v4883, %v4881
      %v6074 = vpack.c.b16 %v4886, %v4884
      %v6075 = vpack.c.b16 %v4887, %v4885
      %v6076 = vpack.c.b16 %v4890, %v4888
      %v6077 = vpack.c.b16 %v4891, %v4889
      %v6078 = vpack.c.b16 %v4894, %v4892
      %v6079 = vpack.c.b16 %v4895, %v4893
      %v6080 = vpack.c.b16 %v4898, %v4896
      %v6081 = vpack.c.b16 %v4899, %v4897
      %v6082 = vpack.c.b16 %v4902, %v4900
      %v6083 = vpack.c.b16 %v4903, %v4901
      %v6084 = vpack.c.b16 %v4906, %v4904
      %v6085 = vpack.c.b16 %v4907, %v4905
      %v6086 = vpack.c.b16 %v4910, %v4908
      %v6087 = vpack.c.b16 %v4911, %v4909
      %v6088 = vpack.c.b16 %v4914, %v4912
      %v6089 = vpack.c.b16 %v4915, %v4913
      %v6090 = vpack.c.b16 %v4918, %v4916
      %v6091 = vpack.c.b16 %v4919, %v4917
      %v6092 = vpack.c.b16 %v4922, %v4920
      %v6093 = vpack.c.b16 %v4923, %v4921
      %v6094 = vpack.c.b16 %v4926, %v4924
      %v6095 = vpack.c.b16 %v4927, %v4925
      %v6096 = vpack.c.b16 %v4930, %v4928
      %v6097 = vpack.c.b16 %v4931, %v4929
      %v6098 = vpack.c.b16 %v4934, %v4932
      %v6099 = vpack.c.b16 %v4935, %v4933
      %v6100 = vpack.c.b16 %v4938, %v4936
      %v6101 = vpack.c.b16 %v4939, %v4937
      %v6102 = vpack.c.b16 %v4942, %v4940
      %v6103 = vpack.c.b16 %v4943, %v4941
      %v6104 = vpack.c.b16 %v4946, %v4944
      %v6105 = vpack.c.b16 %v4947, %v4945
      %v6106 = vpack.c.b16 %v4950, %v4948
      %v6107 = vpack.c.b16 %v4951, %v4949
      %v6108 = vpack.c.b16 %v4954, %v4952
      %v6109 = vpack.c.b16 %v4955, %v4953
      %v6110 = vpack.c.b16 %v4958, %v4956
      %v6111 = vpack.c.b16 %v4959, %v4957
      %v6112 = vpack.c.b16 %v4962, %v4960
      %v6113 = vpack.c.b16 %v4963, %v4961
      %v6114 = vpack.c.b16 %v4966, %v4964
      %v6115 = vpack.c.b16 %v4967, %v4965
      %v6116 = vpack.c.b16 %v4970, %v4968
      %v6117 = vpack.c.b16 %v4971, %v4969
      %v6118 = vpack.c.b16 %v4974, %v4972
      %v6119 = vpack.c.b16 %v4975, %v4973
      %v6120 = vpack.c.b16 %v4978, %v4976
      %v6121 = vpack.c.b16 %v4979, %v4977
      %v6122 = vpack.c.b16 %v4982, %v4980
      %v6123 = vpack.c.b16 %v4983, %v4981
      %v6124 = vpack.c.b16 %v4986, %v4984
      %v6125 = vpack.c.b16 %v4987, %v4985
      %v6126 = vpack.c.b16 %v4990, %v4988
      %v6127 = vpack.c.b16 %v4991, %v4989
      %v6128 = vpack.c.b16 %v4994, %v4992
      %v6129 = vpack.c.b16 %v4995, %v4993
      %v6130 = vpack.c.b16 %v4998, %v4996
      %v6131 = vpack.c.b16 %v4999, %v4997
      %v6132 = vpack.c.b16 %v5002, %v5000
      %v6133 = vpack.c.b16 %v5003, %v5001
      %v6134 = vpack.c.b16 %v5006, %v5004
      %v6135 = vpack.c.b16 %v5007, %v5005
      %v6136 = vpack.c.b16 %v5010, %v5008
      %v6137 = vpack.c.b16 %v5011, %v5009
      %v6138 = vpack.c.b16 %v5014, %v5012
      %v6139 = vpack.c.b16 %v5015, %v5013
      %v6140 = vpack.c.b16 %v5018, %v5016
      %v6141 = vpack.c.b16 %v5019, %v5017
      %v6142 = vpack.c.b16 %v5022, %v5020
      %v6143 = vpack.c.b16 %v5023, %v5021
      %v6144 = vpack.c.b16 %v5026, %v5024
      %v6145 = vpack.c.b16 %v5027, %v5025
      %v6146 = vpack.c.b16 %v5030, %v5028
      %v6147 = vpack.c.b16 %v5031, %v5029
      %v6148 = vpack.c.b16 %v5034, %v5032
      %v6149 = vpack.c.b16 %v5035, %v5033
      %v6150 = vpack.c.b16 %v5038, %v5036
      %v6151 = vpack.c.b16 %v5039, %v5037
      %v6152 = vpack.c.b16 %v5042, %v5040
      %v6153 = vpack.c.b16 %v5043, %v5041
      %v6154 = vpack.c.b16 %v5046, %v5044
      %v6155 = vpack.c.b16 %v5047, %v5045
      %v6156 = vpack.c.b16 %v5050, %v5048
      %v6157 = vpack.c.b16 %v5051, %v5049
      %v6158 = vpack.c.b16 %v5054, %v5052
      %v6159 = vpack.c.b16 %v5055, %v5053
      %v6160 = vpack.c.b16 %v5058, %v5056
      %v6161 = vpack.c.b16 %v5059, %v5057
      %v6162 = vpack.c.b16 %v5062, %v5060
      %v6163 = vpack.c.b16 %v5063, %v5061
      %v6164 = vpack.c.b16 %v5066, %v5064
      %v6165 = vpack.c.b16 %v5067, %v5065
      %v6166 = vpack.c.b16 %v5070, %v5068
      %v6167 = vpack.c.b16 %v5071, %v5069
      %v6168 = vpack.c.b16 %v5074, %v5072
      %v6169 = vpack.c.b16 %v5075, %v5073
      %v6170 = vpack.c.b16 %v5078, %v5076
      %v6171 = vpack.c.b16 %v5079, %v5077
      %v6172 = vpack.c.b16 %v5082, %v5080
      %v6173 = vpack.c.b16 %v5083, %v5081
      %v6174 = vpack.c.b16 %v5086, %v5084
      %v6175 = vpack.c.b16 %v5087, %v5085
      %v6176 = vpack.c.b16 %v5090, %v5088
      %v6177 = vpack.c.b16 %v5091, %v5089
      %v6178 = vpack.c.b16 %v5094, %v5092
      %v6179 = vpack.c.b16 %v5095, %v5093
      %v6180 = vpack.c.b16 %v5098, %v5096
      %v6181 = vpack.c.b16 %v5099, %v5097
      %v6182 = vpack.c.b16 %v5102, %v5100
      %v6183 = vpack.c.b16 %v5103, %v5101
      %v6184 = vpack.c.b16 %v5106, %v5104
      %v6185 = vpack.c.b16 %v5107, %v5105
      %v6186 = vpack.c.b16 %v5110, %v5108
      %v6187 = vpack.c.b16 %v5111, %v5109
      %v6188 = vpack.c.b16 %v5114, %v5112
      %v6189 = vpack.c.b16 %v5115, %v5113
      %v6190 = vpack.c.b16 %v5118, %v5116
      %v6191 = vpack.c.b16 %v5119, %v5117
      %v6192 = vpack.c.b16 %v5122, %v5120
      %v6193 = vpack.c.b16 %v5123, %v5121
      %v6194 = vpack.c.b16 %v5126, %v5124
      %v6195 = vpack.c.b16 %v5127, %v5125
      %v6196 = vpack.c.b16 %v5130, %v5128
      %v6197 = vpack.c.b16 %v5131, %v5129
      %v6198 = vpack.c.b16 %v5134, %v5132
      %v6199 = vpack.c.b16 %v5135, %v5133
      %v6200 = vpack.c.b16 %v5138, %v5136
      %v6201 = vpack.c.b16 %v5139, %v5137
      %v6202 = vpack.c.b16 %v5142, %v5140
      %v6203 = vpack.c.b16 %v5143, %v5141
      %v6204 = vpack.c.b16 %v5146, %v5144
      %v6205 = vpack.c.b16 %v5147, %v5145
      %v6206 = vpack.c.b16 %v5150, %v5148
      %v6207 = vpack.c.b16 %v5151, %v5149
      %v6208 = vpack.c.b16 %v5154, %v5152
      %v6209 = vpack.c.b16 %v5155, %v5153
      %v6210 = vpack.c.b16 %v5158, %v5156
      %v6211 = vpack.c.b16 %v5159, %v5157
      %v6212 = vpack.c.b16 %v5162, %v5160
      %v6213 = vpack.c.b16 %v5163, %v5161
      %v6214 = vpack.c.b16 %v5166, %v5164
      %v6215 = vpack.c.b16 %v5167, %v5165
      %v6216 = vpack.c.b16 %v5170, %v5168
      %v6217 = vpack.c.b16 %v5171, %v5169
      %v6218 = vpack.c.b16 %v5174, %v5172
      %v6219 = vpack.c.b16 %v5175, %v5173
      %v6220 = vpack.c.b16 %v5178, %v5176
      %v6221 = vpack.c.b16 %v5179, %v5177
      %v6222 = vpack.c.b16 %v5182, %v5180
      %v6223 = vpack.c.b16 %v5183, %v5181
      %v6224 = vpack.c.b16 %v5186, %v5184
      %v6225 = vpack.c.b16 %v5187, %v5185
      %v6226 = vpack.c.b16 %v5190, %v5188
      %v6227 = vpack.c.b16 %v5191, %v5189
      %v6228 = vpack.c.b16 %v5194, %v5192
      %v6229 = vpack.c.b16 %v5195, %v5193
      %v6230 = vpack.c.b16 %v5198, %v5196
      %v6231 = vpack.c.b16 %v5199, %v5197
      %v6232 = vpack.c.b16 %v5202, %v5200
      %v6233 = vpack.c.b16 %v5203, %v5201
      %v6234 = vpack.c.b16 %v5206, %v5204
      %v6235 = vpack.c.b16 %v5207, %v5205
      %v6236 = vpack.c.b16 %v5210, %v5208
      %v6237 = vpack.c.b16 %v5211, %v5209
      %v6238 = vpack.c.b16 %v5214, %v5212
      %v6239 = vpack.c.b16 %v5215, %v5213
      %v6240 = vpack.c.b16 %v5218, %v5216
      %v6241 = vpack.c.b16 %v5219, %v5217
      %v6242 = vpack.c.b16 %v5222, %v5220
      %v6243 = vpack.c.b16 %v5223, %v5221
      %v6244 = vpack.c.b16 %v5226, %v5224
      %v6245 = vpack.c.b16 %v5227, %v5225
      %v6246 = vpack.c.b16 %v5230, %v5228
      %v6247 = vpack.c.b16 %v5231, %v5229
      %v6248 = vpack.c.b16 %v5234, %v5232
      %v6249 = vpack.c.b16 %v5235, %v5233
      %v6250 = vpack.c.b16 %v5238, %v5236
      %v6251 = vpack.c.b16 %v5239, %v5237
      %v6252 = vpack.c.b16 %v5242, %v5240
      %v6253 = vpack.c.b16 %v5243, %v5241
      %v6254 = vpack.c.b16 %v5246, %v5244
      %v6255 = vpack.c.b16 %v5247, %v5245
      %v6256 = vpack.c.b16 %v5250, %v5248
      %v6257 = vpack.c.b16 %v5251, %v5249
      %v6258 = vpack.c.b16 %v5254, %v5252
      %v6259 = vpack.c.b16 %v5255, %v5253
      %v6260 = vpack.c.b16 %v5258, %v5256
      %v6261 = vpack.c.b16 %v5259, %v5257
      %v6262 = vpack.c.b16 %v5262, %v5260
      %v6263 = vpack.c.b16 %v5263, %v5261
      %v6264 = vpack.c.b16 %v5266, %v5264
      %v6265 = vpack.c.b16 %v5267, %v5265
      %v6266 = vpack.c.b16 %v5270, %v5268
      %v6267 = vpack.c.b16 %v5271, %v5269
      %v6268 = vpack.c.b16 %v5274, %v5272
      %v6269 = vpack.c.b16 %v5275, %v5273
      %v6270 = vpack.c.b16 %v5278, %v5276
      %v6271 = vpack.c.b16 %v5279, %v5277
      %v6272 = vpack.c.b16 %v5282, %v5280
      %v6273 = vpack.c.b16 %v5283, %v5281
      %v6274 = vpack.c.b16 %v5286, %v5284
      %v6275 = vpack.c.b16 %v5287, %v5285
      %v6276 = vpack.c.b16 %v5290, %v5288
      %v6277 = vpack.c.b16 %v5291, %v5289
      %v6278 = vpack.c.b16 %v5294, %v5292
      %v6279 = vpack.c.b16 %v5295, %v5293
      %v6280 = vpack.c.b16 %v5298, %v5296
      %v6281 = vpack.c.b16 %v5299, %v5297
      %v6282 = vpack.c.b16 %v5302, %v5300
      %v6283 = vpack.c.b16 %v5303, %v5301
      %v6284 = vpack.c.b16 %v5306, %v5304
      %v6285 = vpack.c.b16 %v5307, %v5305
      %v6286 = vpack.c.b16 %v5310, %v5308
      %v6287 = vpack.c.b16 %v5311, %v5309
      %v6288 = vpack.c.b16 %v5314, %v5312
      %v6289 = vpack.c.b16 %v5315, %v5313
      %v6290 = vpack.c.b16 %v5318, %v5316
      %v6291 = vpack.c.b16 %v5319, %v5317
      %v6292 = vpack.c.b16 %v5322, %v5320
      %v6293 = vpack.c.b16 %v5323, %v5321
      %v6294 = vpack.c.b16 %v5326, %v5324
      %v6295 = vpack.c.b16 %v5327, %v5325
      %v6296 = vpack.c.b16 %v5330, %v5328
      %v6297 = vpack.c.b16 %v5331, %v5329
      %v6298 = vpack.c.b16 %v5334, %v5332
      %v6299 = vpack.c.b16 %v5335, %v5333
      %v6300 = vpack.c.b16 %v5338, %v5336
      %v6301 = vpack.c.b16 %v5339, %v5337
      %v6302 = vpack.c.b16 %v5342, %v5340
      %v6303 = vpack.c.b16 %v5343, %v5341
      %v6304 = vpack.c.b16 %v5346, %v5344
      %v6305 = vpack.c.b16 %v5347, %v5345
      %v6306 = vpack.c.b16 %v5350, %v5348
      %v6307 = vpack.c.b16 %v5351, %v5349
      %v6308 = vpack.c.b16 %v5354, %v5352
      %v6309 = vpack.c.b16 %v5355, %v5353
      %v6310 = vpack.c.b16 %v5358, %v5356
      %v6311 = vpack.c.b16 %v5359, %v5357
      %v6312 = vpack.c.b16 %v5362, %v5360
      %v6313 = vpack.c.b16 %v5363, %v5361
      %v6314 = vpack.c.b16 %v5366, %v5364
      %v6315 = vpack.c.b16 %v5367, %v5365
      %v6316 = vpack.c.b16 %v5370, %v5368
      %v6317 = vpack.c.b16 %v5371, %v5369
      %v6318 = vpack.c.b16 %v5374, %v5372
      %v6319 = vpack.c.b16 %v5375, %v5373
      %v6320 = vpack.c.b16 %v5378, %v5376
      %v6321 = vpack.c.b16 %v5379, %v5377
      %v6322 = vpack.c.b16 %v5382, %v5380
      %v6323 = vpack.c.b16 %v5383, %v5381
      %v6324 = vpack.c.b16 %v5386, %v5384
      %v6325 = vpack.c.b16 %v5387, %v5385
      %v6326 = vpack.c.b16 %v5390, %v5388
      %v6327 = vpack.c.b16 %v5391, %v5389
      %v6328 = vpack.c.b16 %v5394, %v5392
      %v6329 = vpack.c.b16 %v5395, %v5393
      %v6330 = vpack.c.b16 %v5398, %v5396
      %v6331 = vpack.c.b16 %v5399, %v5397
      %v6332 = vpack.c.b16 %v5402, %v5400
      %v6333 = vpack.c.b16 %v5403, %v5401
      %v6334 = vpack.c.b16 %v5406, %v5404
      %v6335 = vpack.c.b16 %v5407, %v5405
      %v6336 = vpack.c.b16 %v5410, %v5408
      %v6337 = vpack.c.b16 %v5411, %v5409
      %v6338 = vpack.c.b16 %v5414, %v5412
      %v6339 = vpack.c.b16 %v5415, %v5413
      %v6340 = vpack.c.b16 %v5418, %v5416
      %v6341 = vpack.c.b16 %v5419, %v5417
      %v6342 = vpack.c.b16 %v5422, %v5420
      %v6343 = vpack.c.b16 %v5423, %v5421
      %v6344 = vpack.c.b16 %v5426, %v5424
      %v6345 = vpack.c.b16 %v5427, %v5425
      %v6346 = vpack.c.b16 %v5430, %v5428
      %v6347 = vpack.c.b16 %v5431, %v5429
      %v6348 = vpack.c.b16 %v5434, %v5432
      %v6349 = vpack.c.b16 %v5435, %v5433
      %v6350 = vpack.c.b16 %v5438, %v5436
      %v6351 = vpack.c.b16 %v5439, %v5437
      %v6352 = vpack.c.b16 %v5442, %v5440
      %v6353 = vpack.c.b16 %v5443, %v5441
      %v6354 = vpack.c.b16 %v5446, %v5444
      %v6355 = vpack.c.b16 %v5447, %v5445
      %v6356 = vpack.c.b16 %v5450, %v5448
      %v6357 = vpack.c.b16 %v5451, %v5449
      %v6358 = vpack.c.b16 %v5454, %v5452
      %v6359 = vpack.c.b16 %v5455, %v5453
      %v6360 = vpack.c.b16 %v5458, %v5456
      %v6361 = vpack.c.b16 %v5459, %v5457
      %v6362 = vpack.c.b16 %v5462, %v5460
      %v6363 = vpack.c.b16 %v5463, %v5461
      %v6364 = vpack.c.b16 %v5466, %v5464
      %v6365 = vpack.c.b16 %v5467, %v5465
      %v6366 = vpack.c.b16 %v5470, %v5468
      %v6367 = vpack.c.b16 %v5471, %v5469
      %v6368 = vpack.c.b16 %v5474, %v5472
      %v6369 = vpack.c.b16 %v5475, %v5473
      %v6370 = vpack.c.b16 %v5478, %v5476
      %v6371 = vpack.c.b16 %v5479, %v5477
      %v6372 = vpack.c.b16 %v5482, %v5480
      %v6373 = vpack.c.b16 %v5483, %v5481
      %v6374 = vpack.c.b16 %v5486, %v5484
      %v6375 = vpack.c.b16 %v5487, %v5485
      %v6376 = vpack.c.b16 %v5490, %v5488
      %v6377 = vpack.c.b16 %v5491, %v5489
      %v6378 = vpack.c.b16 %v5494, %v5492
      %v6379 = vpack.c.b16 %v5495, %v5493
      %v6380 = vpack.c.b16 %v5498, %v5496
      %v6381 = vpack.c.b16 %v5499, %v5497
      %v6382 = vpack.c.b16 %v5502, %v5500
      %v6383 = vpack.c.b16 %v5503, %v5501
      %v6384 = vpack.c.b16 %v5506, %v5504
      %v6385 = vpack.c.b16 %v5507, %v5505
      %v6386 = vpack.c.b16 %v5510, %v5508
      %v6387 = vpack.c.b16 %v5511, %v5509
      %v6388 = vpack.c.b16 %v5514, %v5512
      %v6389 = vpack.c.b16 %v5515, %v5513
      %v6390 = vpack.c.b16 %v5518, %v5516
      %v6391 = vpack.c.b16 %v5519, %v5517
      %v6392 = vpack.c.b16 %v5522, %v5520
      %v6393 = vpack.c.b16 %v5523, %v5521
      %v6394 = vpack.c.b16 %v5526, %v5524
      %v6395 = vpack.c.b16 %v5527, %v5525
      %v6396 = vpack.c.b16 %v5530, %v5528
      %v6397 = vpack.c.b16 %v5531, %v5529
      %v6398 = vpack.c.b16 %v5534, %v5532
      %v6399 = vpack.c.b16 %v5535, %v5533
      %v6400 = vpack.c.b16 %v5538, %v5536
      %v6401 = vpack.c.b16 %v5539, %v5537
      %v6402 = vpack.c.b16 %v5542, %v5540
      %v6403 = vpack.c.b16 %v5543, %v5541
      %v6404 = vpack.c.b16 %v5546, %v5544
      %v6405 = vpack.c.b16 %v5547, %v5545
      %v6406 = vpack.c.b16 %v5550, %v5548
      %v6407 = vpack.c.b16 %v5551, %v5549
      %v6408 = vpack.c.b16 %v5554, %v5552
      %v6409 = vpack.c.b16 %v5555, %v5553
      %v6410 = vpack.c.b16 %v5558, %v5556
      %v6411 = vpack.c.b16 %v5559, %v5557
      %v6412 = vpack.c.b16 %v5562, %v5560
      %v6413 = vpack.c.b16 %v5563, %v5561
      %v6414 = vpack.c.b16 %v5566, %v5564
      %v6415 = vpack.c.b16 %v5567, %v5565
      %v6416 = vpack.c.b16 %v5570, %v5568
      %v6417 = vpack.c.b16 %v5571, %v5569
      %v6418 = vpack.c.b16 %v5574, %v5572
      %v6419 = vpack.c.b16 %v5575, %v5573
      %v6420 = vpack.c.b16 %v5578, %v5576
      %v6421 = vpack.c.b16 %v5579, %v5577
      %v6422 = vpack.c.b16 %v5582, %v5580
      %v6423 = vpack.c.b16 %v5583, %v5581
      %v6424 = vpack.c.b16 %v5586, %v5584
      %v6425 = vpack.c.b16 %v5587, %v5585
      %v6426 = vpack.c.b16 %v5590, %v5588
      %v6427 = vpack.c.b16 %v5591, %v5589
      %v6428 = vpack.c.b16 %v5594, %v5592
      %v6429 = vpack.c.b16 %v5595, %v5593
      %v6430 = vpack.c.b16 %v5598, %v5596
      %v6431 = vpack.c.b16 %v5599, %v5597
      %v6432 = vpack.c.b16 %v5602, %v5600
      %v6433 = vpack.c.b16 %v5603, %v5601
      %v6434 = vpack.c.b16 %v5606, %v5604
      %v6435 = vpack.c.b16 %v5607, %v5605
      %v6436 = vpack.c.b16 %v5610, %v5608
      %v6437 = vpack.c.b16 %v5611, %v5609
      %v6438 = vpack.c.b16 %v5614, %v5612
      %v6439 = vpack.c.b16 %v5615, %v5613
      %v6440 = vpack.c.b16 %v5618, %v5616
      %v6441 = vpack.c.b16 %v5619, %v5617
      %v6442 = vpack.c.b16 %v5622, %v5620
      %v6443 = vpack.c.b16 %v5623, %v5621
      %v6444 = vpack.c.b16 %v5626, %v5624
      %v6445 = vpack.c.b16 %v5627, %v5625
      %v6446 = vpack.c.b16 %v5630, %v5628
      %v6447 = vpack.c.b16 %v5631, %v5629
      %v6448 = vpack.c.b16 %v5634, %v5632
      %v6449 = vpack.c.b16 %v5635, %v5633
      %v6450 = vpack.c.b16 %v5638, %v5636
      %v6451 = vpack.c.b16 %v5639, %v5637
      %v6452 = vpack.c.b16 %v5642, %v5640
      %v6453 = vpack.c.b16 %v5643, %v5641
      %v6454 = vpack.c.b16 %v5646, %v5644
      %v6455 = vpack.c.b16 %v5647, %v5645
      %v6456 = vpack.c.b16 %v5650, %v5648
      %v6457 = vpack.c.b16 %v5651, %v5649
      %v6458 = vpack.c.b16 %v5654, %v5652
      %v6459 = vpack.c.b16 %v5655, %v5653
      %v6460 = vpack.c.b16 %v5658, %v5656
      %v6461 = vpack.c.b16 %v5659, %v5657
      %v6462 = vpack.c.b16 %v5662, %v5660
      %v6463 = vpack.c.b16 %v5663, %v5661
      %v6464 = vpack.c.b16 %v5666, %v5664
      %v6465 = vpack.c.b16 %v5667, %v5665
      %v6466 = vpack.c.b16 %v5670, %v5668
      %v6467 = vpack.c.b16 %v5671, %v5669
      %v6468 = vpack.c.b16 %v5674, %v5672
      %v6469 = vpack.c.b16 %v5675, %v5673
      %v6470 = vpack.c.b16 %v5678, %v5676
      %v6471 = vpack.c.b16 %v5679, %v5677
      %v6472 = vpack.c.b16 %v5682, %v5680
      %v6473 = vpack.c.b16 %v5683, %v5681
      %v6474 = vpack.c.b16 %v5686, %v5684
      %v6475 = vpack.c.b16 %v5687, %v5685
      %v6476 = vpack.c.b16 %v5690, %v5688
      %v6477 = vpack.c.b16 %v5691, %v5689
      %v6478 = vpack.c.b16 %v5694, %v5692
      %v6479 = vpack.c.b16 %v5695, %v5693
      %7264 = vmatprep.subr.bf16.mxu0 %v5697
      %7265 = vmatpush1.bf16.msra.mxu0 %v5696
      %7266 = vmatprep.subr.bf16.mxu0 %v5699
      %7267 = vmatpush1.bf16.msra.mxu0 %v5698
      %7268 = vmatprep.subr.bf16.mxu0 %v5701
      %7269 = vmatpush1.bf16.msra.mxu0 %v5700
      %7270 = vmatprep.subr.bf16.mxu0 %v5703
      %7271 = vmatpush1.bf16.msra.mxu0 %v5702
      %7272 = vmatprep.subr.bf16.mxu0 %v5705
      %7273 = vmatpush1.bf16.msra.mxu0 %v5704
      %7274 = vmatprep.subr.bf16.mxu0 %v5707
      %7275 = vmatpush1.bf16.msra.mxu0 %v5706
      %7276 = vmatprep.subr.bf16.mxu0 %v5709
      %7277 = vmatpush1.bf16.msra.mxu0 %v5708
      %7278 = vmatprep.subr.bf16.mxu0 %v5711
      %7279 = vmatpush1.bf16.msra.mxu0 %v5710
      %7280 = vmatprep.subr.bf16.mxu0 %v5713
      %7281 = vmatpush1.bf16.msra.mxu0 %v5712
      %7282 = vmatprep.subr.bf16.mxu0 %v5715
      %7283 = vmatpush1.bf16.msra.mxu0 %v5714
      %7284 = vmatprep.subr.bf16.mxu0 %v5717
      %7285 = vmatpush1.bf16.msra.mxu0 %v5716
      %7286 = vmatprep.subr.bf16.mxu0 %v5719
      %7287 = vmatpush1.bf16.msra.mxu0 %v5718
      %7288 = vmatprep.subr.bf16.mxu0 %v5721
      %7289 = vmatpush1.bf16.msra.mxu0 %v5720
      %7290 = vmatprep.subr.bf16.mxu0 %v5723
      %7291 = vmatpush1.bf16.msra.mxu0 %v5722
      %7292 = vmatprep.subr.bf16.mxu0 %v5725
      %7293 = vmatpush1.bf16.msra.mxu0 %v5724
      %7294 = vmatprep.subr.bf16.mxu0 %v5727
      %7295 = vmatpush1.bf16.msra.mxu0 %v5726
      %7296 = vmatprep.mubr.bf16.mxu0 %v2561
      %7297 = vmatmul.mubr.bf16.gmra.mrb[0].mxu0 %v2560
      %v7298 = vpop.f32.mrb[0].mxu0
      %v7299 = vadd.f32 %v1369, %v7298
      %v7300 = vpop.f32.mrb[0].mxu0
      %v7301 = vadd.f32 %v1373, %v7300
      %v7302 = vpop.f32.mrb[0].mxu0
      %v7303 = vadd.f32 %v1369, %v7302
      %v7304 = vpop.f32.mrb[0].mxu0
      %v7305 = vadd.f32 %v1373, %v7304
      %7306 = vmatprep.mubr.bf16.mxu0 %v2610
      %7307 = vmatmul.mubr.bf16.gmra.mrb[0].mxu0 %v2609
      %v7308 = vpop.f32.mrb[0].mxu0
      %v7309 = vadd.f32 %v1369, %v7308
      %v7310 = vpop.f32.mrb[0].mxu0
      %v7311 = vadd.f32 %v1373, %v7310
      %v7312 = vpop.f32.mrb[0].mxu0
      %v7313 = vadd.f32 %v1369, %v7312
      %v7314 = vpop.f32.mrb[0].mxu0
      %v7315 = vadd.f32 %v1373, %v7314
      %7316 = vmatprep.mubr.bf16.mxu0 %v2659
      %7317 = vmatmul.mubr.bf16.gmra.mrb[0].mxu0 %v2658
      %v7318 = vpop.f32.mrb[0].mxu0
      %v7319 = vadd.f32 %v1369, %v7318
      %v7320 = vpop.f32.mrb[0].mxu0
      %v7321 = vadd.f32 %v1373, %v7320
      %v7322 = vpop.f32.mrb[0].mxu0
      %v7323 = vadd.f32 %v1369, %v7322
      %v7324 = vpop.f32.mrb[0].mxu0
      %v7325 = vadd.f32 %v1373, %v7324
      %7326 = vmatprep.mubr.bf16.mxu0 %v2708
      %7327 = vmatmul.mubr.bf16.gmra.mrb[0].mxu0 %v2707
      %v7328 = vpop.f32.mrb[0].mxu0
      %v7329 = vadd.f32 %v1369, %v7328
      %v7330 = vpop.f32.mrb[0].mxu0
      %v7331 = vadd.f32 %v1373, %v7330
      %v7332 = vpop.f32.mrb[0].mxu0
      %v7333 = vadd.f32 %v1369, %v7332
      %v7334 = vpop.f32.mrb[0].mxu0
      %v7335 = vadd.f32 %v1373, %v7334
      %7336 = vmatprep.mubr.bf16.mxu0 %v2757
      %7337 = vmatmul.mubr.bf16.gmra.mrb[0].mxu0 %v2756
      %v7338 = vpop.f32.mrb[0].mxu0
      %v7339 = vadd.f32 %v1369, %v7338
      %v7340 = vpop.f32.mrb[0].mxu0
      %v7341 = vadd.f32 %v1373, %v7340
      %v7342 = vpop.f32.mrb[0].mxu0
      %v7343 = vadd.f32 %v1369, %v7342
      %v7344 = vpop.f32.mrb[0].mxu0
      %v7345 = vadd.f32 %v1373, %v7344
      %7346 = vmatprep.mubr.bf16.mxu0 %v2806
      %7347 = vmatmul.mubr.bf16.gmra.mrb[0].mxu0 %v2805
      %v7348 = vpop.f32.mrb[0].mxu0
      %v7349 = vadd.f32 %v1369, %v7348
      %v7350 = vpop.f32.mrb[0].mxu0
      %v7351 = vadd.f32 %v1373, %v7350
      %v7352 = vpop.f32.mrb[0].mxu0
      %v7353 = vadd.f32 %v1369, %v7352
      %v7354 = vpop.f32.mrb[0].mxu0
      %v7355 = vadd.f32 %v1373, %v7354
      %7356 = vmatprep.mubr.bf16.mxu0 %v2855
      %7357 = vmatmul.mubr.bf16.gmra.mrb[0].mxu0 %v2854
      %v7358 = vpop.f32.mrb[0].mxu0
      %v7359 = vadd.f32 %v1369, %v7358
      %v7360 = vpop.f32.mrb[0].mxu0
      %v7361 = vadd.f32 %v1373, %v7360
      %v7362 = vpop.f32.mrb[0].mxu0
      %v7363 = vadd.f32 %v1369, %v7362
      %v7364 = vpop.f32.mrb[0].mxu0
      %v7365 = vadd.f32 %v1373, %v7364
      %7366 = vmatprep.mubr.bf16.mxu0 %v2904
      %7367 = vmatmul.mubr.bf16.gmra.mrb[0].mxu0 %v2903
      %v7368 = vpop.f32.mrb[0].mxu0
      %v7369 = vadd.f32 %v1369, %v7368
      %v7370 = vpop.f32.mrb[0].mxu0
      %v7371 = vadd.f32 %v1373, %v7370
      %v7372 = vpop.f32.mrb[0].mxu0
      %v7373 = vadd.f32 %v1369, %v7372
      %v7374 = vpop.f32.mrb[0].mxu0
      %v7375 = vadd.f32 %v1373, %v7374
      %7376 = vdwg.mxu0
      %7377 = vmatprep.subr.bf16.mxu0 %v5729
      %7378 = vmatpush1.bf16.msra.mxu0 %v5728
      %7379 = vmatprep.subr.bf16.mxu0 %v5731
      %7380 = vmatpush1.bf16.msra.mxu0 %v5730
      %7381 = vmatprep.subr.bf16.mxu0 %v5733
      %7382 = vmatpush1.bf16.msra.mxu0 %v5732
      %7383 = vmatprep.subr.bf16.mxu0 %v5735
      %7384 = vmatpush1.bf16.msra.mxu0 %v5734
      %7385 = vmatprep.subr.bf16.mxu0 %v5737
      %7386 = vmatpush1.bf16.msra.mxu0 %v5736
      %7387 = vmatprep.subr.bf16.mxu0 %v5739
      %7388 = vmatpush1.bf16.msra.mxu0 %v5738
      %7389 = vmatprep.subr.bf16.mxu0 %v5741
      %7390 = vmatpush1.bf16.msra.mxu0 %v5740
      %7391 = vmatprep.subr.bf16.mxu0 %v5743
      %7392 = vmatpush1.bf16.msra.mxu0 %v5742
      %7393 = vmatprep.subr.bf16.mxu0 %v5745
      %7394 = vmatpush1.bf16.msra.mxu0 %v5744
      %7395 = vmatprep.subr.bf16.mxu0 %v5747
      %7396 = vmatpush1.bf16.msra.mxu0 %v5746
      %7397 = vmatprep.subr.bf16.mxu0 %v5749
      %7398 = vmatpush1.bf16.msra.mxu0 %v5748
      %7399 = vmatprep.subr.bf16.mxu0 %v5751
      %7400 = vmatpush1.bf16.msra.mxu0 %v5750
      %7401 = vmatprep.subr.bf16.mxu0 %v5753
      %7402 = vmatpush1.bf16.msra.mxu0 %v5752
      %7403 = vmatprep.subr.bf16.mxu0 %v5755
      %7404 = vmatpush1.bf16.msra.mxu0 %v5754
      %7405 = vmatprep.subr.bf16.mxu0 %v5757
      %7406 = vmatpush1.bf16.msra.mxu0 %v5756
      %7407 = vmatprep.subr.bf16.mxu0 %v5759
      %7408 = vmatpush1.bf16.msra.mxu0 %v5758
      %7409 = vmatprep.mubr.bf16.mxu0 %v2563
      %7410 = vmatmul.mubr.bf16.gmra.mrb[0].mxu0 %v2562
      %v7411 = vpop.f32.mrb[0].mxu0
      %v7412 = vadd.f32 %v7299, %v7411
      %v7413 = vpop.f32.mrb[0].mxu0
      %v7414 = vadd.f32 %v7301, %v7413
      %v7415 = vpop.f32.mrb[0].mxu0
      %v7416 = vadd.f32 %v7303, %v7415
      %v7417 = vpop.f32.mrb[0].mxu0
      %v7418 = vadd.f32 %v7305, %v7417
      %7419 = vmatprep.mubr.bf16.mxu0 %v2612
      %7420 = vmatmul.mubr.bf16.gmra.mrb[0].mxu0 %v2611
      %v7421 = vpop.f32.mrb[0].mxu0
      %v7422 = vadd.f32 %v7309, %v7421
      %v7423 = vpop.f32.mrb[0].mxu0
      %v7424 = vadd.f32 %v7311, %v7423
      %v7425 = vpop.f32.mrb[0].mxu0
      %v7426 = vadd.f32 %v7313, %v7425
      %v7427 = vpop.f32.mrb[0].mxu0
      %v7428 = vadd.f32 %v7315, %v7427
      %7429 = vmatprep.mubr.bf16.mxu0 %v2661
      %7430 = vmatmul.mubr.bf16.gmra.mrb[0].mxu0 %v2660
      %v7431 = vpop.f32.mrb[0].mxu0
      %v7432 = vadd.f32 %v7319, %v7431
      %v7433 = vpop.f32.mrb[0].mxu0
      %v7434 = vadd.f32 %v7321, %v7433
      %v7435 = vpop.f32.mrb[0].mxu0
      %v7436 = vadd.f32 %v7323, %v7435
      %v7437 = vpop.f32.mrb[0].mxu0
      %v7438 = vadd.f32 %v7325, %v7437
      %7439 = vmatprep.mubr.bf16.mxu0 %v2710
      %7440 = vmatmul.mubr.bf16.gmra.mrb[0].mxu0 %v2709
      %v7441 = vpop.f32.mrb[0].mxu0
      %v7442 = vadd.f32 %v7329, %v7441
      %v7443 = vpop.f32.mrb[0].mxu0
      %v7444 = vadd.f32 %v7331, %v7443
      %v7445 = vpop.f32.mrb[0].mxu0
      %v7446 = vadd.f32 %v7333, %v7445
      %v7447 = vpop.f32.mrb[0].mxu0
      %v7448 = vadd.f32 %v7335, %v7447
      %7449 = vmatprep.mubr.bf16.mxu0 %v2759
      %7450 = vmatmul.mubr.bf16.gmra.mrb[0].mxu0 %v2758
      %v7451 = vpop.f32.mrb[0].mxu0
      %v7452 = vadd.f32 %v7339, %v7451
      %v7453 = vpop.f32.mrb[0].mxu0
      %v7454 = vadd.f32 %v7341, %v7453
      %v7455 = vpop.f32.mrb[0].mxu0
      %v7456 = vadd.f32 %v7343, %v7455
      %v7457 = vpop.f32.mrb[0].mxu0
      %v7458 = vadd.f32 %v7345, %v7457
      %7459 = vmatprep.mubr.bf16.mxu0 %v2808
      %7460 = vmatmul.mubr.bf16.gmra.mrb[0].mxu0 %v2807
      %v7461 = vpop.f32.mrb[0].mxu0
      %v7462 = vadd.f32 %v7349, %v7461
      %v7463 = vpop.f32.mrb[0].mxu0
      %v7464 = vadd.f32 %v7351, %v7463
      %v7465 = vpop.f32.mrb[0].mxu0
      %v7466 = vadd.f32 %v7353, %v7465
      %v7467 = vpop.f32.mrb[0].mxu0
      %v7468 = vadd.f32 %v7355, %v7467
      %7469 = vmatprep.mubr.bf16.mxu0 %v2857
      %7470 = vmatmul.mubr.bf16.gmra.mrb[0].mxu0 %v2856
      %v7471 = vpop.f32.mrb[0].mxu0
      %v7472 = vadd.f32 %v7359, %v7471
      %v7473 = vpop.f32.mrb[0].mxu0
      %v7474 = vadd.f32 %v7361, %v7473
      %v7475 = vpop.f32.mrb[0].mxu0
      %v7476 = vadd.f32 %v7363, %v7475
      %v7477 = vpop.f32.mrb[0].mxu0
      %v7478 = vadd.f32 %v7365, %v7477
      %7479 = vmatprep.mubr.bf16.mxu0 %v2906
      %7480 = vmatmul.mubr.bf16.gmra.mrb[0].mxu0 %v2905
      %v7481 = vpop.f32.mrb[0].mxu0
      %v7482 = vadd.f32 %v7369, %v7481
      %v7483 = vpop.f32.mrb[0].mxu0
      %v7484 = vadd.f32 %v7371, %v7483
      %v7485 = vpop.f32.mrb[0].mxu0
      %v7486 = vadd.f32 %v7373, %v7485
      %v7487 = vpop.f32.mrb[0].mxu0
      %v7488 = vadd.f32 %v7375, %v7487
      %7489 = vdwg.mxu0
      %7490 = vmatprep.subr.bf16.mxu0 %v5761
      %7491 = vmatpush1.bf16.msra.mxu0 %v5760
      %7492 = vmatprep.subr.bf16.mxu0 %v5763
      %7493 = vmatpush1.bf16.msra.mxu0 %v5762
      %7494 = vmatprep.subr.bf16.mxu0 %v5765
      %7495 = vmatpush1.bf16.msra.mxu0 %v5764
      %7496 = vmatprep.subr.bf16.mxu0 %v5767
      %7497 = vmatpush1.bf16.msra.mxu0 %v5766
      %7498 = vmatprep.subr.bf16.mxu0 %v5769
      %7499 = vmatpush1.bf16.msra.mxu0 %v5768
      %7500 = vmatprep.subr.bf16.mxu0 %v5771
      %7501 = vmatpush1.bf16.msra.mxu0 %v5770
      %7502 = vmatprep.subr.bf16.mxu0 %v5773
      %7503 = vmatpush1.bf16.msra.mxu0 %v5772
      %7504 = vmatprep.subr.bf16.mxu0 %v5775
      %7505 = vmatpush1.bf16.msra.mxu0 %v5774
      %7506 = vmatprep.subr.bf16.mxu0 %v5777
      %7507 = vmatpush1.bf16.msra.mxu0 %v5776
      %7508 = vmatprep.subr.bf16.mxu0 %v5779
      %7509 = vmatpush1.bf16.msra.mxu0 %v5778
      %7510 = vmatprep.subr.bf16.mxu0 %v5781
      %7511 = vmatpush1.bf16.msra.mxu0 %v5780
      %7512 = vmatprep.subr.bf16.mxu0 %v5783
      %7513 = vmatpush1.bf16.msra.mxu0 %v5782
      %7514 = vmatprep.subr.bf16.mxu0 %v5785
      %7515 = vmatpush1.bf16.msra.mxu0 %v5784
      %7516 = vmatprep.subr.bf16.mxu0 %v5787
      %7517 = vmatpush1.bf16.msra.mxu0 %v5786
      %7518 = vmatprep.subr.bf16.mxu0 %v5789
      %7519 = vmatpush1.bf16.msra.mxu0 %v5788
      %7520 = vmatprep.subr.bf16.mxu0 %v5791
      %7521 = vmatpush1.bf16.msra.mxu0 %v5790
      %7522 = vmatprep.mubr.bf16.mxu0 %v2565
      %7523 = vmatmul.mubr.bf16.gmra.mrb[0].mxu0 %v2564
      %v7524 = vpop.f32.mrb[0].mxu0
      %v7525 = vadd.f32 %v7412, %v7524
      %v7526 = vpop.f32.mrb[0].mxu0
      %v7527 = vadd.f32 %v7414, %v7526
      %v7528 = vpop.f32.mrb[0].mxu0
      %v7529 = vadd.f32 %v7416, %v7528
      %v7530 = vpop.f32.mrb[0].mxu0
      %v7531 = vadd.f32 %v7418, %v7530
      %7532 = vmatprep.mubr.bf16.mxu0 %v2614
      %7533 = vmatmul.mubr.bf16.gmra.mrb[0].mxu0 %v2613
      %v7534 = vpop.f32.mrb[0].mxu0
      %v7535 = vadd.f32 %v7422, %v7534
      %v7536 = vpop.f32.mrb[0].mxu0
      %v7537 = vadd.f32 %v7424, %v7536
      %v7538 = vpop.f32.mrb[0].mxu0
      %v7539 = vadd.f32 %v7426, %v7538
      %v7540 = vpop.f32.mrb[0].mxu0
      %v7541 = vadd.f32 %v7428, %v7540
      %7542 = vmatprep.mubr.bf16.mxu0 %v2663
      %7543 = vmatmul.mubr.bf16.gmra.mrb[0].mxu0 %v2662
      %v7544 = vpop.f32.mrb[0].mxu0
      %v7545 = vadd.f32 %v7432, %v7544
      %v7546 = vpop.f32.mrb[0].mxu0
      %v7547 = vadd.f32 %v7434, %v7546
      %v7548 = vpop.f32.mrb[0].mxu0
      %v7549 = vadd.f32 %v7436, %v7548
      %v7550 = vpop.f32.mrb[0].mxu0
      %v7551 = vadd.f32 %v7438, %v7550
      %7552 = vmatprep.mubr.bf16.mxu0 %v2712
      %7553 = vmatmul.mubr.bf16.gmra.mrb[0].mxu0 %v2711
      %v7554 = vpop.f32.mrb[0].mxu0
      %v7555 = vadd.f32 %v7442, %v7554
      %v7556 = vpop.f32.mrb[0].mxu0
      %v7557 = vadd.f32 %v7444, %v7556
      %v7558 = vpop.f32.mrb[0].mxu0
      %v7559 = vadd.f32 %v7446, %v7558
      %v7560 = vpop.f32.mrb[0].mxu0
      %v7561 = vadd.f32 %v7448, %v7560
      %7562 = vmatprep.mubr.bf16.mxu0 %v2761
      %7563 = vmatmul.mubr.bf16.gmra.mrb[0].mxu0 %v2760
      %v7564 = vpop.f32.mrb[0].mxu0
      %v7565 = vadd.f32 %v7452, %v7564
      %v7566 = vpop.f32.mrb[0].mxu0
      %v7567 = vadd.f32 %v7454, %v7566
      %v7568 = vpop.f32.mrb[0].mxu0
      %v7569 = vadd.f32 %v7456, %v7568
      %v7570 = vpop.f32.mrb[0].mxu0
      %v7571 = vadd.f32 %v7458, %v7570
      %7572 = vmatprep.mubr.bf16.mxu0 %v2810
      %7573 = vmatmul.mubr.bf16.gmra.mrb[0].mxu0 %v2809
      %v7574 = vpop.f32.mrb[0].mxu0
      %v7575 = vadd.f32 %v7462, %v7574
      %v7576 = vpop.f32.mrb[0].mxu0
      %v7577 = vadd.f32 %v7464, %v7576
      %v7578 = vpop.f32.mrb[0].mxu0
      %v7579 = vadd.f32 %v7466, %v7578
      %v7580 = vpop.f32.mrb[0].mxu0
      %v7581 = vadd.f32 %v7468, %v7580
      %7582 = vmatprep.mubr.bf16.mxu0 %v2859
      %7583 = vmatmul.mubr.bf16.gmra.mrb[0].mxu0 %v2858
      %v7584 = vpop.f32.mrb[0].mxu0
      %v7585 = vadd.f32 %v7472, %v7584
      %v7586 = vpop.f32.mrb[0].mxu0
      %v7587 = vadd.f32 %v7474, %v7586
      %v7588 = vpop.f32.mrb[0].mxu0
      %v7589 = vadd.f32 %v7476, %v7588
      %v7590 = vpop.f32.mrb[0].mxu0
      %v7591 = vadd.f32 %v7478, %v7590
      %7592 = vmatprep.mubr.bf16.mxu0 %v2908
      %7593 = vmatmul.mubr.bf16.gmra.mrb[0].mxu0 %v2907
      %v7594 = vpop.f32.mrb[0].mxu0
      %v7595 = vadd.f32 %v7482, %v7594
      %v7596 = vpop.f32.mrb[0].mxu0
      %v7597 = vadd.f32 %v7484, %v7596
      %v7598 = vpop.f32.mrb[0].mxu0
      %v7599 = vadd.f32 %v7486, %v7598
      %v7600 = vpop.f32.mrb[0].mxu0
      %v7601 = vadd.f32 %v7488, %v7600
      %7602 = vdwg.mxu0
      %7603 = vmatprep.subr.bf16.mxu0 %v5793
      %7604 = vmatpush1.bf16.msra.mxu0 %v5792
      %7605 = vmatprep.subr.bf16.mxu0 %v5795
      %7606 = vmatpush1.bf16.msra.mxu0 %v5794
      %7607 = vmatprep.subr.bf16.mxu0 %v5797
      %7608 = vmatpush1.bf16.msra.mxu0 %v5796
      %7609 = vmatprep.subr.bf16.mxu0 %v5799
      %7610 = vmatpush1.bf16.msra.mxu0 %v5798
      %7611 = vmatprep.subr.bf16.mxu0 %v5801
      %7612 = vmatpush1.bf16.msra.mxu0 %v5800
      %7613 = vmatprep.subr.bf16.mxu0 %v5803
      %7614 = vmatpush1.bf16.msra.mxu0 %v5802
      %7615 = vmatprep.subr.bf16.mxu0 %v5805
      %7616 = vmatpush1.bf16.msra.mxu0 %v5804
      %7617 = vmatprep.subr.bf16.mxu0 %v5807
      %7618 = vmatpush1.bf16.msra.mxu0 %v5806
      %7619 = vmatprep.subr.bf16.mxu0 %v5809
      %7620 = vmatpush1.bf16.msra.mxu0 %v5808
      %7621 = vmatprep.subr.bf16.mxu0 %v5811
      %7622 = vmatpush1.bf16.msra.mxu0 %v5810
      %7623 = vmatprep.subr.bf16.mxu0 %v5813
      %7624 = vmatpush1.bf16.msra.mxu0 %v5812
      %7625 = vmatprep.subr.bf16.mxu0 %v5815
      %7626 = vmatpush1.bf16.msra.mxu0 %v5814
      %7627 = vmatprep.subr.bf16.mxu0 %v5817
      %7628 = vmatpush1.bf16.msra.mxu0 %v5816
      %7629 = vmatprep.subr.bf16.mxu0 %v5819
      %7630 = vmatpush1.bf16.msra.mxu0 %v5818
      %7631 = vmatprep.subr.bf16.mxu0 %v5821
      %7632 = vmatpush1.bf16.msra.mxu0 %v5820
      %7633 = vmatprep.subr.bf16.mxu0 %v5823
      %7634 = vmatpush1.bf16.msra.mxu0 %v5822
      %7635 = vmatprep.mubr.bf16.mxu0 %v2567
      %7636 = vmatmul.mubr.bf16.gmra.mrb[0].mxu0 %v2566
      %v7637 = vpop.f32.mrb[0].mxu0
      %v7638 = vadd.f32 %v7525, %v7637
      %v7639 = vpop.f32.mrb[0].mxu0
      %v7640 = vadd.f32 %v7527, %v7639
      %v7641 = vpop.f32.mrb[0].mxu0
      %v7642 = vadd.f32 %v7529, %v7641
      %v7643 = vpop.f32.mrb[0].mxu0
      %v7644 = vadd.f32 %v7531, %v7643
      %7645 = vmatprep.mubr.bf16.mxu0 %v2616
      %7646 = vmatmul.mubr.bf16.gmra.mrb[0].mxu0 %v2615
      %v7647 = vpop.f32.mrb[0].mxu0
      %v7648 = vadd.f32 %v7535, %v7647
      %v7649 = vpop.f32.mrb[0].mxu0
      %v7650 = vadd.f32 %v7537, %v7649
      %v7651 = vpop.f32.mrb[0].mxu0
      %v7652 = vadd.f32 %v7539, %v7651
      %v7653 = vpop.f32.mrb[0].mxu0
      %v7654 = vadd.f32 %v7541, %v7653
      %7655 = vmatprep.mubr.bf16.mxu0 %v2665
      %7656 = vmatmul.mubr.bf16.gmra.mrb[0].mxu0 %v2664
      %v7657 = vpop.f32.mrb[0].mxu0
      %v7658 = vadd.f32 %v7545, %v7657
      %v7659 = vpop.f32.mrb[0].mxu0
      %v7660 = vadd.f32 %v7547, %v7659
      %v7661 = vpop.f32.mrb[0].mxu0
      %v7662 = vadd.f32 %v7549, %v7661
      %v7663 = vpop.f32.mrb[0].mxu0
      %v7664 = vadd.f32 %v7551, %v7663
      %7665 = vmatprep.mubr.bf16.mxu0 %v2714
      %7666 = vmatmul.mubr.bf16.gmra.mrb[0].mxu0 %v2713
      %v7667 = vpop.f32.mrb[0].mxu0
      %v7668 = vadd.f32 %v7555, %v7667
      %v7669 = vpop.f32.mrb[0].mxu0
      %v7670 = vadd.f32 %v7557, %v7669
      %v7671 = vpop.f32.mrb[0].mxu0
      %v7672 = vadd.f32 %v7559, %v7671
      %v7673 = vpop.f32.mrb[0].mxu0
      %v7674 = vadd.f32 %v7561, %v7673
      %7675 = vmatprep.mubr.bf16.mxu0 %v2763
      %7676 = vmatmul.mubr.bf16.gmra.mrb[0].mxu0 %v2762
      %v7677 = vpop.f32.mrb[0].mxu0
      %v7678 = vadd.f32 %v7565, %v7677
      %v7679 = vpop.f32.mrb[0].mxu0
      %v7680 = vadd.f32 %v7567, %v7679
      %v7681 = vpop.f32.mrb[0].mxu0
      %v7682 = vadd.f32 %v7569, %v7681
      %v7683 = vpop.f32.mrb[0].mxu0
      %v7684 = vadd.f32 %v7571, %v7683
      %7685 = vmatprep.mubr.bf16.mxu0 %v2812
      %7686 = vmatmul.mubr.bf16.gmra.mrb[0].mxu0 %v2811
      %v7687 = vpop.f32.mrb[0].mxu0
      %v7688 = vadd.f32 %v7575, %v7687
      %v7689 = vpop.f32.mrb[0].mxu0
      %v7690 = vadd.f32 %v7577, %v7689
      %v7691 = vpop.f32.mrb[0].mxu0
      %v7692 = vadd.f32 %v7579, %v7691
      %v7693 = vpop.f32.mrb[0].mxu0
      %v7694 = vadd.f32 %v7581, %v7693
      %7695 = vmatprep.mubr.bf16.mxu0 %v2861
      %7696 = vmatmul.mubr.bf16.gmra.mrb[0].mxu0 %v2860
      %v7697 = vpop.f32.mrb[0].mxu0
      %v7698 = vadd.f32 %v7585, %v7697
      %v7699 = vpop.f32.mrb[0].mxu0
      %v7700 = vadd.f32 %v7587, %v7699
      %v7701 = vpop.f32.mrb[0].mxu0
      %v7702 = vadd.f32 %v7589, %v7701
      %v7703 = vpop.f32.mrb[0].mxu0
      %v7704 = vadd.f32 %v7591, %v7703
      %7705 = vmatprep.mubr.bf16.mxu0 %v2910
      %7706 = vmatmul.mubr.bf16.gmra.mrb[0].mxu0 %v2909
      %v7707 = vpop.f32.mrb[0].mxu0
      %v7708 = vadd.f32 %v7595, %v7707
      %v7709 = vpop.f32.mrb[0].mxu0
      %v7710 = vadd.f32 %v7597, %v7709
      %v7711 = vpop.f32.mrb[0].mxu0
      %v7712 = vadd.f32 %v7599, %v7711
      %v7713 = vpop.f32.mrb[0].mxu0
      %v7714 = vadd.f32 %v7601, %v7713
      %7715 = vdwg.mxu0
      %7716 = vmatprep.subr.bf16.mxu0 %v5825
      %7717 = vmatpush1.bf16.msra.mxu0 %v5824
      %7718 = vmatprep.subr.bf16.mxu0 %v5827
      %7719 = vmatpush1.bf16.msra.mxu0 %v5826
      %7720 = vmatprep.subr.bf16.mxu0 %v5829
      %7721 = vmatpush1.bf16.msra.mxu0 %v5828
      %7722 = vmatprep.subr.bf16.mxu0 %v5831
      %7723 = vmatpush1.bf16.msra.mxu0 %v5830
      %7724 = vmatprep.subr.bf16.mxu0 %v5833
      %7725 = vmatpush1.bf16.msra.mxu0 %v5832
      %7726 = vmatprep.subr.bf16.mxu0 %v5835
      %7727 = vmatpush1.bf16.msra.mxu0 %v5834
      %7728 = vmatprep.subr.bf16.mxu0 %v5837
      %7729 = vmatpush1.bf16.msra.mxu0 %v5836
      %7730 = vmatprep.subr.bf16.mxu0 %v5839
      %7731 = vmatpush1.bf16.msra.mxu0 %v5838
      %7732 = vmatprep.subr.bf16.mxu0 %v5841
      %7733 = vmatpush1.bf16.msra.mxu0 %v5840
      %7734 = vmatprep.subr.bf16.mxu0 %v5843
      %7735 = vmatpush1.bf16.msra.mxu0 %v5842
      %7736 = vmatprep.subr.bf16.mxu0 %v5845
      %7737 = vmatpush1.bf16.msra.mxu0 %v5844
      %7738 = vmatprep.subr.bf16.mxu0 %v5847
      %7739 = vmatpush1.bf16.msra.mxu0 %v5846
      %7740 = vmatprep.subr.bf16.mxu0 %v5849
      %7741 = vmatpush1.bf16.msra.mxu0 %v5848
      %7742 = vmatprep.subr.bf16.mxu0 %v5851
      %7743 = vmatpush1.bf16.msra.mxu0 %v5850
      %7744 = vmatprep.subr.bf16.mxu0 %v5853
      %7745 = vmatpush1.bf16.msra.mxu0 %v5852
      %7746 = vmatprep.subr.bf16.mxu0 %v5855
      %7747 = vmatpush1.bf16.msra.mxu0 %v5854
      %7748 = vmatprep.mubr.bf16.mxu0 %v2569
      %7749 = vmatmul.mubr.bf16.gmra.mrb[0].mxu0 %v2568
      %v7750 = vpop.f32.mrb[0].mxu0
      %v7751 = vadd.f32 %v7638, %v7750
      %v7752 = vpop.f32.mrb[0].mxu0
      %v7753 = vadd.f32 %v7640, %v7752
      %v7754 = vpop.f32.mrb[0].mxu0
      %v7755 = vadd.f32 %v7642, %v7754
      %v7756 = vpop.f32.mrb[0].mxu0
      %v7757 = vadd.f32 %v7644, %v7756
      %7758 = vmatprep.mubr.bf16.mxu0 %v2618
      %7759 = vmatmul.mubr.bf16.gmra.mrb[0].mxu0 %v2617
      %v7760 = vpop.f32.mrb[0].mxu0
      %v7761 = vadd.f32 %v7648, %v7760
      %v7762 = vpop.f32.mrb[0].mxu0
      %v7763 = vadd.f32 %v7650, %v7762
      %v7764 = vpop.f32.mrb[0].mxu0
      %v7765 = vadd.f32 %v7652, %v7764
      %v7766 = vpop.f32.mrb[0].mxu0
      %v7767 = vadd.f32 %v7654, %v7766
      %7768 = vmatprep.mubr.bf16.mxu0 %v2667
      %7769 = vmatmul.mubr.bf16.gmra.mrb[0].mxu0 %v2666
      %v7770 = vpop.f32.mrb[0].mxu0
      %v7771 = vadd.f32 %v7658, %v7770
      %v7772 = vpop.f32.mrb[0].mxu0
      %v7773 = vadd.f32 %v7660, %v7772
      %v7774 = vpop.f32.mrb[0].mxu0
      %v7775 = vadd.f32 %v7662, %v7774
      %v7776 = vpop.f32.mrb[0].mxu0
      %v7777 = vadd.f32 %v7664, %v7776
      %7778 = vmatprep.mubr.bf16.mxu0 %v2716
      %7779 = vmatmul.mubr.bf16.gmra.mrb[0].mxu0 %v2715
      %v7780 = vpop.f32.mrb[0].mxu0
      %v7781 = vadd.f32 %v7668, %v7780
      %v7782 = vpop.f32.mrb[0].mxu0
      %v7783 = vadd.f32 %v7670, %v7782
      %v7784 = vpop.f32.mrb[0].mxu0
      %v7785 = vadd.f32 %v7672, %v7784
      %v7786 = vpop.f32.mrb[0].mxu0
      %v7787 = vadd.f32 %v7674, %v7786
      %7788 = vmatprep.mubr.bf16.mxu0 %v2765
      %7789 = vmatmul.mubr.bf16.gmra.mrb[0].mxu0 %v2764
      %v7790 = vpop.f32.mrb[0].mxu0
      %v7791 = vadd.f32 %v7678, %v7790
      %v7792 = vpop.f32.mrb[0].mxu0
      %v7793 = vadd.f32 %v7680, %v7792
      %v7794 = vpop.f32.mrb[0].mxu0
      %v7795 = vadd.f32 %v7682, %v7794
      %v7796 = vpop.f32.mrb[0].mxu0
      %v7797 = vadd.f32 %v7684, %v7796
      %7798 = vmatprep.mubr.bf16.mxu0 %v2814
      %7799 = vmatmul.mubr.bf16.gmra.mrb[0].mxu0 %v2813
      %v7800 = vpop.f32.mrb[0].mxu0
      %v7801 = vadd.f32 %v7688, %v7800
      %v7802 = vpop.f32.mrb[0].mxu0
      %v7803 = vadd.f32 %v7690, %v7802
      %v7804 = vpop.f32.mrb[0].mxu0
      %v7805 = vadd.f32 %v7692, %v7804
      %v7806 = vpop.f32.mrb[0].mxu0
      %v7807 = vadd.f32 %v7694, %v7806
      %7808 = vmatprep.mubr.bf16.mxu0 %v2863
      %7809 = vmatmul.mubr.bf16.gmra.mrb[0].mxu0 %v2862
      %v7810 = vpop.f32.mrb[0].mxu0
      %v7811 = vadd.f32 %v7698, %v7810
      %v7812 = vpop.f32.mrb[0].mxu0
      %v7813 = vadd.f32 %v7700, %v7812
      %v7814 = vpop.f32.mrb[0].mxu0
      %v7815 = vadd.f32 %v7702, %v7814
      %v7816 = vpop.f32.mrb[0].mxu0
      %v7817 = vadd.f32 %v7704, %v7816
      %7818 = vmatprep.mubr.bf16.mxu0 %v2912
      %7819 = vmatmul.mubr.bf16.gmra.mrb[0].mxu0 %v2911
      %v7820 = vpop.f32.mrb[0].mxu0
      %v7821 = vadd.f32 %v7708, %v7820
      %v7822 = vpop.f32.mrb[0].mxu0
      %v7823 = vadd.f32 %v7710, %v7822
      %v7824 = vpop.f32.mrb[0].mxu0
      %v7825 = vadd.f32 %v7712, %v7824
      %v7826 = vpop.f32.mrb[0].mxu0
      %v7827 = vadd.f32 %v7714, %v7826
      %7828 = vdwg.mxu0
      %7829 = vmatprep.subr.bf16.mxu0 %v5857
      %7830 = vmatpush1.bf16.msra.mxu0 %v5856
      %7831 = vmatprep.subr.bf16.mxu0 %v5859
      %7832 = vmatpush1.bf16.msra.mxu0 %v5858
      %7833 = vmatprep.subr.bf16.mxu0 %v5861
      %7834 = vmatpush1.bf16.msra.mxu0 %v5860
      %7835 = vmatprep.subr.bf16.mxu0 %v5863
      %7836 = vmatpush1.bf16.msra.mxu0 %v5862
      %7837 = vmatprep.subr.bf16.mxu0 %v5865
      %7838 = vmatpush1.bf16.msra.mxu0 %v5864
      %7839 = vmatprep.subr.bf16.mxu0 %v5867
      %7840 = vmatpush1.bf16.msra.mxu0 %v5866
      %7841 = vmatprep.subr.bf16.mxu0 %v5869
      %7842 = vmatpush1.bf16.msra.mxu0 %v5868
      %7843 = vmatprep.subr.bf16.mxu0 %v5871
      %7844 = vmatpush1.bf16.msra.mxu0 %v5870
      %7845 = vmatprep.subr.bf16.mxu0 %v5873
      %7846 = vmatpush1.bf16.msra.mxu0 %v5872
      %7847 = vmatprep.subr.bf16.mxu0 %v5875
      %7848 = vmatpush1.bf16.msra.mxu0 %v5874
      %7849 = vmatprep.subr.bf16.mxu0 %v5877
      %7850 = vmatpush1.bf16.msra.mxu0 %v5876
      %7851 = vmatprep.subr.bf16.mxu0 %v5879
      %7852 = vmatpush1.bf16.msra.mxu0 %v5878
      %7853 = vmatprep.subr.bf16.mxu0 %v5881
      %7854 = vmatpush1.bf16.msra.mxu0 %v5880
      %7855 = vmatprep.subr.bf16.mxu0 %v5883
      %7856 = vmatpush1.bf16.msra.mxu0 %v5882
      %7857 = vmatprep.subr.bf16.mxu0 %v5885
      %7858 = vmatpush1.bf16.msra.mxu0 %v5884
      %7859 = vmatprep.subr.bf16.mxu0 %v5887
      %7860 = vmatpush1.bf16.msra.mxu0 %v5886
      %7861 = vmatprep.mubr.bf16.mxu0 %v2571
      %7862 = vmatmul.mubr.bf16.gmra.mrb[0].mxu0 %v2570
      %v7863 = vpop.f32.mrb[0].mxu0
      %v7864 = vadd.f32 %v7751, %v7863
      %v7865 = vpop.f32.mrb[0].mxu0
      %v7866 = vadd.f32 %v7753, %v7865
      %v7867 = vpop.f32.mrb[0].mxu0
      %v7868 = vadd.f32 %v7755, %v7867
      %v7869 = vpop.f32.mrb[0].mxu0
      %v7870 = vadd.f32 %v7757, %v7869
      %7871 = vmatprep.mubr.bf16.mxu0 %v2620
      %7872 = vmatmul.mubr.bf16.gmra.mrb[0].mxu0 %v2619
      %v7873 = vpop.f32.mrb[0].mxu0
      %v7874 = vadd.f32 %v7761, %v7873
      %v7875 = vpop.f32.mrb[0].mxu0
      %v7876 = vadd.f32 %v7763, %v7875
      %v7877 = vpop.f32.mrb[0].mxu0
      %v7878 = vadd.f32 %v7765, %v7877
      %v7879 = vpop.f32.mrb[0].mxu0
      %v7880 = vadd.f32 %v7767, %v7879
      %7881 = vmatprep.mubr.bf16.mxu0 %v2669
      %7882 = vmatmul.mubr.bf16.gmra.mrb[0].mxu0 %v2668
      %v7883 = vpop.f32.mrb[0].mxu0
      %v7884 = vadd.f32 %v7771, %v7883
      %v7885 = vpop.f32.mrb[0].mxu0
      %v7886 = vadd.f32 %v7773, %v7885
      %v7887 = vpop.f32.mrb[0].mxu0
      %v7888 = vadd.f32 %v7775, %v7887
      %v7889 = vpop.f32.mrb[0].mxu0
      %v7890 = vadd.f32 %v7777, %v7889
      %7891 = vmatprep.mubr.bf16.mxu0 %v2718
      %7892 = vmatmul.mubr.bf16.gmra.mrb[0].mxu0 %v2717
      %v7893 = vpop.f32.mrb[0].mxu0
      %v7894 = vadd.f32 %v7781, %v7893
      %v7895 = vpop.f32.mrb[0].mxu0
      %v7896 = vadd.f32 %v7783, %v7895
      %v7897 = vpop.f32.mrb[0].mxu0
      %v7898 = vadd.f32 %v7785, %v7897
      %v7899 = vpop.f32.mrb[0].mxu0
      %v7900 = vadd.f32 %v7787, %v7899
      %7901 = vmatprep.mubr.bf16.mxu0 %v2767
      %7902 = vmatmul.mubr.bf16.gmra.mrb[0].mxu0 %v2766
      %v7903 = vpop.f32.mrb[0].mxu0
      %v7904 = vadd.f32 %v7791, %v7903
      %v7905 = vpop.f32.mrb[0].mxu0
      %v7906 = vadd.f32 %v7793, %v7905
      %v7907 = vpop.f32.mrb[0].mxu0
      %v7908 = vadd.f32 %v7795, %v7907
      %v7909 = vpop.f32.mrb[0].mxu0
      %v7910 = vadd.f32 %v7797, %v7909
      %7911 = vmatprep.mubr.bf16.mxu0 %v2816
      %7912 = vmatmul.mubr.bf16.gmra.mrb[0].mxu0 %v2815
      %v7913 = vpop.f32.mrb[0].mxu0
      %v7914 = vadd.f32 %v7801, %v7913
      %v7915 = vpop.f32.mrb[0].mxu0
      %v7916 = vadd.f32 %v7803, %v7915
      %v7917 = vpop.f32.mrb[0].mxu0
      %v7918 = vadd.f32 %v7805, %v7917
      %v7919 = vpop.f32.mrb[0].mxu0
      %v7920 = vadd.f32 %v7807, %v7919
      %7921 = vmatprep.mubr.bf16.mxu0 %v2865
      %7922 = vmatmul.mubr.bf16.gmra.mrb[0].mxu0 %v2864
      %v7923 = vpop.f32.mrb[0].mxu0
      %v7924 = vadd.f32 %v7811, %v7923
      %v7925 = vpop.f32.mrb[0].mxu0
      %v7926 = vadd.f32 %v7813, %v7925
      %v7927 = vpop.f32.mrb[0].mxu0
      %v7928 = vadd.f32 %v7815, %v7927
      %v7929 = vpop.f32.mrb[0].mxu0
      %v7930 = vadd.f32 %v7817, %v7929
      %7931 = vmatprep.mubr.bf16.mxu0 %v2914
      %7932 = vmatmul.mubr.bf16.gmra.mrb[0].mxu0 %v2913
      %v7933 = vpop.f32.mrb[0].mxu0
      %v7934 = vadd.f32 %v7821, %v7933
      %v7935 = vpop.f32.mrb[0].mxu0
      %v7936 = vadd.f32 %v7823, %v7935
      %v7937 = vpop.f32.mrb[0].mxu0
      %v7938 = vadd.f32 %v7825, %v7937
      %v7939 = vpop.f32.mrb[0].mxu0
      %v7940 = vadd.f32 %v7827, %v7939
      %7941 = vdwg.mxu0
      %7942 = vmatprep.subr.bf16.mxu0 %v5889
      %7943 = vmatpush1.bf16.msra.mxu0 %v5888
      %7944 = vmatprep.subr.bf16.mxu0 %v5891
      %7945 = vmatpush1.bf16.msra.mxu0 %v5890
      %7946 = vmatprep.subr.bf16.mxu0 %v5893
      %7947 = vmatpush1.bf16.msra.mxu0 %v5892
      %7948 = vmatprep.subr.bf16.mxu0 %v5895
      %7949 = vmatpush1.bf16.msra.mxu0 %v5894
      %7950 = vmatprep.subr.bf16.mxu0 %v5897
      %7951 = vmatpush1.bf16.msra.mxu0 %v5896
      %7952 = vmatprep.subr.bf16.mxu0 %v5899
      %7953 = vmatpush1.bf16.msra.mxu0 %v5898
      %7954 = vmatprep.subr.bf16.mxu0 %v5901
      %7955 = vmatpush1.bf16.msra.mxu0 %v5900
      %7956 = vmatprep.subr.bf16.mxu0 %v5903
      %7957 = vmatpush1.bf16.msra.mxu0 %v5902
      %7958 = vmatprep.subr.bf16.mxu0 %v5905
      %7959 = vmatpush1.bf16.msra.mxu0 %v5904
      %7960 = vmatprep.subr.bf16.mxu0 %v5907
      %7961 = vmatpush1.bf16.msra.mxu0 %v5906
      %7962 = vmatprep.subr.bf16.mxu0 %v5909
      %7963 = vmatpush1.bf16.msra.mxu0 %v5908
      %7964 = vmatprep.subr.bf16.mxu0 %v5911
      %7965 = vmatpush1.bf16.msra.mxu0 %v5910
      %7966 = vmatprep.subr.bf16.mxu0 %v5913
      %7967 = vmatpush1.bf16.msra.mxu0 %v5912
      %7968 = vmatprep.subr.bf16.mxu0 %v5915
      %7969 = vmatpush1.bf16.msra.mxu0 %v5914
      %7970 = vmatprep.subr.bf16.mxu0 %v5917
      %7971 = vmatpush1.bf16.msra.mxu0 %v5916
      %7972 = vmatprep.subr.bf16.mxu0 %v5919
      %7973 = vmatpush1.bf16.msra.mxu0 %v5918
      %7974 = vmatprep.mubr.bf16.mxu0 %v2573
      %7975 = vmatmul.mubr.bf16.gmra.mrb[0].mxu0 %v2572
      %v7976 = vpop.f32.mrb[0].mxu0
      %v7977 = vadd.f32 %v7864, %v7976
      %v7978 = vpop.f32.mrb[0].mxu0
      %v7979 = vadd.f32 %v7866, %v7978
      %v7980 = vpop.f32.mrb[0].mxu0
      %v7981 = vadd.f32 %v7868, %v7980
      %v7982 = vpop.f32.mrb[0].mxu0
      %v7983 = vadd.f32 %v7870, %v7982
      %7984 = vmatprep.mubr.bf16.mxu0 %v2622
      %7985 = vmatmul.mubr.bf16.gmra.mrb[0].mxu0 %v2621
      %v7986 = vpop.f32.mrb[0].mxu0
      %v7987 = vadd.f32 %v7874, %v7986
      %v7988 = vpop.f32.mrb[0].mxu0
      %v7989 = vadd.f32 %v7876, %v7988
      %v7990 = vpop.f32.mrb[0].mxu0
      %v7991 = vadd.f32 %v7878, %v7990
      %v7992 = vpop.f32.mrb[0].mxu0
      %v7993 = vadd.f32 %v7880, %v7992
      %7994 = vmatprep.mubr.bf16.mxu0 %v2671
      %7995 = vmatmul.mubr.bf16.gmra.mrb[0].mxu0 %v2670
      %v7996 = vpop.f32.mrb[0].mxu0
      %v7997 = vadd.f32 %v7884, %v7996
      %v7998 = vpop.f32.mrb[0].mxu0
      %v7999 = vadd.f32 %v7886, %v7998
      %v8000 = vpop.f32.mrb[0].mxu0
      %v8001 = vadd.f32 %v7888, %v8000
      %v8002 = vpop.f32.mrb[0].mxu0
      %v8003 = vadd.f32 %v7890, %v8002
      %8004 = vmatprep.mubr.bf16.mxu0 %v2720
      %8005 = vmatmul.mubr.bf16.gmra.mrb[0].mxu0 %v2719
      %v8006 = vpop.f32.mrb[0].mxu0
      %v8007 = vadd.f32 %v7894, %v8006
      %v8008 = vpop.f32.mrb[0].mxu0
      %v8009 = vadd.f32 %v7896, %v8008
      %v8010 = vpop.f32.mrb[0].mxu0
      %v8011 = vadd.f32 %v7898, %v8010
      %v8012 = vpop.f32.mrb[0].mxu0
      %v8013 = vadd.f32 %v7900, %v8012
      %8014 = vmatprep.mubr.bf16.mxu0 %v2769
      %8015 = vmatmul.mubr.bf16.gmra.mrb[0].mxu0 %v2768
      %v8016 = vpop.f32.mrb[0].mxu0
      %v8017 = vadd.f32 %v7904, %v8016
      %v8018 = vpop.f32.mrb[0].mxu0
      %v8019 = vadd.f32 %v7906, %v8018
      %v8020 = vpop.f32.mrb[0].mxu0
      %v8021 = vadd.f32 %v7908, %v8020
      %v8022 = vpop.f32.mrb[0].mxu0
      %v8023 = vadd.f32 %v7910, %v8022
      %8024 = vmatprep.mubr.bf16.mxu0 %v2818
      %8025 = vmatmul.mubr.bf16.gmra.mrb[0].mxu0 %v2817
      %v8026 = vpop.f32.mrb[0].mxu0
      %v8027 = vadd.f32 %v7914, %v8026
      %v8028 = vpop.f32.mrb[0].mxu0
      %v8029 = vadd.f32 %v7916, %v8028
      %v8030 = vpop.f32.mrb[0].mxu0
      %v8031 = vadd.f32 %v7918, %v8030
      %v8032 = vpop.f32.mrb[0].mxu0
      %v8033 = vadd.f32 %v7920, %v8032
      %8034 = vmatprep.mubr.bf16.mxu0 %v2867
      %8035 = vmatmul.mubr.bf16.gmra.mrb[0].mxu0 %v2866
      %v8036 = vpop.f32.mrb[0].mxu0
      %v8037 = vadd.f32 %v7924, %v8036
      %v8038 = vpop.f32.mrb[0].mxu0
      %v8039 = vadd.f32 %v7926, %v8038
      %v8040 = vpop.f32.mrb[0].mxu0
      %v8041 = vadd.f32 %v7928, %v8040
      %v8042 = vpop.f32.mrb[0].mxu0
      %v8043 = vadd.f32 %v7930, %v8042
      %8044 = vmatprep.mubr.bf16.mxu0 %v2916
      %8045 = vmatmul.mubr.bf16.gmra.mrb[0].mxu0 %v2915
      %v8046 = vpop.f32.mrb[0].mxu0
      %v8047 = vadd.f32 %v7934, %v8046
      %v8048 = vpop.f32.mrb[0].mxu0
      %v8049 = vadd.f32 %v7936, %v8048
      %v8050 = vpop.f32.mrb[0].mxu0
      %v8051 = vadd.f32 %v7938, %v8050
      %v8052 = vpop.f32.mrb[0].mxu0
      %v8053 = vadd.f32 %v7940, %v8052
      %8054 = vdwg.mxu0
      %8055 = vmatprep.subr.bf16.mxu0 %v5921
      %8056 = vmatpush1.bf16.msra.mxu0 %v5920
      %8057 = vmatprep.subr.bf16.mxu0 %v5923
      %8058 = vmatpush1.bf16.msra.mxu0 %v5922
      %8059 = vmatprep.subr.bf16.mxu0 %v5925
      %8060 = vmatpush1.bf16.msra.mxu0 %v5924
      %8061 = vmatprep.subr.bf16.mxu0 %v5927
      %8062 = vmatpush1.bf16.msra.mxu0 %v5926
      %8063 = vmatprep.subr.bf16.mxu0 %v5929
      %8064 = vmatpush1.bf16.msra.mxu0 %v5928
      %8065 = vmatprep.subr.bf16.mxu0 %v5931
      %8066 = vmatpush1.bf16.msra.mxu0 %v5930
      %8067 = vmatprep.subr.bf16.mxu0 %v5933
      %8068 = vmatpush1.bf16.msra.mxu0 %v5932
      %8069 = vmatprep.subr.bf16.mxu0 %v5935
      %8070 = vmatpush1.bf16.msra.mxu0 %v5934
      %8071 = vmatprep.subr.bf16.mxu0 %v5937
      %8072 = vmatpush1.bf16.msra.mxu0 %v5936
      %8073 = vmatprep.subr.bf16.mxu0 %v5939
      %8074 = vmatpush1.bf16.msra.mxu0 %v5938
      %8075 = vmatprep.subr.bf16.mxu0 %v5941
      %8076 = vmatpush1.bf16.msra.mxu0 %v5940
      %8077 = vmatprep.subr.bf16.mxu0 %v5943
      %8078 = vmatpush1.bf16.msra.mxu0 %v5942
      %8079 = vmatprep.subr.bf16.mxu0 %v5945
      %8080 = vmatpush1.bf16.msra.mxu0 %v5944
      %8081 = vmatprep.subr.bf16.mxu0 %v5947
      %8082 = vmatpush1.bf16.msra.mxu0 %v5946
      %8083 = vmatprep.subr.bf16.mxu0 %v5949
      %8084 = vmatpush1.bf16.msra.mxu0 %v5948
      %8085 = vmatprep.subr.bf16.mxu0 %v5951
      %8086 = vmatpush1.bf16.msra.mxu0 %v5950
      %8087 = vmatprep.mubr.bf16.mxu0 %v2575
      %8088 = vmatmul.mubr.bf16.gmra.mrb[0].mxu0 %v2574
      %v8089 = vpop.f32.mrb[0].mxu0
      %v8090 = vadd.f32 %v7977, %v8089
      %v8091 = vpop.f32.mrb[0].mxu0
      %v8092 = vadd.f32 %v7979, %v8091
      %v8093 = vpop.f32.mrb[0].mxu0
      %v8094 = vadd.f32 %v7981, %v8093
      %v8095 = vpop.f32.mrb[0].mxu0
      %v8096 = vadd.f32 %v7983, %v8095
      %8097 = vmatprep.mubr.bf16.mxu0 %v2624
      %8098 = vmatmul.mubr.bf16.gmra.mrb[0].mxu0 %v2623
      %v8099 = vpop.f32.mrb[0].mxu0
      %v8100 = vadd.f32 %v7987, %v8099
      %v8101 = vpop.f32.mrb[0].mxu0
      %v8102 = vadd.f32 %v7989, %v8101
      %v8103 = vpop.f32.mrb[0].mxu0
      %v8104 = vadd.f32 %v7991, %v8103
      %v8105 = vpop.f32.mrb[0].mxu0
      %v8106 = vadd.f32 %v7993, %v8105
      %8107 = vmatprep.mubr.bf16.mxu0 %v2673
      %8108 = vmatmul.mubr.bf16.gmra.mrb[0].mxu0 %v2672
      %v8109 = vpop.f32.mrb[0].mxu0
      %v8110 = vadd.f32 %v7997, %v8109
      %v8111 = vpop.f32.mrb[0].mxu0
      %v8112 = vadd.f32 %v7999, %v8111
      %v8113 = vpop.f32.mrb[0].mxu0
      %v8114 = vadd.f32 %v8001, %v8113
      %v8115 = vpop.f32.mrb[0].mxu0
      %v8116 = vadd.f32 %v8003, %v8115
      %8117 = vmatprep.mubr.bf16.mxu0 %v2722
      %8118 = vmatmul.mubr.bf16.gmra.mrb[0].mxu0 %v2721
      %v8119 = vpop.f32.mrb[0].mxu0
      %v8120 = vadd.f32 %v8007, %v8119
      %v8121 = vpop.f32.mrb[0].mxu0
      %v8122 = vadd.f32 %v8009, %v8121
      %v8123 = vpop.f32.mrb[0].mxu0
      %v8124 = vadd.f32 %v8011, %v8123
      %v8125 = vpop.f32.mrb[0].mxu0
      %v8126 = vadd.f32 %v8013, %v8125
      %8127 = vmatprep.mubr.bf16.mxu0 %v2771
      %8128 = vmatmul.mubr.bf16.gmra.mrb[0].mxu0 %v2770
      %v8129 = vpop.f32.mrb[0].mxu0
      %v8130 = vadd.f32 %v8017, %v8129
      %v8131 = vpop.f32.mrb[0].mxu0
      %v8132 = vadd.f32 %v8019, %v8131
      %v8133 = vpop.f32.mrb[0].mxu0
      %v8134 = vadd.f32 %v8021, %v8133
      %v8135 = vpop.f32.mrb[0].mxu0
      %v8136 = vadd.f32 %v8023, %v8135
      %8137 = vmatprep.mubr.bf16.mxu0 %v2820
      %8138 = vmatmul.mubr.bf16.gmra.mrb[0].mxu0 %v2819
      %v8139 = vpop.f32.mrb[0].mxu0
      %v8140 = vadd.f32 %v8027, %v8139
      %v8141 = vpop.f32.mrb[0].mxu0
      %v8142 = vadd.f32 %v8029, %v8141
      %v8143 = vpop.f32.mrb[0].mxu0
      %v8144 = vadd.f32 %v8031, %v8143
      %v8145 = vpop.f32.mrb[0].mxu0
      %v8146 = vadd.f32 %v8033, %v8145
      %8147 = vmatprep.mubr.bf16.mxu0 %v2869
      %8148 = vmatmul.mubr.bf16.gmra.mrb[0].mxu0 %v2868
      %v8149 = vpop.f32.mrb[0].mxu0
      %v8150 = vadd.f32 %v8037, %v8149
      %v8151 = vpop.f32.mrb[0].mxu0
      %v8152 = vadd.f32 %v8039, %v8151
      %v8153 = vpop.f32.mrb[0].mxu0
      %v8154 = vadd.f32 %v8041, %v8153
      %v8155 = vpop.f32.mrb[0].mxu0
      %v8156 = vadd.f32 %v8043, %v8155
      %8157 = vmatprep.mubr.bf16.mxu0 %v2918
      %8158 = vmatmul.mubr.bf16.gmra.mrb[0].mxu0 %v2917
      %v8159 = vpop.f32.mrb[0].mxu0
      %v8160 = vadd.f32 %v8047, %v8159
      %v8161 = vpop.f32.mrb[0].mxu0
      %v8162 = vadd.f32 %v8049, %v8161
      %v8163 = vpop.f32.mrb[0].mxu0
      %v8164 = vadd.f32 %v8051, %v8163
      %v8165 = vpop.f32.mrb[0].mxu0
      %v8166 = vadd.f32 %v8053, %v8165
      %8167 = vdwg.mxu0
      %8168 = vmatprep.subr.bf16.mxu0 %v5953
      %8169 = vmatpush1.bf16.msra.mxu0 %v5952
      %8170 = vmatprep.subr.bf16.mxu0 %v5955
      %8171 = vmatpush1.bf16.msra.mxu0 %v5954
      %8172 = vmatprep.subr.bf16.mxu0 %v5957
      %8173 = vmatpush1.bf16.msra.mxu0 %v5956
      %8174 = vmatprep.subr.bf16.mxu0 %v5959
      %8175 = vmatpush1.bf16.msra.mxu0 %v5958
      %8176 = vmatprep.subr.bf16.mxu0 %v5961
      %8177 = vmatpush1.bf16.msra.mxu0 %v5960
      %8178 = vmatprep.subr.bf16.mxu0 %v5963
      %8179 = vmatpush1.bf16.msra.mxu0 %v5962
      %8180 = vmatprep.subr.bf16.mxu0 %v5965
      %8181 = vmatpush1.bf16.msra.mxu0 %v5964
      %8182 = vmatprep.subr.bf16.mxu0 %v5967
      %8183 = vmatpush1.bf16.msra.mxu0 %v5966
      %8184 = vmatprep.subr.bf16.mxu0 %v5969
      %8185 = vmatpush1.bf16.msra.mxu0 %v5968
      %8186 = vmatprep.subr.bf16.mxu0 %v5971
      %8187 = vmatpush1.bf16.msra.mxu0 %v5970
      %8188 = vmatprep.subr.bf16.mxu0 %v5973
      %8189 = vmatpush1.bf16.msra.mxu0 %v5972
      %8190 = vmatprep.subr.bf16.mxu0 %v5975
      %8191 = vmatpush1.bf16.msra.mxu0 %v5974
      %8192 = vmatprep.subr.bf16.mxu0 %v5977
      %8193 = vmatpush1.bf16.msra.mxu0 %v5976
      %8194 = vmatprep.subr.bf16.mxu0 %v5979
      %8195 = vmatpush1.bf16.msra.mxu0 %v5978
      %8196 = vmatprep.subr.bf16.mxu0 %v5981
      %8197 = vmatpush1.bf16.msra.mxu0 %v5980
      %8198 = vmatprep.subr.bf16.mxu0 %v5983
      %8199 = vmatpush1.bf16.msra.mxu0 %v5982
      %8200 = vmatprep.mubr.bf16.mxu0 %v2577
      %8201 = vmatmul.mubr.bf16.gmra.mrb[0].mxu0 %v2576
      %v8202 = vpop.f32.mrb[0].mxu0
      %v8203 = vadd.f32 %v8090, %v8202
      %v8204 = vpop.f32.mrb[0].mxu0
      %v8205 = vadd.f32 %v8092, %v8204
      %v8206 = vpop.f32.mrb[0].mxu0
      %v8207 = vadd.f32 %v8094, %v8206
      %v8208 = vpop.f32.mrb[0].mxu0
      %v8209 = vadd.f32 %v8096, %v8208
      %8210 = vmatprep.mubr.bf16.mxu0 %v2626
      %8211 = vmatmul.mubr.bf16.gmra.mrb[0].mxu0 %v2625
      %v8212 = vpop.f32.mrb[0].mxu0
      %v8213 = vadd.f32 %v8100, %v8212
      %v8214 = vpop.f32.mrb[0].mxu0
      %v8215 = vadd.f32 %v8102, %v8214
      %v8216 = vpop.f32.mrb[0].mxu0
      %v8217 = vadd.f32 %v8104, %v8216
      %v8218 = vpop.f32.mrb[0].mxu0
      %v8219 = vadd.f32 %v8106, %v8218
      %8220 = vmatprep.mubr.bf16.mxu0 %v2675
      %8221 = vmatmul.mubr.bf16.gmra.mrb[0].mxu0 %v2674
      %v8222 = vpop.f32.mrb[0].mxu0
      %v8223 = vadd.f32 %v8110, %v8222
      %v8224 = vpop.f32.mrb[0].mxu0
      %v8225 = vadd.f32 %v8112, %v8224
      %v8226 = vpop.f32.mrb[0].mxu0
      %v8227 = vadd.f32 %v8114, %v8226
      %v8228 = vpop.f32.mrb[0].mxu0
      %v8229 = vadd.f32 %v8116, %v8228
      %8230 = vmatprep.mubr.bf16.mxu0 %v2724
      %8231 = vmatmul.mubr.bf16.gmra.mrb[0].mxu0 %v2723
      %v8232 = vpop.f32.mrb[0].mxu0
      %v8233 = vadd.f32 %v8120, %v8232
      %v8234 = vpop.f32.mrb[0].mxu0
      %v8235 = vadd.f32 %v8122, %v8234
      %v8236 = vpop.f32.mrb[0].mxu0
      %v8237 = vadd.f32 %v8124, %v8236
      %v8238 = vpop.f32.mrb[0].mxu0
      %v8239 = vadd.f32 %v8126, %v8238
      %8240 = vmatprep.mubr.bf16.mxu0 %v2773
      %8241 = vmatmul.mubr.bf16.gmra.mrb[0].mxu0 %v2772
      %v8242 = vpop.f32.mrb[0].mxu0
      %v8243 = vadd.f32 %v8130, %v8242
      %v8244 = vpop.f32.mrb[0].mxu0
      %v8245 = vadd.f32 %v8132, %v8244
      %v8246 = vpop.f32.mrb[0].mxu0
      %v8247 = vadd.f32 %v8134, %v8246
      %v8248 = vpop.f32.mrb[0].mxu0
      %v8249 = vadd.f32 %v8136, %v8248
      %8250 = vmatprep.mubr.bf16.mxu0 %v2822
      %8251 = vmatmul.mubr.bf16.gmra.mrb[0].mxu0 %v2821
      %v8252 = vpop.f32.mrb[0].mxu0
      %v8253 = vadd.f32 %v8140, %v8252
      %v8254 = vpop.f32.mrb[0].mxu0
      %v8255 = vadd.f32 %v8142, %v8254
      %v8256 = vpop.f32.mrb[0].mxu0
      %v8257 = vadd.f32 %v8144, %v8256
      %v8258 = vpop.f32.mrb[0].mxu0
      %v8259 = vadd.f32 %v8146, %v8258
      %8260 = vmatprep.mubr.bf16.mxu0 %v2871
      %8261 = vmatmul.mubr.bf16.gmra.mrb[0].mxu0 %v2870
      %v8262 = vpop.f32.mrb[0].mxu0
      %v8263 = vadd.f32 %v8150, %v8262
      %v8264 = vpop.f32.mrb[0].mxu0
      %v8265 = vadd.f32 %v8152, %v8264
      %v8266 = vpop.f32.mrb[0].mxu0
      %v8267 = vadd.f32 %v8154, %v8266
      %v8268 = vpop.f32.mrb[0].mxu0
      %v8269 = vadd.f32 %v8156, %v8268
      %8270 = vmatprep.mubr.bf16.mxu0 %v2920
      %8271 = vmatmul.mubr.bf16.gmra.mrb[0].mxu0 %v2919
      %v8272 = vpop.f32.mrb[0].mxu0
      %v8273 = vadd.f32 %v8160, %v8272
      %v8274 = vpop.f32.mrb[0].mxu0
      %v8275 = vadd.f32 %v8162, %v8274
      %v8276 = vpop.f32.mrb[0].mxu0
      %v8277 = vadd.f32 %v8164, %v8276
      %v8278 = vpop.f32.mrb[0].mxu0
      %v8279 = vadd.f32 %v8166, %v8278
      %8280 = vdwg.mxu0
      %8281 = vmatprep.subr.bf16.mxu0 %v5985
      %8282 = vmatpush1.bf16.msra.mxu0 %v5984
      %8283 = vmatprep.subr.bf16.mxu0 %v5987
      %8284 = vmatpush1.bf16.msra.mxu0 %v5986
      %8285 = vmatprep.subr.bf16.mxu0 %v5989
      %8286 = vmatpush1.bf16.msra.mxu0 %v5988
      %8287 = vmatprep.subr.bf16.mxu0 %v5991
      %8288 = vmatpush1.bf16.msra.mxu0 %v5990
      %8289 = vmatprep.subr.bf16.mxu0 %v5993
      %8290 = vmatpush1.bf16.msra.mxu0 %v5992
      %8291 = vmatprep.subr.bf16.mxu0 %v5995
      %8292 = vmatpush1.bf16.msra.mxu0 %v5994
      %8293 = vmatprep.subr.bf16.mxu0 %v5997
      %8294 = vmatpush1.bf16.msra.mxu0 %v5996
      %8295 = vmatprep.subr.bf16.mxu0 %v5999
      %8296 = vmatpush1.bf16.msra.mxu0 %v5998
      %8297 = vmatprep.subr.bf16.mxu0 %v6001
      %8298 = vmatpush1.bf16.msra.mxu0 %v6000
      %8299 = vmatprep.subr.bf16.mxu0 %v6003
      %8300 = vmatpush1.bf16.msra.mxu0 %v6002
      %8301 = vmatprep.subr.bf16.mxu0 %v6005
      %8302 = vmatpush1.bf16.msra.mxu0 %v6004
      %8303 = vmatprep.subr.bf16.mxu0 %v6007
      %8304 = vmatpush1.bf16.msra.mxu0 %v6006
      %8305 = vmatprep.subr.bf16.mxu0 %v6009
      %8306 = vmatpush1.bf16.msra.mxu0 %v6008
      %8307 = vmatprep.subr.bf16.mxu0 %v6011
      %8308 = vmatpush1.bf16.msra.mxu0 %v6010
      %8309 = vmatprep.subr.bf16.mxu0 %v6013
      %8310 = vmatpush1.bf16.msra.mxu0 %v6012
      %8311 = vmatprep.subr.bf16.mxu0 %v6015
      %8312 = vmatpush1.bf16.msra.mxu0 %v6014
      %8313 = vmatprep.mubr.bf16.mxu0 %v2579
      %8314 = vmatmul.mubr.bf16.gmra.mrb[0].mxu0 %v2578
      %v8315 = vpop.f32.mrb[0].mxu0
      %v8316 = vadd.f32 %v8203, %v8315
      %v8317 = vpop.f32.mrb[0].mxu0
      %v8318 = vadd.f32 %v8205, %v8317
      %v8319 = vpop.f32.mrb[0].mxu0
      %v8320 = vadd.f32 %v8207, %v8319
      %v8321 = vpop.f32.mrb[0].mxu0
      %v8322 = vadd.f32 %v8209, %v8321
      %8323 = vmatprep.mubr.bf16.mxu0 %v2628
      %8324 = vmatmul.mubr.bf16.gmra.mrb[0].mxu0 %v2627
      %v8325 = vpop.f32.mrb[0].mxu0
      %v8326 = vadd.f32 %v8213, %v8325
      %v8327 = vpop.f32.mrb[0].mxu0
      %v8328 = vadd.f32 %v8215, %v8327
      %v8329 = vpop.f32.mrb[0].mxu0
      %v8330 = vadd.f32 %v8217, %v8329
      %v8331 = vpop.f32.mrb[0].mxu0
      %v8332 = vadd.f32 %v8219, %v8331
      %8333 = vmatprep.mubr.bf16.mxu0 %v2677
      %8334 = vmatmul.mubr.bf16.gmra.mrb[0].mxu0 %v2676
      %v8335 = vpop.f32.mrb[0].mxu0
      %v8336 = vadd.f32 %v8223, %v8335
      %v8337 = vpop.f32.mrb[0].mxu0
      %v8338 = vadd.f32 %v8225, %v8337
      %v8339 = vpop.f32.mrb[0].mxu0
      %v8340 = vadd.f32 %v8227, %v8339
      %v8341 = vpop.f32.mrb[0].mxu0
      %v8342 = vadd.f32 %v8229, %v8341
      %8343 = vmatprep.mubr.bf16.mxu0 %v2726
      %8344 = vmatmul.mubr.bf16.gmra.mrb[0].mxu0 %v2725
      %v8345 = vpop.f32.mrb[0].mxu0
      %v8346 = vadd.f32 %v8233, %v8345
      %v8347 = vpop.f32.mrb[0].mxu0
      %v8348 = vadd.f32 %v8235, %v8347
      %v8349 = vpop.f32.mrb[0].mxu0
      %v8350 = vadd.f32 %v8237, %v8349
      %v8351 = vpop.f32.mrb[0].mxu0
      %v8352 = vadd.f32 %v8239, %v8351
      %8353 = vmatprep.mubr.bf16.mxu0 %v2775
      %8354 = vmatmul.mubr.bf16.gmra.mrb[0].mxu0 %v2774
      %v8355 = vpop.f32.mrb[0].mxu0
      %v8356 = vadd.f32 %v8243, %v8355
      %v8357 = vpop.f32.mrb[0].mxu0
      %v8358 = vadd.f32 %v8245, %v8357
      %v8359 = vpop.f32.mrb[0].mxu0
      %v8360 = vadd.f32 %v8247, %v8359
      %v8361 = vpop.f32.mrb[0].mxu0
      %v8362 = vadd.f32 %v8249, %v8361
      %8363 = vmatprep.mubr.bf16.mxu0 %v2824
      %8364 = vmatmul.mubr.bf16.gmra.mrb[0].mxu0 %v2823
      %v8365 = vpop.f32.mrb[0].mxu0
      %v8366 = vadd.f32 %v8253, %v8365
      %v8367 = vpop.f32.mrb[0].mxu0
      %v8368 = vadd.f32 %v8255, %v8367
      %v8369 = vpop.f32.mrb[0].mxu0
      %v8370 = vadd.f32 %v8257, %v8369
      %v8371 = vpop.f32.mrb[0].mxu0
      %v8372 = vadd.f32 %v8259, %v8371
      %8373 = vmatprep.mubr.bf16.mxu0 %v2873
      %8374 = vmatmul.mubr.bf16.gmra.mrb[0].mxu0 %v2872
      %v8375 = vpop.f32.mrb[0].mxu0
      %v8376 = vadd.f32 %v8263, %v8375
      %v8377 = vpop.f32.mrb[0].mxu0
      %v8378 = vadd.f32 %v8265, %v8377
      %v8379 = vpop.f32.mrb[0].mxu0
      %v8380 = vadd.f32 %v8267, %v8379
      %v8381 = vpop.f32.mrb[0].mxu0
      %v8382 = vadd.f32 %v8269, %v8381
      %8383 = vmatprep.mubr.bf16.mxu0 %v2922
      %8384 = vmatmul.mubr.bf16.gmra.mrb[0].mxu0 %v2921
      %v8385 = vpop.f32.mrb[0].mxu0
      %v8386 = vadd.f32 %v8273, %v8385
      %v8387 = vpop.f32.mrb[0].mxu0
      %v8388 = vadd.f32 %v8275, %v8387
      %v8389 = vpop.f32.mrb[0].mxu0
      %v8390 = vadd.f32 %v8277, %v8389
      %v8391 = vpop.f32.mrb[0].mxu0
      %v8392 = vadd.f32 %v8279, %v8391
      %8393 = vdwg.mxu0
      %8394 = vmatprep.subr.bf16.mxu0 %v6017
      %8395 = vmatpush1.bf16.msra.mxu0 %v6016
      %8396 = vmatprep.subr.bf16.mxu0 %v6019
      %8397 = vmatpush1.bf16.msra.mxu0 %v6018
      %8398 = vmatprep.subr.bf16.mxu0 %v6021
      %8399 = vmatpush1.bf16.msra.mxu0 %v6020
      %8400 = vmatprep.subr.bf16.mxu0 %v6023
      %8401 = vmatpush1.bf16.msra.mxu0 %v6022
      %8402 = vmatprep.subr.bf16.mxu0 %v6025
      %8403 = vmatpush1.bf16.msra.mxu0 %v6024
      %8404 = vmatprep.subr.bf16.mxu0 %v6027
      %8405 = vmatpush1.bf16.msra.mxu0 %v6026
      %8406 = vmatprep.subr.bf16.mxu0 %v6029
      %8407 = vmatpush1.bf16.msra.mxu0 %v6028
      %8408 = vmatprep.subr.bf16.mxu0 %v6031
      %8409 = vmatpush1.bf16.msra.mxu0 %v6030
      %8410 = vmatprep.subr.bf16.mxu0 %v6033
      %8411 = vmatpush1.bf16.msra.mxu0 %v6032
      %8412 = vmatprep.subr.bf16.mxu0 %v6035
      %8413 = vmatpush1.bf16.msra.mxu0 %v6034
      %8414 = vmatprep.subr.bf16.mxu0 %v6037
      %8415 = vmatpush1.bf16.msra.mxu0 %v6036
      %8416 = vmatprep.subr.bf16.mxu0 %v6039
      %8417 = vmatpush1.bf16.msra.mxu0 %v6038
      %8418 = vmatprep.subr.bf16.mxu0 %v6041
      %8419 = vmatpush1.bf16.msra.mxu0 %v6040
      %8420 = vmatprep.subr.bf16.mxu0 %v6043
      %8421 = vmatpush1.bf16.msra.mxu0 %v6042
      %8422 = vmatprep.subr.bf16.mxu0 %v6045
      %8423 = vmatpush1.bf16.msra.mxu0 %v6044
      %8424 = vmatprep.subr.bf16.mxu0 %v6047
      %8425 = vmatpush1.bf16.msra.mxu0 %v6046
      %8426 = vmatprep.mubr.bf16.mxu0 %v2581
      %8427 = vmatmul.mubr.bf16.gmra.mrb[0].mxu0 %v2580
      %v8428 = vpop.f32.mrb[0].mxu0
      %v8429 = vadd.f32 %v8316, %v8428
      %v8430 = vpop.f32.mrb[0].mxu0
      %v8431 = vadd.f32 %v8318, %v8430
      %v8432 = vpop.f32.mrb[0].mxu0
      %v8433 = vadd.f32 %v8320, %v8432
      %v8434 = vpop.f32.mrb[0].mxu0
      %v8435 = vadd.f32 %v8322, %v8434
      %8436 = vmatprep.mubr.bf16.mxu0 %v2630
      %8437 = vmatmul.mubr.bf16.gmra.mrb[0].mxu0 %v2629
      %v8438 = vpop.f32.mrb[0].mxu0
      %v8439 = vadd.f32 %v8326, %v8438
      %v8440 = vpop.f32.mrb[0].mxu0
      %v8441 = vadd.f32 %v8328, %v8440
      %v8442 = vpop.f32.mrb[0].mxu0
      %v8443 = vadd.f32 %v8330, %v8442
      %v8444 = vpop.f32.mrb[0].mxu0
      %v8445 = vadd.f32 %v8332, %v8444
      %8446 = vmatprep.mubr.bf16.mxu0 %v2679
      %8447 = vmatmul.mubr.bf16.gmra.mrb[0].mxu0 %v2678
      %v8448 = vpop.f32.mrb[0].mxu0
      %v8449 = vadd.f32 %v8336, %v8448
      %v8450 = vpop.f32.mrb[0].mxu0
      %v8451 = vadd.f32 %v8338, %v8450
      %v8452 = vpop.f32.mrb[0].mxu0
      %v8453 = vadd.f32 %v8340, %v8452
      %v8454 = vpop.f32.mrb[0].mxu0
      %v8455 = vadd.f32 %v8342, %v8454
      %8456 = vmatprep.mubr.bf16.mxu0 %v2728
      %8457 = vmatmul.mubr.bf16.gmra.mrb[0].mxu0 %v2727
      %v8458 = vpop.f32.mrb[0].mxu0
      %v8459 = vadd.f32 %v8346, %v8458
      %v8460 = vpop.f32.mrb[0].mxu0
      %v8461 = vadd.f32 %v8348, %v8460
      %v8462 = vpop.f32.mrb[0].mxu0
      %v8463 = vadd.f32 %v8350, %v8462
      %v8464 = vpop.f32.mrb[0].mxu0
      %v8465 = vadd.f32 %v8352, %v8464
      %8466 = vmatprep.mubr.bf16.mxu0 %v2777
      %8467 = vmatmul.mubr.bf16.gmra.mrb[0].mxu0 %v2776
      %v8468 = vpop.f32.mrb[0].mxu0
      %v8469 = vadd.f32 %v8356, %v8468
      %v8470 = vpop.f32.mrb[0].mxu0
      %v8471 = vadd.f32 %v8358, %v8470
      %v8472 = vpop.f32.mrb[0].mxu0
      %v8473 = vadd.f32 %v8360, %v8472
      %v8474 = vpop.f32.mrb[0].mxu0
      %v8475 = vadd.f32 %v8362, %v8474
      %8476 = vmatprep.mubr.bf16.mxu0 %v2826
      %8477 = vmatmul.mubr.bf16.gmra.mrb[0].mxu0 %v2825
      %v8478 = vpop.f32.mrb[0].mxu0
      %v8479 = vadd.f32 %v8366, %v8478
      %v8480 = vpop.f32.mrb[0].mxu0
      %v8481 = vadd.f32 %v8368, %v8480
      %v8482 = vpop.f32.mrb[0].mxu0
      %v8483 = vadd.f32 %v8370, %v8482
      %v8484 = vpop.f32.mrb[0].mxu0
      %v8485 = vadd.f32 %v8372, %v8484
      %8486 = vmatprep.mubr.bf16.mxu0 %v2875
      %8487 = vmatmul.mubr.bf16.gmra.mrb[0].mxu0 %v2874
      %v8488 = vpop.f32.mrb[0].mxu0
      %v8489 = vadd.f32 %v8376, %v8488
      %v8490 = vpop.f32.mrb[0].mxu0
      %v8491 = vadd.f32 %v8378, %v8490
      %v8492 = vpop.f32.mrb[0].mxu0
      %v8493 = vadd.f32 %v8380, %v8492
      %v8494 = vpop.f32.mrb[0].mxu0
      %v8495 = vadd.f32 %v8382, %v8494
      %8496 = vmatprep.mubr.bf16.mxu0 %v2924
      %8497 = vmatmul.mubr.bf16.gmra.mrb[0].mxu0 %v2923
      %v8498 = vpop.f32.mrb[0].mxu0
      %v8499 = vadd.f32 %v8386, %v8498
      %v8500 = vpop.f32.mrb[0].mxu0
      %v8501 = vadd.f32 %v8388, %v8500
      %v8502 = vpop.f32.mrb[0].mxu0
      %v8503 = vadd.f32 %v8390, %v8502
      %v8504 = vpop.f32.mrb[0].mxu0
      %v8505 = vadd.f32 %v8392, %v8504
      %8506 = vdwg.mxu0
      %8507 = vmatprep.subr.bf16.mxu0 %v6049
      %8508 = vmatpush1.bf16.msra.mxu0 %v6048
      %8509 = vmatprep.subr.bf16.mxu0 %v6051
      %8510 = vmatpush1.bf16.msra.mxu0 %v6050
      %8511 = vmatprep.subr.bf16.mxu0 %v6053
      %8512 = vmatpush1.bf16.msra.mxu0 %v6052
      %8513 = vmatprep.subr.bf16.mxu0 %v6055
      %8514 = vmatpush1.bf16.msra.mxu0 %v6054
      %8515 = vmatprep.subr.bf16.mxu0 %v6057
      %8516 = vmatpush1.bf16.msra.mxu0 %v6056
      %8517 = vmatprep.subr.bf16.mxu0 %v6059
      %8518 = vmatpush1.bf16.msra.mxu0 %v6058
      %8519 = vmatprep.subr.bf16.mxu0 %v6061
      %8520 = vmatpush1.bf16.msra.mxu0 %v6060
      %8521 = vmatprep.subr.bf16.mxu0 %v6063
      %8522 = vmatpush1.bf16.msra.mxu0 %v6062
      %8523 = vmatprep.subr.bf16.mxu0 %v6065
      %8524 = vmatpush1.bf16.msra.mxu0 %v6064
      %8525 = vmatprep.subr.bf16.mxu0 %v6067
      %8526 = vmatpush1.bf16.msra.mxu0 %v6066
      %8527 = vmatprep.subr.bf16.mxu0 %v6069
      %8528 = vmatpush1.bf16.msra.mxu0 %v6068
      %8529 = vmatprep.subr.bf16.mxu0 %v6071
      %8530 = vmatpush1.bf16.msra.mxu0 %v6070
      %8531 = vmatprep.subr.bf16.mxu0 %v6073
      %8532 = vmatpush1.bf16.msra.mxu0 %v6072
      %8533 = vmatprep.subr.bf16.mxu0 %v6075
      %8534 = vmatpush1.bf16.msra.mxu0 %v6074
      %8535 = vmatprep.subr.bf16.mxu0 %v6077
      %8536 = vmatpush1.bf16.msra.mxu0 %v6076
      %8537 = vmatprep.subr.bf16.mxu0 %v6079
      %8538 = vmatpush1.bf16.msra.mxu0 %v6078
      %8539 = vmatprep.mubr.bf16.mxu0 %v2583
      %8540 = vmatmul.mubr.bf16.gmra.mrb[0].mxu0 %v2582
      %v8541 = vpop.f32.mrb[0].mxu0
      %v8542 = vadd.f32 %v8429, %v8541
      %v8543 = vpop.f32.mrb[0].mxu0
      %v8544 = vadd.f32 %v8431, %v8543
      %v8545 = vpop.f32.mrb[0].mxu0
      %v8546 = vadd.f32 %v8433, %v8545
      %v8547 = vpop.f32.mrb[0].mxu0
      %v8548 = vadd.f32 %v8435, %v8547
      %8549 = vmatprep.mubr.bf16.mxu0 %v2632
      %8550 = vmatmul.mubr.bf16.gmra.mrb[0].mxu0 %v2631
      %v8551 = vpop.f32.mrb[0].mxu0
      %v8552 = vadd.f32 %v8439, %v8551
      %v8553 = vpop.f32.mrb[0].mxu0
      %v8554 = vadd.f32 %v8441, %v8553
      %v8555 = vpop.f32.mrb[0].mxu0
      %v8556 = vadd.f32 %v8443, %v8555
      %v8557 = vpop.f32.mrb[0].mxu0
      %v8558 = vadd.f32 %v8445, %v8557
      %8559 = vmatprep.mubr.bf16.mxu0 %v2681
      %8560 = vmatmul.mubr.bf16.gmra.mrb[0].mxu0 %v2680
      %v8561 = vpop.f32.mrb[0].mxu0
      %v8562 = vadd.f32 %v8449, %v8561
      %v8563 = vpop.f32.mrb[0].mxu0
      %v8564 = vadd.f32 %v8451, %v8563
      %v8565 = vpop.f32.mrb[0].mxu0
      %v8566 = vadd.f32 %v8453, %v8565
      %v8567 = vpop.f32.mrb[0].mxu0
      %v8568 = vadd.f32 %v8455, %v8567
      %8569 = vmatprep.mubr.bf16.mxu0 %v2730
      %8570 = vmatmul.mubr.bf16.gmra.mrb[0].mxu0 %v2729
      %v8571 = vpop.f32.mrb[0].mxu0
      %v8572 = vadd.f32 %v8459, %v8571
      %v8573 = vpop.f32.mrb[0].mxu0
      %v8574 = vadd.f32 %v8461, %v8573
      %v8575 = vpop.f32.mrb[0].mxu0
      %v8576 = vadd.f32 %v8463, %v8575
      %v8577 = vpop.f32.mrb[0].mxu0
      %v8578 = vadd.f32 %v8465, %v8577
      %8579 = vmatprep.mubr.bf16.mxu0 %v2779
      %8580 = vmatmul.mubr.bf16.gmra.mrb[0].mxu0 %v2778
      %v8581 = vpop.f32.mrb[0].mxu0
      %v8582 = vadd.f32 %v8469, %v8581
      %v8583 = vpop.f32.mrb[0].mxu0
      %v8584 = vadd.f32 %v8471, %v8583
      %v8585 = vpop.f32.mrb[0].mxu0
      %v8586 = vadd.f32 %v8473, %v8585
      %v8587 = vpop.f32.mrb[0].mxu0
      %v8588 = vadd.f32 %v8475, %v8587
      %8589 = vmatprep.mubr.bf16.mxu0 %v2828
      %8590 = vmatmul.mubr.bf16.gmra.mrb[0].mxu0 %v2827
      %v8591 = vpop.f32.mrb[0].mxu0
      %v8592 = vadd.f32 %v8479, %v8591
      %v8593 = vpop.f32.mrb[0].mxu0
      %v8594 = vadd.f32 %v8481, %v8593
      %v8595 = vpop.f32.mrb[0].mxu0
      %v8596 = vadd.f32 %v8483, %v8595
      %v8597 = vpop.f32.mrb[0].mxu0
      %v8598 = vadd.f32 %v8485, %v8597
      %8599 = vmatprep.mubr.bf16.mxu0 %v2877
      %8600 = vmatmul.mubr.bf16.gmra.mrb[0].mxu0 %v2876
      %v8601 = vpop.f32.mrb[0].mxu0
      %v8602 = vadd.f32 %v8489, %v8601
      %v8603 = vpop.f32.mrb[0].mxu0
      %v8604 = vadd.f32 %v8491, %v8603
      %v8605 = vpop.f32.mrb[0].mxu0
      %v8606 = vadd.f32 %v8493, %v8605
      %v8607 = vpop.f32.mrb[0].mxu0
      %v8608 = vadd.f32 %v8495, %v8607
      %8609 = vmatprep.mubr.bf16.mxu0 %v2926
      %8610 = vmatmul.mubr.bf16.gmra.mrb[0].mxu0 %v2925
      %v8611 = vpop.f32.mrb[0].mxu0
      %v8612 = vadd.f32 %v8499, %v8611
      %v8613 = vpop.f32.mrb[0].mxu0
      %v8614 = vadd.f32 %v8501, %v8613
      %v8615 = vpop.f32.mrb[0].mxu0
      %v8616 = vadd.f32 %v8503, %v8615
      %v8617 = vpop.f32.mrb[0].mxu0
      %v8618 = vadd.f32 %v8505, %v8617
      %8619 = vdwg.mxu0
      %8620 = vmatprep.subr.bf16.mxu0 %v6081
      %8621 = vmatpush1.bf16.msra.mxu0 %v6080
      %8622 = vmatprep.subr.bf16.mxu0 %v6083
      %8623 = vmatpush1.bf16.msra.mxu0 %v6082
      %8624 = vmatprep.subr.bf16.mxu0 %v6085
      %8625 = vmatpush1.bf16.msra.mxu0 %v6084
      %8626 = vmatprep.subr.bf16.mxu0 %v6087
      %8627 = vmatpush1.bf16.msra.mxu0 %v6086
      %8628 = vmatprep.subr.bf16.mxu0 %v6089
      %8629 = vmatpush1.bf16.msra.mxu0 %v6088
      %8630 = vmatprep.subr.bf16.mxu0 %v6091
      %8631 = vmatpush1.bf16.msra.mxu0 %v6090
      %8632 = vmatprep.subr.bf16.mxu0 %v6093
      %8633 = vmatpush1.bf16.msra.mxu0 %v6092
      %8634 = vmatprep.subr.bf16.mxu0 %v6095
      %8635 = vmatpush1.bf16.msra.mxu0 %v6094
      %8636 = vmatprep.subr.bf16.mxu0 %v6097
      %8637 = vmatpush1.bf16.msra.mxu0 %v6096
      %8638 = vmatprep.subr.bf16.mxu0 %v6099
      %8639 = vmatpush1.bf16.msra.mxu0 %v6098
      %8640 = vmatprep.subr.bf16.mxu0 %v6101
      %8641 = vmatpush1.bf16.msra.mxu0 %v6100
      %8642 = vmatprep.subr.bf16.mxu0 %v6103
      %8643 = vmatpush1.bf16.msra.mxu0 %v6102
      %8644 = vmatprep.subr.bf16.mxu0 %v6105
      %8645 = vmatpush1.bf16.msra.mxu0 %v6104
      %8646 = vmatprep.subr.bf16.mxu0 %v6107
      %8647 = vmatpush1.bf16.msra.mxu0 %v6106
      %8648 = vmatprep.subr.bf16.mxu0 %v6109
      %8649 = vmatpush1.bf16.msra.mxu0 %v6108
      %8650 = vmatprep.subr.bf16.mxu0 %v6111
      %8651 = vmatpush1.bf16.msra.mxu0 %v6110
      %8652 = vmatprep.mubr.bf16.mxu0 %v2585
      %8653 = vmatmul.mubr.bf16.gmra.mrb[0].mxu0 %v2584
      %v8654 = vpop.f32.mrb[0].mxu0
      %v8655 = vadd.f32 %v8542, %v8654
      %v8656 = vpop.f32.mrb[0].mxu0
      %v8657 = vadd.f32 %v8544, %v8656
      %v8658 = vpop.f32.mrb[0].mxu0
      %v8659 = vadd.f32 %v8546, %v8658
      %v8660 = vpop.f32.mrb[0].mxu0
      %v8661 = vadd.f32 %v8548, %v8660
      %8662 = vmatprep.mubr.bf16.mxu0 %v2634
      %8663 = vmatmul.mubr.bf16.gmra.mrb[0].mxu0 %v2633
      %v8664 = vpop.f32.mrb[0].mxu0
      %v8665 = vadd.f32 %v8552, %v8664
      %v8666 = vpop.f32.mrb[0].mxu0
      %v8667 = vadd.f32 %v8554, %v8666
      %v8668 = vpop.f32.mrb[0].mxu0
      %v8669 = vadd.f32 %v8556, %v8668
      %v8670 = vpop.f32.mrb[0].mxu0
      %v8671 = vadd.f32 %v8558, %v8670
      %8672 = vmatprep.mubr.bf16.mxu0 %v2683
      %8673 = vmatmul.mubr.bf16.gmra.mrb[0].mxu0 %v2682
      %v8674 = vpop.f32.mrb[0].mxu0
      %v8675 = vadd.f32 %v8562, %v8674
      %v8676 = vpop.f32.mrb[0].mxu0
      %v8677 = vadd.f32 %v8564, %v8676
      %v8678 = vpop.f32.mrb[0].mxu0
      %v8679 = vadd.f32 %v8566, %v8678
      %v8680 = vpop.f32.mrb[0].mxu0
      %v8681 = vadd.f32 %v8568, %v8680
      %8682 = vmatprep.mubr.bf16.mxu0 %v2732
      %8683 = vmatmul.mubr.bf16.gmra.mrb[0].mxu0 %v2731
      %v8684 = vpop.f32.mrb[0].mxu0
      %v8685 = vadd.f32 %v8572, %v8684
      %v8686 = vpop.f32.mrb[0].mxu0
      %v8687 = vadd.f32 %v8574, %v8686
      %v8688 = vpop.f32.mrb[0].mxu0
      %v8689 = vadd.f32 %v8576, %v8688
      %v8690 = vpop.f32.mrb[0].mxu0
      %v8691 = vadd.f32 %v8578, %v8690
      %8692 = vmatprep.mubr.bf16.mxu0 %v2781
      %8693 = vmatmul.mubr.bf16.gmra.mrb[0].mxu0 %v2780
      %v8694 = vpop.f32.mrb[0].mxu0
      %v8695 = vadd.f32 %v8582, %v8694
      %v8696 = vpop.f32.mrb[0].mxu0
      %v8697 = vadd.f32 %v8584, %v8696
      %v8698 = vpop.f32.mrb[0].mxu0
      %v8699 = vadd.f32 %v8586, %v8698
      %v8700 = vpop.f32.mrb[0].mxu0
      %v8701 = vadd.f32 %v8588, %v8700
      %8702 = vmatprep.mubr.bf16.mxu0 %v2830
      %8703 = vmatmul.mubr.bf16.gmra.mrb[0].mxu0 %v2829
      %v8704 = vpop.f32.mrb[0].mxu0
      %v8705 = vadd.f32 %v8592, %v8704
      %v8706 = vpop.f32.mrb[0].mxu0
      %v8707 = vadd.f32 %v8594, %v8706
      %v8708 = vpop.f32.mrb[0].mxu0
      %v8709 = vadd.f32 %v8596, %v8708
      %v8710 = vpop.f32.mrb[0].mxu0
      %v8711 = vadd.f32 %v8598, %v8710
      %8712 = vmatprep.mubr.bf16.mxu0 %v2879
      %8713 = vmatmul.mubr.bf16.gmra.mrb[0].mxu0 %v2878
      %v8714 = vpop.f32.mrb[0].mxu0
      %v8715 = vadd.f32 %v8602, %v8714
      %v8716 = vpop.f32.mrb[0].mxu0
      %v8717 = vadd.f32 %v8604, %v8716
      %v8718 = vpop.f32.mrb[0].mxu0
      %v8719 = vadd.f32 %v8606, %v8718
      %v8720 = vpop.f32.mrb[0].mxu0
      %v8721 = vadd.f32 %v8608, %v8720
      %8722 = vmatprep.mubr.bf16.mxu0 %v2928
      %8723 = vmatmul.mubr.bf16.gmra.mrb[0].mxu0 %v2927
      %v8724 = vpop.f32.mrb[0].mxu0
      %v8725 = vadd.f32 %v8612, %v8724
      %v8726 = vpop.f32.mrb[0].mxu0
      %v8727 = vadd.f32 %v8614, %v8726
      %v8728 = vpop.f32.mrb[0].mxu0
      %v8729 = vadd.f32 %v8616, %v8728
      %v8730 = vpop.f32.mrb[0].mxu0
      %v8731 = vadd.f32 %v8618, %v8730
      %8732 = vdwg.mxu0
      %8733 = vmatprep.subr.bf16.mxu0 %v6113
      %8734 = vmatpush1.bf16.msra.mxu0 %v6112
      %8735 = vmatprep.subr.bf16.mxu0 %v6115
      %8736 = vmatpush1.bf16.msra.mxu0 %v6114
      %8737 = vmatprep.subr.bf16.mxu0 %v6117
      %8738 = vmatpush1.bf16.msra.mxu0 %v6116
      %8739 = vmatprep.subr.bf16.mxu0 %v6119
      %8740 = vmatpush1.bf16.msra.mxu0 %v6118
      %8741 = vmatprep.subr.bf16.mxu0 %v6121
      %8742 = vmatpush1.bf16.msra.mxu0 %v6120
      %8743 = vmatprep.subr.bf16.mxu0 %v6123
      %8744 = vmatpush1.bf16.msra.mxu0 %v6122
      %8745 = vmatprep.subr.bf16.mxu0 %v6125
      %8746 = vmatpush1.bf16.msra.mxu0 %v6124
      %8747 = vmatprep.subr.bf16.mxu0 %v6127
      %8748 = vmatpush1.bf16.msra.mxu0 %v6126
      %8749 = vmatprep.subr.bf16.mxu0 %v6129
      %8750 = vmatpush1.bf16.msra.mxu0 %v6128
      %8751 = vmatprep.subr.bf16.mxu0 %v6131
      %8752 = vmatpush1.bf16.msra.mxu0 %v6130
      %8753 = vmatprep.subr.bf16.mxu0 %v6133
      %8754 = vmatpush1.bf16.msra.mxu0 %v6132
      %8755 = vmatprep.subr.bf16.mxu0 %v6135
      %8756 = vmatpush1.bf16.msra.mxu0 %v6134
      %8757 = vmatprep.subr.bf16.mxu0 %v6137
      %8758 = vmatpush1.bf16.msra.mxu0 %v6136
      %8759 = vmatprep.subr.bf16.mxu0 %v6139
      %8760 = vmatpush1.bf16.msra.mxu0 %v6138
      %8761 = vmatprep.subr.bf16.mxu0 %v6141
      %8762 = vmatpush1.bf16.msra.mxu0 %v6140
      %8763 = vmatprep.subr.bf16.mxu0 %v6143
      %8764 = vmatpush1.bf16.msra.mxu0 %v6142
      %8765 = vmatprep.mubr.bf16.mxu0 %v2587
      %8766 = vmatmul.mubr.bf16.gmra.mrb[0].mxu0 %v2586
      %v8767 = vpop.f32.mrb[0].mxu0
      %v8768 = vadd.f32 %v8655, %v8767
      %v8769 = vpop.f32.mrb[0].mxu0
      %v8770 = vadd.f32 %v8657, %v8769
      %v8771 = vpop.f32.mrb[0].mxu0
      %v8772 = vadd.f32 %v8659, %v8771
      %v8773 = vpop.f32.mrb[0].mxu0
      %v8774 = vadd.f32 %v8661, %v8773
      %8775 = vmatprep.mubr.bf16.mxu0 %v2636
      %8776 = vmatmul.mubr.bf16.gmra.mrb[0].mxu0 %v2635
      %v8777 = vpop.f32.mrb[0].mxu0
      %v8778 = vadd.f32 %v8665, %v8777
      %v8779 = vpop.f32.mrb[0].mxu0
      %v8780 = vadd.f32 %v8667, %v8779
      %v8781 = vpop.f32.mrb[0].mxu0
      %v8782 = vadd.f32 %v8669, %v8781
      %v8783 = vpop.f32.mrb[0].mxu0
      %v8784 = vadd.f32 %v8671, %v8783
      %8785 = vmatprep.mubr.bf16.mxu0 %v2685
      %8786 = vmatmul.mubr.bf16.gmra.mrb[0].mxu0 %v2684
      %v8787 = vpop.f32.mrb[0].mxu0
      %v8788 = vadd.f32 %v8675, %v8787
      %v8789 = vpop.f32.mrb[0].mxu0
      %v8790 = vadd.f32 %v8677, %v8789
      %v8791 = vpop.f32.mrb[0].mxu0
      %v8792 = vadd.f32 %v8679, %v8791
      %v8793 = vpop.f32.mrb[0].mxu0
      %v8794 = vadd.f32 %v8681, %v8793
      %8795 = vmatprep.mubr.bf16.mxu0 %v2734
      %8796 = vmatmul.mubr.bf16.gmra.mrb[0].mxu0 %v2733
      %v8797 = vpop.f32.mrb[0].mxu0
      %v8798 = vadd.f32 %v8685, %v8797
      %v8799 = vpop.f32.mrb[0].mxu0
      %v8800 = vadd.f32 %v8687, %v8799
      %v8801 = vpop.f32.mrb[0].mxu0
      %v8802 = vadd.f32 %v8689, %v8801
      %v8803 = vpop.f32.mrb[0].mxu0
      %v8804 = vadd.f32 %v8691, %v8803
      %8805 = vmatprep.mubr.bf16.mxu0 %v2783
      %8806 = vmatmul.mubr.bf16.gmra.mrb[0].mxu0 %v2782
      %v8807 = vpop.f32.mrb[0].mxu0
      %v8808 = vadd.f32 %v8695, %v8807
      %v8809 = vpop.f32.mrb[0].mxu0
      %v8810 = vadd.f32 %v8697, %v8809
      %v8811 = vpop.f32.mrb[0].mxu0
      %v8812 = vadd.f32 %v8699, %v8811
      %v8813 = vpop.f32.mrb[0].mxu0
      %v8814 = vadd.f32 %v8701, %v8813
      %8815 = vmatprep.mubr.bf16.mxu0 %v2832
      %8816 = vmatmul.mubr.bf16.gmra.mrb[0].mxu0 %v2831
      %v8817 = vpop.f32.mrb[0].mxu0
      %v8818 = vadd.f32 %v8705, %v8817
      %v8819 = vpop.f32.mrb[0].mxu0
      %v8820 = vadd.f32 %v8707, %v8819
      %v8821 = vpop.f32.mrb[0].mxu0
      %v8822 = vadd.f32 %v8709, %v8821
      %v8823 = vpop.f32.mrb[0].mxu0
      %v8824 = vadd.f32 %v8711, %v8823
      %8825 = vmatprep.mubr.bf16.mxu0 %v2881
      %8826 = vmatmul.mubr.bf16.gmra.mrb[0].mxu0 %v2880
      %v8827 = vpop.f32.mrb[0].mxu0
      %v8828 = vadd.f32 %v8715, %v8827
      %v8829 = vpop.f32.mrb[0].mxu0
      %v8830 = vadd.f32 %v8717, %v8829
      %v8831 = vpop.f32.mrb[0].mxu0
      %v8832 = vadd.f32 %v8719, %v8831
      %v8833 = vpop.f32.mrb[0].mxu0
      %v8834 = vadd.f32 %v8721, %v8833
      %8835 = vmatprep.mubr.bf16.mxu0 %v2930
      %8836 = vmatmul.mubr.bf16.gmra.mrb[0].mxu0 %v2929
      %v8837 = vpop.f32.mrb[0].mxu0
      %v8838 = vadd.f32 %v8725, %v8837
      %v8839 = vpop.f32.mrb[0].mxu0
      %v8840 = vadd.f32 %v8727, %v8839
      %v8841 = vpop.f32.mrb[0].mxu0
      %v8842 = vadd.f32 %v8729, %v8841
      %v8843 = vpop.f32.mrb[0].mxu0
      %v8844 = vadd.f32 %v8731, %v8843
      %8845 = vdwg.mxu0
      %8846 = vmatprep.subr.bf16.mxu0 %v6145
      %8847 = vmatpush1.bf16.msra.mxu0 %v6144
      %8848 = vmatprep.subr.bf16.mxu0 %v6147
      %8849 = vmatpush1.bf16.msra.mxu0 %v6146
      %8850 = vmatprep.subr.bf16.mxu0 %v6149
      %8851 = vmatpush1.bf16.msra.mxu0 %v6148
      %8852 = vmatprep.subr.bf16.mxu0 %v6151
      %8853 = vmatpush1.bf16.msra.mxu0 %v6150
      %8854 = vmatprep.subr.bf16.mxu0 %v6153
      %8855 = vmatpush1.bf16.msra.mxu0 %v6152
      %8856 = vmatprep.subr.bf16.mxu0 %v6155
      %8857 = vmatpush1.bf16.msra.mxu0 %v6154
      %8858 = vmatprep.subr.bf16.mxu0 %v6157
      %8859 = vmatpush1.bf16.msra.mxu0 %v6156
      %8860 = vmatprep.subr.bf16.mxu0 %v6159
      %8861 = vmatpush1.bf16.msra.mxu0 %v6158
      %8862 = vmatprep.subr.bf16.mxu0 %v6161
      %8863 = vmatpush1.bf16.msra.mxu0 %v6160
      %8864 = vmatprep.subr.bf16.mxu0 %v6163
      %8865 = vmatpush1.bf16.msra.mxu0 %v6162
      %8866 = vmatprep.subr.bf16.mxu0 %v6165
      %8867 = vmatpush1.bf16.msra.mxu0 %v6164
      %8868 = vmatprep.subr.bf16.mxu0 %v6167
      %8869 = vmatpush1.bf16.msra.mxu0 %v6166
      %8870 = vmatprep.subr.bf16.mxu0 %v6169
      %8871 = vmatpush1.bf16.msra.mxu0 %v6168
      %8872 = vmatprep.subr.bf16.mxu0 %v6171
      %8873 = vmatpush1.bf16.msra.mxu0 %v6170
      %8874 = vmatprep.subr.bf16.mxu0 %v6173
      %8875 = vmatpush1.bf16.msra.mxu0 %v6172
      %8876 = vmatprep.subr.bf16.mxu0 %v6175
      %8877 = vmatpush1.bf16.msra.mxu0 %v6174
      %8878 = vmatprep.mubr.bf16.mxu0 %v2589
      %8879 = vmatmul.mubr.bf16.gmra.mrb[0].mxu0 %v2588
      %v8880 = vpop.f32.mrb[0].mxu0
      %v8881 = vadd.f32 %v8768, %v8880
      %v8882 = vpop.f32.mrb[0].mxu0
      %v8883 = vadd.f32 %v8770, %v8882
      %v8884 = vpop.f32.mrb[0].mxu0
      %v8885 = vadd.f32 %v8772, %v8884
      %v8886 = vpop.f32.mrb[0].mxu0
      %v8887 = vadd.f32 %v8774, %v8886
      %8888 = vmatprep.mubr.bf16.mxu0 %v2638
      %8889 = vmatmul.mubr.bf16.gmra.mrb[0].mxu0 %v2637
      %v8890 = vpop.f32.mrb[0].mxu0
      %v8891 = vadd.f32 %v8778, %v8890
      %v8892 = vpop.f32.mrb[0].mxu0
      %v8893 = vadd.f32 %v8780, %v8892
      %v8894 = vpop.f32.mrb[0].mxu0
      %v8895 = vadd.f32 %v8782, %v8894
      %v8896 = vpop.f32.mrb[0].mxu0
      %v8897 = vadd.f32 %v8784, %v8896
      %8898 = vmatprep.mubr.bf16.mxu0 %v2687
      %8899 = vmatmul.mubr.bf16.gmra.mrb[0].mxu0 %v2686
      %v8900 = vpop.f32.mrb[0].mxu0
      %v8901 = vadd.f32 %v8788, %v8900
      %v8902 = vpop.f32.mrb[0].mxu0
      %v8903 = vadd.f32 %v8790, %v8902
      %v8904 = vpop.f32.mrb[0].mxu0
      %v8905 = vadd.f32 %v8792, %v8904
      %v8906 = vpop.f32.mrb[0].mxu0
      %v8907 = vadd.f32 %v8794, %v8906
      %8908 = vmatprep.mubr.bf16.mxu0 %v2736
      %8909 = vmatmul.mubr.bf16.gmra.mrb[0].mxu0 %v2735
      %v8910 = vpop.f32.mrb[0].mxu0
      %v8911 = vadd.f32 %v8798, %v8910
      %v8912 = vpop.f32.mrb[0].mxu0
      %v8913 = vadd.f32 %v8800, %v8912
      %v8914 = vpop.f32.mrb[0].mxu0
      %v8915 = vadd.f32 %v8802, %v8914
      %v8916 = vpop.f32.mrb[0].mxu0
      %v8917 = vadd.f32 %v8804, %v8916
      %8918 = vmatprep.mubr.bf16.mxu0 %v2785
      %8919 = vmatmul.mubr.bf16.gmra.mrb[0].mxu0 %v2784
      %v8920 = vpop.f32.mrb[0].mxu0
      %v8921 = vadd.f32 %v8808, %v8920
      %v8922 = vpop.f32.mrb[0].mxu0
      %v8923 = vadd.f32 %v8810, %v8922
      %v8924 = vpop.f32.mrb[0].mxu0
      %v8925 = vadd.f32 %v8812, %v8924
      %v8926 = vpop.f32.mrb[0].mxu0
      %v8927 = vadd.f32 %v8814, %v8926
      %8928 = vmatprep.mubr.bf16.mxu0 %v2834
      %8929 = vmatmul.mubr.bf16.gmra.mrb[0].mxu0 %v2833
      %v8930 = vpop.f32.mrb[0].mxu0
      %v8931 = vadd.f32 %v8818, %v8930
      %v8932 = vpop.f32.mrb[0].mxu0
      %v8933 = vadd.f32 %v8820, %v8932
      %v8934 = vpop.f32.mrb[0].mxu0
      %v8935 = vadd.f32 %v8822, %v8934
      %v8936 = vpop.f32.mrb[0].mxu0
      %v8937 = vadd.f32 %v8824, %v8936
      %8938 = vmatprep.mubr.bf16.mxu0 %v2883
      %8939 = vmatmul.mubr.bf16.gmra.mrb[0].mxu0 %v2882
      %v8940 = vpop.f32.mrb[0].mxu0
      %v8941 = vadd.f32 %v8828, %v8940
      %v8942 = vpop.f32.mrb[0].mxu0
      %v8943 = vadd.f32 %v8830, %v8942
      %v8944 = vpop.f32.mrb[0].mxu0
      %v8945 = vadd.f32 %v8832, %v8944
      %v8946 = vpop.f32.mrb[0].mxu0
      %v8947 = vadd.f32 %v8834, %v8946
      %8948 = vmatprep.mubr.bf16.mxu0 %v2932
      %8949 = vmatmul.mubr.bf16.gmra.mrb[0].mxu0 %v2931
      %v8950 = vpop.f32.mrb[0].mxu0
      %v8951 = vadd.f32 %v8838, %v8950
      %v8952 = vpop.f32.mrb[0].mxu0
      %v8953 = vadd.f32 %v8840, %v8952
      %v8954 = vpop.f32.mrb[0].mxu0
      %v8955 = vadd.f32 %v8842, %v8954
      %v8956 = vpop.f32.mrb[0].mxu0
      %v8957 = vadd.f32 %v8844, %v8956
      %8958 = vdwg.mxu0
      %8959 = vmatprep.subr.bf16.mxu0 %v6177
      %8960 = vmatpush1.bf16.msra.mxu0 %v6176
      %8961 = vmatprep.subr.bf16.mxu0 %v6179
      %8962 = vmatpush1.bf16.msra.mxu0 %v6178
      %8963 = vmatprep.subr.bf16.mxu0 %v6181
      %8964 = vmatpush1.bf16.msra.mxu0 %v6180
      %8965 = vmatprep.subr.bf16.mxu0 %v6183
      %8966 = vmatpush1.bf16.msra.mxu0 %v6182
      %8967 = vmatprep.subr.bf16.mxu0 %v6185
      %8968 = vmatpush1.bf16.msra.mxu0 %v6184
      %8969 = vmatprep.subr.bf16.mxu0 %v6187
      %8970 = vmatpush1.bf16.msra.mxu0 %v6186
      %8971 = vmatprep.subr.bf16.mxu0 %v6189
      %8972 = vmatpush1.bf16.msra.mxu0 %v6188
      %8973 = vmatprep.subr.bf16.mxu0 %v6191
      %8974 = vmatpush1.bf16.msra.mxu0 %v6190
      %8975 = vmatprep.subr.bf16.mxu0 %v6193
      %8976 = vmatpush1.bf16.msra.mxu0 %v6192
      %8977 = vmatprep.subr.bf16.mxu0 %v6195
      %8978 = vmatpush1.bf16.msra.mxu0 %v6194
      %8979 = vmatprep.subr.bf16.mxu0 %v6197
      %8980 = vmatpush1.bf16.msra.mxu0 %v6196
      %8981 = vmatprep.subr.bf16.mxu0 %v6199
      %8982 = vmatpush1.bf16.msra.mxu0 %v6198
      %8983 = vmatprep.subr.bf16.mxu0 %v6201
      %8984 = vmatpush1.bf16.msra.mxu0 %v6200
      %8985 = vmatprep.subr.bf16.mxu0 %v6203
      %8986 = vmatpush1.bf16.msra.mxu0 %v6202
      %8987 = vmatprep.subr.bf16.mxu0 %v6205
      %8988 = vmatpush1.bf16.msra.mxu0 %v6204
      %8989 = vmatprep.subr.bf16.mxu0 %v6207
      %8990 = vmatpush1.bf16.msra.mxu0 %v6206
      %8991 = vmatprep.mubr.bf16.mxu0 %v2591
      %8992 = vmatmul.mubr.bf16.gmra.mrb[0].mxu0 %v2590
      %v8993 = vpop.f32.mrb[0].mxu0
      %v8994 = vadd.f32 %v8881, %v8993
      %v8995 = vpop.f32.mrb[0].mxu0
      %v8996 = vadd.f32 %v8883, %v8995
      %v8997 = vpop.f32.mrb[0].mxu0
      %v8998 = vadd.f32 %v8885, %v8997
      %v8999 = vpop.f32.mrb[0].mxu0
      %v9000 = vadd.f32 %v8887, %v8999
      %9001 = vmatprep.mubr.bf16.mxu0 %v2640
      %9002 = vmatmul.mubr.bf16.gmra.mrb[0].mxu0 %v2639
      %v9003 = vpop.f32.mrb[0].mxu0
      %v9004 = vadd.f32 %v8891, %v9003
      %v9005 = vpop.f32.mrb[0].mxu0
      %v9006 = vadd.f32 %v8893, %v9005
      %v9007 = vpop.f32.mrb[0].mxu0
      %v9008 = vadd.f32 %v8895, %v9007
      %v9009 = vpop.f32.mrb[0].mxu0
      %v9010 = vadd.f32 %v8897, %v9009
      %9011 = vmatprep.mubr.bf16.mxu0 %v2689
      %9012 = vmatmul.mubr.bf16.gmra.mrb[0].mxu0 %v2688
      %v9013 = vpop.f32.mrb[0].mxu0
      %v9014 = vadd.f32 %v8901, %v9013
      %v9015 = vpop.f32.mrb[0].mxu0
      %v9016 = vadd.f32 %v8903, %v9015
      %v9017 = vpop.f32.mrb[0].mxu0
      %v9018 = vadd.f32 %v8905, %v9017
      %v9019 = vpop.f32.mrb[0].mxu0
      %v9020 = vadd.f32 %v8907, %v9019
      %9021 = vmatprep.mubr.bf16.mxu0 %v2738
      %9022 = vmatmul.mubr.bf16.gmra.mrb[0].mxu0 %v2737
      %v9023 = vpop.f32.mrb[0].mxu0
      %v9024 = vadd.f32 %v8911, %v9023
      %v9025 = vpop.f32.mrb[0].mxu0
      %v9026 = vadd.f32 %v8913, %v9025
      %v9027 = vpop.f32.mrb[0].mxu0
      %v9028 = vadd.f32 %v8915, %v9027
      %v9029 = vpop.f32.mrb[0].mxu0
      %v9030 = vadd.f32 %v8917, %v9029
      %9031 = vmatprep.mubr.bf16.mxu0 %v2787
      %9032 = vmatmul.mubr.bf16.gmra.mrb[0].mxu0 %v2786
      %v9033 = vpop.f32.mrb[0].mxu0
      %v9034 = vadd.f32 %v8921, %v9033
      %v9035 = vpop.f32.mrb[0].mxu0
      %v9036 = vadd.f32 %v8923, %v9035
      %v9037 = vpop.f32.mrb[0].mxu0
      %v9038 = vadd.f32 %v8925, %v9037
      %v9039 = vpop.f32.mrb[0].mxu0
      %v9040 = vadd.f32 %v8927, %v9039
      %9041 = vmatprep.mubr.bf16.mxu0 %v2836
      %9042 = vmatmul.mubr.bf16.gmra.mrb[0].mxu0 %v2835
      %v9043 = vpop.f32.mrb[0].mxu0
      %v9044 = vadd.f32 %v8931, %v9043
      %v9045 = vpop.f32.mrb[0].mxu0
      %v9046 = vadd.f32 %v8933, %v9045
      %v9047 = vpop.f32.mrb[0].mxu0
      %v9048 = vadd.f32 %v8935, %v9047
      %v9049 = vpop.f32.mrb[0].mxu0
      %v9050 = vadd.f32 %v8937, %v9049
      %9051 = vmatprep.mubr.bf16.mxu0 %v2885
      %9052 = vmatmul.mubr.bf16.gmra.mrb[0].mxu0 %v2884
      %v9053 = vpop.f32.mrb[0].mxu0
      %v9054 = vadd.f32 %v8941, %v9053
      %v9055 = vpop.f32.mrb[0].mxu0
      %v9056 = vadd.f32 %v8943, %v9055
      %v9057 = vpop.f32.mrb[0].mxu0
      %v9058 = vadd.f32 %v8945, %v9057
      %v9059 = vpop.f32.mrb[0].mxu0
      %v9060 = vadd.f32 %v8947, %v9059
      %9061 = vmatprep.mubr.bf16.mxu0 %v2934
      %9062 = vmatmul.mubr.bf16.gmra.mrb[0].mxu0 %v2933
      %v9063 = vpop.f32.mrb[0].mxu0
      %v9064 = vadd.f32 %v8951, %v9063
      %v9065 = vpop.f32.mrb[0].mxu0
      %v9066 = vadd.f32 %v8953, %v9065
      %v9067 = vpop.f32.mrb[0].mxu0
      %v9068 = vadd.f32 %v8955, %v9067
      %v9069 = vpop.f32.mrb[0].mxu0
      %v9070 = vadd.f32 %v8957, %v9069
      %9071 = vdwg.mxu0
      %9072 = vmatprep.subr.bf16.mxu0 %v6209
      %9073 = vmatpush1.bf16.msra.mxu0 %v6208
      %9074 = vmatprep.subr.bf16.mxu0 %v6211
      %9075 = vmatpush1.bf16.msra.mxu0 %v6210
      %9076 = vmatprep.subr.bf16.mxu0 %v6213
      %9077 = vmatpush1.bf16.msra.mxu0 %v6212
      %9078 = vmatprep.subr.bf16.mxu0 %v6215
      %9079 = vmatpush1.bf16.msra.mxu0 %v6214
      %9080 = vmatprep.subr.bf16.mxu0 %v6217
      %9081 = vmatpush1.bf16.msra.mxu0 %v6216
      %9082 = vmatprep.subr.bf16.mxu0 %v6219
      %9083 = vmatpush1.bf16.msra.mxu0 %v6218
      %9084 = vmatprep.subr.bf16.mxu0 %v6221
      %9085 = vmatpush1.bf16.msra.mxu0 %v6220
      %9086 = vmatprep.subr.bf16.mxu0 %v6223
      %9087 = vmatpush1.bf16.msra.mxu0 %v6222
      %9088 = vmatprep.subr.bf16.mxu0 %v6225
      %9089 = vmatpush1.bf16.msra.mxu0 %v6224
      %9090 = vmatprep.subr.bf16.mxu0 %v6227
      %9091 = vmatpush1.bf16.msra.mxu0 %v6226
      %9092 = vmatprep.subr.bf16.mxu0 %v6229
      %9093 = vmatpush1.bf16.msra.mxu0 %v6228
      %9094 = vmatprep.subr.bf16.mxu0 %v6231
      %9095 = vmatpush1.bf16.msra.mxu0 %v6230
      %9096 = vmatprep.subr.bf16.mxu0 %v6233
      %9097 = vmatpush1.bf16.msra.mxu0 %v6232
      %9098 = vmatprep.subr.bf16.mxu0 %v6235
      %9099 = vmatpush1.bf16.msra.mxu0 %v6234
      %9100 = vmatprep.subr.bf16.mxu0 %v6237
      %9101 = vmatpush1.bf16.msra.mxu0 %v6236
      %9102 = vmatprep.subr.bf16.mxu0 %v6239
      %9103 = vmatpush1.bf16.msra.mxu0 %v6238
      %9104 = vmatprep.mubr.bf16.mxu0 %v2593
      %9105 = vmatmul.mubr.bf16.gmra.mrb[0].mxu0 %v2592
      %v9106 = vpop.f32.mrb[0].mxu0
      %v9107 = vadd.f32 %v8994, %v9106
      %v9108 = vpop.f32.mrb[0].mxu0
      %v9109 = vadd.f32 %v8996, %v9108
      %v9110 = vpop.f32.mrb[0].mxu0
      %v9111 = vadd.f32 %v8998, %v9110
      %v9112 = vpop.f32.mrb[0].mxu0
      %v9113 = vadd.f32 %v9000, %v9112
      %9114 = vmatprep.mubr.bf16.mxu0 %v2642
      %9115 = vmatmul.mubr.bf16.gmra.mrb[0].mxu0 %v2641
      %v9116 = vpop.f32.mrb[0].mxu0
      %v9117 = vadd.f32 %v9004, %v9116
      %v9118 = vpop.f32.mrb[0].mxu0
      %v9119 = vadd.f32 %v9006, %v9118
      %v9120 = vpop.f32.mrb[0].mxu0
      %v9121 = vadd.f32 %v9008, %v9120
      %v9122 = vpop.f32.mrb[0].mxu0
      %v9123 = vadd.f32 %v9010, %v9122
      %9124 = vmatprep.mubr.bf16.mxu0 %v2691
      %9125 = vmatmul.mubr.bf16.gmra.mrb[0].mxu0 %v2690
      %v9126 = vpop.f32.mrb[0].mxu0
      %v9127 = vadd.f32 %v9014, %v9126
      %v9128 = vpop.f32.mrb[0].mxu0
      %v9129 = vadd.f32 %v9016, %v9128
      %v9130 = vpop.f32.mrb[0].mxu0
      %v9131 = vadd.f32 %v9018, %v9130
      %v9132 = vpop.f32.mrb[0].mxu0
      %v9133 = vadd.f32 %v9020, %v9132
      %9134 = vmatprep.mubr.bf16.mxu0 %v2740
      %9135 = vmatmul.mubr.bf16.gmra.mrb[0].mxu0 %v2739
      %v9136 = vpop.f32.mrb[0].mxu0
      %v9137 = vadd.f32 %v9024, %v9136
      %v9138 = vpop.f32.mrb[0].mxu0
      %v9139 = vadd.f32 %v9026, %v9138
      %v9140 = vpop.f32.mrb[0].mxu0
      %v9141 = vadd.f32 %v9028, %v9140
      %v9142 = vpop.f32.mrb[0].mxu0
      %v9143 = vadd.f32 %v9030, %v9142
      %9144 = vmatprep.mubr.bf16.mxu0 %v2789
      %9145 = vmatmul.mubr.bf16.gmra.mrb[0].mxu0 %v2788
      %v9146 = vpop.f32.mrb[0].mxu0
      %v9147 = vadd.f32 %v9034, %v9146
      %v9148 = vpop.f32.mrb[0].mxu0
      %v9149 = vadd.f32 %v9036, %v9148
      %v9150 = vpop.f32.mrb[0].mxu0
      %v9151 = vadd.f32 %v9038, %v9150
      %v9152 = vpop.f32.mrb[0].mxu0
      %v9153 = vadd.f32 %v9040, %v9152
      %9154 = vmatprep.mubr.bf16.mxu0 %v2838
      %9155 = vmatmul.mubr.bf16.gmra.mrb[0].mxu0 %v2837
      %v9156 = vpop.f32.mrb[0].mxu0
      %v9157 = vadd.f32 %v9044, %v9156
      %v9158 = vpop.f32.mrb[0].mxu0
      %v9159 = vadd.f32 %v9046, %v9158
      %v9160 = vpop.f32.mrb[0].mxu0
      %v9161 = vadd.f32 %v9048, %v9160
      %v9162 = vpop.f32.mrb[0].mxu0
      %v9163 = vadd.f32 %v9050, %v9162
      %9164 = vmatprep.mubr.bf16.mxu0 %v2887
      %9165 = vmatmul.mubr.bf16.gmra.mrb[0].mxu0 %v2886
      %v9166 = vpop.f32.mrb[0].mxu0
      %v9167 = vadd.f32 %v9054, %v9166
      %v9168 = vpop.f32.mrb[0].mxu0
      %v9169 = vadd.f32 %v9056, %v9168
      %v9170 = vpop.f32.mrb[0].mxu0
      %v9171 = vadd.f32 %v9058, %v9170
      %v9172 = vpop.f32.mrb[0].mxu0
      %v9173 = vadd.f32 %v9060, %v9172
      %9174 = vmatprep.mubr.bf16.mxu0 %v2936
      %9175 = vmatmul.mubr.bf16.gmra.mrb[0].mxu0 %v2935
      %v9176 = vpop.f32.mrb[0].mxu0
      %v9177 = vadd.f32 %v9064, %v9176
      %v9178 = vpop.f32.mrb[0].mxu0
      %v9179 = vadd.f32 %v9066, %v9178
      %v9180 = vpop.f32.mrb[0].mxu0
      %v9181 = vadd.f32 %v9068, %v9180
      %v9182 = vpop.f32.mrb[0].mxu0
      %v9183 = vadd.f32 %v9070, %v9182
      %9184 = vdwg.mxu0
      %9185 = vmatprep.subr.bf16.mxu0 %v6241
      %9186 = vmatpush1.bf16.msra.mxu0 %v6240
      %9187 = vmatprep.subr.bf16.mxu0 %v6243
      %9188 = vmatpush1.bf16.msra.mxu0 %v6242
      %9189 = vmatprep.subr.bf16.mxu0 %v6245
      %9190 = vmatpush1.bf16.msra.mxu0 %v6244
      %9191 = vmatprep.subr.bf16.mxu0 %v6247
      %9192 = vmatpush1.bf16.msra.mxu0 %v6246
      %9193 = vmatprep.subr.bf16.mxu0 %v6249
      %9194 = vmatpush1.bf16.msra.mxu0 %v6248
      %9195 = vmatprep.subr.bf16.mxu0 %v6251
      %9196 = vmatpush1.bf16.msra.mxu0 %v6250
      %9197 = vmatprep.subr.bf16.mxu0 %v6253
      %9198 = vmatpush1.bf16.msra.mxu0 %v6252
      %9199 = vmatprep.subr.bf16.mxu0 %v6255
      %9200 = vmatpush1.bf16.msra.mxu0 %v6254
      %9201 = vmatprep.subr.bf16.mxu0 %v6257
      %9202 = vmatpush1.bf16.msra.mxu0 %v6256
      %9203 = vmatprep.subr.bf16.mxu0 %v6259
      %9204 = vmatpush1.bf16.msra.mxu0 %v6258
      %9205 = vmatprep.subr.bf16.mxu0 %v6261
      %9206 = vmatpush1.bf16.msra.mxu0 %v6260
      %9207 = vmatprep.subr.bf16.mxu0 %v6263
      %9208 = vmatpush1.bf16.msra.mxu0 %v6262
      %9209 = vmatprep.subr.bf16.mxu0 %v6265
      %9210 = vmatpush1.bf16.msra.mxu0 %v6264
      %9211 = vmatprep.subr.bf16.mxu0 %v6267
      %9212 = vmatpush1.bf16.msra.mxu0 %v6266
      %9213 = vmatprep.subr.bf16.mxu0 %v6269
      %9214 = vmatpush1.bf16.msra.mxu0 %v6268
      %9215 = vmatprep.subr.bf16.mxu0 %v6271
      %9216 = vmatpush1.bf16.msra.mxu0 %v6270
      %9217 = vmatprep.mubr.bf16.mxu0 %v2595
      %9218 = vmatmul.mubr.bf16.gmra.mrb[0].mxu0 %v2594
      %v9219 = vpop.f32.mrb[0].mxu0
      %v9220 = vadd.f32 %v9107, %v9219
      %v9221 = vpop.f32.mrb[0].mxu0
      %v9222 = vadd.f32 %v9109, %v9221
      %v9223 = vpop.f32.mrb[0].mxu0
      %v9224 = vadd.f32 %v9111, %v9223
      %v9225 = vpop.f32.mrb[0].mxu0
      %v9226 = vadd.f32 %v9113, %v9225
      %9227 = vmatprep.mubr.bf16.mxu0 %v2644
      %9228 = vmatmul.mubr.bf16.gmra.mrb[0].mxu0 %v2643
      %v9229 = vpop.f32.mrb[0].mxu0
      %v9230 = vadd.f32 %v9117, %v9229
      %v9231 = vpop.f32.mrb[0].mxu0
      %v9232 = vadd.f32 %v9119, %v9231
      %v9233 = vpop.f32.mrb[0].mxu0
      %v9234 = vadd.f32 %v9121, %v9233
      %v9235 = vpop.f32.mrb[0].mxu0
      %v9236 = vadd.f32 %v9123, %v9235
      %9237 = vmatprep.mubr.bf16.mxu0 %v2693
      %9238 = vmatmul.mubr.bf16.gmra.mrb[0].mxu0 %v2692
      %v9239 = vpop.f32.mrb[0].mxu0
      %v9240 = vadd.f32 %v9127, %v9239
      %v9241 = vpop.f32.mrb[0].mxu0
      %v9242 = vadd.f32 %v9129, %v9241
      %v9243 = vpop.f32.mrb[0].mxu0
      %v9244 = vadd.f32 %v9131, %v9243
      %v9245 = vpop.f32.mrb[0].mxu0
      %v9246 = vadd.f32 %v9133, %v9245
      %9247 = vmatprep.mubr.bf16.mxu0 %v2742
      %9248 = vmatmul.mubr.bf16.gmra.mrb[0].mxu0 %v2741
      %v9249 = vpop.f32.mrb[0].mxu0
      %v9250 = vadd.f32 %v9137, %v9249
      %v9251 = vpop.f32.mrb[0].mxu0
      %v9252 = vadd.f32 %v9139, %v9251
      %v9253 = vpop.f32.mrb[0].mxu0
      %v9254 = vadd.f32 %v9141, %v9253
      %v9255 = vpop.f32.mrb[0].mxu0
      %v9256 = vadd.f32 %v9143, %v9255
      %9257 = vmatprep.mubr.bf16.mxu0 %v2791
      %9258 = vmatmul.mubr.bf16.gmra.mrb[0].mxu0 %v2790
      %v9259 = vpop.f32.mrb[0].mxu0
      %v9260 = vadd.f32 %v9147, %v9259
      %v9261 = vpop.f32.mrb[0].mxu0
      %v9262 = vadd.f32 %v9149, %v9261
      %v9263 = vpop.f32.mrb[0].mxu0
      %v9264 = vadd.f32 %v9151, %v9263
      %v9265 = vpop.f32.mrb[0].mxu0
      %v9266 = vadd.f32 %v9153, %v9265
      %9267 = vmatprep.mubr.bf16.mxu0 %v2840
      %9268 = vmatmul.mubr.bf16.gmra.mrb[0].mxu0 %v2839
      %v9269 = vpop.f32.mrb[0].mxu0
      %v9270 = vadd.f32 %v9157, %v9269
      %v9271 = vpop.f32.mrb[0].mxu0
      %v9272 = vadd.f32 %v9159, %v9271
      %v9273 = vpop.f32.mrb[0].mxu0
      %v9274 = vadd.f32 %v9161, %v9273
      %v9275 = vpop.f32.mrb[0].mxu0
      %v9276 = vadd.f32 %v9163, %v9275
      %9277 = vmatprep.mubr.bf16.mxu0 %v2889
      %9278 = vmatmul.mubr.bf16.gmra.mrb[0].mxu0 %v2888
      %v9279 = vpop.f32.mrb[0].mxu0
      %v9280 = vadd.f32 %v9167, %v9279
      %v9281 = vpop.f32.mrb[0].mxu0
      %v9282 = vadd.f32 %v9169, %v9281
      %v9283 = vpop.f32.mrb[0].mxu0
      %v9284 = vadd.f32 %v9171, %v9283
      %v9285 = vpop.f32.mrb[0].mxu0
      %v9286 = vadd.f32 %v9173, %v9285
      %9287 = vmatprep.mubr.bf16.mxu0 %v2938
      %9288 = vmatmul.mubr.bf16.gmra.mrb[0].mxu0 %v2937
      %v9289 = vpop.f32.mrb[0].mxu0
      %v9290 = vadd.f32 %v9177, %v9289
      %v9291 = vpop.f32.mrb[0].mxu0
      %v9292 = vadd.f32 %v9179, %v9291
      %v9293 = vpop.f32.mrb[0].mxu0
      %v9294 = vadd.f32 %v9181, %v9293
      %v9295 = vpop.f32.mrb[0].mxu0
      %v9296 = vadd.f32 %v9183, %v9295
      %9297 = vdwg.mxu0
      %9298 = vmatprep.subr.bf16.mxu0 %v6273
      %9299 = vmatpush1.bf16.msra.mxu0 %v6272
      %9300 = vmatprep.subr.bf16.mxu0 %v6275
      %9301 = vmatpush1.bf16.msra.mxu0 %v6274
      %9302 = vmatprep.subr.bf16.mxu0 %v6277
      %9303 = vmatpush1.bf16.msra.mxu0 %v6276
      %9304 = vmatprep.subr.bf16.mxu0 %v6279
      %9305 = vmatpush1.bf16.msra.mxu0 %v6278
      %9306 = vmatprep.subr.bf16.mxu0 %v6281
      %9307 = vmatpush1.bf16.msra.mxu0 %v6280
      %9308 = vmatprep.subr.bf16.mxu0 %v6283
      %9309 = vmatpush1.bf16.msra.mxu0 %v6282
      %9310 = vmatprep.subr.bf16.mxu0 %v6285
      %9311 = vmatpush1.bf16.msra.mxu0 %v6284
      %9312 = vmatprep.subr.bf16.mxu0 %v6287
      %9313 = vmatpush1.bf16.msra.mxu0 %v6286
      %9314 = vmatprep.subr.bf16.mxu0 %v6289
      %9315 = vmatpush1.bf16.msra.mxu0 %v6288
      %9316 = vmatprep.subr.bf16.mxu0 %v6291
      %9317 = vmatpush1.bf16.msra.mxu0 %v6290
      %9318 = vmatprep.subr.bf16.mxu0 %v6293
      %9319 = vmatpush1.bf16.msra.mxu0 %v6292
      %9320 = vmatprep.subr.bf16.mxu0 %v6295
      %9321 = vmatpush1.bf16.msra.mxu0 %v6294
      %9322 = vmatprep.subr.bf16.mxu0 %v6297
      %9323 = vmatpush1.bf16.msra.mxu0 %v6296
      %9324 = vmatprep.subr.bf16.mxu0 %v6299
      %9325 = vmatpush1.bf16.msra.mxu0 %v6298
      %9326 = vmatprep.subr.bf16.mxu0 %v6301
      %9327 = vmatpush1.bf16.msra.mxu0 %v6300
      %9328 = vmatprep.subr.bf16.mxu0 %v6303
      %9329 = vmatpush1.bf16.msra.mxu0 %v6302
      %9330 = vmatprep.mubr.bf16.mxu0 %v2597
      %9331 = vmatmul.mubr.bf16.gmra.mrb[0].mxu0 %v2596
      %v9332 = vpop.f32.mrb[0].mxu0
      %v9333 = vadd.f32 %v9220, %v9332
      %v9334 = vpop.f32.mrb[0].mxu0
      %v9335 = vadd.f32 %v9222, %v9334
      %v9336 = vpop.f32.mrb[0].mxu0
      %v9337 = vadd.f32 %v9224, %v9336
      %v9338 = vpop.f32.mrb[0].mxu0
      %v9339 = vadd.f32 %v9226, %v9338
      %9340 = vmatprep.mubr.bf16.mxu0 %v2646
      %9341 = vmatmul.mubr.bf16.gmra.mrb[0].mxu0 %v2645
      %v9342 = vpop.f32.mrb[0].mxu0
      %v9343 = vadd.f32 %v9230, %v9342
      %v9344 = vpop.f32.mrb[0].mxu0
      %v9345 = vadd.f32 %v9232, %v9344
      %v9346 = vpop.f32.mrb[0].mxu0
      %v9347 = vadd.f32 %v9234, %v9346
      %v9348 = vpop.f32.mrb[0].mxu0
      %v9349 = vadd.f32 %v9236, %v9348
      %9350 = vmatprep.mubr.bf16.mxu0 %v2695
      %9351 = vmatmul.mubr.bf16.gmra.mrb[0].mxu0 %v2694
      %v9352 = vpop.f32.mrb[0].mxu0
      %v9353 = vadd.f32 %v9240, %v9352
      %v9354 = vpop.f32.mrb[0].mxu0
      %v9355 = vadd.f32 %v9242, %v9354
      %v9356 = vpop.f32.mrb[0].mxu0
      %v9357 = vadd.f32 %v9244, %v9356
      %v9358 = vpop.f32.mrb[0].mxu0
      %v9359 = vadd.f32 %v9246, %v9358
      %9360 = vmatprep.mubr.bf16.mxu0 %v2744
      %9361 = vmatmul.mubr.bf16.gmra.mrb[0].mxu0 %v2743
      %v9362 = vpop.f32.mrb[0].mxu0
      %v9363 = vadd.f32 %v9250, %v9362
      %v9364 = vpop.f32.mrb[0].mxu0
      %v9365 = vadd.f32 %v9252, %v9364
      %v9366 = vpop.f32.mrb[0].mxu0
      %v9367 = vadd.f32 %v9254, %v9366
      %v9368 = vpop.f32.mrb[0].mxu0
      %v9369 = vadd.f32 %v9256, %v9368
      %9370 = vmatprep.mubr.bf16.mxu0 %v2793
      %9371 = vmatmul.mubr.bf16.gmra.mrb[0].mxu0 %v2792
      %v9372 = vpop.f32.mrb[0].mxu0
      %v9373 = vadd.f32 %v9260, %v9372
      %v9374 = vpop.f32.mrb[0].mxu0
      %v9375 = vadd.f32 %v9262, %v9374
      %v9376 = vpop.f32.mrb[0].mxu0
      %v9377 = vadd.f32 %v9264, %v9376
      %v9378 = vpop.f32.mrb[0].mxu0
      %v9379 = vadd.f32 %v9266, %v9378
      %9380 = vmatprep.mubr.bf16.mxu0 %v2842
      %9381 = vmatmul.mubr.bf16.gmra.mrb[0].mxu0 %v2841
      %v9382 = vpop.f32.mrb[0].mxu0
      %v9383 = vadd.f32 %v9270, %v9382
      %v9384 = vpop.f32.mrb[0].mxu0
      %v9385 = vadd.f32 %v9272, %v9384
      %v9386 = vpop.f32.mrb[0].mxu0
      %v9387 = vadd.f32 %v9274, %v9386
      %v9388 = vpop.f32.mrb[0].mxu0
      %v9389 = vadd.f32 %v9276, %v9388
      %9390 = vmatprep.mubr.bf16.mxu0 %v2891
      %9391 = vmatmul.mubr.bf16.gmra.mrb[0].mxu0 %v2890
      %v9392 = vpop.f32.mrb[0].mxu0
      %v9393 = vadd.f32 %v9280, %v9392
      %v9394 = vpop.f32.mrb[0].mxu0
      %v9395 = vadd.f32 %v9282, %v9394
      %v9396 = vpop.f32.mrb[0].mxu0
      %v9397 = vadd.f32 %v9284, %v9396
      %v9398 = vpop.f32.mrb[0].mxu0
      %v9399 = vadd.f32 %v9286, %v9398
      %9400 = vmatprep.mubr.bf16.mxu0 %v2940
      %9401 = vmatmul.mubr.bf16.gmra.mrb[0].mxu0 %v2939
      %v9402 = vpop.f32.mrb[0].mxu0
      %v9403 = vadd.f32 %v9290, %v9402
      %v9404 = vpop.f32.mrb[0].mxu0
      %v9405 = vadd.f32 %v9292, %v9404
      %v9406 = vpop.f32.mrb[0].mxu0
      %v9407 = vadd.f32 %v9294, %v9406
      %v9408 = vpop.f32.mrb[0].mxu0
      %v9409 = vadd.f32 %v9296, %v9408
      %9410 = vdwg.mxu0
      %9411 = vmatprep.subr.bf16.mxu0 %v6305
      %9412 = vmatpush1.bf16.msra.mxu0 %v6304
      %9413 = vmatprep.subr.bf16.mxu0 %v6307
      %9414 = vmatpush1.bf16.msra.mxu0 %v6306
      %9415 = vmatprep.subr.bf16.mxu0 %v6309
      %9416 = vmatpush1.bf16.msra.mxu0 %v6308
      %9417 = vmatprep.subr.bf16.mxu0 %v6311
      %9418 = vmatpush1.bf16.msra.mxu0 %v6310
      %9419 = vmatprep.subr.bf16.mxu0 %v6313
      %9420 = vmatpush1.bf16.msra.mxu0 %v6312
      %9421 = vmatprep.subr.bf16.mxu0 %v6315
      %9422 = vmatpush1.bf16.msra.mxu0 %v6314
      %9423 = vmatprep.subr.bf16.mxu0 %v6317
      %9424 = vmatpush1.bf16.msra.mxu0 %v6316
      %9425 = vmatprep.subr.bf16.mxu0 %v6319
      %9426 = vmatpush1.bf16.msra.mxu0 %v6318
      %9427 = vmatprep.subr.bf16.mxu0 %v6321
      %9428 = vmatpush1.bf16.msra.mxu0 %v6320
      %9429 = vmatprep.subr.bf16.mxu0 %v6323
      %9430 = vmatpush1.bf16.msra.mxu0 %v6322
      %9431 = vmatprep.subr.bf16.mxu0 %v6325
      %9432 = vmatpush1.bf16.msra.mxu0 %v6324
      %9433 = vmatprep.subr.bf16.mxu0 %v6327
      %9434 = vmatpush1.bf16.msra.mxu0 %v6326
      %9435 = vmatprep.subr.bf16.mxu0 %v6329
      %9436 = vmatpush1.bf16.msra.mxu0 %v6328
      %9437 = vmatprep.subr.bf16.mxu0 %v6331
      %9438 = vmatpush1.bf16.msra.mxu0 %v6330
      %9439 = vmatprep.subr.bf16.mxu0 %v6333
      %9440 = vmatpush1.bf16.msra.mxu0 %v6332
      %9441 = vmatprep.subr.bf16.mxu0 %v6335
      %9442 = vmatpush1.bf16.msra.mxu0 %v6334
      %9443 = vmatprep.mubr.bf16.mxu0 %v2599
      %9444 = vmatmul.mubr.bf16.gmra.mrb[0].mxu0 %v2598
      %v9445 = vpop.f32.mrb[0].mxu0
      %v9446 = vadd.f32 %v9333, %v9445
      %v9447 = vpop.f32.mrb[0].mxu0
      %v9448 = vadd.f32 %v9335, %v9447
      %v9449 = vpop.f32.mrb[0].mxu0
      %v9450 = vadd.f32 %v9337, %v9449
      %v9451 = vpop.f32.mrb[0].mxu0
      %v9452 = vadd.f32 %v9339, %v9451
      %9453 = vmatprep.mubr.bf16.mxu0 %v2648
      %9454 = vmatmul.mubr.bf16.gmra.mrb[0].mxu0 %v2647
      %v9455 = vpop.f32.mrb[0].mxu0
      %v9456 = vadd.f32 %v9343, %v9455
      %v9457 = vpop.f32.mrb[0].mxu0
      %v9458 = vadd.f32 %v9345, %v9457
      %v9459 = vpop.f32.mrb[0].mxu0
      %v9460 = vadd.f32 %v9347, %v9459
      %v9461 = vpop.f32.mrb[0].mxu0
      %v9462 = vadd.f32 %v9349, %v9461
      %9463 = vmatprep.mubr.bf16.mxu0 %v2697
      %9464 = vmatmul.mubr.bf16.gmra.mrb[0].mxu0 %v2696
      %v9465 = vpop.f32.mrb[0].mxu0
      %v9466 = vadd.f32 %v9353, %v9465
      %v9467 = vpop.f32.mrb[0].mxu0
      %v9468 = vadd.f32 %v9355, %v9467
      %v9469 = vpop.f32.mrb[0].mxu0
      %v9470 = vadd.f32 %v9357, %v9469
      %v9471 = vpop.f32.mrb[0].mxu0
      %v9472 = vadd.f32 %v9359, %v9471
      %9473 = vmatprep.mubr.bf16.mxu0 %v2746
      %9474 = vmatmul.mubr.bf16.gmra.mrb[0].mxu0 %v2745
      %v9475 = vpop.f32.mrb[0].mxu0
      %v9476 = vadd.f32 %v9363, %v9475
      %v9477 = vpop.f32.mrb[0].mxu0
      %v9478 = vadd.f32 %v9365, %v9477
      %v9479 = vpop.f32.mrb[0].mxu0
      %v9480 = vadd.f32 %v9367, %v9479
      %v9481 = vpop.f32.mrb[0].mxu0
      %v9482 = vadd.f32 %v9369, %v9481
      %9483 = vmatprep.mubr.bf16.mxu0 %v2795
      %9484 = vmatmul.mubr.bf16.gmra.mrb[0].mxu0 %v2794
      %v9485 = vpop.f32.mrb[0].mxu0
      %v9486 = vadd.f32 %v9373, %v9485
      %v9487 = vpop.f32.mrb[0].mxu0
      %v9488 = vadd.f32 %v9375, %v9487
      %v9489 = vpop.f32.mrb[0].mxu0
      %v9490 = vadd.f32 %v9377, %v9489
      %v9491 = vpop.f32.mrb[0].mxu0
      %v9492 = vadd.f32 %v9379, %v9491
      %9493 = vmatprep.mubr.bf16.mxu0 %v2844
      %9494 = vmatmul.mubr.bf16.gmra.mrb[0].mxu0 %v2843
      %v9495 = vpop.f32.mrb[0].mxu0
      %v9496 = vadd.f32 %v9383, %v9495
      %v9497 = vpop.f32.mrb[0].mxu0
      %v9498 = vadd.f32 %v9385, %v9497
      %v9499 = vpop.f32.mrb[0].mxu0
      %v9500 = vadd.f32 %v9387, %v9499
      %v9501 = vpop.f32.mrb[0].mxu0
      %v9502 = vadd.f32 %v9389, %v9501
      %9503 = vmatprep.mubr.bf16.mxu0 %v2893
      %9504 = vmatmul.mubr.bf16.gmra.mrb[0].mxu0 %v2892
      %v9505 = vpop.f32.mrb[0].mxu0
      %v9506 = vadd.f32 %v9393, %v9505
      %v9507 = vpop.f32.mrb[0].mxu0
      %v9508 = vadd.f32 %v9395, %v9507
      %v9509 = vpop.f32.mrb[0].mxu0
      %v9510 = vadd.f32 %v9397, %v9509
      %v9511 = vpop.f32.mrb[0].mxu0
      %v9512 = vadd.f32 %v9399, %v9511
      %9513 = vmatprep.mubr.bf16.mxu0 %v2942
      %9514 = vmatmul.mubr.bf16.gmra.mrb[0].mxu0 %v2941
      %v9515 = vpop.f32.mrb[0].mxu0
      %v9516 = vadd.f32 %v9403, %v9515
      %v9517 = vpop.f32.mrb[0].mxu0
      %v9518 = vadd.f32 %v9405, %v9517
      %v9519 = vpop.f32.mrb[0].mxu0
      %v9520 = vadd.f32 %v9407, %v9519
      %v9521 = vpop.f32.mrb[0].mxu0
      %v9522 = vadd.f32 %v9409, %v9521
      %9523 = vdwg.mxu0
      %9524 = vmatprep.subr.bf16.mxu0 %v6337
      %9525 = vmatpush1.bf16.msra.mxu0 %v6336
      %9526 = vmatprep.subr.bf16.mxu0 %v6339
      %9527 = vmatpush1.bf16.msra.mxu0 %v6338
      %9528 = vmatprep.subr.bf16.mxu0 %v6341
      %9529 = vmatpush1.bf16.msra.mxu0 %v6340
      %9530 = vmatprep.subr.bf16.mxu0 %v6343
      %9531 = vmatpush1.bf16.msra.mxu0 %v6342
      %9532 = vmatprep.subr.bf16.mxu0 %v6345
      %9533 = vmatpush1.bf16.msra.mxu0 %v6344
      %9534 = vmatprep.subr.bf16.mxu0 %v6347
      %9535 = vmatpush1.bf16.msra.mxu0 %v6346
      %9536 = vmatprep.subr.bf16.mxu0 %v6349
      %9537 = vmatpush1.bf16.msra.mxu0 %v6348
      %9538 = vmatprep.subr.bf16.mxu0 %v6351
      %9539 = vmatpush1.bf16.msra.mxu0 %v6350
      %9540 = vmatprep.subr.bf16.mxu0 %v6353
      %9541 = vmatpush1.bf16.msra.mxu0 %v6352
      %9542 = vmatprep.subr.bf16.mxu0 %v6355
      %9543 = vmatpush1.bf16.msra.mxu0 %v6354
      %9544 = vmatprep.subr.bf16.mxu0 %v6357
      %9545 = vmatpush1.bf16.msra.mxu0 %v6356
      %9546 = vmatprep.subr.bf16.mxu0 %v6359
      %9547 = vmatpush1.bf16.msra.mxu0 %v6358
      %9548 = vmatprep.subr.bf16.mxu0 %v6361
      %9549 = vmatpush1.bf16.msra.mxu0 %v6360
      %9550 = vmatprep.subr.bf16.mxu0 %v6363
      %9551 = vmatpush1.bf16.msra.mxu0 %v6362
      %9552 = vmatprep.subr.bf16.mxu0 %v6365
      %9553 = vmatpush1.bf16.msra.mxu0 %v6364
      %9554 = vmatprep.subr.bf16.mxu0 %v6367
      %9555 = vmatpush1.bf16.msra.mxu0 %v6366
      %9556 = vmatprep.mubr.bf16.mxu0 %v2601
      %9557 = vmatmul.mubr.bf16.gmra.mrb[0].mxu0 %v2600
      %v9558 = vpop.f32.mrb[0].mxu0
      %v9559 = vadd.f32 %v9446, %v9558
      %v9560 = vpop.f32.mrb[0].mxu0
      %v9561 = vadd.f32 %v9448, %v9560
      %v9562 = vpop.f32.mrb[0].mxu0
      %v9563 = vadd.f32 %v9450, %v9562
      %v9564 = vpop.f32.mrb[0].mxu0
      %v9565 = vadd.f32 %v9452, %v9564
      %9566 = vmatprep.mubr.bf16.mxu0 %v2650
      %9567 = vmatmul.mubr.bf16.gmra.mrb[0].mxu0 %v2649
      %v9568 = vpop.f32.mrb[0].mxu0
      %v9569 = vadd.f32 %v9456, %v9568
      %v9570 = vpop.f32.mrb[0].mxu0
      %v9571 = vadd.f32 %v9458, %v9570
      %v9572 = vpop.f32.mrb[0].mxu0
      %v9573 = vadd.f32 %v9460, %v9572
      %v9574 = vpop.f32.mrb[0].mxu0
      %v9575 = vadd.f32 %v9462, %v9574
      %9576 = vmatprep.mubr.bf16.mxu0 %v2699
      %9577 = vmatmul.mubr.bf16.gmra.mrb[0].mxu0 %v2698
      %v9578 = vpop.f32.mrb[0].mxu0
      %v9579 = vadd.f32 %v9466, %v9578
      %v9580 = vpop.f32.mrb[0].mxu0
      %v9581 = vadd.f32 %v9468, %v9580
      %v9582 = vpop.f32.mrb[0].mxu0
      %v9583 = vadd.f32 %v9470, %v9582
      %v9584 = vpop.f32.mrb[0].mxu0
      %v9585 = vadd.f32 %v9472, %v9584
      %9586 = vmatprep.mubr.bf16.mxu0 %v2748
      %9587 = vmatmul.mubr.bf16.gmra.mrb[0].mxu0 %v2747
      %v9588 = vpop.f32.mrb[0].mxu0
      %v9589 = vadd.f32 %v9476, %v9588
      %v9590 = vpop.f32.mrb[0].mxu0
      %v9591 = vadd.f32 %v9478, %v9590
      %v9592 = vpop.f32.mrb[0].mxu0
      %v9593 = vadd.f32 %v9480, %v9592
      %v9594 = vpop.f32.mrb[0].mxu0
      %v9595 = vadd.f32 %v9482, %v9594
      %9596 = vmatprep.mubr.bf16.mxu0 %v2797
      %9597 = vmatmul.mubr.bf16.gmra.mrb[0].mxu0 %v2796
      %v9598 = vpop.f32.mrb[0].mxu0
      %v9599 = vadd.f32 %v9486, %v9598
      %v9600 = vpop.f32.mrb[0].mxu0
      %v9601 = vadd.f32 %v9488, %v9600
      %v9602 = vpop.f32.mrb[0].mxu0
      %v9603 = vadd.f32 %v9490, %v9602
      %v9604 = vpop.f32.mrb[0].mxu0
      %v9605 = vadd.f32 %v9492, %v9604
      %9606 = vmatprep.mubr.bf16.mxu0 %v2846
      %9607 = vmatmul.mubr.bf16.gmra.mrb[0].mxu0 %v2845
      %v9608 = vpop.f32.mrb[0].mxu0
      %v9609 = vadd.f32 %v9496, %v9608
      %v9610 = vpop.f32.mrb[0].mxu0
      %v9611 = vadd.f32 %v9498, %v9610
      %v9612 = vpop.f32.mrb[0].mxu0
      %v9613 = vadd.f32 %v9500, %v9612
      %v9614 = vpop.f32.mrb[0].mxu0
      %v9615 = vadd.f32 %v9502, %v9614
      %9616 = vmatprep.mubr.bf16.mxu0 %v2895
      %9617 = vmatmul.mubr.bf16.gmra.mrb[0].mxu0 %v2894
      %v9618 = vpop.f32.mrb[0].mxu0
      %v9619 = vadd.f32 %v9506, %v9618
      %v9620 = vpop.f32.mrb[0].mxu0
      %v9621 = vadd.f32 %v9508, %v9620
      %v9622 = vpop.f32.mrb[0].mxu0
      %v9623 = vadd.f32 %v9510, %v9622
      %v9624 = vpop.f32.mrb[0].mxu0
      %v9625 = vadd.f32 %v9512, %v9624
      %9626 = vmatprep.mubr.bf16.mxu0 %v2944
      %9627 = vmatmul.mubr.bf16.gmra.mrb[0].mxu0 %v2943
      %v9628 = vpop.f32.mrb[0].mxu0
      %v9629 = vadd.f32 %v9516, %v9628
      %v9630 = vpop.f32.mrb[0].mxu0
      %v9631 = vadd.f32 %v9518, %v9630
      %v9632 = vpop.f32.mrb[0].mxu0
      %v9633 = vadd.f32 %v9520, %v9632
      %v9634 = vpop.f32.mrb[0].mxu0
      %v9635 = vadd.f32 %v9522, %v9634
      %9636 = vdwg.mxu0
      %9637 = vmatprep.subr.bf16.mxu0 %v6369
      %9638 = vmatpush1.bf16.msra.mxu0 %v6368
      %9639 = vmatprep.subr.bf16.mxu0 %v6371
      %9640 = vmatpush1.bf16.msra.mxu0 %v6370
      %9641 = vmatprep.subr.bf16.mxu0 %v6373
      %9642 = vmatpush1.bf16.msra.mxu0 %v6372
      %9643 = vmatprep.subr.bf16.mxu0 %v6375
      %9644 = vmatpush1.bf16.msra.mxu0 %v6374
      %9645 = vmatprep.subr.bf16.mxu0 %v6377
      %9646 = vmatpush1.bf16.msra.mxu0 %v6376
      %9647 = vmatprep.subr.bf16.mxu0 %v6379
      %9648 = vmatpush1.bf16.msra.mxu0 %v6378
      %9649 = vmatprep.subr.bf16.mxu0 %v6381
      %9650 = vmatpush1.bf16.msra.mxu0 %v6380
      %9651 = vmatprep.subr.bf16.mxu0 %v6383
      %9652 = vmatpush1.bf16.msra.mxu0 %v6382
      %9653 = vmatprep.subr.bf16.mxu0 %v6385
      %9654 = vmatpush1.bf16.msra.mxu0 %v6384
      %9655 = vmatprep.subr.bf16.mxu0 %v6387
      %9656 = vmatpush1.bf16.msra.mxu0 %v6386
      %9657 = vmatprep.subr.bf16.mxu0 %v6389
      %9658 = vmatpush1.bf16.msra.mxu0 %v6388
      %9659 = vmatprep.subr.bf16.mxu0 %v6391
      %9660 = vmatpush1.bf16.msra.mxu0 %v6390
      %9661 = vmatprep.subr.bf16.mxu0 %v6393
      %9662 = vmatpush1.bf16.msra.mxu0 %v6392
      %9663 = vmatprep.subr.bf16.mxu0 %v6395
      %9664 = vmatpush1.bf16.msra.mxu0 %v6394
      %9665 = vmatprep.subr.bf16.mxu0 %v6397
      %9666 = vmatpush1.bf16.msra.mxu0 %v6396
      %9667 = vmatprep.subr.bf16.mxu0 %v6399
      %9668 = vmatpush1.bf16.msra.mxu0 %v6398
      %9669 = vmatprep.mubr.bf16.mxu0 %v2603
      %9670 = vmatmul.mubr.bf16.gmra.mrb[0].mxu0 %v2602
      %v9671 = vpop.f32.mrb[0].mxu0
      %v9672 = vadd.f32 %v9559, %v9671
      %v9673 = vpop.f32.mrb[0].mxu0
      %v9674 = vadd.f32 %v9561, %v9673
      %v9675 = vpop.f32.mrb[0].mxu0
      %v9676 = vadd.f32 %v9563, %v9675
      %v9677 = vpop.f32.mrb[0].mxu0
      %v9678 = vadd.f32 %v9565, %v9677
      %9679 = vmatprep.mubr.bf16.mxu0 %v2652
      %9680 = vmatmul.mubr.bf16.gmra.mrb[0].mxu0 %v2651
      %v9681 = vpop.f32.mrb[0].mxu0
      %v9682 = vadd.f32 %v9569, %v9681
      %v9683 = vpop.f32.mrb[0].mxu0
      %v9684 = vadd.f32 %v9571, %v9683
      %v9685 = vpop.f32.mrb[0].mxu0
      %v9686 = vadd.f32 %v9573, %v9685
      %v9687 = vpop.f32.mrb[0].mxu0
      %v9688 = vadd.f32 %v9575, %v9687
      %9689 = vmatprep.mubr.bf16.mxu0 %v2701
      %9690 = vmatmul.mubr.bf16.gmra.mrb[0].mxu0 %v2700
      %v9691 = vpop.f32.mrb[0].mxu0
      %v9692 = vadd.f32 %v9579, %v9691
      %v9693 = vpop.f32.mrb[0].mxu0
      %v9694 = vadd.f32 %v9581, %v9693
      %v9695 = vpop.f32.mrb[0].mxu0
      %v9696 = vadd.f32 %v9583, %v9695
      %v9697 = vpop.f32.mrb[0].mxu0
      %v9698 = vadd.f32 %v9585, %v9697
      %9699 = vmatprep.mubr.bf16.mxu0 %v2750
      %9700 = vmatmul.mubr.bf16.gmra.mrb[0].mxu0 %v2749
      %v9701 = vpop.f32.mrb[0].mxu0
      %v9702 = vadd.f32 %v9589, %v9701
      %v9703 = vpop.f32.mrb[0].mxu0
      %v9704 = vadd.f32 %v9591, %v9703
      %v9705 = vpop.f32.mrb[0].mxu0
      %v9706 = vadd.f32 %v9593, %v9705
      %v9707 = vpop.f32.mrb[0].mxu0
      %v9708 = vadd.f32 %v9595, %v9707
      %9709 = vmatprep.mubr.bf16.mxu0 %v2799
      %9710 = vmatmul.mubr.bf16.gmra.mrb[0].mxu0 %v2798
      %v9711 = vpop.f32.mrb[0].mxu0
      %v9712 = vadd.f32 %v9599, %v9711
      %v9713 = vpop.f32.mrb[0].mxu0
      %v9714 = vadd.f32 %v9601, %v9713
      %v9715 = vpop.f32.mrb[0].mxu0
      %v9716 = vadd.f32 %v9603, %v9715
      %v9717 = vpop.f32.mrb[0].mxu0
      %v9718 = vadd.f32 %v9605, %v9717
      %9719 = vmatprep.mubr.bf16.mxu0 %v2848
      %9720 = vmatmul.mubr.bf16.gmra.mrb[0].mxu0 %v2847
      %v9721 = vpop.f32.mrb[0].mxu0
      %v9722 = vadd.f32 %v9609, %v9721
      %v9723 = vpop.f32.mrb[0].mxu0
      %v9724 = vadd.f32 %v9611, %v9723
      %v9725 = vpop.f32.mrb[0].mxu0
      %v9726 = vadd.f32 %v9613, %v9725
      %v9727 = vpop.f32.mrb[0].mxu0
      %v9728 = vadd.f32 %v9615, %v9727
      %9729 = vmatprep.mubr.bf16.mxu0 %v2897
      %9730 = vmatmul.mubr.bf16.gmra.mrb[0].mxu0 %v2896
      %v9731 = vpop.f32.mrb[0].mxu0
      %v9732 = vadd.f32 %v9619, %v9731
      %v9733 = vpop.f32.mrb[0].mxu0
      %v9734 = vadd.f32 %v9621, %v9733
      %v9735 = vpop.f32.mrb[0].mxu0
      %v9736 = vadd.f32 %v9623, %v9735
      %v9737 = vpop.f32.mrb[0].mxu0
      %v9738 = vadd.f32 %v9625, %v9737
      %9739 = vmatprep.mubr.bf16.mxu0 %v2946
      %9740 = vmatmul.mubr.bf16.gmra.mrb[0].mxu0 %v2945
      %v9741 = vpop.f32.mrb[0].mxu0
      %v9742 = vadd.f32 %v9629, %v9741
      %v9743 = vpop.f32.mrb[0].mxu0
      %v9744 = vadd.f32 %v9631, %v9743
      %v9745 = vpop.f32.mrb[0].mxu0
      %v9746 = vadd.f32 %v9633, %v9745
      %v9747 = vpop.f32.mrb[0].mxu0
      %v9748 = vadd.f32 %v9635, %v9747
      %9749 = vdwg.mxu0
      %9750 = vmatprep.subr.bf16.mxu0 %v6401
      %9751 = vmatpush1.bf16.msra.mxu0 %v6400
      %9752 = vmatprep.subr.bf16.mxu0 %v6403
      %9753 = vmatpush1.bf16.msra.mxu0 %v6402
      %9754 = vmatprep.subr.bf16.mxu0 %v6405
      %9755 = vmatpush1.bf16.msra.mxu0 %v6404
      %9756 = vmatprep.subr.bf16.mxu0 %v6407
      %9757 = vmatpush1.bf16.msra.mxu0 %v6406
      %9758 = vmatprep.subr.bf16.mxu0 %v6409
      %9759 = vmatpush1.bf16.msra.mxu0 %v6408
      %9760 = vmatprep.subr.bf16.mxu0 %v6411
      %9761 = vmatpush1.bf16.msra.mxu0 %v6410
      %9762 = vmatprep.subr.bf16.mxu0 %v6413
      %9763 = vmatpush1.bf16.msra.mxu0 %v6412
      %9764 = vmatprep.subr.bf16.mxu0 %v6415
      %9765 = vmatpush1.bf16.msra.mxu0 %v6414
      %9766 = vmatprep.subr.bf16.mxu0 %v6417
      %9767 = vmatpush1.bf16.msra.mxu0 %v6416
      %9768 = vmatprep.subr.bf16.mxu0 %v6419
      %9769 = vmatpush1.bf16.msra.mxu0 %v6418
      %9770 = vmatprep.subr.bf16.mxu0 %v6421
      %9771 = vmatpush1.bf16.msra.mxu0 %v6420
      %9772 = vmatprep.subr.bf16.mxu0 %v6423
      %9773 = vmatpush1.bf16.msra.mxu0 %v6422
      %9774 = vmatprep.subr.bf16.mxu0 %v6425
      %9775 = vmatpush1.bf16.msra.mxu0 %v6424
      %9776 = vmatprep.subr.bf16.mxu0 %v6427
      %9777 = vmatpush1.bf16.msra.mxu0 %v6426
      %9778 = vmatprep.subr.bf16.mxu0 %v6429
      %9779 = vmatpush1.bf16.msra.mxu0 %v6428
      %9780 = vmatprep.subr.bf16.mxu0 %v6431
      %9781 = vmatpush1.bf16.msra.mxu0 %v6430
      %9782 = vmatprep.mubr.bf16.mxu0 %v2605
      %9783 = vmatmul.mubr.bf16.gmra.mrb[0].mxu0 %v2604
      %v9784 = vpop.f32.mrb[0].mxu0
      %v9785 = vadd.f32 %v9672, %v9784
      %v9786 = vpop.f32.mrb[0].mxu0
      %v9787 = vadd.f32 %v9674, %v9786
      %v9788 = vpop.f32.mrb[0].mxu0
      %v9789 = vadd.f32 %v9676, %v9788
      %v9790 = vpop.f32.mrb[0].mxu0
      %v9791 = vadd.f32 %v9678, %v9790
      %9792 = vmatprep.mubr.bf16.mxu0 %v2654
      %9793 = vmatmul.mubr.bf16.gmra.mrb[0].mxu0 %v2653
      %v9794 = vpop.f32.mrb[0].mxu0
      %v9795 = vadd.f32 %v9682, %v9794
      %v9796 = vpop.f32.mrb[0].mxu0
      %v9797 = vadd.f32 %v9684, %v9796
      %v9798 = vpop.f32.mrb[0].mxu0
      %v9799 = vadd.f32 %v9686, %v9798
      %v9800 = vpop.f32.mrb[0].mxu0
      %v9801 = vadd.f32 %v9688, %v9800
      %9802 = vmatprep.mubr.bf16.mxu0 %v2703
      %9803 = vmatmul.mubr.bf16.gmra.mrb[0].mxu0 %v2702
      %v9804 = vpop.f32.mrb[0].mxu0
      %v9805 = vadd.f32 %v9692, %v9804
      %v9806 = vpop.f32.mrb[0].mxu0
      %v9807 = vadd.f32 %v9694, %v9806
      %v9808 = vpop.f32.mrb[0].mxu0
      %v9809 = vadd.f32 %v9696, %v9808
      %v9810 = vpop.f32.mrb[0].mxu0
      %v9811 = vadd.f32 %v9698, %v9810
      %9812 = vmatprep.mubr.bf16.mxu0 %v2752
      %9813 = vmatmul.mubr.bf16.gmra.mrb[0].mxu0 %v2751
      %v9814 = vpop.f32.mrb[0].mxu0
      %v9815 = vadd.f32 %v9702, %v9814
      %v9816 = vpop.f32.mrb[0].mxu0
      %v9817 = vadd.f32 %v9704, %v9816
      %v9818 = vpop.f32.mrb[0].mxu0
      %v9819 = vadd.f32 %v9706, %v9818
      %v9820 = vpop.f32.mrb[0].mxu0
      %v9821 = vadd.f32 %v9708, %v9820
      %9822 = vmatprep.mubr.bf16.mxu0 %v2801
      %9823 = vmatmul.mubr.bf16.gmra.mrb[0].mxu0 %v2800
      %v9824 = vpop.f32.mrb[0].mxu0
      %v9825 = vadd.f32 %v9712, %v9824
      %v9826 = vpop.f32.mrb[0].mxu0
      %v9827 = vadd.f32 %v9714, %v9826
      %v9828 = vpop.f32.mrb[0].mxu0
      %v9829 = vadd.f32 %v9716, %v9828
      %v9830 = vpop.f32.mrb[0].mxu0
      %v9831 = vadd.f32 %v9718, %v9830
      %9832 = vmatprep.mubr.bf16.mxu0 %v2850
      %9833 = vmatmul.mubr.bf16.gmra.mrb[0].mxu0 %v2849
      %v9834 = vpop.f32.mrb[0].mxu0
      %v9835 = vadd.f32 %v9722, %v9834
      %v9836 = vpop.f32.mrb[0].mxu0
      %v9837 = vadd.f32 %v9724, %v9836
      %v9838 = vpop.f32.mrb[0].mxu0
      %v9839 = vadd.f32 %v9726, %v9838
      %v9840 = vpop.f32.mrb[0].mxu0
      %v9841 = vadd.f32 %v9728, %v9840
      %9842 = vmatprep.mubr.bf16.mxu0 %v2899
      %9843 = vmatmul.mubr.bf16.gmra.mrb[0].mxu0 %v2898
      %v9844 = vpop.f32.mrb[0].mxu0
      %v9845 = vadd.f32 %v9732, %v9844
      %v9846 = vpop.f32.mrb[0].mxu0
      %v9847 = vadd.f32 %v9734, %v9846
      %v9848 = vpop.f32.mrb[0].mxu0
      %v9849 = vadd.f32 %v9736, %v9848
      %v9850 = vpop.f32.mrb[0].mxu0
      %v9851 = vadd.f32 %v9738, %v9850
      %9852 = vmatprep.mubr.bf16.mxu0 %v2948
      %9853 = vmatmul.mubr.bf16.gmra.mrb[0].mxu0 %v2947
      %v9854 = vpop.f32.mrb[0].mxu0
      %v9855 = vadd.f32 %v9742, %v9854
      %v9856 = vpop.f32.mrb[0].mxu0
      %v9857 = vadd.f32 %v9744, %v9856
      %v9858 = vpop.f32.mrb[0].mxu0
      %v9859 = vadd.f32 %v9746, %v9858
      %v9860 = vpop.f32.mrb[0].mxu0
      %v9861 = vadd.f32 %v9748, %v9860
      %9862 = vdwg.mxu0
      %9863 = vmatprep.subr.bf16.mxu0 %v6433
      %9864 = vmatpush1.bf16.msra.mxu0 %v6432
      %9865 = vmatprep.subr.bf16.mxu0 %v6435
      %9866 = vmatpush1.bf16.msra.mxu0 %v6434
      %9867 = vmatprep.subr.bf16.mxu0 %v6437
      %9868 = vmatpush1.bf16.msra.mxu0 %v6436
      %9869 = vmatprep.subr.bf16.mxu0 %v6439
      %9870 = vmatpush1.bf16.msra.mxu0 %v6438
      %9871 = vmatprep.subr.bf16.mxu0 %v6441
      %9872 = vmatpush1.bf16.msra.mxu0 %v6440
      %9873 = vmatprep.subr.bf16.mxu0 %v6443
      %9874 = vmatpush1.bf16.msra.mxu0 %v6442
      %9875 = vmatprep.subr.bf16.mxu0 %v6445
      %9876 = vmatpush1.bf16.msra.mxu0 %v6444
      %9877 = vmatprep.subr.bf16.mxu0 %v6447
      %9878 = vmatpush1.bf16.msra.mxu0 %v6446
      %9879 = vmatprep.subr.bf16.mxu0 %v6449
      %9880 = vmatpush1.bf16.msra.mxu0 %v6448
      %9881 = vmatprep.subr.bf16.mxu0 %v6451
      %9882 = vmatpush1.bf16.msra.mxu0 %v6450
      %9883 = vmatprep.subr.bf16.mxu0 %v6453
      %9884 = vmatpush1.bf16.msra.mxu0 %v6452
      %9885 = vmatprep.subr.bf16.mxu0 %v6455
      %9886 = vmatpush1.bf16.msra.mxu0 %v6454
      %9887 = vmatprep.subr.bf16.mxu0 %v6457
      %9888 = vmatpush1.bf16.msra.mxu0 %v6456
      %9889 = vmatprep.subr.bf16.mxu0 %v6459
      %9890 = vmatpush1.bf16.msra.mxu0 %v6458
      %9891 = vmatprep.subr.bf16.mxu0 %v6461
      %9892 = vmatpush1.bf16.msra.mxu0 %v6460
      %9893 = vmatprep.subr.bf16.mxu0 %v6463
      %9894 = vmatpush1.bf16.msra.mxu0 %v6462
      %9895 = vmatprep.mubr.bf16.mxu0 %v2607
      %9896 = vmatmul.mubr.bf16.gmra.mrb[0].mxu0 %v2606
      %v9897 = vpop.f32.mrb[0].mxu0
      %v9898 = vadd.f32 %v9785, %v9897
      %v9899 = vpop.f32.mrb[0].mxu0
      %v9900 = vadd.f32 %v9787, %v9899
      %v9901 = vpop.f32.mrb[0].mxu0
      %v9902 = vadd.f32 %v9789, %v9901
      %v9903 = vpop.f32.mrb[0].mxu0
      %v9904 = vadd.f32 %v9791, %v9903
      %9905 = vmatprep.mubr.bf16.mxu0 %v2656
      %9906 = vmatmul.mubr.bf16.gmra.mrb[0].mxu0 %v2655
      %v9907 = vpop.f32.mrb[0].mxu0
      %v9908 = vadd.f32 %v9795, %v9907
      %v9909 = vpop.f32.mrb[0].mxu0
      %v9910 = vadd.f32 %v9797, %v9909
      %v9911 = vpop.f32.mrb[0].mxu0
      %v9912 = vadd.f32 %v9799, %v9911
      %v9913 = vpop.f32.mrb[0].mxu0
      %v9914 = vadd.f32 %v9801, %v9913
      %9915 = vmatprep.mubr.bf16.mxu0 %v2705
      %9916 = vmatmul.mubr.bf16.gmra.mrb[0].mxu0 %v2704
      %v9917 = vpop.f32.mrb[0].mxu0
      %v9918 = vadd.f32 %v9805, %v9917
      %v9919 = vpop.f32.mrb[0].mxu0
      %v9920 = vadd.f32 %v9807, %v9919
      %v9921 = vpop.f32.mrb[0].mxu0
      %v9922 = vadd.f32 %v9809, %v9921
      %v9923 = vpop.f32.mrb[0].mxu0
      %v9924 = vadd.f32 %v9811, %v9923
      %9925 = vmatprep.mubr.bf16.mxu0 %v2754
      %9926 = vmatmul.mubr.bf16.gmra.mrb[0].mxu0 %v2753
      %v9927 = vpop.f32.mrb[0].mxu0
      %v9928 = vadd.f32 %v9815, %v9927
      %v9929 = vpop.f32.mrb[0].mxu0
      %v9930 = vadd.f32 %v9817, %v9929
      %v9931 = vpop.f32.mrb[0].mxu0
      %v9932 = vadd.f32 %v9819, %v9931
      %v9933 = vpop.f32.mrb[0].mxu0
      %v9934 = vadd.f32 %v9821, %v9933
      %9935 = vmatprep.mubr.bf16.mxu0 %v2803
      %9936 = vmatmul.mubr.bf16.gmra.mrb[0].mxu0 %v2802
      %v9937 = vpop.f32.mrb[0].mxu0
      %v9938 = vadd.f32 %v9825, %v9937
      %v9939 = vpop.f32.mrb[0].mxu0
      %v9940 = vadd.f32 %v9827, %v9939
      %v9941 = vpop.f32.mrb[0].mxu0
      %v9942 = vadd.f32 %v9829, %v9941
      %v9943 = vpop.f32.mrb[0].mxu0
      %v9944 = vadd.f32 %v9831, %v9943
      %9945 = vmatprep.mubr.bf16.mxu0 %v2852
      %9946 = vmatmul.mubr.bf16.gmra.mrb[0].mxu0 %v2851
      %v9947 = vpop.f32.mrb[0].mxu0
      %v9948 = vadd.f32 %v9835, %v9947
      %v9949 = vpop.f32.mrb[0].mxu0
      %v9950 = vadd.f32 %v9837, %v9949
      %v9951 = vpop.f32.mrb[0].mxu0
      %v9952 = vadd.f32 %v9839, %v9951
      %v9953 = vpop.f32.mrb[0].mxu0
      %v9954 = vadd.f32 %v9841, %v9953
      %9955 = vmatprep.mubr.bf16.mxu0 %v2901
      %9956 = vmatmul.mubr.bf16.gmra.mrb[0].mxu0 %v2900
      %v9957 = vpop.f32.mrb[0].mxu0
      %v9958 = vadd.f32 %v9845, %v9957
      %v9959 = vpop.f32.mrb[0].mxu0
      %v9960 = vadd.f32 %v9847, %v9959
      %v9961 = vpop.f32.mrb[0].mxu0
      %v9962 = vadd.f32 %v9849, %v9961
      %v9963 = vpop.f32.mrb[0].mxu0
      %v9964 = vadd.f32 %v9851, %v9963
      %9965 = vmatprep.mubr.bf16.mxu0 %v2950
      %9966 = vmatmul.mubr.bf16.gmra.mrb[0].mxu0 %v2949
      %v9967 = vpop.f32.mrb[0].mxu0
      %v9968 = vadd.f32 %v9855, %v9967
      %v9969 = vpop.f32.mrb[0].mxu0
      %v9970 = vadd.f32 %v9857, %v9969
      %v9971 = vpop.f32.mrb[0].mxu0
      %v9972 = vadd.f32 %v9859, %v9971
      %v9973 = vpop.f32.mrb[0].mxu0
      %v9974 = vadd.f32 %v9861, %v9973
      %9975 = vdwg.mxu0
      %9976 = vmatprep.subr.bf16.mxu0 %v6465
      %9977 = vmatpush1.bf16.msra.mxu0 %v6464
      %9978 = vmatprep.subr.bf16.mxu0 %v6467
      %9979 = vmatpush1.bf16.msra.mxu0 %v6466
      %9980 = vmatprep.subr.bf16.mxu0 %v6469
      %9981 = vmatpush1.bf16.msra.mxu0 %v6468
      %9982 = vmatprep.subr.bf16.mxu0 %v6471
      %9983 = vmatpush1.bf16.msra.mxu0 %v6470
      %9984 = vmatprep.subr.bf16.mxu0 %v6473
      %9985 = vmatpush1.bf16.msra.mxu0 %v6472
      %9986 = vmatprep.subr.bf16.mxu0 %v6475
      %9987 = vmatpush1.bf16.msra.mxu0 %v6474
      %9988 = vmatprep.subr.bf16.mxu0 %v6477
      %9989 = vmatpush1.bf16.msra.mxu0 %v6476
      %9990 = vmatprep.subr.bf16.mxu0 %v6479
      %9991 = vmatpush1.bf16.msra.mxu0 %v6478
      %9992 = vmatprep.subr.bf16.mxu0 0
      %9993 = vmatpush1.bf16.msra.mxu0 0
      %9994 = vmatprep.subr.bf16.mxu0 0
      %9995 = vmatpush1.bf16.msra.mxu0 0
      %9996 = vmatprep.subr.bf16.mxu0 0
      %9997 = vmatpush1.bf16.msra.mxu0 0
      %9998 = vmatprep.subr.bf16.mxu0 0
      %9999 = vmatpush1.bf16.msra.mxu0 0
      %10000 = vmatprep.subr.bf16.mxu0 0
      %10001 = vmatpush1.bf16.msra.mxu0 0
      %10002 = vmatprep.subr.bf16.mxu0 0
      %10003 = vmatpush1.bf16.msra.mxu0 0
      %10004 = vmatprep.subr.bf16.mxu0 0
      %10005 = vmatpush1.bf16.msra.mxu0 0
      %10006 = vmatprep.subr.bf16.mxu0 0
      %10007 = vmatpush1.bf16.msra.mxu0 0
      %10008 = vmatprep.mubr.bf16.mxu0 0
      %10009 = vmatmul.mubr.bf16.gmra.mrb[0].mxu0 %v2608
      %v10010 = vpop.f32.mrb[0].mxu0
      %v10011 = vadd.f32 %v9898, %v10010
      %v10012 = vpop.f32.mrb[0].mxu0
      %v10013 = vadd.f32 %v9900, %v10012
      %v10014 = vpop.f32.mrb[0].mxu0
      %v10015 = vadd.f32 %v9902, %v10014
      %v10016 = vpop.f32.mrb[0].mxu0
      %v10017 = vadd.f32 %v9904, %v10016
      %10018 = vmatprep.mubr.bf16.mxu0 0
      %10019 = vmatmul.mubr.bf16.gmra.mrb[0].mxu0 %v2657
      %v10020 = vpop.f32.mrb[0].mxu0
      %v10021 = vadd.f32 %v9908, %v10020
      %v10022 = vpop.f32.mrb[0].mxu0
      %v10023 = vadd.f32 %v9910, %v10022
      %v10024 = vpop.f32.mrb[0].mxu0
      %v10025 = vadd.f32 %v9912, %v10024
      %v10026 = vpop.f32.mrb[0].mxu0
      %v10027 = vadd.f32 %v9914, %v10026
      %10028 = vmatprep.mubr.bf16.mxu0 0
      %10029 = vmatmul.mubr.bf16.gmra.mrb[0].mxu0 %v2706
      %v10030 = vpop.f32.mrb[0].mxu0
      %v10031 = vadd.f32 %v9918, %v10030
      %v10032 = vpop.f32.mrb[0].mxu0
      %v10033 = vadd.f32 %v9920, %v10032
      %v10034 = vpop.f32.mrb[0].mxu0
      %v10035 = vadd.f32 %v9922, %v10034
      %v10036 = vpop.f32.mrb[0].mxu0
      %v10037 = vadd.f32 %v9924, %v10036
      %10038 = vmatprep.mubr.bf16.mxu0 0
      %10039 = vmatmul.mubr.bf16.gmra.mrb[0].mxu0 %v2755
      %v10040 = vpop.f32.mrb[0].mxu0
      %v10041 = vadd.f32 %v9928, %v10040
      %v10042 = vpop.f32.mrb[0].mxu0
      %v10043 = vadd.f32 %v9930, %v10042
      %v10044 = vpop.f32.mrb[0].mxu0
      %v10045 = vadd.f32 %v9932, %v10044
      %v10046 = vpop.f32.mrb[0].mxu0
      %v10047 = vadd.f32 %v9934, %v10046
      %10048 = vmatprep.mubr.bf16.mxu0 0
      %10049 = vmatmul.mubr.bf16.gmra.mrb[0].mxu0 %v2804
      %v10050 = vpop.f32.mrb[0].mxu0
      %v10051 = vadd.f32 %v9938, %v10050
      %v10052 = vpop.f32.mrb[0].mxu0
      %v10053 = vadd.f32 %v9940, %v10052
      %v10054 = vpop.f32.mrb[0].mxu0
      %v10055 = vadd.f32 %v9942, %v10054
      %v10056 = vpop.f32.mrb[0].mxu0
      %v10057 = vadd.f32 %v9944, %v10056
      %10058 = vmatprep.mubr.bf16.mxu0 0
      %10059 = vmatmul.mubr.bf16.gmra.mrb[0].mxu0 %v2853
      %v10060 = vpop.f32.mrb[0].mxu0
      %v10061 = vadd.f32 %v9948, %v10060
      %v10062 = vpop.f32.mrb[0].mxu0
      %v10063 = vadd.f32 %v9950, %v10062
      %v10064 = vpop.f32.mrb[0].mxu0
      %v10065 = vadd.f32 %v9952, %v10064
      %v10066 = vpop.f32.mrb[0].mxu0
      %v10067 = vadd.f32 %v9954, %v10066
      %10068 = vmatprep.mubr.bf16.mxu0 0
      %10069 = vmatmul.mubr.bf16.gmra.mrb[0].mxu0 %v2902
      %v10070 = vpop.f32.mrb[0].mxu0
      %v10071 = vadd.f32 %v9958, %v10070
      %v10072 = vpop.f32.mrb[0].mxu0
      %v10073 = vadd.f32 %v9960, %v10072
      %v10074 = vpop.f32.mrb[0].mxu0
      %v10075 = vadd.f32 %v9962, %v10074
      %v10076 = vpop.f32.mrb[0].mxu0
      %v10077 = vadd.f32 %v9964, %v10076
      %10078 = vmatprep.mubr.bf16.mxu0 0
      %10079 = vmatmul.mubr.bf16.gmra.mrb[0].mxu0 %v2951
      %v10080 = vpop.f32.mrb[0].mxu0
      %v10081 = vadd.f32 %v9968, %v10080
      %v10082 = vpop.f32.mrb[0].mxu0
      %v10083 = vadd.f32 %v9970, %v10082
      %v10084 = vpop.f32.mrb[0].mxu0
      %v10085 = vadd.f32 %v9972, %v10084
      %v10086 = vpop.f32.mrb[0].mxu0
      %v10087 = vadd.f32 %v9974, %v10086
      %10088 = vdwg.mxu0
      %10089 = vst [vmem:[%s177] sm:$0xff] %v10011
      %10090 = vst [vmem:[%s177 + $0x8] sm:$0xff] %v10013
      %10091 = vst [vmem:[%s177 + $0x10] sm:$0xff] %v10015
      %10092 = vst [vmem:[%s177 + $0x18] sm:$0xff] %v10017
      %10093 = vst [vmem:[%s177 + $0x20] sm:$0xff] %v10021
      %10094 = vst [vmem:[%s177 + $0x28] sm:$0xff] %v10023
      %10095 = vst [vmem:[%s177 + $0x30] sm:$0xff] %v10025
      %10096 = vst [vmem:[%s177 + $0x38] sm:$0xff] %v10027
      %10097 = vst [vmem:[%s177 + $0x40] sm:$0xff] %v10031
      %10098 = vst [vmem:[%s177 + $0x48] sm:$0xff] %v10033
      %10099 = vst [vmem:[%s177 + $0x50] sm:$0xff] %v10035
      %10100 = vst [vmem:[%s177 + $0x58] sm:$0xff] %v10037
      %10101 = vst [vmem:[%s177 + $0x60] sm:$0xff] %v10041
      %10102 = vst [vmem:[%s177 + $0x68] sm:$0xff] %v10043
      %10103 = vst [vmem:[%s177 + $0x70] sm:$0xff] %v10045
      %10104 = vst [vmem:[%s177 + $0x78] sm:$0xff] %v10047
      %10105 = vst [vmem:[%s177 + $0x80] sm:$0xff] %v10051
      %10106 = vst [vmem:[%s177 + $0x88] sm:$0xff] %v10053
      %10107 = vst [vmem:[%s177 + $0x90] sm:$0xff] %v10055
      %10108 = vst [vmem:[%s177 + $0x98] sm:$0xff] %v10057
      %10109 = vst [vmem:[%s177 + $0xa0] sm:$0xff] %v10061
      %10110 = vst [vmem:[%s177 + $0xa8] sm:$0xff] %v10063
      %10111 = vst [vmem:[%s177 + $0xb0] sm:$0xff] %v10065
      %10112 = vst [vmem:[%s177 + $0xb8] sm:$0xff] %v10067
      %10113 = vst [vmem:[%s177 + $0xc0] sm:$0xff] %v10071
      %10114 = vst [vmem:[%s177 + $0xc8] sm:$0xff] %v10073
      %10115 = vst [vmem:[%s177 + $0xd0] sm:$0xff] %v10075
      %10116 = vst [vmem:[%s177 + $0xd8] sm:$0xff] %v10077
      %10117 = vst [vmem:[%s177 + $0xe0] sm:$0xff] %v10081
      %10118 = vst [vmem:[%s177 + $0xe8] sm:$0xff] %v10083
      %10119 = vst [vmem:[%s177 + $0xf0] sm:$0xff] %v10085
      %10120 = vst [vmem:[%s177 + $0xf8] sm:$0xff] %v10087
      %s10121 = smul.u32 16, %s14
      %p10122 = scmp.lt.s32.totalorder %s10121, 31
      %s10123 = scalar_select %p10122, %s10121, 31
      %s10124 = smul.addr %s10123, 2
      %s10125 = smul.addr %s10124, 8
      %s10126 = scalar_lea.vmem %s3, %s10125
      // Predicated region
      $region33: #{model_forward.2} parent=31 // pred_check
        %p10127 = pneg %p100
      $region34: #{model_forward.2} parent=31 // pred_check_branch
        %10129 = sbr.rel (%p10127) target = $region36
      $region35: #{model_forward.2} parent=31 // pred_region
        %s10130 = smul.u32 16, %s14
      $region36: #{model_forward.2} parent=31 // pred_fallthru
        _
    $region32: #{model_forward.2} parent=5 // pred_fallthru
      _
    %p10131 = scmp.le.s32.totalorder 2, %s9
    // Predicated region
    $region37: #{model_forward.2} parent=5 // pred_check
      %p10132 = pneg %p10131
    $region38: #{model_forward.2} parent=5 // pred_check_branch
      %10134 = sbr.rel (%p10132) target = $region40
    $region39: #{model_forward.2} parent=5 // pred_region
      %s10135 = ssub.s32 %s9, 2
      // Predicated region
      $region41: #{model_forward.2} parent=39 // pred_check
        %p10136 = pneg %p106
      $region42: #{model_forward.2} parent=39 // pred_check_branch
        %10138 = sbr.rel (%p10136) target = $region44
      $region43: #{model_forward.2} parent=39 // pred_region
        %s10139 = smul.u32 16, %s15
        %p10140 = scmp.lt.s32.totalorder %s10139, 31
        %s10141 = scalar_select %p10140, %s10139, 31
        %s10142 = smul.addr %s10141, 2
        %s10143 = smul.addr %s10142, 8
        %s10144 = scalar_lea.vmem %s3, %s10143
      $region44: #{model_forward.2} parent=39 // pred_fallthru
        _
    $region40: #{model_forward.2} parent=5 // pred_fallthru
      _
  $region6: #{model_forward.2} parent=0 // loop_footer
    %s13 = sadd.s32 1, %s9
  $region7: #{model_forward.2} parent=0 // loop_footer_branch
    %8 = sbr.rel target = $region3
  $region8: #{model_forward.2} parent=0 // loop_exit
    _

</llo_original>
